<compile_context>
chip_gen: v6e
topology: v6e:2x2x1
jax: 0.10.0
libtpu: 0.0.40
codegen_flags: <defaults>
</compile_context>

<pallas_src>
import functools
import math

import jax
import jax.numpy as jnp
from jax.experimental import pallas as pl
from jax.experimental.pallas import tpu as pltpu


HIDDEN = 1024          # fc6 / fc7 width (fixed by the module: Linear(1024, ...))
CLS_OUT = 2            # predictor.cls_score output width
LANE = 128             # TPU lane width (output / reduction padding)
SUBLANE_BF16 = 16      # bf16 packs 16 sublanes per vreg
TK_MAX = 2048          # cap on the fc6 reduction tile
NO_TILE_MAX = 512      # up to this many rows: single batch block (w6 streamed once)
BM_CAP = 256           # batch block for very large batches (fills 256-wide MXU)


def _round_up(x, m):
    return (x + m - 1) // m * m


def _choose_tk(d_in_pad):
    """Largest 128-aligned divisor of d_in_pad, capped at TK_MAX (zero pad bytes)."""
    m = d_in_pad // LANE
    best = 1
    for d in range(1, min(m, TK_MAX // LANE) + 1):
        if m % d == 0:
            best = d
    return best * LANE


# ---------------------------------------------------------------------------
# Kernel
# ---------------------------------------------------------------------------
def _reid_kernel(x_ref, w6_ref, b6_ref, w7_ref, b7_ref, wo_ref, bo_ref,
                 out_ref, acc_ref):
    """Grid = (batch blocks [parallel], fc6 K blocks [arbitrary]).

    Streams w6 in (tk, 1024) tiles, accumulating fc6 into an f32 scratch
    seeded with the fc6 bias; on the last K step applies ReLU, fc7 + ReLU and
    the fused [cls_score | additional_layer] projection.
    """
    k = pl.program_id(1)

    @pl.when(k == 0)
    def _():
        # Seed the accumulator with the broadcast fc6 bias (saves a VPU add in
        # the serialized epilogue).
        acc_ref[...] = jnp.broadcast_to(b6_ref[...], acc_ref.shape)

    # Partial fc6: (bm, tk) @ (tk, 1024), bf16 x bf16 -> f32 accumulate.
    # x may arrive as f32 (no-copy path) -> cast to bf16 on the VPU here.
    acc_ref[...] += jnp.dot(x_ref[...].astype(jnp.bfloat16), w6_ref[...],
                            preferred_element_type=jnp.float32)

    @pl.when(k == pl.num_programs(1) - 1)
    def _():
        h = jnp.maximum(acc_ref[...], 0.0)                         # fc6 ReLU
        h = jnp.dot(h.astype(jnp.bfloat16), w7_ref[...],
                    preferred_element_type=jnp.float32)
        h = jnp.maximum(h + b7_ref[...], 0.0)                      # fc7 + ReLU
        o = jnp.dot(h.astype(jnp.bfloat16), wo_ref[...],
                    preferred_element_type=jnp.float32) + bo_ref[...]
        out_ref[...] = o.astype(out_ref.dtype)


# ---------------------------------------------------------------------------
# One-time weight preparation (fusion, padding, bf16 cast, tile selection) —
# hoisted out of the per-call forward path and cached by the caller per nways.
# ---------------------------------------------------------------------------
def prepare_weights(params, nways):
    d_in = params["w6"].shape[0]
    d_in_pad = _round_up(d_in, LANE)
    tk = _choose_tk(d_in_pad)
    assert d_in_pad % tk == 0

    if nways > 2:
        w_out = jnp.concatenate([params["w_cls"], params["w_add"][nways]], axis=1)
        b_out = jnp.concatenate([params["b_cls"], params["b_add"][nways]], axis=0)
        n_out = nways
    else:
        w_out, b_out = params["w_cls"], params["b_cls"]
        n_out = CLS_OUT
    o_pad = _round_up(max(n_out, LANE), LANE)

    w6 = jnp.zeros((d_in_pad, HIDDEN), jnp.bfloat16)
    w6 = w6.at[:d_in].set(params["w6"].astype(jnp.bfloat16))
    wo = jnp.zeros((HIDDEN, o_pad), jnp.bfloat16)
    wo = wo.at[:, :n_out].set(w_out.astype(jnp.bfloat16))
    bo = jnp.zeros((1, o_pad), jnp.float32).at[0, :n_out].set(b_out.astype(jnp.float32))

    return {
        "w6": w6,                                              # (d_in_pad, 1024) bf16
        "b6": params["b6"].reshape(1, HIDDEN).astype(jnp.float32),
        "w7": params["w7"].astype(jnp.bfloat16),               # (1024, 1024) bf16
        "b7": params["b7"].reshape(1, HIDDEN).astype(jnp.float32),
        "wo": wo,                                              # (1024, o_pad) bf16
        "bo": bo,                                              # (1, o_pad) f32
        "tk": tk,          # python int: fc6 K-tile (single source of truth)
        "n_out": n_out,    # python int
        "d_in": d_in,      # python int
    }


# ---------------------------------------------------------------------------
# Forward
# ---------------------------------------------------------------------------
@functools.partial(jax.jit, static_argnames=("tk", "n_out"))
def _reid_forward(x, w6, b6, w7, b7, wo, bo, *, tk, n_out):
    B = x.shape[0]
    d_in = math.prod(x.shape[1:])
    d_in_pad = w6.shape[0]
    o_pad = wo.shape[1]
    assert d_in <= d_in_pad and _round_up(d_in, LANE) == d_in_pad
    assert d_in_pad % tk == 0

    x_flat = x.reshape(B, d_in)                      # == torch.flatten(x, 1) on NCHW

    if B <= NO_TILE_MAX and d_in == d_in_pad:
        # No wrapper-side HBM copy at all: kernel streams raw f32 tiles and
        # casts to bf16 on the VPU (4 B/elem vs 8 B/elem for cast-then-read).
        x_in, bm, b_pad = x_flat, B, B
    elif B <= NO_TILE_MAX:
        # A copy is needed anyway (d_in pad) -> cast to bf16 and pad batch to
        # 16 rows for full bf16 sublane packing.
        b_pad = _round_up(B, SUBLANE_BF16)
        bm = b_pad
        x_in = jnp.pad(x_flat.astype(jnp.bfloat16),
                       ((0, b_pad - B), (0, d_in_pad - d_in)))
    else:
        # Very large batches: 256-row blocks (fills the 256-wide MXU, halves
        # w6 re-streaming vs 128-row blocks).
        bm = BM_CAP
        b_pad = _round_up(B, bm)
        x_in = jnp.pad(x_flat.astype(jnp.bfloat16),
                       ((0, b_pad - B), (0, d_in_pad - d_in)))

    grid = (b_pad // bm, d_in_pad // tk)             # reduction axis last

    out = pl.pallas_call(
        _reid_kernel,
        out_shape=jax.ShapeDtypeStruct((b_pad, o_pad), jnp.float32),
        grid_spec=pltpu.PrefetchScalarGridSpec(
            num_scalar_prefetch=0,
            grid=grid,
            in_specs=[
                pl.BlockSpec((bm, tk), lambda i, k: (i, k)),           # x tile (streamed)
                pl.BlockSpec((tk, HIDDEN), lambda i, k: (k, 0)),        # w6 tile (streamed)
                pl.BlockSpec((1, HIDDEN), lambda i, k: (0, 0)),         # b6 (resident)
                pl.BlockSpec((HIDDEN, HIDDEN), lambda i, k: (0, 0)),    # w7 (resident)
                pl.BlockSpec((1, HIDDEN), lambda i, k: (0, 0)),         # b7 (resident)
                pl.BlockSpec((HIDDEN, o_pad), lambda i, k: (0, 0)),     # wo (resident)
                pl.BlockSpec((1, o_pad), lambda i, k: (0, 0)),          # bo (resident)
            ],
            out_specs=pl.BlockSpec((bm, o_pad), lambda i, k: (i, 0)),
            scratch_shapes=[pltpu.VMEM((bm, HIDDEN), jnp.float32)],     # fc6 accumulator
        ),
        compiler_params=pltpu.CompilerParams(
            dimension_semantics=("parallel", "arbitrary"),
            vmem_limit_bytes=32 << 20,
        ),
    )(x_in, w6, b6, w7, b7, wo, bo)

    return out[:B, :n_out]


def reid_model_forward(x, prep):
    """x: (B, C, H, W) NCHW f32.  Returns (B, n_out) f32."""
    return _reid_forward(x, prep["w6"], prep["b6"], prep["w7"], prep["b7"],
                         prep["wo"], prep["bo"], tk=prep["tk"], n_out=prep["n_out"])


# ---------------------------------------------------------------------------
# Synthetic params + references
# ---------------------------------------------------------------------------
def init_params(key, d_in, n_list):
    """Deterministic synthetic init matching the module's parameter shapes (f32)."""
    ks = jax.random.split(key, 8)
    s = 0.02
    params = {
        "w6": s * jax.random.normal(ks[0], (d_in, HIDDEN), jnp.float32),
        "b6": s * jax.random.normal(ks[1], (HIDDEN,), jnp.float32),
        "w7": s * jax.random.normal(ks[2], (HIDDEN, HIDDEN), jnp.float32),
        "b7": s * jax.random.normal(ks[3], (HIDDEN,), jnp.float32),
        "w_cls": s * jax.random.normal(ks[4], (HIDDEN, CLS_OUT), jnp.float32),
        "b_cls": s * jax.random.normal(ks[5], (CLS_OUT,), jnp.float32),
        "w_add": {},
        "b_add": {},
    }
    kadd = jax.random.split(ks[6], 2 * max(len(n_list), 1))
    for j, n in enumerate(n_list):
        if n > 2:
            params["w_add"][n] = s * jax.random.normal(
                kadd[2 * j], (HIDDEN, n - 2), jnp.float32)
            params["b_add"][n] = s * jax.random.normal(
                kadd[2 * j + 1], (n - 2,), jnp.float32)
    return params


def _reference_mixed(x, prep):
    """Pure-JAX reference with the SAME bf16 weights the kernel uses."""
    B = x.shape[0]
    d_in_pad = prep["w6"].shape[0]
    f = x.reshape(B, -1).astype(jnp.bfloat16)
    f = jnp.pad(f, ((0, 0), (0, d_in_pad - f.shape[1])))
    h = jnp.dot(f, prep["w6"], preferred_element_type=jnp.float32)
    h = jnp.maximum(h + prep["b6"], 0.0)
    h = jnp.dot(h.astype(jnp.bfloat16), prep["w7"], preferred_element_type=jnp.float32)
    h = jnp.maximum(h + prep["b7"], 0.0)
    o = jnp.dot(h.astype(jnp.bfloat16), prep["wo"], preferred_element_type=jnp.float32)
    return (o + prep["bo"])[:, :prep["n_out"]]


def _reference_f32(x, params, nways):
    """Full-f32 reference of the PyTorch forward (sanity check for bf16 drift)."""
    B = x.shape[0]
    feat = x.reshape(B, -1)
    feat = jnp.maximum(feat @ params["w6"] + params["b6"], 0.0)
    feat = jnp.maximum(feat @ params["w7"] + params["b7"], 0.0)
    out = feat @ params["w_cls"] + params["b_cls"]
    if nways > 2:
        add = feat @ params["w_add"][nways] + params["b_add"][nways]
        out = jnp.concatenate([out, add], axis=1)
    return out


if __name__ == "__main__":
    key = jax.random.PRNGKey(0)
    kx1, kp1, kx2, kp2 = jax.random.split(key, 4)

    # ---- Test 1: nways=5, 128-aligned d_in, tiny batch (no-copy f32 path) ----
    B, C, H, W = 2, 4, 16, 16                        # d_in = 1024, tk = 1024
    x = jax.random.normal(kx1, (B, C, H, W), jnp.float32)
    params = init_params(kp1, C * H * W, (5,))
    prep = prepare_weights(params, 5)                # fuses cls_score + additional_layer[5]

    out = jax.block_until_ready(reid_model_forward(x, prep))
    assert out.shape == (B, 5), out.shape

    ref_mixed = _reference_mixed(x, prep)
    assert jnp.allclose(out, ref_mixed, atol=5e-3, rtol=1e-2), (
        float(jnp.max(jnp.abs(out - ref_mixed))))
    ref_f32 = _reference_f32(x, params, 5)
    assert jnp.allclose(out, ref_f32, atol=5e-2, rtol=5e-2), (
        float(jnp.max(jnp.abs(out - ref_f32))))

    # ---- Test 2: nways=2, unaligned d_in (pad+bf16 path), multi-K accumulation ----
    B2, C2, H2, W2 = 10, 5, 23, 23                   # d_in = 2645 -> pad 2688, tk = 896 (3 K steps)
    x2 = jax.random.normal(kx2, (B2, C2, H2, W2), jnp.float32)
    params2 = init_params(kp2, C2 * H2 * W2, (2,))
    prep2 = prepare_weights(params2, 2)

    out2 = jax.block_until_ready(reid_model_forward(x2, prep2))
    assert out2.shape == (B2, 2), out2.shape

    ref_mixed2 = _reference_mixed(x2, prep2)
    assert jnp.allclose(out2, ref_mixed2, atol=5e-3, rtol=1e-2), (
        float(jnp.max(jnp.abs(out2 - ref_mixed2))))
    ref_f32_2 = _reference_f32(x2, params2, 2)
    assert jnp.allclose(out2, ref_f32_2, atol=5e-2, rtol=5e-2), (
        float(jnp.max(jnp.abs(out2 - ref_f32_2))))

    print("KERNEL_OK")
</pallas_src>

<mosaic_0001>
module attributes {stable_mosaic.version = 11 : i64} {
  func.func @_reid_kernel(%arg0: i32, %arg1: i32, %arg2: memref<2x1024xf32, #tpu.memory_space<vmem>>, %arg3: memref<1024x1024xbf16, #tpu.memory_space<vmem>>, %arg4: memref<1x1024xf32, #tpu.memory_space<vmem>>, %arg5: memref<1024x1024xbf16, #tpu.memory_space<vmem>>, %arg6: memref<1x1024xf32, #tpu.memory_space<vmem>>, %arg7: memref<1024x128xbf16, #tpu.memory_space<vmem>>, %arg8: memref<1x128xf32, #tpu.memory_space<vmem>>, %arg9: memref<2x128xf32, #tpu.memory_space<vmem>>, %arg10: memref<2x1024xf32, #tpu.memory_space<vmem>>) attributes {dimension_semantics = [#tpu.dimension_semantics<parallel>, #tpu.dimension_semantics<arbitrary>], iteration_bounds = array<i64: 1, 1>, scalar_prefetch = 0 : i64, scratch_operands = 1 : i64, tpu.core_type = #tpu.core_type<tc>, window_params = [{transform_indices = @transform_0, window_bounds = array<i64: 2, 1024>}, {transform_indices = @transform_1, window_bounds = array<i64: 1024, 1024>}, {pipeline_mode = #tpu.pipeline_mode<synchronous>, transform_indices = @transform_2, window_bounds = array<i64: 1, 1024>}, {pipeline_mode = #tpu.pipeline_mode<synchronous>, transform_indices = @transform_3, window_bounds = array<i64: 1024, 1024>}, {pipeline_mode = #tpu.pipeline_mode<synchronous>, transform_indices = @transform_4, window_bounds = array<i64: 1, 1024>}, {pipeline_mode = #tpu.pipeline_mode<synchronous>, transform_indices = @transform_5, window_bounds = array<i64: 1024, 128>}, {pipeline_mode = #tpu.pipeline_mode<synchronous>, transform_indices = @transform_6, window_bounds = array<i64: 1, 128>}, {transform_indices = @transform_7, window_bounds = array<i64: 2, 128>}]} {
    %c0_i32 = arith.constant 0 : i32
    %0 = arith.cmpi eq, %arg1, %c0_i32 : i32
    %1 = arith.extui %0 : i1 to i32
    %c0_i32_0 = arith.constant 0 : i32
    %2 = arith.cmpi ne, %1, %c0_i32_0 : i32
    scf.if %2 {
      %c0_10 = arith.constant 0 : index
      %c0_11 = arith.constant 0 : index
      %13 = vector.load %arg4[%c0_10, %c0_11] : memref<1x1024xf32, #tpu.memory_space<vmem>>, vector<1x1024xf32>
      %14 = vector.shape_cast %13 : vector<1x1024xf32> to vector<1x1024xf32>
      %15 = vector.broadcast %14 : vector<1x1024xf32> to vector<2x1024xf32>
      %c0_12 = arith.constant 0 : index
      %c0_13 = arith.constant 0 : index
      %16 = vector.load %arg10[%c0_12, %c0_13] : memref<2x1024xf32, #tpu.memory_space<vmem>>, vector<2x1024xf32>
      tpu.vector_store %arg10[%c0_12, %c0_13], %15 {strides = array<i32>} : memref<2x1024xf32, #tpu.memory_space<vmem>>, vector<2x1024xf32>,
    } else {
    }
    %c0 = arith.constant 0 : index
    %c0_1 = arith.constant 0 : index
    %3 = vector.load %arg10[%c0, %c0_1] : memref<2x1024xf32, #tpu.memory_space<vmem>>, vector<2x1024xf32>
    %c0_2 = arith.constant 0 : index
    %c0_3 = arith.constant 0 : index
    %4 = vector.load %arg2[%c0_2, %c0_3] : memref<2x1024xf32, #tpu.memory_space<vmem>>, vector<2x1024xf32>
    %5 = arith.truncf %4 : vector<2x1024xf32> to vector<2x1024xbf16>
    %c0_4 = arith.constant 0 : index
    %c0_5 = arith.constant 0 : index
    %6 = vector.load %arg3[%c0_4, %c0_5] : memref<1024x1024xbf16, #tpu.memory_space<vmem>>, vector<1024x1024xbf16>
    %cst = arith.constant dense<0.000000e+00> : vector<2x1024xf32>
    %7 = tpu.matmul %5, %6, %cst {dimension_numbers = #tpu.dot_dimension_numbers<[1], [0], [0], [1], [0, 0, 1, 1], [], []>} : vector<2x1024xbf16>, vector<1024x1024xbf16>, vector<2x1024xf32> -> vector<2x1024xf32>
    %8 = arith.addf %3, %7 : vector<2x1024xf32>
    %c0_6 = arith.constant 0 : index
    %c0_7 = arith.constant 0 : index
    %9 = vector.load %arg10[%c0_6, %c0_7] : memref<2x1024xf32, #tpu.memory_space<vmem>>, vector<2x1024xf32>
    tpu.vector_store %arg10[%c0_6, %c0_7], %8 {strides = array<i32>} : memref<2x1024xf32, #tpu.memory_space<vmem>>, vector<2x1024xf32>,
    %c0_i32_8 = arith.constant 0 : i32
    %10 = arith.cmpi eq, %arg1, %c0_i32_8 : i32
    %11 = arith.extui %10 : i1 to i32
    %c0_i32_9 = arith.constant 0 : i32
    %12 = arith.cmpi ne, %11, %c0_i32_9 : i32
    scf.if %12 {
      %c0_10 = arith.constant 0 : index
      %c0_11 = arith.constant 0 : index
      %13 = vector.load %arg10[%c0_10, %c0_11] : memref<2x1024xf32, #tpu.memory_space<vmem>>, vector<2x1024xf32>
      %cst_12 = arith.constant 0.000000e+00 : f32
      %14 = vector.broadcast %cst_12 : f32 to vector<2x1024xf32>
      %15 = arith.maximumf %13, %14 : vector<2x1024xf32>
      %16 = arith.truncf %15 : vector<2x1024xf32> to vector<2x1024xbf16>
      %c0_13 = arith.constant 0 : index
      %c0_14 = arith.constant 0 : index
      %17 = vector.load %arg5[%c0_13, %c0_14] : memref<1024x1024xbf16, #tpu.memory_space<vmem>>, vector<1024x1024xbf16>
      %cst_15 = arith.constant dense<0.000000e+00> : vector<2x1024xf32>
      %18 = tpu.matmul %16, %17, %cst_15 {dimension_numbers = #tpu.dot_dimension_numbers<[1], [0], [0], [1], [0, 0, 1, 1], [], []>} : vector<2x1024xbf16>, vector<1024x1024xbf16>, vector<2x1024xf32> -> vector<2x1024xf32>
      %c0_16 = arith.constant 0 : index
      %c0_17 = arith.constant 0 : index
      %19 = vector.load %arg6[%c0_16, %c0_17] : memref<1x1024xf32, #tpu.memory_space<vmem>>, vector<1x1024xf32>
      %20 = vector.broadcast %19 : vector<1x1024xf32> to vector<2x1024xf32>
      %21 = arith.addf %18, %20 : vector<2x1024xf32>
      %cst_18 = arith.constant 0.000000e+00 : f32
      %22 = vector.broadcast %cst_18 : f32 to vector<2x1024xf32>
      %23 = arith.maximumf %21, %22 : vector<2x1024xf32>
      %24 = arith.truncf %23 : vector<2x1024xf32> to vector<2x1024xbf16>
      %c0_19 = arith.constant 0 : index
      %c0_20 = arith.constant 0 : index
      %25 = vector.load %arg7[%c0_19, %c0_20] : memref<1024x128xbf16, #tpu.memory_space<vmem>>, vector<1024x128xbf16>
      %cst_21 = arith.constant dense<0.000000e+00> : vector<2x128xf32>
      %26 = tpu.matmul %24, %25, %cst_21 {dimension_numbers = #tpu.dot_dimension_numbers<[1], [0], [0], [1], [0, 0, 1, 1], [], []>} : vector<2x1024xbf16>, vector<1024x128xbf16>, vector<2x128xf32> -> vector<2x128xf32>
      %c0_22 = arith.constant 0 : index
      %c0_23 = arith.constant 0 : index
      %27 = vector.load %arg8[%c0_22, %c0_23] : memref<1x128xf32, #tpu.memory_space<vmem>>, vector<1x128xf32>
      %28 = vector.broadcast %27 : vector<1x128xf32> to vector<2x128xf32>
      %29 = arith.addf %26, %28 : vector<2x128xf32>
      %c0_24 = arith.constant 0 : index
      %c0_25 = arith.constant 0 : index
      %30 = vector.load %arg9[%c0_24, %c0_25] : memref<2x128xf32, #tpu.memory_space<vmem>>, vector<2x128xf32>
      tpu.vector_store %arg9[%c0_24, %c0_25], %29 {strides = array<i32>} : memref<2x128xf32, #tpu.memory_space<vmem>>, vector<2x128xf32>,
    } else {
    }
    return
  }
  func.func @transform_0(%arg0: i32, %arg1: i32) -> (i32, i32) {
    %c0_i32 = arith.constant 0 : i32
    return %arg0, %arg1 : i32, i32
  }
  func.func @transform_1(%arg0: i32, %arg1: i32) -> (i32, i32) {
    %c0_i32 = arith.constant 0 : i32
    %c0_i32_0 = arith.constant 0 : i32
    return %arg1, %c0_i32 : i32, i32
  }
  func.func @transform_2(%arg0: i32, %arg1: i32) -> (i32, i32) {
    %c0_i32 = arith.constant 0 : i32
    %c0_i32_0 = arith.constant 0 : i32
    %c0_i32_1 = arith.constant 0 : i32
    return %c0_i32, %c0_i32_0 : i32, i32
  }
  func.func @transform_3(%arg0: i32, %arg1: i32) -> (i32, i32) {
    %c0_i32 = arith.constant 0 : i32
    %c0_i32_0 = arith.constant 0 : i32
    %c0_i32_1 = arith.constant 0 : i32
    return %c0_i32, %c0_i32_0 : i32, i32
  }
  func.func @transform_4(%arg0: i32, %arg1: i32) -> (i32, i32) {
    %c0_i32 = arith.constant 0 : i32
    %c0_i32_0 = arith.constant 0 : i32
    %c0_i32_1 = arith.constant 0 : i32
    return %c0_i32, %c0_i32_0 : i32, i32
  }
  func.func @transform_5(%arg0: i32, %arg1: i32) -> (i32, i32) {
    %c0_i32 = arith.constant 0 : i32
    %c0_i32_0 = arith.constant 0 : i32
    %c0_i32_1 = arith.constant 0 : i32
    return %c0_i32, %c0_i32_0 : i32, i32
  }
  func.func @transform_6(%arg0: i32, %arg1: i32) -> (i32, i32) {
    %c0_i32 = arith.constant 0 : i32
    %c0_i32_0 = arith.constant 0 : i32
    %c0_i32_1 = arith.constant 0 : i32
    return %c0_i32, %c0_i32_0 : i32, i32
  }
  func.func @transform_7(%arg0: i32, %arg1: i32) -> (i32, i32) {
    %c0_i32 = arith.constant 0 : i32
    %c0_i32_0 = arith.constant 0 : i32
    return %arg0, %c0_i32 : i32, i32
  }
}

</mosaic_0001>

<llo_original>
// kernel: _reid_forward.1
$region0: #{_reid_forward.1}
  #allocation0 [shape = 'u32[]', space=smem, size = 0x4, offset = 0x4, fixed_abs, tag = 'smem constant byte address 0x4 - core index']
  #allocation1 [shape = 'u32[144,128]{1,0:T(1,128)}', space=vmem, size = 0x12000, scoped, tag = 'internal scratch']
  #allocation2 [shape = 'f32[2,1024]{1,0:T(2,128)}', space=vmem, size = 0x2000, scoped, tag = 'scratch operand']
  %s0 = inlined_call_operand.vmem [shape: f32[2,1024], index: 0, kind: input, shape index: {}]
  %s1 = inlined_call_operand.hbm [shape: bf16[1024,1024], index: 1, kind: input, shape index: {}]
  %s2 = inlined_call_operand.hbm [shape: f32[1,1024], index: 2, kind: input, shape index: {}]
  %s3 = inlined_call_operand.hbm [shape: bf16[1024,1024], index: 3, kind: input, shape index: {}]
  %s4 = inlined_call_operand.hbm [shape: f32[1,1024], index: 4, kind: input, shape index: {}]
  %s5 = inlined_call_operand.hbm [shape: bf16[1024,128], index: 5, kind: input, shape index: {}]
  %s6 = inlined_call_operand.hbm [shape: f32[1,128], index: 6, kind: input, shape index: {}]
  %s7 = inlined_call_operand.hbm [shape: f32[2,128], index: 7, kind: output, shape index: {}]
  %s8 = sld [smem:[#allocation0]]
  $region70: #{_reid_forward.1} parent=0
    _
  %s10 = ssub.s32 1, %s8
  %s11 = scalar_select 0, %s10, %s8
  $region1: #{_reid_forward.1} parent=0
    #allocation3 [shape = 'u8[2097152]{0}', space=vmem, size = 0x200000, scoped, tag = 'input window, operand 1, single buffered']
    #allocation4 [shape = 's32[1]{0}', space=sflag, size = 0x4, scoped, tag = 'scoped memory for _reid_forward.1']
    #allocation5 [shape = 's32[1]{0}', space=sflag, size = 0x4, scoped, tag = 'scoped memory for _reid_forward.1']
    #allocation6 [shape = 'u8[4096]{0}', space=vmem, size = 0x1000, scoped, tag = 'input window, operand 2, single buffered']
    #allocation7 [shape = 's32[1]{0}', space=sflag, size = 0x4, scoped, tag = 'scoped memory for _reid_forward.1']
    #allocation8 [shape = 'u8[2097152]{0}', space=vmem, size = 0x200000, scoped, tag = 'input window, operand 3, single buffered']
    #allocation9 [shape = 'u8[4096]{0}', space=vmem, size = 0x1000, scoped, tag = 'input window, operand 4, single buffered']
    #allocation10 [shape = 's32[1]{0}', space=sflag, size = 0x4, scoped, tag = 'scoped memory for _reid_forward.1']
    #allocation11 [shape = 'u8[262144]{0}', space=vmem, size = 0x40000, scoped, tag = 'input window, operand 5, single buffered']
    #allocation12 [shape = 'u8[512]{0}', space=vmem, size = 0x400, scoped, tag = 'input window, operand 6, single buffered']
    #allocation13 [shape = 's32[1]{0}', space=sflag, size = 0x4, scoped, tag = 'scoped memory for _reid_forward.1']
    #allocation14 [shape = 'u8[1024]{0}', space=vmem, size = 0x400, scoped, tag = 'output window, operand 0, single buffered']
    %12 = vsyncpa [#allocation4], 0
    %13 = vsyncpa [#allocation7], 0
    %14 = vsyncpa [#allocation10], 0
    %15 = vsyncpa [#allocation13], 0
    %16 = vsyncpa [#allocation5], 0
    // Predicated region
    $region2: #{_reid_forward.1} parent=1 // pred_check
      _
    $region3: #{_reid_forward.1} parent=1 // pred_check_branch
      %18 = sbr.rel (0) target = $region5
    $region4: #{_reid_forward.1} parent=1 // pred_region
      _
    $region5: #{_reid_forward.1} parent=1 // pred_fallthru
      _
    // Predicated region
    $region6: #{_reid_forward.1} parent=1 // pred_check
      _
    $region7: #{_reid_forward.1} parent=1 // pred_check_branch
      %20 = sbr.rel (0) target = $region9
    $region8: #{_reid_forward.1} parent=1 // pred_region
      %s22 = ssub.s32 65536, 65536
      %23 = vsyncadd [#allocation4], %s22
      %s24 = sshll.u32 [#allocation3], 4
      %s25 = int_to_ptr.vmem [resolvable:$true] %s24
      %30 = dma.hbm_to_vmem [thread:$0]  %s1, 65536, %s25, [#allocation4], 512, 512, 32
    $region9: #{_reid_forward.1} parent=1 // pred_fallthru
      _
    // Predicated region
    $region10: #{_reid_forward.1} parent=1 // pred_check
      _
    $region11: #{_reid_forward.1} parent=1 // pred_check_branch
      %32 = sbr.rel (0) target = $region13
    $region12: #{_reid_forward.1} parent=1 // pred_region
      %s34 = ssub.s32 128, 128
      %35 = vsyncadd [#allocation7], %s34
      %s37 = sshll.u32 [#allocation6], 4
      %s38 = int_to_ptr.vmem [resolvable:$true] %s37
      %40 = dma.hbm_to_vmem [thread:$0]  %s2, 128, %s38, [#allocation7]
    $region13: #{_reid_forward.1} parent=1 // pred_fallthru
      _
    // Predicated region
    $region14: #{_reid_forward.1} parent=1 // pred_check
      _
    $region15: #{_reid_forward.1} parent=1 // pred_check_branch
      %42 = sbr.rel (0) target = $region17
    $region16: #{_reid_forward.1} parent=1 // pred_region
      %s44 = ssub.s32 65536, 65536
      %45 = vsyncadd [#allocation7], %s44
      %s46 = sshll.u32 [#allocation8], 4
      %s47 = int_to_ptr.vmem [resolvable:$true] %s46
      %52 = dma.hbm_to_vmem [thread:$0]  %s3, 65536, %s47, [#allocation7], 512, 512, 32
    $region17: #{_reid_forward.1} parent=1 // pred_fallthru
      _
    // Predicated region
    $region18: #{_reid_forward.1} parent=1 // pred_check
      _
    $region19: #{_reid_forward.1} parent=1 // pred_check_branch
      %54 = sbr.rel (0) target = $region21
    $region20: #{_reid_forward.1} parent=1 // pred_region
      %s56 = ssub.s32 128, 128
      %57 = vsyncadd [#allocation10], %s56
      %s59 = sshll.u32 [#allocation9], 4
      %s60 = int_to_ptr.vmem [resolvable:$true] %s59
      %62 = dma.hbm_to_vmem [thread:$0]  %s4, 128, %s60, [#allocation10]
    $region21: #{_reid_forward.1} parent=1 // pred_fallthru
      _
    // Predicated region
    $region22: #{_reid_forward.1} parent=1 // pred_check
      _
    $region23: #{_reid_forward.1} parent=1 // pred_check_branch
      %64 = sbr.rel (0) target = $region25
    $region24: #{_reid_forward.1} parent=1 // pred_region
      %s66 = ssub.s32 8192, 8192
      %67 = vsyncadd [#allocation10], %s66
      %s68 = sshll.u32 [#allocation11], 4
      %s69 = int_to_ptr.vmem [resolvable:$true] %s68
      %74 = dma.hbm_to_vmem [thread:$0]  %s5, 8192, %s69, [#allocation10], 64, 64, 4
    $region25: #{_reid_forward.1} parent=1 // pred_fallthru
      _
    // Predicated region
    $region26: #{_reid_forward.1} parent=1 // pred_check
      _
    $region27: #{_reid_forward.1} parent=1 // pred_check_branch
      %76 = sbr.rel (0) target = $region29
    $region28: #{_reid_forward.1} parent=1 // pred_region
      %s78 = ssub.s32 16, 16
      %79 = vsyncadd [#allocation13], %s78
      %s81 = sshll.u32 [#allocation12], 4
      %s82 = int_to_ptr.vmem [resolvable:$true] %s81
      %84 = dma.hbm_to_vmem [thread:$0]  %s6, 16, %s82, [#allocation13]
    $region29: #{_reid_forward.1} parent=1 // pred_fallthru
      _
    // Predicated region
    $region30: #{_reid_forward.1} parent=1 // pred_check
      _
    $region31: #{_reid_forward.1} parent=1 // pred_check_branch
      %86 = sbr.rel (0) target = $region33
    $region32: #{_reid_forward.1} parent=1 // pred_region
      %87 = dma.done [#allocation4], 65536
    $region33: #{_reid_forward.1} parent=1 // pred_fallthru
      _
    // Predicated region
    $region34: #{_reid_forward.1} parent=1 // pred_check
      _
    $region35: #{_reid_forward.1} parent=1 // pred_check_branch
      %89 = sbr.rel (0) target = $region37
    $region36: #{_reid_forward.1} parent=1 // pred_region
      %90 = dma.done [#allocation7], 128
    $region37: #{_reid_forward.1} parent=1 // pred_fallthru
      _
    // Predicated region
    $region38: #{_reid_forward.1} parent=1 // pred_check
      _
    $region39: #{_reid_forward.1} parent=1 // pred_check_branch
      %92 = sbr.rel (0) target = $region41
    $region40: #{_reid_forward.1} parent=1 // pred_region
      %93 = dma.done [#allocation7], 65536
    $region41: #{_reid_forward.1} parent=1 // pred_fallthru
      _
    // Predicated region
    $region42: #{_reid_forward.1} parent=1 // pred_check
      _
    $region43: #{_reid_forward.1} parent=1 // pred_check_branch
      %95 = sbr.rel (0) target = $region45
    $region44: #{_reid_forward.1} parent=1 // pred_region
      %96 = dma.done [#allocation10], 128
    $region45: #{_reid_forward.1} parent=1 // pred_fallthru
      _
    // Predicated region
    $region46: #{_reid_forward.1} parent=1 // pred_check
      _
    $region47: #{_reid_forward.1} parent=1 // pred_check_branch
      %98 = sbr.rel (0) target = $region49
    $region48: #{_reid_forward.1} parent=1 // pred_region
      %99 = dma.done [#allocation10], 8192
    $region49: #{_reid_forward.1} parent=1 // pred_fallthru
      _
    // Predicated region
    $region50: #{_reid_forward.1} parent=1 // pred_check
      _
    $region51: #{_reid_forward.1} parent=1 // pred_check_branch
      %101 = sbr.rel (0) target = $region53
    $region52: #{_reid_forward.1} parent=1 // pred_region
      %102 = dma.done [#allocation13], 16
    $region53: #{_reid_forward.1} parent=1 // pred_fallthru
      _
    %p104 = scmp.eq.s32.totalorder 0, 0
    // Predicated region
    $region54: #{_reid_forward.1} parent=1 // pred_check
      %p105 = pneg %p104
    $region55: #{_reid_forward.1} parent=1 // pred_check_branch
      %107 = sbr.rel (%p105) target = $region57
    $region56: #{_reid_forward.1} parent=1 // pred_region
      %v108 = vld [vmem:[#allocation6] sm:$0xff]
      %v110 = vlaneseq
      %v111 = vshrl.u32 %v110, 7
      %v112 = vsub.s32 0, %v111
      %v113 = vrot.slane %v108, %v112
      %v114 = vlaneseq
      %v115 = vshrl.u32 %v114, 7
      %v116 = vsub.s32 1, %v115
      %v117 = vrot.slane %v108, %v116
      %v118 = vlaneseq
      %v119 = vshrl.u32 %v118, 7
      %v120 = vsub.s32 2, %v119
      %v121 = vrot.slane %v108, %v120
      %v122 = vlaneseq
      %v123 = vshrl.u32 %v122, 7
      %v124 = vsub.s32 3, %v123
      %v125 = vrot.slane %v108, %v124
      %v126 = vlaneseq
      %v127 = vshrl.u32 %v126, 7
      %v128 = vsub.s32 4, %v127
      %v129 = vrot.slane %v108, %v128
      %v130 = vlaneseq
      %v131 = vshrl.u32 %v130, 7
      %v132 = vsub.s32 5, %v131
      %v133 = vrot.slane %v108, %v132
      %v134 = vlaneseq
      %v135 = vshrl.u32 %v134, 7
      %v136 = vsub.s32 6, %v135
      %v137 = vrot.slane %v108, %v136
      %v138 = vlaneseq
      %v139 = vshrl.u32 %v138, 7
      %v140 = vsub.s32 7, %v139
      %v141 = vrot.slane %v108, %v140
      %v142 = vcombine.low %v113, %v117
      %v143 = vcombine.low %v121, %v125
      %v145 = vunpack.c.l.s4 1983009808
      %v146 = vunpack.c.0.s8 %v145
      %v147 = vlaneseq
      %v148 = vshrl.u32 %v147, 7
      %v149 = vsub.s32 %v146, %v148
      %v150 = vrot.slane %v142, %v149
      %v152 = vunpack.c.l.s4 1983009808
      %v153 = vunpack.c.0.s8 %v152
      %v154 = vlaneseq
      %v155 = vshrl.u32 %v154, 7
      %v156 = vsub.s32 %v153, %v155
      %v157 = vrot.slane %v143, %v156
      %v158 = vcombine.low %v150, %v157
      %v159 = vcombine.low %v129, %v133
      %v160 = vcombine.low %v137, %v141
      %v162 = vunpack.c.l.s4 1983009808
      %v163 = vunpack.c.0.s8 %v162
      %v164 = vlaneseq
      %v165 = vshrl.u32 %v164, 7
      %v166 = vsub.s32 %v163, %v165
      %v167 = vrot.slane %v159, %v166
      %v169 = vunpack.c.l.s4 1983009808
      %v170 = vunpack.c.0.s8 %v169
      %v171 = vlaneseq
      %v172 = vshrl.u32 %v171, 7
      %v173 = vsub.s32 %v170, %v172
      %v174 = vrot.slane %v160, %v173
      %v175 = vcombine.low %v167, %v174
      %178 = vst [vmem:[#allocation2] sm:$0xff] %v158
      %179 = vst [vmem:[#allocation2 + $0x8] sm:$0xff] %v175
    $region57: #{_reid_forward.1} parent=1 // pred_fallthru
      _
    %v180 = vld [vmem:[#allocation2] sm:$0xff]
    %v181 = vld [vmem:[#allocation2 + $0x8] sm:$0xff]
    %v182 = vld [vmem:[%s0] sm:$0xff]
    %v183 = vld [vmem:[%s0 + $0x8] sm:$0xff]
    %v186 = vcombine.high %v182, %v182
    %v188 = vunpack.c.l.s4 1983009808
    %v189 = vunpack.c.0.s8 %v188
    %v190 = vlaneseq
    %v191 = vshrl.u32 %v190, 7
    %v192 = vsub.s32 %v189, %v191
    %v193 = vrot.slane %v182, %v192
    %v195 = vunpack.c.l.s4 1983009808
    %v196 = vunpack.c.0.s8 %v195
    %v197 = vlaneseq
    %v198 = vshrl.u32 %v197, 7
    %v199 = vsub.s32 %v196, %v198
    %v200 = vrot.slane %v186, %v199
    %v201 = vcombine.high %v193, %v193
    %v202 = vcombine.high %v200, %v200
    %v203 = vcombine.high %v183, %v183
    %v205 = vunpack.c.l.s4 1983009808
    %v206 = vunpack.c.0.s8 %v205
    %v207 = vlaneseq
    %v208 = vshrl.u32 %v207, 7
    %v209 = vsub.s32 %v206, %v208
    %v210 = vrot.slane %v183, %v209
    %v212 = vunpack.c.l.s4 1983009808
    %v213 = vunpack.c.0.s8 %v212
    %v214 = vlaneseq
    %v215 = vshrl.u32 %v214, 7
    %v216 = vsub.s32 %v213, %v215
    %v217 = vrot.slane %v203, %v216
    %v218 = vcombine.high %v210, %v210
    %v219 = vcombine.high %v217, %v217
    %v228 = vpack.c.bf16 %v193, %v193
    %v229 = vpack.c.bf16 %v201, %v201
    %v230 = vpack.c.bf16 %v200, %v200
    %v231 = vpack.c.bf16 %v202, %v202
    %v232 = vpack.c.bf16 %v210, %v210
    %v233 = vpack.c.bf16 %v218, %v218
    %v234 = vpack.c.bf16 %v217, %v217
    %v235 = vpack.c.bf16 %v219, %v219
    %v236 = vld [vmem:[#allocation3] sm:$0xff]
    %v237 = vld [vmem:[#allocation3 + $0x8] sm:$0xff]
    %v238 = vld [vmem:[#allocation3 + $0x10] sm:$0xff]
    %v239 = vld [vmem:[#allocation3 + $0x18] sm:$0xff]
    %v240 = vld [vmem:[#allocation3 + $0x20] sm:$0xff]
    %v241 = vld [vmem:[#allocation3 + $0x28] sm:$0xff]
    %v242 = vld [vmem:[#allocation3 + $0x30] sm:$0xff]
    %v243 = vld [vmem:[#allocation3 + $0x38] sm:$0xff]
    %v244 = vld [vmem:[#allocation3 + $0x40] sm:$0xff]
    %v245 = vld [vmem:[#allocation3 + $0x48] sm:$0xff]
    %v246 = vld [vmem:[#allocation3 + $0x50] sm:$0xff]
    %v247 = vld [vmem:[#allocation3 + $0x58] sm:$0xff]
    %v248 = vld [vmem:[#allocation3 + $0x60] sm:$0xff]
    %v249 = vld [vmem:[#allocation3 + $0x68] sm:$0xff]
    %v250 = vld [vmem:[#allocation3 + $0x70] sm:$0xff]
    %v251 = vld [vmem:[#allocation3 + $0x78] sm:$0xff]
    %v252 = vld [vmem:[#allocation3 + $0x80] sm:$0xff]
    %v253 = vld [vmem:[#allocation3 + $0x88] sm:$0xff]
    %v254 = vld [vmem:[#allocation3 + $0x90] sm:$0xff]
    %v255 = vld [vmem:[#allocation3 + $0x98] sm:$0xff]
    %v256 = vld [vmem:[#allocation3 + $0xa0] sm:$0xff]
    %v257 = vld [vmem:[#allocation3 + $0xa8] sm:$0xff]
    %v258 = vld [vmem:[#allocation3 + $0xb0] sm:$0xff]
    %v259 = vld [vmem:[#allocation3 + $0xb8] sm:$0xff]
    %v260 = vld [vmem:[#allocation3 + $0xc0] sm:$0xff]
    %v261 = vld [vmem:[#allocation3 + $0xc8] sm:$0xff]
    %v262 = vld [vmem:[#allocation3 + $0xd0] sm:$0xff]
    %v263 = vld [vmem:[#allocation3 + $0xd8] sm:$0xff]
    %v264 = vld [vmem:[#allocation3 + $0xe0] sm:$0xff]
    %v265 = vld [vmem:[#allocation3 + $0xe8] sm:$0xff]
    %v266 = vld [vmem:[#allocation3 + $0xf0] sm:$0xff]
    %v267 = vld [vmem:[#allocation3 + $0xf8] sm:$0xff]
    %v268 = vld [vmem:[#allocation3 + $0x100] sm:$0xff]
    %v269 = vld [vmem:[#allocation3 + $0x108] sm:$0xff]
    %v270 = vld [vmem:[#allocation3 + $0x110] sm:$0xff]
    %v271 = vld [vmem:[#allocation3 + $0x118] sm:$0xff]
    %v272 = vld [vmem:[#allocation3 + $0x120] sm:$0xff]
    %v273 = vld [vmem:[#allocation3 + $0x128] sm:$0xff]
    %v274 = vld [vmem:[#allocation3 + $0x130] sm:$0xff]
    %v275 = vld [vmem:[#allocation3 + $0x138] sm:$0xff]
    %v276 = vld [vmem:[#allocation3 + $0x140] sm:$0xff]
    %v277 = vld [vmem:[#allocation3 + $0x148] sm:$0xff]
    %v278 = vld [vmem:[#allocation3 + $0x150] sm:$0xff]
    %v279 = vld [vmem:[#allocation3 + $0x158] sm:$0xff]
    %v280 = vld [vmem:[#allocation3 + $0x160] sm:$0xff]
    %v281 = vld [vmem:[#allocation3 + $0x168] sm:$0xff]
    %v282 = vld [vmem:[#allocation3 + $0x170] sm:$0xff]
    %v283 = vld [vmem:[#allocation3 + $0x178] sm:$0xff]
    %v284 = vld [vmem:[#allocation3 + $0x180] sm:$0xff]
    %v285 = vld [vmem:[#allocation3 + $0x188] sm:$0xff]
    %v286 = vld [vmem:[#allocation3 + $0x190] sm:$0xff]
    %v287 = vld [vmem:[#allocation3 + $0x198] sm:$0xff]
    %v288 = vld [vmem:[#allocation3 + $0x1a0] sm:$0xff]
    %v289 = vld [vmem:[#allocation3 + $0x1a8] sm:$0xff]
    %v290 = vld [vmem:[#allocation3 + $0x1b0] sm:$0xff]
    %v291 = vld [vmem:[#allocation3 + $0x1b8] sm:$0xff]
    %v292 = vld [vmem:[#allocation3 + $0x1c0] sm:$0xff]
    %v293 = vld [vmem:[#allocation3 + $0x1c8] sm:$0xff]
    %v294 = vld [vmem:[#allocation3 + $0x1d0] sm:$0xff]
    %v295 = vld [vmem:[#allocation3 + $0x1d8] sm:$0xff]
    %v296 = vld [vmem:[#allocation3 + $0x1e0] sm:$0xff]
    %v297 = vld [vmem:[#allocation3 + $0x1e8] sm:$0xff]
    %v298 = vld [vmem:[#allocation3 + $0x1f0] sm:$0xff]
    %v299 = vld [vmem:[#allocation3 + $0x1f8] sm:$0xff]
    %v300 = vld [vmem:[#allocation3 + $0x200] sm:$0xff]
    %v301 = vld [vmem:[#allocation3 + $0x208] sm:$0xff]
    %v302 = vld [vmem:[#allocation3 + $0x210] sm:$0xff]
    %v303 = vld [vmem:[#allocation3 + $0x218] sm:$0xff]
    %v304 = vld [vmem:[#allocation3 + $0x220] sm:$0xff]
    %v305 = vld [vmem:[#allocation3 + $0x228] sm:$0xff]
    %v306 = vld [vmem:[#allocation3 + $0x230] sm:$0xff]
    %v307 = vld [vmem:[#allocation3 + $0x238] sm:$0xff]
    %v308 = vld [vmem:[#allocation3 + $0x240] sm:$0xff]
    %v309 = vld [vmem:[#allocation3 + $0x248] sm:$0xff]
    %v310 = vld [vmem:[#allocation3 + $0x250] sm:$0xff]
    %v311 = vld [vmem:[#allocation3 + $0x258] sm:$0xff]
    %v312 = vld [vmem:[#allocation3 + $0x260] sm:$0xff]
    %v313 = vld [vmem:[#allocation3 + $0x268] sm:$0xff]
    %v314 = vld [vmem:[#allocation3 + $0x270] sm:$0xff]
    %v315 = vld [vmem:[#allocation3 + $0x278] sm:$0xff]
    %v316 = vld [vmem:[#allocation3 + $0x280] sm:$0xff]
    %v317 = vld [vmem:[#allocation3 + $0x288] sm:$0xff]
    %v318 = vld [vmem:[#allocation3 + $0x290] sm:$0xff]
    %v319 = vld [vmem:[#allocation3 + $0x298] sm:$0xff]
    %v320 = vld [vmem:[#allocation3 + $0x2a0] sm:$0xff]
    %v321 = vld [vmem:[#allocation3 + $0x2a8] sm:$0xff]
    %v322 = vld [vmem:[#allocation3 + $0x2b0] sm:$0xff]
    %v323 = vld [vmem:[#allocation3 + $0x2b8] sm:$0xff]
    %v324 = vld [vmem:[#allocation3 + $0x2c0] sm:$0xff]
    %v325 = vld [vmem:[#allocation3 + $0x2c8] sm:$0xff]
    %v326 = vld [vmem:[#allocation3 + $0x2d0] sm:$0xff]
    %v327 = vld [vmem:[#allocation3 + $0x2d8] sm:$0xff]
    %v328 = vld [vmem:[#allocation3 + $0x2e0] sm:$0xff]
    %v329 = vld [vmem:[#allocation3 + $0x2e8] sm:$0xff]
    %v330 = vld [vmem:[#allocation3 + $0x2f0] sm:$0xff]
    %v331 = vld [vmem:[#allocation3 + $0x2f8] sm:$0xff]
    %v332 = vld [vmem:[#allocation3 + $0x300] sm:$0xff]
    %v333 = vld [vmem:[#allocation3 + $0x308] sm:$0xff]
    %v334 = vld [vmem:[#allocation3 + $0x310] sm:$0xff]
    %v335 = vld [vmem:[#allocation3 + $0x318] sm:$0xff]
    %v336 = vld [vmem:[#allocation3 + $0x320] sm:$0xff]
    %v337 = vld [vmem:[#allocation3 + $0x328] sm:$0xff]
    %v338 = vld [vmem:[#allocation3 + $0x330] sm:$0xff]
    %v339 = vld [vmem:[#allocation3 + $0x338] sm:$0xff]
    %v340 = vld [vmem:[#allocation3 + $0x340] sm:$0xff]
    %v341 = vld [vmem:[#allocation3 + $0x348] sm:$0xff]
    %v342 = vld [vmem:[#allocation3 + $0x350] sm:$0xff]
    %v343 = vld [vmem:[#allocation3 + $0x358] sm:$0xff]
    %v344 = vld [vmem:[#allocation3 + $0x360] sm:$0xff]
    %v345 = vld [vmem:[#allocation3 + $0x368] sm:$0xff]
    %v346 = vld [vmem:[#allocation3 + $0x370] sm:$0xff]
    %v347 = vld [vmem:[#allocation3 + $0x378] sm:$0xff]
    %v348 = vld [vmem:[#allocation3 + $0x380] sm:$0xff]
    %v349 = vld [vmem:[#allocation3 + $0x388] sm:$0xff]
    %v350 = vld [vmem:[#allocation3 + $0x390] sm:$0xff]
    %v351 = vld [vmem:[#allocation3 + $0x398] sm:$0xff]
    %v352 = vld [vmem:[#allocation3 + $0x3a0] sm:$0xff]
    %v353 = vld [vmem:[#allocation3 + $0x3a8] sm:$0xff]
    %v354 = vld [vmem:[#allocation3 + $0x3b0] sm:$0xff]
    %v355 = vld [vmem:[#allocation3 + $0x3b8] sm:$0xff]
    %v356 = vld [vmem:[#allocation3 + $0x3c0] sm:$0xff]
    %v357 = vld [vmem:[#allocation3 + $0x3c8] sm:$0xff]
    %v358 = vld [vmem:[#allocation3 + $0x3d0] sm:$0xff]
    %v359 = vld [vmem:[#allocation3 + $0x3d8] sm:$0xff]
    %v360 = vld [vmem:[#allocation3 + $0x3e0] sm:$0xff]
    %v361 = vld [vmem:[#allocation3 + $0x3e8] sm:$0xff]
    %v362 = vld [vmem:[#allocation3 + $0x3f0] sm:$0xff]
    %v363 = vld [vmem:[#allocation3 + $0x3f8] sm:$0xff]
    %v364 = vld [vmem:[#allocation3 + $0x400] sm:$0xff]
    %v365 = vld [vmem:[#allocation3 + $0x408] sm:$0xff]
    %v366 = vld [vmem:[#allocation3 + $0x410] sm:$0xff]
    %v367 = vld [vmem:[#allocation3 + $0x418] sm:$0xff]
    %v368 = vld [vmem:[#allocation3 + $0x420] sm:$0xff]
    %v369 = vld [vmem:[#allocation3 + $0x428] sm:$0xff]
    %v370 = vld [vmem:[#allocation3 + $0x430] sm:$0xff]
    %v371 = vld [vmem:[#allocation3 + $0x438] sm:$0xff]
    %v372 = vld [vmem:[#allocation3 + $0x440] sm:$0xff]
    %v373 = vld [vmem:[#allocation3 + $0x448] sm:$0xff]
    %v374 = vld [vmem:[#allocation3 + $0x450] sm:$0xff]
    %v375 = vld [vmem:[#allocation3 + $0x458] sm:$0xff]
    %v376 = vld [vmem:[#allocation3 + $0x460] sm:$0xff]
    %v377 = vld [vmem:[#allocation3 + $0x468] sm:$0xff]
    %v378 = vld [vmem:[#allocation3 + $0x470] sm:$0xff]
    %v379 = vld [vmem:[#allocation3 + $0x478] sm:$0xff]
    %v380 = vld [vmem:[#allocation3 + $0x480] sm:$0xff]
    %v381 = vld [vmem:[#allocation3 + $0x488] sm:$0xff]
    %v382 = vld [vmem:[#allocation3 + $0x490] sm:$0xff]
    %v383 = vld [vmem:[#allocation3 + $0x498] sm:$0xff]
    %v384 = vld [vmem:[#allocation3 + $0x4a0] sm:$0xff]
    %v385 = vld [vmem:[#allocation3 + $0x4a8] sm:$0xff]
    %v386 = vld [vmem:[#allocation3 + $0x4b0] sm:$0xff]
    %v387 = vld [vmem:[#allocation3 + $0x4b8] sm:$0xff]
    %v388 = vld [vmem:[#allocation3 + $0x4c0] sm:$0xff]
    %v389 = vld [vmem:[#allocation3 + $0x4c8] sm:$0xff]
    %v390 = vld [vmem:[#allocation3 + $0x4d0] sm:$0xff]
    %v391 = vld [vmem:[#allocation3 + $0x4d8] sm:$0xff]
    %v392 = vld [vmem:[#allocation3 + $0x4e0] sm:$0xff]
    %v393 = vld [vmem:[#allocation3 + $0x4e8] sm:$0xff]
    %v394 = vld [vmem:[#allocation3 + $0x4f0] sm:$0xff]
    %v395 = vld [vmem:[#allocation3 + $0x4f8] sm:$0xff]
    %v396 = vld [vmem:[#allocation3 + $0x500] sm:$0xff]
    %v397 = vld [vmem:[#allocation3 + $0x508] sm:$0xff]
    %v398 = vld [vmem:[#allocation3 + $0x510] sm:$0xff]
    %v399 = vld [vmem:[#allocation3 + $0x518] sm:$0xff]
    %v400 = vld [vmem:[#allocation3 + $0x520] sm:$0xff]
    %v401 = vld [vmem:[#allocation3 + $0x528] sm:$0xff]
    %v402 = vld [vmem:[#allocation3 + $0x530] sm:$0xff]
    %v403 = vld [vmem:[#allocation3 + $0x538] sm:$0xff]
    %v404 = vld [vmem:[#allocation3 + $0x540] sm:$0xff]
    %v405 = vld [vmem:[#allocation3 + $0x548] sm:$0xff]
    %v406 = vld [vmem:[#allocation3 + $0x550] sm:$0xff]
    %v407 = vld [vmem:[#allocation3 + $0x558] sm:$0xff]
    %v408 = vld [vmem:[#allocation3 + $0x560] sm:$0xff]
    %v409 = vld [vmem:[#allocation3 + $0x568] sm:$0xff]
    %v410 = vld [vmem:[#allocation3 + $0x570] sm:$0xff]
    %v411 = vld [vmem:[#allocation3 + $0x578] sm:$0xff]
    %v412 = vld [vmem:[#allocation3 + $0x580] sm:$0xff]
    %v413 = vld [vmem:[#allocation3 + $0x588] sm:$0xff]
    %v414 = vld [vmem:[#allocation3 + $0x590] sm:$0xff]
    %v415 = vld [vmem:[#allocation3 + $0x598] sm:$0xff]
    %v416 = vld [vmem:[#allocation3 + $0x5a0] sm:$0xff]
    %v417 = vld [vmem:[#allocation3 + $0x5a8] sm:$0xff]
    %v418 = vld [vmem:[#allocation3 + $0x5b0] sm:$0xff]
    %v419 = vld [vmem:[#allocation3 + $0x5b8] sm:$0xff]
    %v420 = vld [vmem:[#allocation3 + $0x5c0] sm:$0xff]
    %v421 = vld [vmem:[#allocation3 + $0x5c8] sm:$0xff]
    %v422 = vld [vmem:[#allocation3 + $0x5d0] sm:$0xff]
    %v423 = vld [vmem:[#allocation3 + $0x5d8] sm:$0xff]
    %v424 = vld [vmem:[#allocation3 + $0x5e0] sm:$0xff]
    %v425 = vld [vmem:[#allocation3 + $0x5e8] sm:$0xff]
    %v426 = vld [vmem:[#allocation3 + $0x5f0] sm:$0xff]
    %v427 = vld [vmem:[#allocation3 + $0x5f8] sm:$0xff]
    %v428 = vld [vmem:[#allocation3 + $0x600] sm:$0xff]
    %v429 = vld [vmem:[#allocation3 + $0x608] sm:$0xff]
    %v430 = vld [vmem:[#allocation3 + $0x610] sm:$0xff]
    %v431 = vld [vmem:[#allocation3 + $0x618] sm:$0xff]
    %v432 = vld [vmem:[#allocation3 + $0x620] sm:$0xff]
    %v433 = vld [vmem:[#allocation3 + $0x628] sm:$0xff]
    %v434 = vld [vmem:[#allocation3 + $0x630] sm:$0xff]
    %v435 = vld [vmem:[#allocation3 + $0x638] sm:$0xff]
    %v436 = vld [vmem:[#allocation3 + $0x640] sm:$0xff]
    %v437 = vld [vmem:[#allocation3 + $0x648] sm:$0xff]
    %v438 = vld [vmem:[#allocation3 + $0x650] sm:$0xff]
    %v439 = vld [vmem:[#allocation3 + $0x658] sm:$0xff]
    %v440 = vld [vmem:[#allocation3 + $0x660] sm:$0xff]
    %v441 = vld [vmem:[#allocation3 + $0x668] sm:$0xff]
    %v442 = vld [vmem:[#allocation3 + $0x670] sm:$0xff]
    %v443 = vld [vmem:[#allocation3 + $0x678] sm:$0xff]
    %v444 = vld [vmem:[#allocation3 + $0x680] sm:$0xff]
    %v445 = vld [vmem:[#allocation3 + $0x688] sm:$0xff]
    %v446 = vld [vmem:[#allocation3 + $0x690] sm:$0xff]
    %v447 = vld [vmem:[#allocation3 + $0x698] sm:$0xff]
    %v448 = vld [vmem:[#allocation3 + $0x6a0] sm:$0xff]
    %v449 = vld [vmem:[#allocation3 + $0x6a8] sm:$0xff]
    %v450 = vld [vmem:[#allocation3 + $0x6b0] sm:$0xff]
    %v451 = vld [vmem:[#allocation3 + $0x6b8] sm:$0xff]
    %v452 = vld [vmem:[#allocation3 + $0x6c0] sm:$0xff]
    %v453 = vld [vmem:[#allocation3 + $0x6c8] sm:$0xff]
    %v454 = vld [vmem:[#allocation3 + $0x6d0] sm:$0xff]
    %v455 = vld [vmem:[#allocation3 + $0x6d8] sm:$0xff]
    %v456 = vld [vmem:[#allocation3 + $0x6e0] sm:$0xff]
    %v457 = vld [vmem:[#allocation3 + $0x6e8] sm:$0xff]
    %v458 = vld [vmem:[#allocation3 + $0x6f0] sm:$0xff]
    %v459 = vld [vmem:[#allocation3 + $0x6f8] sm:$0xff]
    %v460 = vld [vmem:[#allocation3 + $0x700] sm:$0xff]
    %v461 = vld [vmem:[#allocation3 + $0x708] sm:$0xff]
    %v462 = vld [vmem:[#allocation3 + $0x710] sm:$0xff]
    %v463 = vld [vmem:[#allocation3 + $0x718] sm:$0xff]
    %v464 = vld [vmem:[#allocation3 + $0x720] sm:$0xff]
    %v465 = vld [vmem:[#allocation3 + $0x728] sm:$0xff]
    %v466 = vld [vmem:[#allocation3 + $0x730] sm:$0xff]
    %v467 = vld [vmem:[#allocation3 + $0x738] sm:$0xff]
    %v468 = vld [vmem:[#allocation3 + $0x740] sm:$0xff]
    %v469 = vld [vmem:[#allocation3 + $0x748] sm:$0xff]
    %v470 = vld [vmem:[#allocation3 + $0x750] sm:$0xff]
    %v471 = vld [vmem:[#allocation3 + $0x758] sm:$0xff]
    %v472 = vld [vmem:[#allocation3 + $0x760] sm:$0xff]
    %v473 = vld [vmem:[#allocation3 + $0x768] sm:$0xff]
    %v474 = vld [vmem:[#allocation3 + $0x770] sm:$0xff]
    %v475 = vld [vmem:[#allocation3 + $0x778] sm:$0xff]
    %v476 = vld [vmem:[#allocation3 + $0x780] sm:$0xff]
    %v477 = vld [vmem:[#allocation3 + $0x788] sm:$0xff]
    %v478 = vld [vmem:[#allocation3 + $0x790] sm:$0xff]
    %v479 = vld [vmem:[#allocation3 + $0x798] sm:$0xff]
    %v480 = vld [vmem:[#allocation3 + $0x7a0] sm:$0xff]
    %v481 = vld [vmem:[#allocation3 + $0x7a8] sm:$0xff]
    %v482 = vld [vmem:[#allocation3 + $0x7b0] sm:$0xff]
    %v483 = vld [vmem:[#allocation3 + $0x7b8] sm:$0xff]
    %v484 = vld [vmem:[#allocation3 + $0x7c0] sm:$0xff]
    %v485 = vld [vmem:[#allocation3 + $0x7c8] sm:$0xff]
    %v486 = vld [vmem:[#allocation3 + $0x7d0] sm:$0xff]
    %v487 = vld [vmem:[#allocation3 + $0x7d8] sm:$0xff]
    %v488 = vld [vmem:[#allocation3 + $0x7e0] sm:$0xff]
    %v489 = vld [vmem:[#allocation3 + $0x7e8] sm:$0xff]
    %v490 = vld [vmem:[#allocation3 + $0x7f0] sm:$0xff]
    %v491 = vld [vmem:[#allocation3 + $0x7f8] sm:$0xff]
    %v492 = vld [vmem:[#allocation3 + $0x800] sm:$0xff]
    %v493 = vld [vmem:[#allocation3 + $0x808] sm:$0xff]
    %v494 = vld [vmem:[#allocation3 + $0x810] sm:$0xff]
    %v495 = vld [vmem:[#allocation3 + $0x818] sm:$0xff]
    %v496 = vld [vmem:[#allocation3 + $0x820] sm:$0xff]
    %v497 = vld [vmem:[#allocation3 + $0x828] sm:$0xff]
    %v498 = vld [vmem:[#allocation3 + $0x830] sm:$0xff]
    %v499 = vld [vmem:[#allocation3 + $0x838] sm:$0xff]
    %v500 = vld [vmem:[#allocation3 + $0x840] sm:$0xff]
    %v501 = vld [vmem:[#allocation3 + $0x848] sm:$0xff]
    %v502 = vld [vmem:[#allocation3 + $0x850] sm:$0xff]
    %v503 = vld [vmem:[#allocation3 + $0x858] sm:$0xff]
    %v504 = vld [vmem:[#allocation3 + $0x860] sm:$0xff]
    %v505 = vld [vmem:[#allocation3 + $0x868] sm:$0xff]
    %v506 = vld [vmem:[#allocation3 + $0x870] sm:$0xff]
    %v507 = vld [vmem:[#allocation3 + $0x878] sm:$0xff]
    %v508 = vld [vmem:[#allocation3 + $0x880] sm:$0xff]
    %v509 = vld [vmem:[#allocation3 + $0x888] sm:$0xff]
    %v510 = vld [vmem:[#allocation3 + $0x890] sm:$0xff]
    %v511 = vld [vmem:[#allocation3 + $0x898] sm:$0xff]
    %v512 = vld [vmem:[#allocation3 + $0x8a0] sm:$0xff]
    %v513 = vld [vmem:[#allocation3 + $0x8a8] sm:$0xff]
    %v514 = vld [vmem:[#allocation3 + $0x8b0] sm:$0xff]
    %v515 = vld [vmem:[#allocation3 + $0x8b8] sm:$0xff]
    %v516 = vld [vmem:[#allocation3 + $0x8c0] sm:$0xff]
    %v517 = vld [vmem:[#allocation3 + $0x8c8] sm:$0xff]
    %v518 = vld [vmem:[#allocation3 + $0x8d0] sm:$0xff]
    %v519 = vld [vmem:[#allocation3 + $0x8d8] sm:$0xff]
    %v520 = vld [vmem:[#allocation3 + $0x8e0] sm:$0xff]
    %v521 = vld [vmem:[#allocation3 + $0x8e8] sm:$0xff]
    %v522 = vld [vmem:[#allocation3 + $0x8f0] sm:$0xff]
    %v523 = vld [vmem:[#allocation3 + $0x8f8] sm:$0xff]
    %v524 = vld [vmem:[#allocation3 + $0x900] sm:$0xff]
    %v525 = vld [vmem:[#allocation3 + $0x908] sm:$0xff]
    %v526 = vld [vmem:[#allocation3 + $0x910] sm:$0xff]
    %v527 = vld [vmem:[#allocation3 + $0x918] sm:$0xff]
    %v528 = vld [vmem:[#allocation3 + $0x920] sm:$0xff]
    %v529 = vld [vmem:[#allocation3 + $0x928] sm:$0xff]
    %v530 = vld [vmem:[#allocation3 + $0x930] sm:$0xff]
    %v531 = vld [vmem:[#allocation3 + $0x938] sm:$0xff]
    %v532 = vld [vmem:[#allocation3 + $0x940] sm:$0xff]
    %v533 = vld [vmem:[#allocation3 + $0x948] sm:$0xff]
    %v534 = vld [vmem:[#allocation3 + $0x950] sm:$0xff]
    %v535 = vld [vmem:[#allocation3 + $0x958] sm:$0xff]
    %v536 = vld [vmem:[#allocation3 + $0x960] sm:$0xff]
    %v537 = vld [vmem:[#allocation3 + $0x968] sm:$0xff]
    %v538 = vld [vmem:[#allocation3 + $0x970] sm:$0xff]
    %v539 = vld [vmem:[#allocation3 + $0x978] sm:$0xff]
    %v540 = vld [vmem:[#allocation3 + $0x980] sm:$0xff]
    %v541 = vld [vmem:[#allocation3 + $0x988] sm:$0xff]
    %v542 = vld [vmem:[#allocation3 + $0x990] sm:$0xff]
    %v543 = vld [vmem:[#allocation3 + $0x998] sm:$0xff]
    %v544 = vld [vmem:[#allocation3 + $0x9a0] sm:$0xff]
    %v545 = vld [vmem:[#allocation3 + $0x9a8] sm:$0xff]
    %v546 = vld [vmem:[#allocation3 + $0x9b0] sm:$0xff]
    %v547 = vld [vmem:[#allocation3 + $0x9b8] sm:$0xff]
    %v548 = vld [vmem:[#allocation3 + $0x9c0] sm:$0xff]
    %v549 = vld [vmem:[#allocation3 + $0x9c8] sm:$0xff]
    %v550 = vld [vmem:[#allocation3 + $0x9d0] sm:$0xff]
    %v551 = vld [vmem:[#allocation3 + $0x9d8] sm:$0xff]
    %v552 = vld [vmem:[#allocation3 + $0x9e0] sm:$0xff]
    %v553 = vld [vmem:[#allocation3 + $0x9e8] sm:$0xff]
    %v554 = vld [vmem:[#allocation3 + $0x9f0] sm:$0xff]
    %v555 = vld [vmem:[#allocation3 + $0x9f8] sm:$0xff]
    %v556 = vld [vmem:[#allocation3 + $0xa00] sm:$0xff]
    %v557 = vld [vmem:[#allocation3 + $0xa08] sm:$0xff]
    %v558 = vld [vmem:[#allocation3 + $0xa10] sm:$0xff]
    %v559 = vld [vmem:[#allocation3 + $0xa18] sm:$0xff]
    %v560 = vld [vmem:[#allocation3 + $0xa20] sm:$0xff]
    %v561 = vld [vmem:[#allocation3 + $0xa28] sm:$0xff]
    %v562 = vld [vmem:[#allocation3 + $0xa30] sm:$0xff]
    %v563 = vld [vmem:[#allocation3 + $0xa38] sm:$0xff]
    %v564 = vld [vmem:[#allocation3 + $0xa40] sm:$0xff]
    %v565 = vld [vmem:[#allocation3 + $0xa48] sm:$0xff]
    %v566 = vld [vmem:[#allocation3 + $0xa50] sm:$0xff]
    %v567 = vld [vmem:[#allocation3 + $0xa58] sm:$0xff]
    %v568 = vld [vmem:[#allocation3 + $0xa60] sm:$0xff]
    %v569 = vld [vmem:[#allocation3 + $0xa68] sm:$0xff]
    %v570 = vld [vmem:[#allocation3 + $0xa70] sm:$0xff]
    %v571 = vld [vmem:[#allocation3 + $0xa78] sm:$0xff]
    %v572 = vld [vmem:[#allocation3 + $0xa80] sm:$0xff]
    %v573 = vld [vmem:[#allocation3 + $0xa88] sm:$0xff]
    %v574 = vld [vmem:[#allocation3 + $0xa90] sm:$0xff]
    %v575 = vld [vmem:[#allocation3 + $0xa98] sm:$0xff]
    %v576 = vld [vmem:[#allocation3 + $0xaa0] sm:$0xff]
    %v577 = vld [vmem:[#allocation3 + $0xaa8] sm:$0xff]
    %v578 = vld [vmem:[#allocation3 + $0xab0] sm:$0xff]
    %v579 = vld [vmem:[#allocation3 + $0xab8] sm:$0xff]
    %v580 = vld [vmem:[#allocation3 + $0xac0] sm:$0xff]
    %v581 = vld [vmem:[#allocation3 + $0xac8] sm:$0xff]
    %v582 = vld [vmem:[#allocation3 + $0xad0] sm:$0xff]
    %v583 = vld [vmem:[#allocation3 + $0xad8] sm:$0xff]
    %v584 = vld [vmem:[#allocation3 + $0xae0] sm:$0xff]
    %v585 = vld [vmem:[#allocation3 + $0xae8] sm:$0xff]
    %v586 = vld [vmem:[#allocation3 + $0xaf0] sm:$0xff]
    %v587 = vld [vmem:[#allocation3 + $0xaf8] sm:$0xff]
    %v588 = vld [vmem:[#allocation3 + $0xb00] sm:$0xff]
    %v589 = vld [vmem:[#allocation3 + $0xb08] sm:$0xff]
    %v590 = vld [vmem:[#allocation3 + $0xb10] sm:$0xff]
    %v591 = vld [vmem:[#allocation3 + $0xb18] sm:$0xff]
    %v592 = vld [vmem:[#allocation3 + $0xb20] sm:$0xff]
    %v593 = vld [vmem:[#allocation3 + $0xb28] sm:$0xff]
    %v594 = vld [vmem:[#allocation3 + $0xb30] sm:$0xff]
    %v595 = vld [vmem:[#allocation3 + $0xb38] sm:$0xff]
    %v596 = vld [vmem:[#allocation3 + $0xb40] sm:$0xff]
    %v597 = vld [vmem:[#allocation3 + $0xb48] sm:$0xff]
    %v598 = vld [vmem:[#allocation3 + $0xb50] sm:$0xff]
    %v599 = vld [vmem:[#allocation3 + $0xb58] sm:$0xff]
    %v600 = vld [vmem:[#allocation3 + $0xb60] sm:$0xff]
    %v601 = vld [vmem:[#allocation3 + $0xb68] sm:$0xff]
    %v602 = vld [vmem:[#allocation3 + $0xb70] sm:$0xff]
    %v603 = vld [vmem:[#allocation3 + $0xb78] sm:$0xff]
    %v604 = vld [vmem:[#allocation3 + $0xb80] sm:$0xff]
    %v605 = vld [vmem:[#allocation3 + $0xb88] sm:$0xff]
    %v606 = vld [vmem:[#allocation3 + $0xb90] sm:$0xff]
    %v607 = vld [vmem:[#allocation3 + $0xb98] sm:$0xff]
    %v608 = vld [vmem:[#allocation3 + $0xba0] sm:$0xff]
    %v609 = vld [vmem:[#allocation3 + $0xba8] sm:$0xff]
    %v610 = vld [vmem:[#allocation3 + $0xbb0] sm:$0xff]
    %v611 = vld [vmem:[#allocation3 + $0xbb8] sm:$0xff]
    %v612 = vld [vmem:[#allocation3 + $0xbc0] sm:$0xff]
    %v613 = vld [vmem:[#allocation3 + $0xbc8] sm:$0xff]
    %v614 = vld [vmem:[#allocation3 + $0xbd0] sm:$0xff]
    %v615 = vld [vmem:[#allocation3 + $0xbd8] sm:$0xff]
    %v616 = vld [vmem:[#allocation3 + $0xbe0] sm:$0xff]
    %v617 = vld [vmem:[#allocation3 + $0xbe8] sm:$0xff]
    %v618 = vld [vmem:[#allocation3 + $0xbf0] sm:$0xff]
    %v619 = vld [vmem:[#allocation3 + $0xbf8] sm:$0xff]
    %v620 = vld [vmem:[#allocation3 + $0xc00] sm:$0xff]
    %v621 = vld [vmem:[#allocation3 + $0xc08] sm:$0xff]
    %v622 = vld [vmem:[#allocation3 + $0xc10] sm:$0xff]
    %v623 = vld [vmem:[#allocation3 + $0xc18] sm:$0xff]
    %v624 = vld [vmem:[#allocation3 + $0xc20] sm:$0xff]
    %v625 = vld [vmem:[#allocation3 + $0xc28] sm:$0xff]
    %v626 = vld [vmem:[#allocation3 + $0xc30] sm:$0xff]
    %v627 = vld [vmem:[#allocation3 + $0xc38] sm:$0xff]
    %v628 = vld [vmem:[#allocation3 + $0xc40] sm:$0xff]
    %v629 = vld [vmem:[#allocation3 + $0xc48] sm:$0xff]
    %v630 = vld [vmem:[#allocation3 + $0xc50] sm:$0xff]
    %v631 = vld [vmem:[#allocation3 + $0xc58] sm:$0xff]
    %v632 = vld [vmem:[#allocation3 + $0xc60] sm:$0xff]
    %v633 = vld [vmem:[#allocation3 + $0xc68] sm:$0xff]
    %v634 = vld [vmem:[#allocation3 + $0xc70] sm:$0xff]
    %v635 = vld [vmem:[#allocation3 + $0xc78] sm:$0xff]
    %v636 = vld [vmem:[#allocation3 + $0xc80] sm:$0xff]
    %v637 = vld [vmem:[#allocation3 + $0xc88] sm:$0xff]
    %v638 = vld [vmem:[#allocation3 + $0xc90] sm:$0xff]
    %v639 = vld [vmem:[#allocation3 + $0xc98] sm:$0xff]
    %v640 = vld [vmem:[#allocation3 + $0xca0] sm:$0xff]
    %v641 = vld [vmem:[#allocation3 + $0xca8] sm:$0xff]
    %v642 = vld [vmem:[#allocation3 + $0xcb0] sm:$0xff]
    %v643 = vld [vmem:[#allocation3 + $0xcb8] sm:$0xff]
    %v644 = vld [vmem:[#allocation3 + $0xcc0] sm:$0xff]
    %v645 = vld [vmem:[#allocation3 + $0xcc8] sm:$0xff]
    %v646 = vld [vmem:[#allocation3 + $0xcd0] sm:$0xff]
    %v647 = vld [vmem:[#allocation3 + $0xcd8] sm:$0xff]
    %v648 = vld [vmem:[#allocation3 + $0xce0] sm:$0xff]
    %v649 = vld [vmem:[#allocation3 + $0xce8] sm:$0xff]
    %v650 = vld [vmem:[#allocation3 + $0xcf0] sm:$0xff]
    %v651 = vld [vmem:[#allocation3 + $0xcf8] sm:$0xff]
    %v652 = vld [vmem:[#allocation3 + $0xd00] sm:$0xff]
    %v653 = vld [vmem:[#allocation3 + $0xd08] sm:$0xff]
    %v654 = vld [vmem:[#allocation3 + $0xd10] sm:$0xff]
    %v655 = vld [vmem:[#allocation3 + $0xd18] sm:$0xff]
    %v656 = vld [vmem:[#allocation3 + $0xd20] sm:$0xff]
    %v657 = vld [vmem:[#allocation3 + $0xd28] sm:$0xff]
    %v658 = vld [vmem:[#allocation3 + $0xd30] sm:$0xff]
    %v659 = vld [vmem:[#allocation3 + $0xd38] sm:$0xff]
    %v660 = vld [vmem:[#allocation3 + $0xd40] sm:$0xff]
    %v661 = vld [vmem:[#allocation3 + $0xd48] sm:$0xff]
    %v662 = vld [vmem:[#allocation3 + $0xd50] sm:$0xff]
    %v663 = vld [vmem:[#allocation3 + $0xd58] sm:$0xff]
    %v664 = vld [vmem:[#allocation3 + $0xd60] sm:$0xff]
    %v665 = vld [vmem:[#allocation3 + $0xd68] sm:$0xff]
    %v666 = vld [vmem:[#allocation3 + $0xd70] sm:$0xff]
    %v667 = vld [vmem:[#allocation3 + $0xd78] sm:$0xff]
    %v668 = vld [vmem:[#allocation3 + $0xd80] sm:$0xff]
    %v669 = vld [vmem:[#allocation3 + $0xd88] sm:$0xff]
    %v670 = vld [vmem:[#allocation3 + $0xd90] sm:$0xff]
    %v671 = vld [vmem:[#allocation3 + $0xd98] sm:$0xff]
    %v672 = vld [vmem:[#allocation3 + $0xda0] sm:$0xff]
    %v673 = vld [vmem:[#allocation3 + $0xda8] sm:$0xff]
    %v674 = vld [vmem:[#allocation3 + $0xdb0] sm:$0xff]
    %v675 = vld [vmem:[#allocation3 + $0xdb8] sm:$0xff]
    %v676 = vld [vmem:[#allocation3 + $0xdc0] sm:$0xff]
    %v677 = vld [vmem:[#allocation3 + $0xdc8] sm:$0xff]
    %v678 = vld [vmem:[#allocation3 + $0xdd0] sm:$0xff]
    %v679 = vld [vmem:[#allocation3 + $0xdd8] sm:$0xff]
    %v680 = vld [vmem:[#allocation3 + $0xde0] sm:$0xff]
    %v681 = vld [vmem:[#allocation3 + $0xde8] sm:$0xff]
    %v682 = vld [vmem:[#allocation3 + $0xdf0] sm:$0xff]
    %v683 = vld [vmem:[#allocation3 + $0xdf8] sm:$0xff]
    %v684 = vld [vmem:[#allocation3 + $0xe00] sm:$0xff]
    %v685 = vld [vmem:[#allocation3 + $0xe08] sm:$0xff]
    %v686 = vld [vmem:[#allocation3 + $0xe10] sm:$0xff]
    %v687 = vld [vmem:[#allocation3 + $0xe18] sm:$0xff]
    %v688 = vld [vmem:[#allocation3 + $0xe20] sm:$0xff]
    %v689 = vld [vmem:[#allocation3 + $0xe28] sm:$0xff]
    %v690 = vld [vmem:[#allocation3 + $0xe30] sm:$0xff]
    %v691 = vld [vmem:[#allocation3 + $0xe38] sm:$0xff]
    %v692 = vld [vmem:[#allocation3 + $0xe40] sm:$0xff]
    %v693 = vld [vmem:[#allocation3 + $0xe48] sm:$0xff]
    %v694 = vld [vmem:[#allocation3 + $0xe50] sm:$0xff]
    %v695 = vld [vmem:[#allocation3 + $0xe58] sm:$0xff]
    %v696 = vld [vmem:[#allocation3 + $0xe60] sm:$0xff]
    %v697 = vld [vmem:[#allocation3 + $0xe68] sm:$0xff]
    %v698 = vld [vmem:[#allocation3 + $0xe70] sm:$0xff]
    %v699 = vld [vmem:[#allocation3 + $0xe78] sm:$0xff]
    %v700 = vld [vmem:[#allocation3 + $0xe80] sm:$0xff]
    %v701 = vld [vmem:[#allocation3 + $0xe88] sm:$0xff]
    %v702 = vld [vmem:[#allocation3 + $0xe90] sm:$0xff]
    %v703 = vld [vmem:[#allocation3 + $0xe98] sm:$0xff]
    %v704 = vld [vmem:[#allocation3 + $0xea0] sm:$0xff]
    %v705 = vld [vmem:[#allocation3 + $0xea8] sm:$0xff]
    %v706 = vld [vmem:[#allocation3 + $0xeb0] sm:$0xff]
    %v707 = vld [vmem:[#allocation3 + $0xeb8] sm:$0xff]
    %v708 = vld [vmem:[#allocation3 + $0xec0] sm:$0xff]
    %v709 = vld [vmem:[#allocation3 + $0xec8] sm:$0xff]
    %v710 = vld [vmem:[#allocation3 + $0xed0] sm:$0xff]
    %v711 = vld [vmem:[#allocation3 + $0xed8] sm:$0xff]
    %v712 = vld [vmem:[#allocation3 + $0xee0] sm:$0xff]
    %v713 = vld [vmem:[#allocation3 + $0xee8] sm:$0xff]
    %v714 = vld [vmem:[#allocation3 + $0xef0] sm:$0xff]
    %v715 = vld [vmem:[#allocation3 + $0xef8] sm:$0xff]
    %v716 = vld [vmem:[#allocation3 + $0xf00] sm:$0xff]
    %v717 = vld [vmem:[#allocation3 + $0xf08] sm:$0xff]
    %v718 = vld [vmem:[#allocation3 + $0xf10] sm:$0xff]
    %v719 = vld [vmem:[#allocation3 + $0xf18] sm:$0xff]
    %v720 = vld [vmem:[#allocation3 + $0xf20] sm:$0xff]
    %v721 = vld [vmem:[#allocation3 + $0xf28] sm:$0xff]
    %v722 = vld [vmem:[#allocation3 + $0xf30] sm:$0xff]
    %v723 = vld [vmem:[#allocation3 + $0xf38] sm:$0xff]
    %v724 = vld [vmem:[#allocation3 + $0xf40] sm:$0xff]
    %v725 = vld [vmem:[#allocation3 + $0xf48] sm:$0xff]
    %v726 = vld [vmem:[#allocation3 + $0xf50] sm:$0xff]
    %v727 = vld [vmem:[#allocation3 + $0xf58] sm:$0xff]
    %v728 = vld [vmem:[#allocation3 + $0xf60] sm:$0xff]
    %v729 = vld [vmem:[#allocation3 + $0xf68] sm:$0xff]
    %v730 = vld [vmem:[#allocation3 + $0xf70] sm:$0xff]
    %v731 = vld [vmem:[#allocation3 + $0xf78] sm:$0xff]
    %v732 = vld [vmem:[#allocation3 + $0xf80] sm:$0xff]
    %v733 = vld [vmem:[#allocation3 + $0xf88] sm:$0xff]
    %v734 = vld [vmem:[#allocation3 + $0xf90] sm:$0xff]
    %v735 = vld [vmem:[#allocation3 + $0xf98] sm:$0xff]
    %v736 = vld [vmem:[#allocation3 + $0xfa0] sm:$0xff]
    %v737 = vld [vmem:[#allocation3 + $0xfa8] sm:$0xff]
    %v738 = vld [vmem:[#allocation3 + $0xfb0] sm:$0xff]
    %v739 = vld [vmem:[#allocation3 + $0xfb8] sm:$0xff]
    %v740 = vld [vmem:[#allocation3 + $0xfc0] sm:$0xff]
    %v741 = vld [vmem:[#allocation3 + $0xfc8] sm:$0xff]
    %v742 = vld [vmem:[#allocation3 + $0xfd0] sm:$0xff]
    %v743 = vld [vmem:[#allocation3 + $0xfd8] sm:$0xff]
    %v744 = vld [vmem:[#allocation3 + $0xfe0] sm:$0xff]
    %v745 = vld [vmem:[#allocation3 + $0xfe8] sm:$0xff]
    %v746 = vld [vmem:[#allocation3 + $0xff0] sm:$0xff]
    %v747 = vld [vmem:[#allocation3 + $0xff8] sm:$0xff]
    %v1260 = vunpack.c.l.b16 %v236
    %v1261 = vunpack.c.h.b16 %v236
    %v1262 = vunpack.c.l.b16 %v237
    %v1263 = vunpack.c.h.b16 %v237
    %v1264 = vunpack.c.l.b16 %v238
    %v1265 = vunpack.c.h.b16 %v238
    %v1266 = vunpack.c.l.b16 %v239
    %v1267 = vunpack.c.h.b16 %v239
    %v1268 = vunpack.c.l.b16 %v240
    %v1269 = vunpack.c.h.b16 %v240
    %v1270 = vunpack.c.l.b16 %v241
    %v1271 = vunpack.c.h.b16 %v241
    %v1272 = vunpack.c.l.b16 %v242
    %v1273 = vunpack.c.h.b16 %v242
    %v1274 = vunpack.c.l.b16 %v243
    %v1275 = vunpack.c.h.b16 %v243
    %v1276 = vunpack.c.l.b16 %v244
    %v1277 = vunpack.c.h.b16 %v244
    %v1278 = vunpack.c.l.b16 %v245
    %v1279 = vunpack.c.h.b16 %v245
    %v1280 = vunpack.c.l.b16 %v246
    %v1281 = vunpack.c.h.b16 %v246
    %v1282 = vunpack.c.l.b16 %v247
    %v1283 = vunpack.c.h.b16 %v247
    %v1284 = vunpack.c.l.b16 %v248
    %v1285 = vunpack.c.h.b16 %v248
    %v1286 = vunpack.c.l.b16 %v249
    %v1287 = vunpack.c.h.b16 %v249
    %v1288 = vunpack.c.l.b16 %v250
    %v1289 = vunpack.c.h.b16 %v250
    %v1290 = vunpack.c.l.b16 %v251
    %v1291 = vunpack.c.h.b16 %v251
    %v1292 = vunpack.c.l.b16 %v252
    %v1293 = vunpack.c.h.b16 %v252
    %v1294 = vunpack.c.l.b16 %v253
    %v1295 = vunpack.c.h.b16 %v253
    %v1296 = vunpack.c.l.b16 %v254
    %v1297 = vunpack.c.h.b16 %v254
    %v1298 = vunpack.c.l.b16 %v255
    %v1299 = vunpack.c.h.b16 %v255
    %v1300 = vunpack.c.l.b16 %v256
    %v1301 = vunpack.c.h.b16 %v256
    %v1302 = vunpack.c.l.b16 %v257
    %v1303 = vunpack.c.h.b16 %v257
    %v1304 = vunpack.c.l.b16 %v258
    %v1305 = vunpack.c.h.b16 %v258
    %v1306 = vunpack.c.l.b16 %v259
    %v1307 = vunpack.c.h.b16 %v259
    %v1308 = vunpack.c.l.b16 %v260
    %v1309 = vunpack.c.h.b16 %v260
    %v1310 = vunpack.c.l.b16 %v261
    %v1311 = vunpack.c.h.b16 %v261
    %v1312 = vunpack.c.l.b16 %v262
    %v1313 = vunpack.c.h.b16 %v262
    %v1314 = vunpack.c.l.b16 %v263
    %v1315 = vunpack.c.h.b16 %v263
    %v1316 = vunpack.c.l.b16 %v264
    %v1317 = vunpack.c.h.b16 %v264
    %v1318 = vunpack.c.l.b16 %v265
    %v1319 = vunpack.c.h.b16 %v265
    %v1320 = vunpack.c.l.b16 %v266
    %v1321 = vunpack.c.h.b16 %v266
    %v1322 = vunpack.c.l.b16 %v267
    %v1323 = vunpack.c.h.b16 %v267
    %v1324 = vunpack.c.l.b16 %v268
    %v1325 = vunpack.c.h.b16 %v268
    %v1326 = vunpack.c.l.b16 %v269
    %v1327 = vunpack.c.h.b16 %v269
    %v1328 = vunpack.c.l.b16 %v270
    %v1329 = vunpack.c.h.b16 %v270
    %v1330 = vunpack.c.l.b16 %v271
    %v1331 = vunpack.c.h.b16 %v271
    %v1332 = vunpack.c.l.b16 %v272
    %v1333 = vunpack.c.h.b16 %v272
    %v1334 = vunpack.c.l.b16 %v273
    %v1335 = vunpack.c.h.b16 %v273
    %v1336 = vunpack.c.l.b16 %v274
    %v1337 = vunpack.c.h.b16 %v274
    %v1338 = vunpack.c.l.b16 %v275
    %v1339 = vunpack.c.h.b16 %v275
    %v1340 = vunpack.c.l.b16 %v276
    %v1341 = vunpack.c.h.b16 %v276
    %v1342 = vunpack.c.l.b16 %v277
    %v1343 = vunpack.c.h.b16 %v277
    %v1344 = vunpack.c.l.b16 %v278
    %v1345 = vunpack.c.h.b16 %v278
    %v1346 = vunpack.c.l.b16 %v279
    %v1347 = vunpack.c.h.b16 %v279
    %v1348 = vunpack.c.l.b16 %v280
    %v1349 = vunpack.c.h.b16 %v280
    %v1350 = vunpack.c.l.b16 %v281
    %v1351 = vunpack.c.h.b16 %v281
    %v1352 = vunpack.c.l.b16 %v282
    %v1353 = vunpack.c.h.b16 %v282
    %v1354 = vunpack.c.l.b16 %v283
    %v1355 = vunpack.c.h.b16 %v283
    %v1356 = vunpack.c.l.b16 %v284
    %v1357 = vunpack.c.h.b16 %v284
    %v1358 = vunpack.c.l.b16 %v285
    %v1359 = vunpack.c.h.b16 %v285
    %v1360 = vunpack.c.l.b16 %v286
    %v1361 = vunpack.c.h.b16 %v286
    %v1362 = vunpack.c.l.b16 %v287
    %v1363 = vunpack.c.h.b16 %v287
    %v1364 = vunpack.c.l.b16 %v288
    %v1365 = vunpack.c.h.b16 %v288
    %v1366 = vunpack.c.l.b16 %v289
    %v1367 = vunpack.c.h.b16 %v289
    %v1368 = vunpack.c.l.b16 %v290
    %v1369 = vunpack.c.h.b16 %v290
    %v1370 = vunpack.c.l.b16 %v291
    %v1371 = vunpack.c.h.b16 %v291
    %v1372 = vunpack.c.l.b16 %v292
    %v1373 = vunpack.c.h.b16 %v292
    %v1374 = vunpack.c.l.b16 %v293
    %v1375 = vunpack.c.h.b16 %v293
    %v1376 = vunpack.c.l.b16 %v294
    %v1377 = vunpack.c.h.b16 %v294
    %v1378 = vunpack.c.l.b16 %v295
    %v1379 = vunpack.c.h.b16 %v295
    %v1380 = vunpack.c.l.b16 %v296
    %v1381 = vunpack.c.h.b16 %v296
    %v1382 = vunpack.c.l.b16 %v297
    %v1383 = vunpack.c.h.b16 %v297
    %v1384 = vunpack.c.l.b16 %v298
    %v1385 = vunpack.c.h.b16 %v298
    %v1386 = vunpack.c.l.b16 %v299
    %v1387 = vunpack.c.h.b16 %v299
    %v1388 = vunpack.c.l.b16 %v300
    %v1389 = vunpack.c.h.b16 %v300
    %v1390 = vunpack.c.l.b16 %v301
    %v1391 = vunpack.c.h.b16 %v301
    %v1392 = vunpack.c.l.b16 %v302
    %v1393 = vunpack.c.h.b16 %v302
    %v1394 = vunpack.c.l.b16 %v303
    %v1395 = vunpack.c.h.b16 %v303
    %v1396 = vunpack.c.l.b16 %v304
    %v1397 = vunpack.c.h.b16 %v304
    %v1398 = vunpack.c.l.b16 %v305
    %v1399 = vunpack.c.h.b16 %v305
    %v1400 = vunpack.c.l.b16 %v306
    %v1401 = vunpack.c.h.b16 %v306
    %v1402 = vunpack.c.l.b16 %v307
    %v1403 = vunpack.c.h.b16 %v307
    %v1404 = vunpack.c.l.b16 %v308
    %v1405 = vunpack.c.h.b16 %v308
    %v1406 = vunpack.c.l.b16 %v309
    %v1407 = vunpack.c.h.b16 %v309
    %v1408 = vunpack.c.l.b16 %v310
    %v1409 = vunpack.c.h.b16 %v310
    %v1410 = vunpack.c.l.b16 %v311
    %v1411 = vunpack.c.h.b16 %v311
    %v1412 = vunpack.c.l.b16 %v312
    %v1413 = vunpack.c.h.b16 %v312
    %v1414 = vunpack.c.l.b16 %v313
    %v1415 = vunpack.c.h.b16 %v313
    %v1416 = vunpack.c.l.b16 %v314
    %v1417 = vunpack.c.h.b16 %v314
    %v1418 = vunpack.c.l.b16 %v315
    %v1419 = vunpack.c.h.b16 %v315
    %v1420 = vunpack.c.l.b16 %v316
    %v1421 = vunpack.c.h.b16 %v316
    %v1422 = vunpack.c.l.b16 %v317
    %v1423 = vunpack.c.h.b16 %v317
    %v1424 = vunpack.c.l.b16 %v318
    %v1425 = vunpack.c.h.b16 %v318
    %v1426 = vunpack.c.l.b16 %v319
    %v1427 = vunpack.c.h.b16 %v319
    %v1428 = vunpack.c.l.b16 %v320
    %v1429 = vunpack.c.h.b16 %v320
    %v1430 = vunpack.c.l.b16 %v321
    %v1431 = vunpack.c.h.b16 %v321
    %v1432 = vunpack.c.l.b16 %v322
    %v1433 = vunpack.c.h.b16 %v322
    %v1434 = vunpack.c.l.b16 %v323
    %v1435 = vunpack.c.h.b16 %v323
    %v1436 = vunpack.c.l.b16 %v324
    %v1437 = vunpack.c.h.b16 %v324
    %v1438 = vunpack.c.l.b16 %v325
    %v1439 = vunpack.c.h.b16 %v325
    %v1440 = vunpack.c.l.b16 %v326
    %v1441 = vunpack.c.h.b16 %v326
    %v1442 = vunpack.c.l.b16 %v327
    %v1443 = vunpack.c.h.b16 %v327
    %v1444 = vunpack.c.l.b16 %v328
    %v1445 = vunpack.c.h.b16 %v328
    %v1446 = vunpack.c.l.b16 %v329
    %v1447 = vunpack.c.h.b16 %v329
    %v1448 = vunpack.c.l.b16 %v330
    %v1449 = vunpack.c.h.b16 %v330
    %v1450 = vunpack.c.l.b16 %v331
    %v1451 = vunpack.c.h.b16 %v331
    %v1452 = vunpack.c.l.b16 %v332
    %v1453 = vunpack.c.h.b16 %v332
    %v1454 = vunpack.c.l.b16 %v333
    %v1455 = vunpack.c.h.b16 %v333
    %v1456 = vunpack.c.l.b16 %v334
    %v1457 = vunpack.c.h.b16 %v334
    %v1458 = vunpack.c.l.b16 %v335
    %v1459 = vunpack.c.h.b16 %v335
    %v1460 = vunpack.c.l.b16 %v336
    %v1461 = vunpack.c.h.b16 %v336
    %v1462 = vunpack.c.l.b16 %v337
    %v1463 = vunpack.c.h.b16 %v337
    %v1464 = vunpack.c.l.b16 %v338
    %v1465 = vunpack.c.h.b16 %v338
    %v1466 = vunpack.c.l.b16 %v339
    %v1467 = vunpack.c.h.b16 %v339
    %v1468 = vunpack.c.l.b16 %v340
    %v1469 = vunpack.c.h.b16 %v340
    %v1470 = vunpack.c.l.b16 %v341
    %v1471 = vunpack.c.h.b16 %v341
    %v1472 = vunpack.c.l.b16 %v342
    %v1473 = vunpack.c.h.b16 %v342
    %v1474 = vunpack.c.l.b16 %v343
    %v1475 = vunpack.c.h.b16 %v343
    %v1476 = vunpack.c.l.b16 %v344
    %v1477 = vunpack.c.h.b16 %v344
    %v1478 = vunpack.c.l.b16 %v345
    %v1479 = vunpack.c.h.b16 %v345
    %v1480 = vunpack.c.l.b16 %v346
    %v1481 = vunpack.c.h.b16 %v346
    %v1482 = vunpack.c.l.b16 %v347
    %v1483 = vunpack.c.h.b16 %v347
    %v1484 = vunpack.c.l.b16 %v348
    %v1485 = vunpack.c.h.b16 %v348
    %v1486 = vunpack.c.l.b16 %v349
    %v1487 = vunpack.c.h.b16 %v349
    %v1488 = vunpack.c.l.b16 %v350
    %v1489 = vunpack.c.h.b16 %v350
    %v1490 = vunpack.c.l.b16 %v351
    %v1491 = vunpack.c.h.b16 %v351
    %v1492 = vunpack.c.l.b16 %v352
    %v1493 = vunpack.c.h.b16 %v352
    %v1494 = vunpack.c.l.b16 %v353
    %v1495 = vunpack.c.h.b16 %v353
    %v1496 = vunpack.c.l.b16 %v354
    %v1497 = vunpack.c.h.b16 %v354
    %v1498 = vunpack.c.l.b16 %v355
    %v1499 = vunpack.c.h.b16 %v355
    %v1500 = vunpack.c.l.b16 %v356
    %v1501 = vunpack.c.h.b16 %v356
    %v1502 = vunpack.c.l.b16 %v357
    %v1503 = vunpack.c.h.b16 %v357
    %v1504 = vunpack.c.l.b16 %v358
    %v1505 = vunpack.c.h.b16 %v358
    %v1506 = vunpack.c.l.b16 %v359
    %v1507 = vunpack.c.h.b16 %v359
    %v1508 = vunpack.c.l.b16 %v360
    %v1509 = vunpack.c.h.b16 %v360
    %v1510 = vunpack.c.l.b16 %v361
    %v1511 = vunpack.c.h.b16 %v361
    %v1512 = vunpack.c.l.b16 %v362
    %v1513 = vunpack.c.h.b16 %v362
    %v1514 = vunpack.c.l.b16 %v363
    %v1515 = vunpack.c.h.b16 %v363
    %v1516 = vunpack.c.l.b16 %v364
    %v1517 = vunpack.c.h.b16 %v364
    %v1518 = vunpack.c.l.b16 %v365
    %v1519 = vunpack.c.h.b16 %v365
    %v1520 = vunpack.c.l.b16 %v366
    %v1521 = vunpack.c.h.b16 %v366
    %v1522 = vunpack.c.l.b16 %v367
    %v1523 = vunpack.c.h.b16 %v367
    %v1524 = vunpack.c.l.b16 %v368
    %v1525 = vunpack.c.h.b16 %v368
    %v1526 = vunpack.c.l.b16 %v369
    %v1527 = vunpack.c.h.b16 %v369
    %v1528 = vunpack.c.l.b16 %v370
    %v1529 = vunpack.c.h.b16 %v370
    %v1530 = vunpack.c.l.b16 %v371
    %v1531 = vunpack.c.h.b16 %v371
    %v1532 = vunpack.c.l.b16 %v372
    %v1533 = vunpack.c.h.b16 %v372
    %v1534 = vunpack.c.l.b16 %v373
    %v1535 = vunpack.c.h.b16 %v373
    %v1536 = vunpack.c.l.b16 %v374
    %v1537 = vunpack.c.h.b16 %v374
    %v1538 = vunpack.c.l.b16 %v375
    %v1539 = vunpack.c.h.b16 %v375
    %v1540 = vunpack.c.l.b16 %v376
    %v1541 = vunpack.c.h.b16 %v376
    %v1542 = vunpack.c.l.b16 %v377
    %v1543 = vunpack.c.h.b16 %v377
    %v1544 = vunpack.c.l.b16 %v378
    %v1545 = vunpack.c.h.b16 %v378
    %v1546 = vunpack.c.l.b16 %v379
    %v1547 = vunpack.c.h.b16 %v379
    %v1548 = vunpack.c.l.b16 %v380
    %v1549 = vunpack.c.h.b16 %v380
    %v1550 = vunpack.c.l.b16 %v381
    %v1551 = vunpack.c.h.b16 %v381
    %v1552 = vunpack.c.l.b16 %v382
    %v1553 = vunpack.c.h.b16 %v382
    %v1554 = vunpack.c.l.b16 %v383
    %v1555 = vunpack.c.h.b16 %v383
    %v1556 = vunpack.c.l.b16 %v384
    %v1557 = vunpack.c.h.b16 %v384
    %v1558 = vunpack.c.l.b16 %v385
    %v1559 = vunpack.c.h.b16 %v385
    %v1560 = vunpack.c.l.b16 %v386
    %v1561 = vunpack.c.h.b16 %v386
    %v1562 = vunpack.c.l.b16 %v387
    %v1563 = vunpack.c.h.b16 %v387
    %v1564 = vunpack.c.l.b16 %v388
    %v1565 = vunpack.c.h.b16 %v388
    %v1566 = vunpack.c.l.b16 %v389
    %v1567 = vunpack.c.h.b16 %v389
    %v1568 = vunpack.c.l.b16 %v390
    %v1569 = vunpack.c.h.b16 %v390
    %v1570 = vunpack.c.l.b16 %v391
    %v1571 = vunpack.c.h.b16 %v391
    %v1572 = vunpack.c.l.b16 %v392
    %v1573 = vunpack.c.h.b16 %v392
    %v1574 = vunpack.c.l.b16 %v393
    %v1575 = vunpack.c.h.b16 %v393
    %v1576 = vunpack.c.l.b16 %v394
    %v1577 = vunpack.c.h.b16 %v394
    %v1578 = vunpack.c.l.b16 %v395
    %v1579 = vunpack.c.h.b16 %v395
    %v1580 = vunpack.c.l.b16 %v396
    %v1581 = vunpack.c.h.b16 %v396
    %v1582 = vunpack.c.l.b16 %v397
    %v1583 = vunpack.c.h.b16 %v397
    %v1584 = vunpack.c.l.b16 %v398
    %v1585 = vunpack.c.h.b16 %v398
    %v1586 = vunpack.c.l.b16 %v399
    %v1587 = vunpack.c.h.b16 %v399
    %v1588 = vunpack.c.l.b16 %v400
    %v1589 = vunpack.c.h.b16 %v400
    %v1590 = vunpack.c.l.b16 %v401
    %v1591 = vunpack.c.h.b16 %v401
    %v1592 = vunpack.c.l.b16 %v402
    %v1593 = vunpack.c.h.b16 %v402
    %v1594 = vunpack.c.l.b16 %v403
    %v1595 = vunpack.c.h.b16 %v403
    %v1596 = vunpack.c.l.b16 %v404
    %v1597 = vunpack.c.h.b16 %v404
    %v1598 = vunpack.c.l.b16 %v405
    %v1599 = vunpack.c.h.b16 %v405
    %v1600 = vunpack.c.l.b16 %v406
    %v1601 = vunpack.c.h.b16 %v406
    %v1602 = vunpack.c.l.b16 %v407
    %v1603 = vunpack.c.h.b16 %v407
    %v1604 = vunpack.c.l.b16 %v408
    %v1605 = vunpack.c.h.b16 %v408
    %v1606 = vunpack.c.l.b16 %v409
    %v1607 = vunpack.c.h.b16 %v409
    %v1608 = vunpack.c.l.b16 %v410
    %v1609 = vunpack.c.h.b16 %v410
    %v1610 = vunpack.c.l.b16 %v411
    %v1611 = vunpack.c.h.b16 %v411
    %v1612 = vunpack.c.l.b16 %v412
    %v1613 = vunpack.c.h.b16 %v412
    %v1614 = vunpack.c.l.b16 %v413
    %v1615 = vunpack.c.h.b16 %v413
    %v1616 = vunpack.c.l.b16 %v414
    %v1617 = vunpack.c.h.b16 %v414
    %v1618 = vunpack.c.l.b16 %v415
    %v1619 = vunpack.c.h.b16 %v415
    %v1620 = vunpack.c.l.b16 %v416
    %v1621 = vunpack.c.h.b16 %v416
    %v1622 = vunpack.c.l.b16 %v417
    %v1623 = vunpack.c.h.b16 %v417
    %v1624 = vunpack.c.l.b16 %v418
    %v1625 = vunpack.c.h.b16 %v418
    %v1626 = vunpack.c.l.b16 %v419
    %v1627 = vunpack.c.h.b16 %v419
    %v1628 = vunpack.c.l.b16 %v420
    %v1629 = vunpack.c.h.b16 %v420
    %v1630 = vunpack.c.l.b16 %v421
    %v1631 = vunpack.c.h.b16 %v421
    %v1632 = vunpack.c.l.b16 %v422
    %v1633 = vunpack.c.h.b16 %v422
    %v1634 = vunpack.c.l.b16 %v423
    %v1635 = vunpack.c.h.b16 %v423
    %v1636 = vunpack.c.l.b16 %v424
    %v1637 = vunpack.c.h.b16 %v424
    %v1638 = vunpack.c.l.b16 %v425
    %v1639 = vunpack.c.h.b16 %v425
    %v1640 = vunpack.c.l.b16 %v426
    %v1641 = vunpack.c.h.b16 %v426
    %v1642 = vunpack.c.l.b16 %v427
    %v1643 = vunpack.c.h.b16 %v427
    %v1644 = vunpack.c.l.b16 %v428
    %v1645 = vunpack.c.h.b16 %v428
    %v1646 = vunpack.c.l.b16 %v429
    %v1647 = vunpack.c.h.b16 %v429
    %v1648 = vunpack.c.l.b16 %v430
    %v1649 = vunpack.c.h.b16 %v430
    %v1650 = vunpack.c.l.b16 %v431
    %v1651 = vunpack.c.h.b16 %v431
    %v1652 = vunpack.c.l.b16 %v432
    %v1653 = vunpack.c.h.b16 %v432
    %v1654 = vunpack.c.l.b16 %v433
    %v1655 = vunpack.c.h.b16 %v433
    %v1656 = vunpack.c.l.b16 %v434
    %v1657 = vunpack.c.h.b16 %v434
    %v1658 = vunpack.c.l.b16 %v435
    %v1659 = vunpack.c.h.b16 %v435
    %v1660 = vunpack.c.l.b16 %v436
    %v1661 = vunpack.c.h.b16 %v436
    %v1662 = vunpack.c.l.b16 %v437
    %v1663 = vunpack.c.h.b16 %v437
    %v1664 = vunpack.c.l.b16 %v438
    %v1665 = vunpack.c.h.b16 %v438
    %v1666 = vunpack.c.l.b16 %v439
    %v1667 = vunpack.c.h.b16 %v439
    %v1668 = vunpack.c.l.b16 %v440
    %v1669 = vunpack.c.h.b16 %v440
    %v1670 = vunpack.c.l.b16 %v441
    %v1671 = vunpack.c.h.b16 %v441
    %v1672 = vunpack.c.l.b16 %v442
    %v1673 = vunpack.c.h.b16 %v442
    %v1674 = vunpack.c.l.b16 %v443
    %v1675 = vunpack.c.h.b16 %v443
    %v1676 = vunpack.c.l.b16 %v444
    %v1677 = vunpack.c.h.b16 %v444
    %v1678 = vunpack.c.l.b16 %v445
    %v1679 = vunpack.c.h.b16 %v445
    %v1680 = vunpack.c.l.b16 %v446
    %v1681 = vunpack.c.h.b16 %v446
    %v1682 = vunpack.c.l.b16 %v447
    %v1683 = vunpack.c.h.b16 %v447
    %v1684 = vunpack.c.l.b16 %v448
    %v1685 = vunpack.c.h.b16 %v448
    %v1686 = vunpack.c.l.b16 %v449
    %v1687 = vunpack.c.h.b16 %v449
    %v1688 = vunpack.c.l.b16 %v450
    %v1689 = vunpack.c.h.b16 %v450
    %v1690 = vunpack.c.l.b16 %v451
    %v1691 = vunpack.c.h.b16 %v451
    %v1692 = vunpack.c.l.b16 %v452
    %v1693 = vunpack.c.h.b16 %v452
    %v1694 = vunpack.c.l.b16 %v453
    %v1695 = vunpack.c.h.b16 %v453
    %v1696 = vunpack.c.l.b16 %v454
    %v1697 = vunpack.c.h.b16 %v454
    %v1698 = vunpack.c.l.b16 %v455
    %v1699 = vunpack.c.h.b16 %v455
    %v1700 = vunpack.c.l.b16 %v456
    %v1701 = vunpack.c.h.b16 %v456
    %v1702 = vunpack.c.l.b16 %v457
    %v1703 = vunpack.c.h.b16 %v457
    %v1704 = vunpack.c.l.b16 %v458
    %v1705 = vunpack.c.h.b16 %v458
    %v1706 = vunpack.c.l.b16 %v459
    %v1707 = vunpack.c.h.b16 %v459
    %v1708 = vunpack.c.l.b16 %v460
    %v1709 = vunpack.c.h.b16 %v460
    %v1710 = vunpack.c.l.b16 %v461
    %v1711 = vunpack.c.h.b16 %v461
    %v1712 = vunpack.c.l.b16 %v462
    %v1713 = vunpack.c.h.b16 %v462
    %v1714 = vunpack.c.l.b16 %v463
    %v1715 = vunpack.c.h.b16 %v463
    %v1716 = vunpack.c.l.b16 %v464
    %v1717 = vunpack.c.h.b16 %v464
    %v1718 = vunpack.c.l.b16 %v465
    %v1719 = vunpack.c.h.b16 %v465
    %v1720 = vunpack.c.l.b16 %v466
    %v1721 = vunpack.c.h.b16 %v466
    %v1722 = vunpack.c.l.b16 %v467
    %v1723 = vunpack.c.h.b16 %v467
    %v1724 = vunpack.c.l.b16 %v468
    %v1725 = vunpack.c.h.b16 %v468
    %v1726 = vunpack.c.l.b16 %v469
    %v1727 = vunpack.c.h.b16 %v469
    %v1728 = vunpack.c.l.b16 %v470
    %v1729 = vunpack.c.h.b16 %v470
    %v1730 = vunpack.c.l.b16 %v471
    %v1731 = vunpack.c.h.b16 %v471
    %v1732 = vunpack.c.l.b16 %v472
    %v1733 = vunpack.c.h.b16 %v472
    %v1734 = vunpack.c.l.b16 %v473
    %v1735 = vunpack.c.h.b16 %v473
    %v1736 = vunpack.c.l.b16 %v474
    %v1737 = vunpack.c.h.b16 %v474
    %v1738 = vunpack.c.l.b16 %v475
    %v1739 = vunpack.c.h.b16 %v475
    %v1740 = vunpack.c.l.b16 %v476
    %v1741 = vunpack.c.h.b16 %v476
    %v1742 = vunpack.c.l.b16 %v477
    %v1743 = vunpack.c.h.b16 %v477
    %v1744 = vunpack.c.l.b16 %v478
    %v1745 = vunpack.c.h.b16 %v478
    %v1746 = vunpack.c.l.b16 %v479
    %v1747 = vunpack.c.h.b16 %v479
    %v1748 = vunpack.c.l.b16 %v480
    %v1749 = vunpack.c.h.b16 %v480
    %v1750 = vunpack.c.l.b16 %v481
    %v1751 = vunpack.c.h.b16 %v481
    %v1752 = vunpack.c.l.b16 %v482
    %v1753 = vunpack.c.h.b16 %v482
    %v1754 = vunpack.c.l.b16 %v483
    %v1755 = vunpack.c.h.b16 %v483
    %v1756 = vunpack.c.l.b16 %v484
    %v1757 = vunpack.c.h.b16 %v484
    %v1758 = vunpack.c.l.b16 %v485
    %v1759 = vunpack.c.h.b16 %v485
    %v1760 = vunpack.c.l.b16 %v486
    %v1761 = vunpack.c.h.b16 %v486
    %v1762 = vunpack.c.l.b16 %v487
    %v1763 = vunpack.c.h.b16 %v487
    %v1764 = vunpack.c.l.b16 %v488
    %v1765 = vunpack.c.h.b16 %v488
    %v1766 = vunpack.c.l.b16 %v489
    %v1767 = vunpack.c.h.b16 %v489
    %v1768 = vunpack.c.l.b16 %v490
    %v1769 = vunpack.c.h.b16 %v490
    %v1770 = vunpack.c.l.b16 %v491
    %v1771 = vunpack.c.h.b16 %v491
    %v1772 = vunpack.c.l.b16 %v492
    %v1773 = vunpack.c.h.b16 %v492
    %v1774 = vunpack.c.l.b16 %v493
    %v1775 = vunpack.c.h.b16 %v493
    %v1776 = vunpack.c.l.b16 %v494
    %v1777 = vunpack.c.h.b16 %v494
    %v1778 = vunpack.c.l.b16 %v495
    %v1779 = vunpack.c.h.b16 %v495
    %v1780 = vunpack.c.l.b16 %v496
    %v1781 = vunpack.c.h.b16 %v496
    %v1782 = vunpack.c.l.b16 %v497
    %v1783 = vunpack.c.h.b16 %v497
    %v1784 = vunpack.c.l.b16 %v498
    %v1785 = vunpack.c.h.b16 %v498
    %v1786 = vunpack.c.l.b16 %v499
    %v1787 = vunpack.c.h.b16 %v499
    %v1788 = vunpack.c.l.b16 %v500
    %v1789 = vunpack.c.h.b16 %v500
    %v1790 = vunpack.c.l.b16 %v501
    %v1791 = vunpack.c.h.b16 %v501
    %v1792 = vunpack.c.l.b16 %v502
    %v1793 = vunpack.c.h.b16 %v502
    %v1794 = vunpack.c.l.b16 %v503
    %v1795 = vunpack.c.h.b16 %v503
    %v1796 = vunpack.c.l.b16 %v504
    %v1797 = vunpack.c.h.b16 %v504
    %v1798 = vunpack.c.l.b16 %v505
    %v1799 = vunpack.c.h.b16 %v505
    %v1800 = vunpack.c.l.b16 %v506
    %v1801 = vunpack.c.h.b16 %v506
    %v1802 = vunpack.c.l.b16 %v507
    %v1803 = vunpack.c.h.b16 %v507
    %v1804 = vunpack.c.l.b16 %v508
    %v1805 = vunpack.c.h.b16 %v508
    %v1806 = vunpack.c.l.b16 %v509
    %v1807 = vunpack.c.h.b16 %v509
    %v1808 = vunpack.c.l.b16 %v510
    %v1809 = vunpack.c.h.b16 %v510
    %v1810 = vunpack.c.l.b16 %v511
    %v1811 = vunpack.c.h.b16 %v511
    %v1812 = vunpack.c.l.b16 %v512
    %v1813 = vunpack.c.h.b16 %v512
    %v1814 = vunpack.c.l.b16 %v513
    %v1815 = vunpack.c.h.b16 %v513
    %v1816 = vunpack.c.l.b16 %v514
    %v1817 = vunpack.c.h.b16 %v514
    %v1818 = vunpack.c.l.b16 %v515
    %v1819 = vunpack.c.h.b16 %v515
    %v1820 = vunpack.c.l.b16 %v516
    %v1821 = vunpack.c.h.b16 %v516
    %v1822 = vunpack.c.l.b16 %v517
    %v1823 = vunpack.c.h.b16 %v517
    %v1824 = vunpack.c.l.b16 %v518
    %v1825 = vunpack.c.h.b16 %v518
    %v1826 = vunpack.c.l.b16 %v519
    %v1827 = vunpack.c.h.b16 %v519
    %v1828 = vunpack.c.l.b16 %v520
    %v1829 = vunpack.c.h.b16 %v520
    %v1830 = vunpack.c.l.b16 %v521
    %v1831 = vunpack.c.h.b16 %v521
    %v1832 = vunpack.c.l.b16 %v522
    %v1833 = vunpack.c.h.b16 %v522
    %v1834 = vunpack.c.l.b16 %v523
    %v1835 = vunpack.c.h.b16 %v523
    %v1836 = vunpack.c.l.b16 %v524
    %v1837 = vunpack.c.h.b16 %v524
    %v1838 = vunpack.c.l.b16 %v525
    %v1839 = vunpack.c.h.b16 %v525
    %v1840 = vunpack.c.l.b16 %v526
    %v1841 = vunpack.c.h.b16 %v526
    %v1842 = vunpack.c.l.b16 %v527
    %v1843 = vunpack.c.h.b16 %v527
    %v1844 = vunpack.c.l.b16 %v528
    %v1845 = vunpack.c.h.b16 %v528
    %v1846 = vunpack.c.l.b16 %v529
    %v1847 = vunpack.c.h.b16 %v529
    %v1848 = vunpack.c.l.b16 %v530
    %v1849 = vunpack.c.h.b16 %v530
    %v1850 = vunpack.c.l.b16 %v531
    %v1851 = vunpack.c.h.b16 %v531
    %v1852 = vunpack.c.l.b16 %v532
    %v1853 = vunpack.c.h.b16 %v532
    %v1854 = vunpack.c.l.b16 %v533
    %v1855 = vunpack.c.h.b16 %v533
    %v1856 = vunpack.c.l.b16 %v534
    %v1857 = vunpack.c.h.b16 %v534
    %v1858 = vunpack.c.l.b16 %v535
    %v1859 = vunpack.c.h.b16 %v535
    %v1860 = vunpack.c.l.b16 %v536
    %v1861 = vunpack.c.h.b16 %v536
    %v1862 = vunpack.c.l.b16 %v537
    %v1863 = vunpack.c.h.b16 %v537
    %v1864 = vunpack.c.l.b16 %v538
    %v1865 = vunpack.c.h.b16 %v538
    %v1866 = vunpack.c.l.b16 %v539
    %v1867 = vunpack.c.h.b16 %v539
    %v1868 = vunpack.c.l.b16 %v540
    %v1869 = vunpack.c.h.b16 %v540
    %v1870 = vunpack.c.l.b16 %v541
    %v1871 = vunpack.c.h.b16 %v541
    %v1872 = vunpack.c.l.b16 %v542
    %v1873 = vunpack.c.h.b16 %v542
    %v1874 = vunpack.c.l.b16 %v543
    %v1875 = vunpack.c.h.b16 %v543
    %v1876 = vunpack.c.l.b16 %v544
    %v1877 = vunpack.c.h.b16 %v544
    %v1878 = vunpack.c.l.b16 %v545
    %v1879 = vunpack.c.h.b16 %v545
    %v1880 = vunpack.c.l.b16 %v546
    %v1881 = vunpack.c.h.b16 %v546
    %v1882 = vunpack.c.l.b16 %v547
    %v1883 = vunpack.c.h.b16 %v547
    %v1884 = vunpack.c.l.b16 %v548
    %v1885 = vunpack.c.h.b16 %v548
    %v1886 = vunpack.c.l.b16 %v549
    %v1887 = vunpack.c.h.b16 %v549
    %v1888 = vunpack.c.l.b16 %v550
    %v1889 = vunpack.c.h.b16 %v550
    %v1890 = vunpack.c.l.b16 %v551
    %v1891 = vunpack.c.h.b16 %v551
    %v1892 = vunpack.c.l.b16 %v552
    %v1893 = vunpack.c.h.b16 %v552
    %v1894 = vunpack.c.l.b16 %v553
    %v1895 = vunpack.c.h.b16 %v553
    %v1896 = vunpack.c.l.b16 %v554
    %v1897 = vunpack.c.h.b16 %v554
    %v1898 = vunpack.c.l.b16 %v555
    %v1899 = vunpack.c.h.b16 %v555
    %v1900 = vunpack.c.l.b16 %v556
    %v1901 = vunpack.c.h.b16 %v556
    %v1902 = vunpack.c.l.b16 %v557
    %v1903 = vunpack.c.h.b16 %v557
    %v1904 = vunpack.c.l.b16 %v558
    %v1905 = vunpack.c.h.b16 %v558
    %v1906 = vunpack.c.l.b16 %v559
    %v1907 = vunpack.c.h.b16 %v559
    %v1908 = vunpack.c.l.b16 %v560
    %v1909 = vunpack.c.h.b16 %v560
    %v1910 = vunpack.c.l.b16 %v561
    %v1911 = vunpack.c.h.b16 %v561
    %v1912 = vunpack.c.l.b16 %v562
    %v1913 = vunpack.c.h.b16 %v562
    %v1914 = vunpack.c.l.b16 %v563
    %v1915 = vunpack.c.h.b16 %v563
    %v1916 = vunpack.c.l.b16 %v564
    %v1917 = vunpack.c.h.b16 %v564
    %v1918 = vunpack.c.l.b16 %v565
    %v1919 = vunpack.c.h.b16 %v565
    %v1920 = vunpack.c.l.b16 %v566
    %v1921 = vunpack.c.h.b16 %v566
    %v1922 = vunpack.c.l.b16 %v567
    %v1923 = vunpack.c.h.b16 %v567
    %v1924 = vunpack.c.l.b16 %v568
    %v1925 = vunpack.c.h.b16 %v568
    %v1926 = vunpack.c.l.b16 %v569
    %v1927 = vunpack.c.h.b16 %v569
    %v1928 = vunpack.c.l.b16 %v570
    %v1929 = vunpack.c.h.b16 %v570
    %v1930 = vunpack.c.l.b16 %v571
    %v1931 = vunpack.c.h.b16 %v571
    %v1932 = vunpack.c.l.b16 %v572
    %v1933 = vunpack.c.h.b16 %v572
    %v1934 = vunpack.c.l.b16 %v573
    %v1935 = vunpack.c.h.b16 %v573
    %v1936 = vunpack.c.l.b16 %v574
    %v1937 = vunpack.c.h.b16 %v574
    %v1938 = vunpack.c.l.b16 %v575
    %v1939 = vunpack.c.h.b16 %v575
    %v1940 = vunpack.c.l.b16 %v576
    %v1941 = vunpack.c.h.b16 %v576
    %v1942 = vunpack.c.l.b16 %v577
    %v1943 = vunpack.c.h.b16 %v577
    %v1944 = vunpack.c.l.b16 %v578
    %v1945 = vunpack.c.h.b16 %v578
    %v1946 = vunpack.c.l.b16 %v579
    %v1947 = vunpack.c.h.b16 %v579
    %v1948 = vunpack.c.l.b16 %v580
    %v1949 = vunpack.c.h.b16 %v580
    %v1950 = vunpack.c.l.b16 %v581
    %v1951 = vunpack.c.h.b16 %v581
    %v1952 = vunpack.c.l.b16 %v582
    %v1953 = vunpack.c.h.b16 %v582
    %v1954 = vunpack.c.l.b16 %v583
    %v1955 = vunpack.c.h.b16 %v583
    %v1956 = vunpack.c.l.b16 %v584
    %v1957 = vunpack.c.h.b16 %v584
    %v1958 = vunpack.c.l.b16 %v585
    %v1959 = vunpack.c.h.b16 %v585
    %v1960 = vunpack.c.l.b16 %v586
    %v1961 = vunpack.c.h.b16 %v586
    %v1962 = vunpack.c.l.b16 %v587
    %v1963 = vunpack.c.h.b16 %v587
    %v1964 = vunpack.c.l.b16 %v588
    %v1965 = vunpack.c.h.b16 %v588
    %v1966 = vunpack.c.l.b16 %v589
    %v1967 = vunpack.c.h.b16 %v589
    %v1968 = vunpack.c.l.b16 %v590
    %v1969 = vunpack.c.h.b16 %v590
    %v1970 = vunpack.c.l.b16 %v591
    %v1971 = vunpack.c.h.b16 %v591
    %v1972 = vunpack.c.l.b16 %v592
    %v1973 = vunpack.c.h.b16 %v592
    %v1974 = vunpack.c.l.b16 %v593
    %v1975 = vunpack.c.h.b16 %v593
    %v1976 = vunpack.c.l.b16 %v594
    %v1977 = vunpack.c.h.b16 %v594
    %v1978 = vunpack.c.l.b16 %v595
    %v1979 = vunpack.c.h.b16 %v595
    %v1980 = vunpack.c.l.b16 %v596
    %v1981 = vunpack.c.h.b16 %v596
    %v1982 = vunpack.c.l.b16 %v597
    %v1983 = vunpack.c.h.b16 %v597
    %v1984 = vunpack.c.l.b16 %v598
    %v1985 = vunpack.c.h.b16 %v598
    %v1986 = vunpack.c.l.b16 %v599
    %v1987 = vunpack.c.h.b16 %v599
    %v1988 = vunpack.c.l.b16 %v600
    %v1989 = vunpack.c.h.b16 %v600
    %v1990 = vunpack.c.l.b16 %v601
    %v1991 = vunpack.c.h.b16 %v601
    %v1992 = vunpack.c.l.b16 %v602
    %v1993 = vunpack.c.h.b16 %v602
    %v1994 = vunpack.c.l.b16 %v603
    %v1995 = vunpack.c.h.b16 %v603
    %v1996 = vunpack.c.l.b16 %v604
    %v1997 = vunpack.c.h.b16 %v604
    %v1998 = vunpack.c.l.b16 %v605
    %v1999 = vunpack.c.h.b16 %v605
    %v2000 = vunpack.c.l.b16 %v606
    %v2001 = vunpack.c.h.b16 %v606
    %v2002 = vunpack.c.l.b16 %v607
    %v2003 = vunpack.c.h.b16 %v607
    %v2004 = vunpack.c.l.b16 %v608
    %v2005 = vunpack.c.h.b16 %v608
    %v2006 = vunpack.c.l.b16 %v609
    %v2007 = vunpack.c.h.b16 %v609
    %v2008 = vunpack.c.l.b16 %v610
    %v2009 = vunpack.c.h.b16 %v610
    %v2010 = vunpack.c.l.b16 %v611
    %v2011 = vunpack.c.h.b16 %v611
    %v2012 = vunpack.c.l.b16 %v612
    %v2013 = vunpack.c.h.b16 %v612
    %v2014 = vunpack.c.l.b16 %v613
    %v2015 = vunpack.c.h.b16 %v613
    %v2016 = vunpack.c.l.b16 %v614
    %v2017 = vunpack.c.h.b16 %v614
    %v2018 = vunpack.c.l.b16 %v615
    %v2019 = vunpack.c.h.b16 %v615
    %v2020 = vunpack.c.l.b16 %v616
    %v2021 = vunpack.c.h.b16 %v616
    %v2022 = vunpack.c.l.b16 %v617
    %v2023 = vunpack.c.h.b16 %v617
    %v2024 = vunpack.c.l.b16 %v618
    %v2025 = vunpack.c.h.b16 %v618
    %v2026 = vunpack.c.l.b16 %v619
    %v2027 = vunpack.c.h.b16 %v619
    %v2028 = vunpack.c.l.b16 %v620
    %v2029 = vunpack.c.h.b16 %v620
    %v2030 = vunpack.c.l.b16 %v621
    %v2031 = vunpack.c.h.b16 %v621
    %v2032 = vunpack.c.l.b16 %v622
    %v2033 = vunpack.c.h.b16 %v622
    %v2034 = vunpack.c.l.b16 %v623
    %v2035 = vunpack.c.h.b16 %v623
    %v2036 = vunpack.c.l.b16 %v624
    %v2037 = vunpack.c.h.b16 %v624
    %v2038 = vunpack.c.l.b16 %v625
    %v2039 = vunpack.c.h.b16 %v625
    %v2040 = vunpack.c.l.b16 %v626
    %v2041 = vunpack.c.h.b16 %v626
    %v2042 = vunpack.c.l.b16 %v627
    %v2043 = vunpack.c.h.b16 %v627
    %v2044 = vunpack.c.l.b16 %v628
    %v2045 = vunpack.c.h.b16 %v628
    %v2046 = vunpack.c.l.b16 %v629
    %v2047 = vunpack.c.h.b16 %v629
    %v2048 = vunpack.c.l.b16 %v630
    %v2049 = vunpack.c.h.b16 %v630
    %v2050 = vunpack.c.l.b16 %v631
    %v2051 = vunpack.c.h.b16 %v631
    %v2052 = vunpack.c.l.b16 %v632
    %v2053 = vunpack.c.h.b16 %v632
    %v2054 = vunpack.c.l.b16 %v633
    %v2055 = vunpack.c.h.b16 %v633
    %v2056 = vunpack.c.l.b16 %v634
    %v2057 = vunpack.c.h.b16 %v634
    %v2058 = vunpack.c.l.b16 %v635
    %v2059 = vunpack.c.h.b16 %v635
    %v2060 = vunpack.c.l.b16 %v636
    %v2061 = vunpack.c.h.b16 %v636
    %v2062 = vunpack.c.l.b16 %v637
    %v2063 = vunpack.c.h.b16 %v637
    %v2064 = vunpack.c.l.b16 %v638
    %v2065 = vunpack.c.h.b16 %v638
    %v2066 = vunpack.c.l.b16 %v639
    %v2067 = vunpack.c.h.b16 %v639
    %v2068 = vunpack.c.l.b16 %v640
    %v2069 = vunpack.c.h.b16 %v640
    %v2070 = vunpack.c.l.b16 %v641
    %v2071 = vunpack.c.h.b16 %v641
    %v2072 = vunpack.c.l.b16 %v642
    %v2073 = vunpack.c.h.b16 %v642
    %v2074 = vunpack.c.l.b16 %v643
    %v2075 = vunpack.c.h.b16 %v643
    %v2076 = vunpack.c.l.b16 %v644
    %v2077 = vunpack.c.h.b16 %v644
    %v2078 = vunpack.c.l.b16 %v645
    %v2079 = vunpack.c.h.b16 %v645
    %v2080 = vunpack.c.l.b16 %v646
    %v2081 = vunpack.c.h.b16 %v646
    %v2082 = vunpack.c.l.b16 %v647
    %v2083 = vunpack.c.h.b16 %v647
    %v2084 = vunpack.c.l.b16 %v648
    %v2085 = vunpack.c.h.b16 %v648
    %v2086 = vunpack.c.l.b16 %v649
    %v2087 = vunpack.c.h.b16 %v649
    %v2088 = vunpack.c.l.b16 %v650
    %v2089 = vunpack.c.h.b16 %v650
    %v2090 = vunpack.c.l.b16 %v651
    %v2091 = vunpack.c.h.b16 %v651
    %v2092 = vunpack.c.l.b16 %v652
    %v2093 = vunpack.c.h.b16 %v652
    %v2094 = vunpack.c.l.b16 %v653
    %v2095 = vunpack.c.h.b16 %v653
    %v2096 = vunpack.c.l.b16 %v654
    %v2097 = vunpack.c.h.b16 %v654
    %v2098 = vunpack.c.l.b16 %v655
    %v2099 = vunpack.c.h.b16 %v655
    %v2100 = vunpack.c.l.b16 %v656
    %v2101 = vunpack.c.h.b16 %v656
    %v2102 = vunpack.c.l.b16 %v657
    %v2103 = vunpack.c.h.b16 %v657
    %v2104 = vunpack.c.l.b16 %v658
    %v2105 = vunpack.c.h.b16 %v658
    %v2106 = vunpack.c.l.b16 %v659
    %v2107 = vunpack.c.h.b16 %v659
    %v2108 = vunpack.c.l.b16 %v660
    %v2109 = vunpack.c.h.b16 %v660
    %v2110 = vunpack.c.l.b16 %v661
    %v2111 = vunpack.c.h.b16 %v661
    %v2112 = vunpack.c.l.b16 %v662
    %v2113 = vunpack.c.h.b16 %v662
    %v2114 = vunpack.c.l.b16 %v663
    %v2115 = vunpack.c.h.b16 %v663
    %v2116 = vunpack.c.l.b16 %v664
    %v2117 = vunpack.c.h.b16 %v664
    %v2118 = vunpack.c.l.b16 %v665
    %v2119 = vunpack.c.h.b16 %v665
    %v2120 = vunpack.c.l.b16 %v666
    %v2121 = vunpack.c.h.b16 %v666
    %v2122 = vunpack.c.l.b16 %v667
    %v2123 = vunpack.c.h.b16 %v667
    %v2124 = vunpack.c.l.b16 %v668
    %v2125 = vunpack.c.h.b16 %v668
    %v2126 = vunpack.c.l.b16 %v669
    %v2127 = vunpack.c.h.b16 %v669
    %v2128 = vunpack.c.l.b16 %v670
    %v2129 = vunpack.c.h.b16 %v670
    %v2130 = vunpack.c.l.b16 %v671
    %v2131 = vunpack.c.h.b16 %v671
    %v2132 = vunpack.c.l.b16 %v672
    %v2133 = vunpack.c.h.b16 %v672
    %v2134 = vunpack.c.l.b16 %v673
    %v2135 = vunpack.c.h.b16 %v673
    %v2136 = vunpack.c.l.b16 %v674
    %v2137 = vunpack.c.h.b16 %v674
    %v2138 = vunpack.c.l.b16 %v675
    %v2139 = vunpack.c.h.b16 %v675
    %v2140 = vunpack.c.l.b16 %v676
    %v2141 = vunpack.c.h.b16 %v676
    %v2142 = vunpack.c.l.b16 %v677
    %v2143 = vunpack.c.h.b16 %v677
    %v2144 = vunpack.c.l.b16 %v678
    %v2145 = vunpack.c.h.b16 %v678
    %v2146 = vunpack.c.l.b16 %v679
    %v2147 = vunpack.c.h.b16 %v679
    %v2148 = vunpack.c.l.b16 %v680
    %v2149 = vunpack.c.h.b16 %v680
    %v2150 = vunpack.c.l.b16 %v681
    %v2151 = vunpack.c.h.b16 %v681
    %v2152 = vunpack.c.l.b16 %v682
    %v2153 = vunpack.c.h.b16 %v682
    %v2154 = vunpack.c.l.b16 %v683
    %v2155 = vunpack.c.h.b16 %v683
    %v2156 = vunpack.c.l.b16 %v684
    %v2157 = vunpack.c.h.b16 %v684
    %v2158 = vunpack.c.l.b16 %v685
    %v2159 = vunpack.c.h.b16 %v685
    %v2160 = vunpack.c.l.b16 %v686
    %v2161 = vunpack.c.h.b16 %v686
    %v2162 = vunpack.c.l.b16 %v687
    %v2163 = vunpack.c.h.b16 %v687
    %v2164 = vunpack.c.l.b16 %v688
    %v2165 = vunpack.c.h.b16 %v688
    %v2166 = vunpack.c.l.b16 %v689
    %v2167 = vunpack.c.h.b16 %v689
    %v2168 = vunpack.c.l.b16 %v690
    %v2169 = vunpack.c.h.b16 %v690
    %v2170 = vunpack.c.l.b16 %v691
    %v2171 = vunpack.c.h.b16 %v691
    %v2172 = vunpack.c.l.b16 %v692
    %v2173 = vunpack.c.h.b16 %v692
    %v2174 = vunpack.c.l.b16 %v693
    %v2175 = vunpack.c.h.b16 %v693
    %v2176 = vunpack.c.l.b16 %v694
    %v2177 = vunpack.c.h.b16 %v694
    %v2178 = vunpack.c.l.b16 %v695
    %v2179 = vunpack.c.h.b16 %v695
    %v2180 = vunpack.c.l.b16 %v696
    %v2181 = vunpack.c.h.b16 %v696
    %v2182 = vunpack.c.l.b16 %v697
    %v2183 = vunpack.c.h.b16 %v697
    %v2184 = vunpack.c.l.b16 %v698
    %v2185 = vunpack.c.h.b16 %v698
    %v2186 = vunpack.c.l.b16 %v699
    %v2187 = vunpack.c.h.b16 %v699
    %v2188 = vunpack.c.l.b16 %v700
    %v2189 = vunpack.c.h.b16 %v700
    %v2190 = vunpack.c.l.b16 %v701
    %v2191 = vunpack.c.h.b16 %v701
    %v2192 = vunpack.c.l.b16 %v702
    %v2193 = vunpack.c.h.b16 %v702
    %v2194 = vunpack.c.l.b16 %v703
    %v2195 = vunpack.c.h.b16 %v703
    %v2196 = vunpack.c.l.b16 %v704
    %v2197 = vunpack.c.h.b16 %v704
    %v2198 = vunpack.c.l.b16 %v705
    %v2199 = vunpack.c.h.b16 %v705
    %v2200 = vunpack.c.l.b16 %v706
    %v2201 = vunpack.c.h.b16 %v706
    %v2202 = vunpack.c.l.b16 %v707
    %v2203 = vunpack.c.h.b16 %v707
    %v2204 = vunpack.c.l.b16 %v708
    %v2205 = vunpack.c.h.b16 %v708
    %v2206 = vunpack.c.l.b16 %v709
    %v2207 = vunpack.c.h.b16 %v709
    %v2208 = vunpack.c.l.b16 %v710
    %v2209 = vunpack.c.h.b16 %v710
    %v2210 = vunpack.c.l.b16 %v711
    %v2211 = vunpack.c.h.b16 %v711
    %v2212 = vunpack.c.l.b16 %v712
    %v2213 = vunpack.c.h.b16 %v712
    %v2214 = vunpack.c.l.b16 %v713
    %v2215 = vunpack.c.h.b16 %v713
    %v2216 = vunpack.c.l.b16 %v714
    %v2217 = vunpack.c.h.b16 %v714
    %v2218 = vunpack.c.l.b16 %v715
    %v2219 = vunpack.c.h.b16 %v715
    %v2220 = vunpack.c.l.b16 %v716
    %v2221 = vunpack.c.h.b16 %v716
    %v2222 = vunpack.c.l.b16 %v717
    %v2223 = vunpack.c.h.b16 %v717
    %v2224 = vunpack.c.l.b16 %v718
    %v2225 = vunpack.c.h.b16 %v718
    %v2226 = vunpack.c.l.b16 %v719
    %v2227 = vunpack.c.h.b16 %v719
    %v2228 = vunpack.c.l.b16 %v720
    %v2229 = vunpack.c.h.b16 %v720
    %v2230 = vunpack.c.l.b16 %v721
    %v2231 = vunpack.c.h.b16 %v721
    %v2232 = vunpack.c.l.b16 %v722
    %v2233 = vunpack.c.h.b16 %v722
    %v2234 = vunpack.c.l.b16 %v723
    %v2235 = vunpack.c.h.b16 %v723
    %v2236 = vunpack.c.l.b16 %v724
    %v2237 = vunpack.c.h.b16 %v724
    %v2238 = vunpack.c.l.b16 %v725
    %v2239 = vunpack.c.h.b16 %v725
    %v2240 = vunpack.c.l.b16 %v726
    %v2241 = vunpack.c.h.b16 %v726
    %v2242 = vunpack.c.l.b16 %v727
    %v2243 = vunpack.c.h.b16 %v727
    %v2244 = vunpack.c.l.b16 %v728
    %v2245 = vunpack.c.h.b16 %v728
    %v2246 = vunpack.c.l.b16 %v729
    %v2247 = vunpack.c.h.b16 %v729
    %v2248 = vunpack.c.l.b16 %v730
    %v2249 = vunpack.c.h.b16 %v730
    %v2250 = vunpack.c.l.b16 %v731
    %v2251 = vunpack.c.h.b16 %v731
    %v2252 = vunpack.c.l.b16 %v732
    %v2253 = vunpack.c.h.b16 %v732
    %v2254 = vunpack.c.l.b16 %v733
    %v2255 = vunpack.c.h.b16 %v733
    %v2256 = vunpack.c.l.b16 %v734
    %v2257 = vunpack.c.h.b16 %v734
    %v2258 = vunpack.c.l.b16 %v735
    %v2259 = vunpack.c.h.b16 %v735
    %v2260 = vunpack.c.l.b16 %v736
    %v2261 = vunpack.c.h.b16 %v736
    %v2262 = vunpack.c.l.b16 %v737
    %v2263 = vunpack.c.h.b16 %v737
    %v2264 = vunpack.c.l.b16 %v738
    %v2265 = vunpack.c.h.b16 %v738
    %v2266 = vunpack.c.l.b16 %v739
    %v2267 = vunpack.c.h.b16 %v739
    %v2268 = vunpack.c.l.b16 %v740
    %v2269 = vunpack.c.h.b16 %v740
    %v2270 = vunpack.c.l.b16 %v741
    %v2271 = vunpack.c.h.b16 %v741
    %v2272 = vunpack.c.l.b16 %v742
    %v2273 = vunpack.c.h.b16 %v742
    %v2274 = vunpack.c.l.b16 %v743
    %v2275 = vunpack.c.h.b16 %v743
    %v2276 = vunpack.c.l.b16 %v744
    %v2277 = vunpack.c.h.b16 %v744
    %v2278 = vunpack.c.l.b16 %v745
    %v2279 = vunpack.c.h.b16 %v745
    %v2280 = vunpack.c.l.b16 %v746
    %v2281 = vunpack.c.h.b16 %v746
    %v2282 = vunpack.c.l.b16 %v747
    %v2283 = vunpack.c.h.b16 %v747
    %v2284 = vpack.c.b16 %v1268, %v1260
    %v2285 = vpack.c.b16 %v1269, %v1261
    %v2286 = vpack.c.b16 %v1270, %v1262
    %v2287 = vpack.c.b16 %v1271, %v1263
    %v2288 = vpack.c.b16 %v1272, %v1264
    %v2289 = vpack.c.b16 %v1273, %v1265
    %v2290 = vpack.c.b16 %v1274, %v1266
    %v2291 = vpack.c.b16 %v1275, %v1267
    %v2292 = vpack.c.b16 %v1284, %v1276
    %v2293 = vpack.c.b16 %v1285, %v1277
    %v2294 = vpack.c.b16 %v1286, %v1278
    %v2295 = vpack.c.b16 %v1287, %v1279
    %v2296 = vpack.c.b16 %v1288, %v1280
    %v2297 = vpack.c.b16 %v1289, %v1281
    %v2298 = vpack.c.b16 %v1290, %v1282
    %v2299 = vpack.c.b16 %v1291, %v1283
    %v2300 = vpack.c.b16 %v1300, %v1292
    %v2301 = vpack.c.b16 %v1301, %v1293
    %v2302 = vpack.c.b16 %v1302, %v1294
    %v2303 = vpack.c.b16 %v1303, %v1295
    %v2304 = vpack.c.b16 %v1304, %v1296
    %v2305 = vpack.c.b16 %v1305, %v1297
    %v2306 = vpack.c.b16 %v1306, %v1298
    %v2307 = vpack.c.b16 %v1307, %v1299
    %v2308 = vpack.c.b16 %v1316, %v1308
    %v2309 = vpack.c.b16 %v1317, %v1309
    %v2310 = vpack.c.b16 %v1318, %v1310
    %v2311 = vpack.c.b16 %v1319, %v1311
    %v2312 = vpack.c.b16 %v1320, %v1312
    %v2313 = vpack.c.b16 %v1321, %v1313
    %v2314 = vpack.c.b16 %v1322, %v1314
    %v2315 = vpack.c.b16 %v1323, %v1315
    %v2316 = vpack.c.b16 %v1332, %v1324
    %v2317 = vpack.c.b16 %v1333, %v1325
    %v2318 = vpack.c.b16 %v1334, %v1326
    %v2319 = vpack.c.b16 %v1335, %v1327
    %v2320 = vpack.c.b16 %v1336, %v1328
    %v2321 = vpack.c.b16 %v1337, %v1329
    %v2322 = vpack.c.b16 %v1338, %v1330
    %v2323 = vpack.c.b16 %v1339, %v1331
    %v2324 = vpack.c.b16 %v1348, %v1340
    %v2325 = vpack.c.b16 %v1349, %v1341
    %v2326 = vpack.c.b16 %v1350, %v1342
    %v2327 = vpack.c.b16 %v1351, %v1343
    %v2328 = vpack.c.b16 %v1352, %v1344
    %v2329 = vpack.c.b16 %v1353, %v1345
    %v2330 = vpack.c.b16 %v1354, %v1346
    %v2331 = vpack.c.b16 %v1355, %v1347
    %v2332 = vpack.c.b16 %v1364, %v1356
    %v2333 = vpack.c.b16 %v1365, %v1357
    %v2334 = vpack.c.b16 %v1366, %v1358
    %v2335 = vpack.c.b16 %v1367, %v1359
    %v2336 = vpack.c.b16 %v1368, %v1360
    %v2337 = vpack.c.b16 %v1369, %v1361
    %v2338 = vpack.c.b16 %v1370, %v1362
    %v2339 = vpack.c.b16 %v1371, %v1363
    %v2340 = vpack.c.b16 %v1380, %v1372
    %v2341 = vpack.c.b16 %v1381, %v1373
    %v2342 = vpack.c.b16 %v1382, %v1374
    %v2343 = vpack.c.b16 %v1383, %v1375
    %v2344 = vpack.c.b16 %v1384, %v1376
    %v2345 = vpack.c.b16 %v1385, %v1377
    %v2346 = vpack.c.b16 %v1386, %v1378
    %v2347 = vpack.c.b16 %v1387, %v1379
    %v2348 = vpack.c.b16 %v1396, %v1388
    %v2349 = vpack.c.b16 %v1397, %v1389
    %v2350 = vpack.c.b16 %v1398, %v1390
    %v2351 = vpack.c.b16 %v1399, %v1391
    %v2352 = vpack.c.b16 %v1400, %v1392
    %v2353 = vpack.c.b16 %v1401, %v1393
    %v2354 = vpack.c.b16 %v1402, %v1394
    %v2355 = vpack.c.b16 %v1403, %v1395
    %v2356 = vpack.c.b16 %v1412, %v1404
    %v2357 = vpack.c.b16 %v1413, %v1405
    %v2358 = vpack.c.b16 %v1414, %v1406
    %v2359 = vpack.c.b16 %v1415, %v1407
    %v2360 = vpack.c.b16 %v1416, %v1408
    %v2361 = vpack.c.b16 %v1417, %v1409
    %v2362 = vpack.c.b16 %v1418, %v1410
    %v2363 = vpack.c.b16 %v1419, %v1411
    %v2364 = vpack.c.b16 %v1428, %v1420
    %v2365 = vpack.c.b16 %v1429, %v1421
    %v2366 = vpack.c.b16 %v1430, %v1422
    %v2367 = vpack.c.b16 %v1431, %v1423
    %v2368 = vpack.c.b16 %v1432, %v1424
    %v2369 = vpack.c.b16 %v1433, %v1425
    %v2370 = vpack.c.b16 %v1434, %v1426
    %v2371 = vpack.c.b16 %v1435, %v1427
    %v2372 = vpack.c.b16 %v1444, %v1436
    %v2373 = vpack.c.b16 %v1445, %v1437
    %v2374 = vpack.c.b16 %v1446, %v1438
    %v2375 = vpack.c.b16 %v1447, %v1439
    %v2376 = vpack.c.b16 %v1448, %v1440
    %v2377 = vpack.c.b16 %v1449, %v1441
    %v2378 = vpack.c.b16 %v1450, %v1442
    %v2379 = vpack.c.b16 %v1451, %v1443
    %v2380 = vpack.c.b16 %v1460, %v1452
    %v2381 = vpack.c.b16 %v1461, %v1453
    %v2382 = vpack.c.b16 %v1462, %v1454
    %v2383 = vpack.c.b16 %v1463, %v1455
    %v2384 = vpack.c.b16 %v1464, %v1456
    %v2385 = vpack.c.b16 %v1465, %v1457
    %v2386 = vpack.c.b16 %v1466, %v1458
    %v2387 = vpack.c.b16 %v1467, %v1459
    %v2388 = vpack.c.b16 %v1476, %v1468
    %v2389 = vpack.c.b16 %v1477, %v1469
    %v2390 = vpack.c.b16 %v1478, %v1470
    %v2391 = vpack.c.b16 %v1479, %v1471
    %v2392 = vpack.c.b16 %v1480, %v1472
    %v2393 = vpack.c.b16 %v1481, %v1473
    %v2394 = vpack.c.b16 %v1482, %v1474
    %v2395 = vpack.c.b16 %v1483, %v1475
    %v2396 = vpack.c.b16 %v1492, %v1484
    %v2397 = vpack.c.b16 %v1493, %v1485
    %v2398 = vpack.c.b16 %v1494, %v1486
    %v2399 = vpack.c.b16 %v1495, %v1487
    %v2400 = vpack.c.b16 %v1496, %v1488
    %v2401 = vpack.c.b16 %v1497, %v1489
    %v2402 = vpack.c.b16 %v1498, %v1490
    %v2403 = vpack.c.b16 %v1499, %v1491
    %v2404 = vpack.c.b16 %v1508, %v1500
    %v2405 = vpack.c.b16 %v1509, %v1501
    %v2406 = vpack.c.b16 %v1510, %v1502
    %v2407 = vpack.c.b16 %v1511, %v1503
    %v2408 = vpack.c.b16 %v1512, %v1504
    %v2409 = vpack.c.b16 %v1513, %v1505
    %v2410 = vpack.c.b16 %v1514, %v1506
    %v2411 = vpack.c.b16 %v1515, %v1507
    %v2412 = vpack.c.b16 %v1524, %v1516
    %v2413 = vpack.c.b16 %v1525, %v1517
    %v2414 = vpack.c.b16 %v1526, %v1518
    %v2415 = vpack.c.b16 %v1527, %v1519
    %v2416 = vpack.c.b16 %v1528, %v1520
    %v2417 = vpack.c.b16 %v1529, %v1521
    %v2418 = vpack.c.b16 %v1530, %v1522
    %v2419 = vpack.c.b16 %v1531, %v1523
    %v2420 = vpack.c.b16 %v1540, %v1532
    %v2421 = vpack.c.b16 %v1541, %v1533
    %v2422 = vpack.c.b16 %v1542, %v1534
    %v2423 = vpack.c.b16 %v1543, %v1535
    %v2424 = vpack.c.b16 %v1544, %v1536
    %v2425 = vpack.c.b16 %v1545, %v1537
    %v2426 = vpack.c.b16 %v1546, %v1538
    %v2427 = vpack.c.b16 %v1547, %v1539
    %v2428 = vpack.c.b16 %v1556, %v1548
    %v2429 = vpack.c.b16 %v1557, %v1549
    %v2430 = vpack.c.b16 %v1558, %v1550
    %v2431 = vpack.c.b16 %v1559, %v1551
    %v2432 = vpack.c.b16 %v1560, %v1552
    %v2433 = vpack.c.b16 %v1561, %v1553
    %v2434 = vpack.c.b16 %v1562, %v1554
    %v2435 = vpack.c.b16 %v1563, %v1555
    %v2436 = vpack.c.b16 %v1572, %v1564
    %v2437 = vpack.c.b16 %v1573, %v1565
    %v2438 = vpack.c.b16 %v1574, %v1566
    %v2439 = vpack.c.b16 %v1575, %v1567
    %v2440 = vpack.c.b16 %v1576, %v1568
    %v2441 = vpack.c.b16 %v1577, %v1569
    %v2442 = vpack.c.b16 %v1578, %v1570
    %v2443 = vpack.c.b16 %v1579, %v1571
    %v2444 = vpack.c.b16 %v1588, %v1580
    %v2445 = vpack.c.b16 %v1589, %v1581
    %v2446 = vpack.c.b16 %v1590, %v1582
    %v2447 = vpack.c.b16 %v1591, %v1583
    %v2448 = vpack.c.b16 %v1592, %v1584
    %v2449 = vpack.c.b16 %v1593, %v1585
    %v2450 = vpack.c.b16 %v1594, %v1586
    %v2451 = vpack.c.b16 %v1595, %v1587
    %v2452 = vpack.c.b16 %v1604, %v1596
    %v2453 = vpack.c.b16 %v1605, %v1597
    %v2454 = vpack.c.b16 %v1606, %v1598
    %v2455 = vpack.c.b16 %v1607, %v1599
    %v2456 = vpack.c.b16 %v1608, %v1600
    %v2457 = vpack.c.b16 %v1609, %v1601
    %v2458 = vpack.c.b16 %v1610, %v1602
    %v2459 = vpack.c.b16 %v1611, %v1603
    %v2460 = vpack.c.b16 %v1620, %v1612
    %v2461 = vpack.c.b16 %v1621, %v1613
    %v2462 = vpack.c.b16 %v1622, %v1614
    %v2463 = vpack.c.b16 %v1623, %v1615
    %v2464 = vpack.c.b16 %v1624, %v1616
    %v2465 = vpack.c.b16 %v1625, %v1617
    %v2466 = vpack.c.b16 %v1626, %v1618
    %v2467 = vpack.c.b16 %v1627, %v1619
    %v2468 = vpack.c.b16 %v1636, %v1628
    %v2469 = vpack.c.b16 %v1637, %v1629
    %v2470 = vpack.c.b16 %v1638, %v1630
    %v2471 = vpack.c.b16 %v1639, %v1631
    %v2472 = vpack.c.b16 %v1640, %v1632
    %v2473 = vpack.c.b16 %v1641, %v1633
    %v2474 = vpack.c.b16 %v1642, %v1634
    %v2475 = vpack.c.b16 %v1643, %v1635
    %v2476 = vpack.c.b16 %v1652, %v1644
    %v2477 = vpack.c.b16 %v1653, %v1645
    %v2478 = vpack.c.b16 %v1654, %v1646
    %v2479 = vpack.c.b16 %v1655, %v1647
    %v2480 = vpack.c.b16 %v1656, %v1648
    %v2481 = vpack.c.b16 %v1657, %v1649
    %v2482 = vpack.c.b16 %v1658, %v1650
    %v2483 = vpack.c.b16 %v1659, %v1651
    %v2484 = vpack.c.b16 %v1668, %v1660
    %v2485 = vpack.c.b16 %v1669, %v1661
    %v2486 = vpack.c.b16 %v1670, %v1662
    %v2487 = vpack.c.b16 %v1671, %v1663
    %v2488 = vpack.c.b16 %v1672, %v1664
    %v2489 = vpack.c.b16 %v1673, %v1665
    %v2490 = vpack.c.b16 %v1674, %v1666
    %v2491 = vpack.c.b16 %v1675, %v1667
    %v2492 = vpack.c.b16 %v1684, %v1676
    %v2493 = vpack.c.b16 %v1685, %v1677
    %v2494 = vpack.c.b16 %v1686, %v1678
    %v2495 = vpack.c.b16 %v1687, %v1679
    %v2496 = vpack.c.b16 %v1688, %v1680
    %v2497 = vpack.c.b16 %v1689, %v1681
    %v2498 = vpack.c.b16 %v1690, %v1682
    %v2499 = vpack.c.b16 %v1691, %v1683
    %v2500 = vpack.c.b16 %v1700, %v1692
    %v2501 = vpack.c.b16 %v1701, %v1693
    %v2502 = vpack.c.b16 %v1702, %v1694
    %v2503 = vpack.c.b16 %v1703, %v1695
    %v2504 = vpack.c.b16 %v1704, %v1696
    %v2505 = vpack.c.b16 %v1705, %v1697
    %v2506 = vpack.c.b16 %v1706, %v1698
    %v2507 = vpack.c.b16 %v1707, %v1699
    %v2508 = vpack.c.b16 %v1716, %v1708
    %v2509 = vpack.c.b16 %v1717, %v1709
    %v2510 = vpack.c.b16 %v1718, %v1710
    %v2511 = vpack.c.b16 %v1719, %v1711
    %v2512 = vpack.c.b16 %v1720, %v1712
    %v2513 = vpack.c.b16 %v1721, %v1713
    %v2514 = vpack.c.b16 %v1722, %v1714
    %v2515 = vpack.c.b16 %v1723, %v1715
    %v2516 = vpack.c.b16 %v1732, %v1724
    %v2517 = vpack.c.b16 %v1733, %v1725
    %v2518 = vpack.c.b16 %v1734, %v1726
    %v2519 = vpack.c.b16 %v1735, %v1727
    %v2520 = vpack.c.b16 %v1736, %v1728
    %v2521 = vpack.c.b16 %v1737, %v1729
    %v2522 = vpack.c.b16 %v1738, %v1730
    %v2523 = vpack.c.b16 %v1739, %v1731
    %v2524 = vpack.c.b16 %v1748, %v1740
    %v2525 = vpack.c.b16 %v1749, %v1741
    %v2526 = vpack.c.b16 %v1750, %v1742
    %v2527 = vpack.c.b16 %v1751, %v1743
    %v2528 = vpack.c.b16 %v1752, %v1744
    %v2529 = vpack.c.b16 %v1753, %v1745
    %v2530 = vpack.c.b16 %v1754, %v1746
    %v2531 = vpack.c.b16 %v1755, %v1747
    %v2532 = vpack.c.b16 %v1764, %v1756
    %v2533 = vpack.c.b16 %v1765, %v1757
    %v2534 = vpack.c.b16 %v1766, %v1758
    %v2535 = vpack.c.b16 %v1767, %v1759
    %v2536 = vpack.c.b16 %v1768, %v1760
    %v2537 = vpack.c.b16 %v1769, %v1761
    %v2538 = vpack.c.b16 %v1770, %v1762
    %v2539 = vpack.c.b16 %v1771, %v1763
    %v2540 = vpack.c.b16 %v1780, %v1772
    %v2541 = vpack.c.b16 %v1781, %v1773
    %v2542 = vpack.c.b16 %v1782, %v1774
    %v2543 = vpack.c.b16 %v1783, %v1775
    %v2544 = vpack.c.b16 %v1784, %v1776
    %v2545 = vpack.c.b16 %v1785, %v1777
    %v2546 = vpack.c.b16 %v1786, %v1778
    %v2547 = vpack.c.b16 %v1787, %v1779
    %v2548 = vpack.c.b16 %v1796, %v1788
    %v2549 = vpack.c.b16 %v1797, %v1789
    %v2550 = vpack.c.b16 %v1798, %v1790
    %v2551 = vpack.c.b16 %v1799, %v1791
    %v2552 = vpack.c.b16 %v1800, %v1792
    %v2553 = vpack.c.b16 %v1801, %v1793
    %v2554 = vpack.c.b16 %v1802, %v1794
    %v2555 = vpack.c.b16 %v1803, %v1795
    %v2556 = vpack.c.b16 %v1812, %v1804
    %v2557 = vpack.c.b16 %v1813, %v1805
    %v2558 = vpack.c.b16 %v1814, %v1806
    %v2559 = vpack.c.b16 %v1815, %v1807
    %v2560 = vpack.c.b16 %v1816, %v1808
    %v2561 = vpack.c.b16 %v1817, %v1809
    %v2562 = vpack.c.b16 %v1818, %v1810
    %v2563 = vpack.c.b16 %v1819, %v1811
    %v2564 = vpack.c.b16 %v1828, %v1820
    %v2565 = vpack.c.b16 %v1829, %v1821
    %v2566 = vpack.c.b16 %v1830, %v1822
    %v2567 = vpack.c.b16 %v1831, %v1823
    %v2568 = vpack.c.b16 %v1832, %v1824
    %v2569 = vpack.c.b16 %v1833, %v1825
    %v2570 = vpack.c.b16 %v1834, %v1826
    %v2571 = vpack.c.b16 %v1835, %v1827
    %v2572 = vpack.c.b16 %v1844, %v1836
    %v2573 = vpack.c.b16 %v1845, %v1837
    %v2574 = vpack.c.b16 %v1846, %v1838
    %v2575 = vpack.c.b16 %v1847, %v1839
    %v2576 = vpack.c.b16 %v1848, %v1840
    %v2577 = vpack.c.b16 %v1849, %v1841
    %v2578 = vpack.c.b16 %v1850, %v1842
    %v2579 = vpack.c.b16 %v1851, %v1843
    %v2580 = vpack.c.b16 %v1860, %v1852
    %v2581 = vpack.c.b16 %v1861, %v1853
    %v2582 = vpack.c.b16 %v1862, %v1854
    %v2583 = vpack.c.b16 %v1863, %v1855
    %v2584 = vpack.c.b16 %v1864, %v1856
    %v2585 = vpack.c.b16 %v1865, %v1857
    %v2586 = vpack.c.b16 %v1866, %v1858
    %v2587 = vpack.c.b16 %v1867, %v1859
    %v2588 = vpack.c.b16 %v1876, %v1868
    %v2589 = vpack.c.b16 %v1877, %v1869
    %v2590 = vpack.c.b16 %v1878, %v1870
    %v2591 = vpack.c.b16 %v1879, %v1871
    %v2592 = vpack.c.b16 %v1880, %v1872
    %v2593 = vpack.c.b16 %v1881, %v1873
    %v2594 = vpack.c.b16 %v1882, %v1874
    %v2595 = vpack.c.b16 %v1883, %v1875
    %v2596 = vpack.c.b16 %v1892, %v1884
    %v2597 = vpack.c.b16 %v1893, %v1885
    %v2598 = vpack.c.b16 %v1894, %v1886
    %v2599 = vpack.c.b16 %v1895, %v1887
    %v2600 = vpack.c.b16 %v1896, %v1888
    %v2601 = vpack.c.b16 %v1897, %v1889
    %v2602 = vpack.c.b16 %v1898, %v1890
    %v2603 = vpack.c.b16 %v1899, %v1891
    %v2604 = vpack.c.b16 %v1908, %v1900
    %v2605 = vpack.c.b16 %v1909, %v1901
    %v2606 = vpack.c.b16 %v1910, %v1902
    %v2607 = vpack.c.b16 %v1911, %v1903
    %v2608 = vpack.c.b16 %v1912, %v1904
    %v2609 = vpack.c.b16 %v1913, %v1905
    %v2610 = vpack.c.b16 %v1914, %v1906
    %v2611 = vpack.c.b16 %v1915, %v1907
    %v2612 = vpack.c.b16 %v1924, %v1916
    %v2613 = vpack.c.b16 %v1925, %v1917
    %v2614 = vpack.c.b16 %v1926, %v1918
    %v2615 = vpack.c.b16 %v1927, %v1919
    %v2616 = vpack.c.b16 %v1928, %v1920
    %v2617 = vpack.c.b16 %v1929, %v1921
    %v2618 = vpack.c.b16 %v1930, %v1922
    %v2619 = vpack.c.b16 %v1931, %v1923
    %v2620 = vpack.c.b16 %v1940, %v1932
    %v2621 = vpack.c.b16 %v1941, %v1933
    %v2622 = vpack.c.b16 %v1942, %v1934
    %v2623 = vpack.c.b16 %v1943, %v1935
    %v2624 = vpack.c.b16 %v1944, %v1936
    %v2625 = vpack.c.b16 %v1945, %v1937
    %v2626 = vpack.c.b16 %v1946, %v1938
    %v2627 = vpack.c.b16 %v1947, %v1939
    %v2628 = vpack.c.b16 %v1956, %v1948
    %v2629 = vpack.c.b16 %v1957, %v1949
    %v2630 = vpack.c.b16 %v1958, %v1950
    %v2631 = vpack.c.b16 %v1959, %v1951
    %v2632 = vpack.c.b16 %v1960, %v1952
    %v2633 = vpack.c.b16 %v1961, %v1953
    %v2634 = vpack.c.b16 %v1962, %v1954
    %v2635 = vpack.c.b16 %v1963, %v1955
    %v2636 = vpack.c.b16 %v1972, %v1964
    %v2637 = vpack.c.b16 %v1973, %v1965
    %v2638 = vpack.c.b16 %v1974, %v1966
    %v2639 = vpack.c.b16 %v1975, %v1967
    %v2640 = vpack.c.b16 %v1976, %v1968
    %v2641 = vpack.c.b16 %v1977, %v1969
    %v2642 = vpack.c.b16 %v1978, %v1970
    %v2643 = vpack.c.b16 %v1979, %v1971
    %v2644 = vpack.c.b16 %v1988, %v1980
    %v2645 = vpack.c.b16 %v1989, %v1981
    %v2646 = vpack.c.b16 %v1990, %v1982
    %v2647 = vpack.c.b16 %v1991, %v1983
    %v2648 = vpack.c.b16 %v1992, %v1984
    %v2649 = vpack.c.b16 %v1993, %v1985
    %v2650 = vpack.c.b16 %v1994, %v1986
    %v2651 = vpack.c.b16 %v1995, %v1987
    %v2652 = vpack.c.b16 %v2004, %v1996
    %v2653 = vpack.c.b16 %v2005, %v1997
    %v2654 = vpack.c.b16 %v2006, %v1998
    %v2655 = vpack.c.b16 %v2007, %v1999
    %v2656 = vpack.c.b16 %v2008, %v2000
    %v2657 = vpack.c.b16 %v2009, %v2001
    %v2658 = vpack.c.b16 %v2010, %v2002
    %v2659 = vpack.c.b16 %v2011, %v2003
    %v2660 = vpack.c.b16 %v2020, %v2012
    %v2661 = vpack.c.b16 %v2021, %v2013
    %v2662 = vpack.c.b16 %v2022, %v2014
    %v2663 = vpack.c.b16 %v2023, %v2015
    %v2664 = vpack.c.b16 %v2024, %v2016
    %v2665 = vpack.c.b16 %v2025, %v2017
    %v2666 = vpack.c.b16 %v2026, %v2018
    %v2667 = vpack.c.b16 %v2027, %v2019
    %v2668 = vpack.c.b16 %v2036, %v2028
    %v2669 = vpack.c.b16 %v2037, %v2029
    %v2670 = vpack.c.b16 %v2038, %v2030
    %v2671 = vpack.c.b16 %v2039, %v2031
    %v2672 = vpack.c.b16 %v2040, %v2032
    %v2673 = vpack.c.b16 %v2041, %v2033
    %v2674 = vpack.c.b16 %v2042, %v2034
    %v2675 = vpack.c.b16 %v2043, %v2035
    %v2676 = vpack.c.b16 %v2052, %v2044
    %v2677 = vpack.c.b16 %v2053, %v2045
    %v2678 = vpack.c.b16 %v2054, %v2046
    %v2679 = vpack.c.b16 %v2055, %v2047
    %v2680 = vpack.c.b16 %v2056, %v2048
    %v2681 = vpack.c.b16 %v2057, %v2049
    %v2682 = vpack.c.b16 %v2058, %v2050
    %v2683 = vpack.c.b16 %v2059, %v2051
    %v2684 = vpack.c.b16 %v2068, %v2060
    %v2685 = vpack.c.b16 %v2069, %v2061
    %v2686 = vpack.c.b16 %v2070, %v2062
    %v2687 = vpack.c.b16 %v2071, %v2063
    %v2688 = vpack.c.b16 %v2072, %v2064
    %v2689 = vpack.c.b16 %v2073, %v2065
    %v2690 = vpack.c.b16 %v2074, %v2066
    %v2691 = vpack.c.b16 %v2075, %v2067
    %v2692 = vpack.c.b16 %v2084, %v2076
    %v2693 = vpack.c.b16 %v2085, %v2077
    %v2694 = vpack.c.b16 %v2086, %v2078
    %v2695 = vpack.c.b16 %v2087, %v2079
    %v2696 = vpack.c.b16 %v2088, %v2080
    %v2697 = vpack.c.b16 %v2089, %v2081
    %v2698 = vpack.c.b16 %v2090, %v2082
    %v2699 = vpack.c.b16 %v2091, %v2083
    %v2700 = vpack.c.b16 %v2100, %v2092
    %v2701 = vpack.c.b16 %v2101, %v2093
    %v2702 = vpack.c.b16 %v2102, %v2094
    %v2703 = vpack.c.b16 %v2103, %v2095
    %v2704 = vpack.c.b16 %v2104, %v2096
    %v2705 = vpack.c.b16 %v2105, %v2097
    %v2706 = vpack.c.b16 %v2106, %v2098
    %v2707 = vpack.c.b16 %v2107, %v2099
    %v2708 = vpack.c.b16 %v2116, %v2108
    %v2709 = vpack.c.b16 %v2117, %v2109
    %v2710 = vpack.c.b16 %v2118, %v2110
    %v2711 = vpack.c.b16 %v2119, %v2111
    %v2712 = vpack.c.b16 %v2120, %v2112
    %v2713 = vpack.c.b16 %v2121, %v2113
    %v2714 = vpack.c.b16 %v2122, %v2114
    %v2715 = vpack.c.b16 %v2123, %v2115
    %v2716 = vpack.c.b16 %v2132, %v2124
    %v2717 = vpack.c.b16 %v2133, %v2125
    %v2718 = vpack.c.b16 %v2134, %v2126
    %v2719 = vpack.c.b16 %v2135, %v2127
    %v2720 = vpack.c.b16 %v2136, %v2128
    %v2721 = vpack.c.b16 %v2137, %v2129
    %v2722 = vpack.c.b16 %v2138, %v2130
    %v2723 = vpack.c.b16 %v2139, %v2131
    %v2724 = vpack.c.b16 %v2148, %v2140
    %v2725 = vpack.c.b16 %v2149, %v2141
    %v2726 = vpack.c.b16 %v2150, %v2142
    %v2727 = vpack.c.b16 %v2151, %v2143
    %v2728 = vpack.c.b16 %v2152, %v2144
    %v2729 = vpack.c.b16 %v2153, %v2145
    %v2730 = vpack.c.b16 %v2154, %v2146
    %v2731 = vpack.c.b16 %v2155, %v2147
    %v2732 = vpack.c.b16 %v2164, %v2156
    %v2733 = vpack.c.b16 %v2165, %v2157
    %v2734 = vpack.c.b16 %v2166, %v2158
    %v2735 = vpack.c.b16 %v2167, %v2159
    %v2736 = vpack.c.b16 %v2168, %v2160
    %v2737 = vpack.c.b16 %v2169, %v2161
    %v2738 = vpack.c.b16 %v2170, %v2162
    %v2739 = vpack.c.b16 %v2171, %v2163
    %v2740 = vpack.c.b16 %v2180, %v2172
    %v2741 = vpack.c.b16 %v2181, %v2173
    %v2742 = vpack.c.b16 %v2182, %v2174
    %v2743 = vpack.c.b16 %v2183, %v2175
    %v2744 = vpack.c.b16 %v2184, %v2176
    %v2745 = vpack.c.b16 %v2185, %v2177
    %v2746 = vpack.c.b16 %v2186, %v2178
    %v2747 = vpack.c.b16 %v2187, %v2179
    %v2748 = vpack.c.b16 %v2196, %v2188
    %v2749 = vpack.c.b16 %v2197, %v2189
    %v2750 = vpack.c.b16 %v2198, %v2190
    %v2751 = vpack.c.b16 %v2199, %v2191
    %v2752 = vpack.c.b16 %v2200, %v2192
    %v2753 = vpack.c.b16 %v2201, %v2193
    %v2754 = vpack.c.b16 %v2202, %v2194
    %v2755 = vpack.c.b16 %v2203, %v2195
    %v2756 = vpack.c.b16 %v2212, %v2204
    %v2757 = vpack.c.b16 %v2213, %v2205
    %v2758 = vpack.c.b16 %v2214, %v2206
    %v2759 = vpack.c.b16 %v2215, %v2207
    %v2760 = vpack.c.b16 %v2216, %v2208
    %v2761 = vpack.c.b16 %v2217, %v2209
    %v2762 = vpack.c.b16 %v2218, %v2210
    %v2763 = vpack.c.b16 %v2219, %v2211
    %v2764 = vpack.c.b16 %v2228, %v2220
    %v2765 = vpack.c.b16 %v2229, %v2221
    %v2766 = vpack.c.b16 %v2230, %v2222
    %v2767 = vpack.c.b16 %v2231, %v2223
    %v2768 = vpack.c.b16 %v2232, %v2224
    %v2769 = vpack.c.b16 %v2233, %v2225
    %v2770 = vpack.c.b16 %v2234, %v2226
    %v2771 = vpack.c.b16 %v2235, %v2227
    %v2772 = vpack.c.b16 %v2244, %v2236
    %v2773 = vpack.c.b16 %v2245, %v2237
    %v2774 = vpack.c.b16 %v2246, %v2238
    %v2775 = vpack.c.b16 %v2247, %v2239
    %v2776 = vpack.c.b16 %v2248, %v2240
    %v2777 = vpack.c.b16 %v2249, %v2241
    %v2778 = vpack.c.b16 %v2250, %v2242
    %v2779 = vpack.c.b16 %v2251, %v2243
    %v2780 = vpack.c.b16 %v2260, %v2252
    %v2781 = vpack.c.b16 %v2261, %v2253
    %v2782 = vpack.c.b16 %v2262, %v2254
    %v2783 = vpack.c.b16 %v2263, %v2255
    %v2784 = vpack.c.b16 %v2264, %v2256
    %v2785 = vpack.c.b16 %v2265, %v2257
    %v2786 = vpack.c.b16 %v2266, %v2258
    %v2787 = vpack.c.b16 %v2267, %v2259
    %v2788 = vpack.c.b16 %v2276, %v2268
    %v2789 = vpack.c.b16 %v2277, %v2269
    %v2790 = vpack.c.b16 %v2278, %v2270
    %v2791 = vpack.c.b16 %v2279, %v2271
    %v2792 = vpack.c.b16 %v2280, %v2272
    %v2793 = vpack.c.b16 %v2281, %v2273
    %v2794 = vpack.c.b16 %v2282, %v2274
    %v2795 = vpack.c.b16 %v2283, %v2275
    %3308 = vmatprep.subr.bf16.mxu0 %v2341
    %3309 = vmatpush1.bf16.msra.mxu0 %v2340
    %3310 = vmatprep.subr.bf16.mxu0 %v2333
    %3311 = vmatpush1.bf16.msra.mxu0 %v2332
    %3312 = vmatprep.subr.bf16.mxu0 %v2325
    %3313 = vmatpush1.bf16.msra.mxu0 %v2324
    %3314 = vmatprep.subr.bf16.mxu0 %v2317
    %3315 = vmatpush1.bf16.msra.mxu0 %v2316
    %3316 = vmatprep.subr.bf16.mxu0 %v2309
    %3317 = vmatpush1.bf16.msra.mxu0 %v2308
    %3318 = vmatprep.subr.bf16.mxu0 %v2301
    %3319 = vmatpush1.bf16.msra.mxu0 %v2300
    %3320 = vmatprep.subr.bf16.mxu0 %v2293
    %3321 = vmatpush1.bf16.msra.mxu0 %v2292
    %3322 = vmatprep.subr.bf16.mxu0 %v2285
    %3323 = vmatpush1.bf16.msra.mxu0 %v2284
    %3324 = vmatprep.subr.bf16.mxu0 %v2405
    %3325 = vmatpush2.bf16.msra.mxu0 %v2404
    %3326 = vmatprep.subr.bf16.mxu0 %v2397
    %3327 = vmatpush2.bf16.msra.mxu0 %v2396
    %3328 = vmatprep.subr.bf16.mxu0 %v2389
    %3329 = vmatpush2.bf16.msra.mxu0 %v2388
    %3330 = vmatprep.subr.bf16.mxu0 %v2381
    %3331 = vmatpush2.bf16.msra.mxu0 %v2380
    %3332 = vmatprep.subr.bf16.mxu0 %v2373
    %3333 = vmatpush2.bf16.msra.mxu0 %v2372
    %3334 = vmatprep.subr.bf16.mxu0 %v2365
    %3335 = vmatpush2.bf16.msra.mxu0 %v2364
    %3336 = vmatprep.subr.bf16.mxu0 %v2357
    %3337 = vmatpush2.bf16.msra.mxu0 %v2356
    %3338 = vmatprep.subr.bf16.mxu0 %v2349
    %3339 = vmatpush2.bf16.msra.mxu0 %v2348
    %3340 = vmatprep.mubr.bf16.mxu0 %v229
    %3341 = vmatmul.mubr.bf16.gmra.mxu0 %v228
    %v3342 = vpop.f32.mrf.mxu0
    %v3343 = vadd.f32 0.0, %v3342
    %v3344 = vpop.f32.mrf.mxu0
    %v3345 = vadd.f32 0.0, %v3344
    %v3346 = vpop.f32.mrf.mxu0
    %v3347 = vpop.f32.mrf.mxu0
    %3348 = vdwg.mxu0
    %3349 = vmatprep.subr.bf16.mxu0 %v2469
    %3350 = vmatpush1.bf16.msra.mxu0 %v2468
    %3351 = vmatprep.subr.bf16.mxu0 %v2461
    %3352 = vmatpush1.bf16.msra.mxu0 %v2460
    %3353 = vmatprep.subr.bf16.mxu0 %v2453
    %3354 = vmatpush1.bf16.msra.mxu0 %v2452
    %3355 = vmatprep.subr.bf16.mxu0 %v2445
    %3356 = vmatpush1.bf16.msra.mxu0 %v2444
    %3357 = vmatprep.subr.bf16.mxu0 %v2437
    %3358 = vmatpush1.bf16.msra.mxu0 %v2436
    %3359 = vmatprep.subr.bf16.mxu0 %v2429
    %3360 = vmatpush1.bf16.msra.mxu0 %v2428
    %3361 = vmatprep.subr.bf16.mxu0 %v2421
    %3362 = vmatpush1.bf16.msra.mxu0 %v2420
    %3363 = vmatprep.subr.bf16.mxu0 %v2413
    %3364 = vmatpush1.bf16.msra.mxu0 %v2412
    %3365 = vmatprep.subr.bf16.mxu0 %v2533
    %3366 = vmatpush2.bf16.msra.mxu0 %v2532
    %3367 = vmatprep.subr.bf16.mxu0 %v2525
    %3368 = vmatpush2.bf16.msra.mxu0 %v2524
    %3369 = vmatprep.subr.bf16.mxu0 %v2517
    %3370 = vmatpush2.bf16.msra.mxu0 %v2516
    %3371 = vmatprep.subr.bf16.mxu0 %v2509
    %3372 = vmatpush2.bf16.msra.mxu0 %v2508
    %3373 = vmatprep.subr.bf16.mxu0 %v2501
    %3374 = vmatpush2.bf16.msra.mxu0 %v2500
    %3375 = vmatprep.subr.bf16.mxu0 %v2493
    %3376 = vmatpush2.bf16.msra.mxu0 %v2492
    %3377 = vmatprep.subr.bf16.mxu0 %v2485
    %3378 = vmatpush2.bf16.msra.mxu0 %v2484
    %3379 = vmatprep.subr.bf16.mxu0 %v2477
    %3380 = vmatpush2.bf16.msra.mxu0 %v2476
    %3381 = vmatprep.mubr.bf16.mxu0 %v231
    %3382 = vmatmul.mubr.bf16.gmra.mxu0 %v230
    %v3383 = vpop.f32.mrf.mxu0
    %v3384 = vadd.f32 %v3343, %v3383
    %v3385 = vpop.f32.mrf.mxu0
    %v3386 = vadd.f32 %v3345, %v3385
    %v3387 = vpop.f32.mrf.mxu0
    %v3388 = vpop.f32.mrf.mxu0
    %3389 = vdwg.mxu0
    %3390 = vmatprep.subr.bf16.mxu0 %v2597
    %3391 = vmatpush1.bf16.msra.mxu0 %v2596
    %3392 = vmatprep.subr.bf16.mxu0 %v2589
    %3393 = vmatpush1.bf16.msra.mxu0 %v2588
    %3394 = vmatprep.subr.bf16.mxu0 %v2581
    %3395 = vmatpush1.bf16.msra.mxu0 %v2580
    %3396 = vmatprep.subr.bf16.mxu0 %v2573
    %3397 = vmatpush1.bf16.msra.mxu0 %v2572
    %3398 = vmatprep.subr.bf16.mxu0 %v2565
    %3399 = vmatpush1.bf16.msra.mxu0 %v2564
    %3400 = vmatprep.subr.bf16.mxu0 %v2557
    %3401 = vmatpush1.bf16.msra.mxu0 %v2556
    %3402 = vmatprep.subr.bf16.mxu0 %v2549
    %3403 = vmatpush1.bf16.msra.mxu0 %v2548
    %3404 = vmatprep.subr.bf16.mxu0 %v2541
    %3405 = vmatpush1.bf16.msra.mxu0 %v2540
    %3406 = vmatprep.subr.bf16.mxu0 %v2661
    %3407 = vmatpush2.bf16.msra.mxu0 %v2660
    %3408 = vmatprep.subr.bf16.mxu0 %v2653
    %3409 = vmatpush2.bf16.msra.mxu0 %v2652
    %3410 = vmatprep.subr.bf16.mxu0 %v2645
    %3411 = vmatpush2.bf16.msra.mxu0 %v2644
    %3412 = vmatprep.subr.bf16.mxu0 %v2637
    %3413 = vmatpush2.bf16.msra.mxu0 %v2636
    %3414 = vmatprep.subr.bf16.mxu0 %v2629
    %3415 = vmatpush2.bf16.msra.mxu0 %v2628
    %3416 = vmatprep.subr.bf16.mxu0 %v2621
    %3417 = vmatpush2.bf16.msra.mxu0 %v2620
    %3418 = vmatprep.subr.bf16.mxu0 %v2613
    %3419 = vmatpush2.bf16.msra.mxu0 %v2612
    %3420 = vmatprep.subr.bf16.mxu0 %v2605
    %3421 = vmatpush2.bf16.msra.mxu0 %v2604
    %3422 = vmatprep.mubr.bf16.mxu0 %v233
    %3423 = vmatmul.mubr.bf16.gmra.mxu0 %v232
    %v3424 = vpop.f32.mrf.mxu0
    %v3425 = vadd.f32 %v3384, %v3424
    %v3426 = vpop.f32.mrf.mxu0
    %v3427 = vadd.f32 %v3386, %v3426
    %v3428 = vpop.f32.mrf.mxu0
    %v3429 = vpop.f32.mrf.mxu0
    %3430 = vdwg.mxu0
    %3431 = vmatprep.subr.bf16.mxu0 %v2725
    %3432 = vmatpush1.bf16.msra.mxu0 %v2724
    %3433 = vmatprep.subr.bf16.mxu0 %v2717
    %3434 = vmatpush1.bf16.msra.mxu0 %v2716
    %3435 = vmatprep.subr.bf16.mxu0 %v2709
    %3436 = vmatpush1.bf16.msra.mxu0 %v2708
    %3437 = vmatprep.subr.bf16.mxu0 %v2701
    %3438 = vmatpush1.bf16.msra.mxu0 %v2700
    %3439 = vmatprep.subr.bf16.mxu0 %v2693
    %3440 = vmatpush1.bf16.msra.mxu0 %v2692
    %3441 = vmatprep.subr.bf16.mxu0 %v2685
    %3442 = vmatpush1.bf16.msra.mxu0 %v2684
    %3443 = vmatprep.subr.bf16.mxu0 %v2677
    %3444 = vmatpush1.bf16.msra.mxu0 %v2676
    %3445 = vmatprep.subr.bf16.mxu0 %v2669
    %3446 = vmatpush1.bf16.msra.mxu0 %v2668
    %3447 = vmatprep.subr.bf16.mxu0 %v2789
    %3448 = vmatpush2.bf16.msra.mxu0 %v2788
    %3449 = vmatprep.subr.bf16.mxu0 %v2781
    %3450 = vmatpush2.bf16.msra.mxu0 %v2780
    %3451 = vmatprep.subr.bf16.mxu0 %v2773
    %3452 = vmatpush2.bf16.msra.mxu0 %v2772
    %3453 = vmatprep.subr.bf16.mxu0 %v2765
    %3454 = vmatpush2.bf16.msra.mxu0 %v2764
    %3455 = vmatprep.subr.bf16.mxu0 %v2757
    %3456 = vmatpush2.bf16.msra.mxu0 %v2756
    %3457 = vmatprep.subr.bf16.mxu0 %v2749
    %3458 = vmatpush2.bf16.msra.mxu0 %v2748
    %3459 = vmatprep.subr.bf16.mxu0 %v2741
    %3460 = vmatpush2.bf16.msra.mxu0 %v2740
    %3461 = vmatprep.subr.bf16.mxu0 %v2733
    %3462 = vmatpush2.bf16.msra.mxu0 %v2732
    %3463 = vmatprep.mubr.bf16.mxu0 %v235
    %3464 = vmatmul.mubr.bf16.gmra.mxu0 %v234
    %v3465 = vpop.f32.mrf.mxu0
    %v3466 = vadd.f32 %v3425, %v3465
    %v3467 = vpop.f32.mrf.mxu0
    %v3468 = vadd.f32 %v3427, %v3467
    %v3469 = vpop.f32.mrf.mxu0
    %v3470 = vpop.f32.mrf.mxu0
    %3471 = vdwg.mxu0
    %3472 = vmatprep.subr.bf16.mxu0 %v2343
    %3473 = vmatpush1.bf16.msra.mxu0 %v2342
    %3474 = vmatprep.subr.bf16.mxu0 %v2335
    %3475 = vmatpush1.bf16.msra.mxu0 %v2334
    %3476 = vmatprep.subr.bf16.mxu0 %v2327
    %3477 = vmatpush1.bf16.msra.mxu0 %v2326
    %3478 = vmatprep.subr.bf16.mxu0 %v2319
    %3479 = vmatpush1.bf16.msra.mxu0 %v2318
    %3480 = vmatprep.subr.bf16.mxu0 %v2311
    %3481 = vmatpush1.bf16.msra.mxu0 %v2310
    %3482 = vmatprep.subr.bf16.mxu0 %v2303
    %3483 = vmatpush1.bf16.msra.mxu0 %v2302
    %3484 = vmatprep.subr.bf16.mxu0 %v2295
    %3485 = vmatpush1.bf16.msra.mxu0 %v2294
    %3486 = vmatprep.subr.bf16.mxu0 %v2287
    %3487 = vmatpush1.bf16.msra.mxu0 %v2286
    %3488 = vmatprep.subr.bf16.mxu0 %v2407
    %3489 = vmatpush2.bf16.msra.mxu0 %v2406
    %3490 = vmatprep.subr.bf16.mxu0 %v2399
    %3491 = vmatpush2.bf16.msra.mxu0 %v2398
    %3492 = vmatprep.subr.bf16.mxu0 %v2391
    %3493 = vmatpush2.bf16.msra.mxu0 %v2390
    %3494 = vmatprep.subr.bf16.mxu0 %v2383
    %3495 = vmatpush2.bf16.msra.mxu0 %v2382
    %3496 = vmatprep.subr.bf16.mxu0 %v2375
    %3497 = vmatpush2.bf16.msra.mxu0 %v2374
    %3498 = vmatprep.subr.bf16.mxu0 %v2367
    %3499 = vmatpush2.bf16.msra.mxu0 %v2366
    %3500 = vmatprep.subr.bf16.mxu0 %v2359
    %3501 = vmatpush2.bf16.msra.mxu0 %v2358
    %3502 = vmatprep.subr.bf16.mxu0 %v2351
    %3503 = vmatpush2.bf16.msra.mxu0 %v2350
    %3504 = vmatprep.mubr.bf16.mxu0 %v229
    %3505 = vmatmul.mubr.bf16.gmra.mxu0 %v228
    %v3506 = vpop.f32.mrf.mxu0
    %v3507 = vadd.f32 0.0, %v3506
    %v3508 = vpop.f32.mrf.mxu0
    %v3509 = vadd.f32 0.0, %v3508
    %v3510 = vpop.f32.mrf.mxu0
    %v3511 = vpop.f32.mrf.mxu0
    %3512 = vdwg.mxu0
    %3513 = vmatprep.subr.bf16.mxu0 %v2471
    %3514 = vmatpush1.bf16.msra.mxu0 %v2470
    %3515 = vmatprep.subr.bf16.mxu0 %v2463
    %3516 = vmatpush1.bf16.msra.mxu0 %v2462
    %3517 = vmatprep.subr.bf16.mxu0 %v2455
    %3518 = vmatpush1.bf16.msra.mxu0 %v2454
    %3519 = vmatprep.subr.bf16.mxu0 %v2447
    %3520 = vmatpush1.bf16.msra.mxu0 %v2446
    %3521 = vmatprep.subr.bf16.mxu0 %v2439
    %3522 = vmatpush1.bf16.msra.mxu0 %v2438
    %3523 = vmatprep.subr.bf16.mxu0 %v2431
    %3524 = vmatpush1.bf16.msra.mxu0 %v2430
    %3525 = vmatprep.subr.bf16.mxu0 %v2423
    %3526 = vmatpush1.bf16.msra.mxu0 %v2422
    %3527 = vmatprep.subr.bf16.mxu0 %v2415
    %3528 = vmatpush1.bf16.msra.mxu0 %v2414
    %3529 = vmatprep.subr.bf16.mxu0 %v2535
    %3530 = vmatpush2.bf16.msra.mxu0 %v2534
    %3531 = vmatprep.subr.bf16.mxu0 %v2527
    %3532 = vmatpush2.bf16.msra.mxu0 %v2526
    %3533 = vmatprep.subr.bf16.mxu0 %v2519
    %3534 = vmatpush2.bf16.msra.mxu0 %v2518
    %3535 = vmatprep.subr.bf16.mxu0 %v2511
    %3536 = vmatpush2.bf16.msra.mxu0 %v2510
    %3537 = vmatprep.subr.bf16.mxu0 %v2503
    %3538 = vmatpush2.bf16.msra.mxu0 %v2502
    %3539 = vmatprep.subr.bf16.mxu0 %v2495
    %3540 = vmatpush2.bf16.msra.mxu0 %v2494
    %3541 = vmatprep.subr.bf16.mxu0 %v2487
    %3542 = vmatpush2.bf16.msra.mxu0 %v2486
    %3543 = vmatprep.subr.bf16.mxu0 %v2479
    %3544 = vmatpush2.bf16.msra.mxu0 %v2478
    %3545 = vmatprep.mubr.bf16.mxu0 %v231
    %3546 = vmatmul.mubr.bf16.gmra.mxu0 %v230
    %v3547 = vpop.f32.mrf.mxu0
    %v3548 = vadd.f32 %v3507, %v3547
    %v3549 = vpop.f32.mrf.mxu0
    %v3550 = vadd.f32 %v3509, %v3549
    %v3551 = vpop.f32.mrf.mxu0
    %v3552 = vpop.f32.mrf.mxu0
    %3553 = vdwg.mxu0
    %3554 = vmatprep.subr.bf16.mxu0 %v2599
    %3555 = vmatpush1.bf16.msra.mxu0 %v2598
    %3556 = vmatprep.subr.bf16.mxu0 %v2591
    %3557 = vmatpush1.bf16.msra.mxu0 %v2590
    %3558 = vmatprep.subr.bf16.mxu0 %v2583
    %3559 = vmatpush1.bf16.msra.mxu0 %v2582
    %3560 = vmatprep.subr.bf16.mxu0 %v2575
    %3561 = vmatpush1.bf16.msra.mxu0 %v2574
    %3562 = vmatprep.subr.bf16.mxu0 %v2567
    %3563 = vmatpush1.bf16.msra.mxu0 %v2566
    %3564 = vmatprep.subr.bf16.mxu0 %v2559
    %3565 = vmatpush1.bf16.msra.mxu0 %v2558
    %3566 = vmatprep.subr.bf16.mxu0 %v2551
    %3567 = vmatpush1.bf16.msra.mxu0 %v2550
    %3568 = vmatprep.subr.bf16.mxu0 %v2543
    %3569 = vmatpush1.bf16.msra.mxu0 %v2542
    %3570 = vmatprep.subr.bf16.mxu0 %v2663
    %3571 = vmatpush2.bf16.msra.mxu0 %v2662
    %3572 = vmatprep.subr.bf16.mxu0 %v2655
    %3573 = vmatpush2.bf16.msra.mxu0 %v2654
    %3574 = vmatprep.subr.bf16.mxu0 %v2647
    %3575 = vmatpush2.bf16.msra.mxu0 %v2646
    %3576 = vmatprep.subr.bf16.mxu0 %v2639
    %3577 = vmatpush2.bf16.msra.mxu0 %v2638
    %3578 = vmatprep.subr.bf16.mxu0 %v2631
    %3579 = vmatpush2.bf16.msra.mxu0 %v2630
    %3580 = vmatprep.subr.bf16.mxu0 %v2623
    %3581 = vmatpush2.bf16.msra.mxu0 %v2622
    %3582 = vmatprep.subr.bf16.mxu0 %v2615
    %3583 = vmatpush2.bf16.msra.mxu0 %v2614
    %3584 = vmatprep.subr.bf16.mxu0 %v2607
    %3585 = vmatpush2.bf16.msra.mxu0 %v2606
    %3586 = vmatprep.mubr.bf16.mxu0 %v233
    %3587 = vmatmul.mubr.bf16.gmra.mxu0 %v232
    %v3588 = vpop.f32.mrf.mxu0
    %v3589 = vadd.f32 %v3548, %v3588
    %v3590 = vpop.f32.mrf.mxu0
    %v3591 = vadd.f32 %v3550, %v3590
    %v3592 = vpop.f32.mrf.mxu0
    %v3593 = vpop.f32.mrf.mxu0
    %3594 = vdwg.mxu0
    %3595 = vmatprep.subr.bf16.mxu0 %v2727
    %3596 = vmatpush1.bf16.msra.mxu0 %v2726
    %3597 = vmatprep.subr.bf16.mxu0 %v2719
    %3598 = vmatpush1.bf16.msra.mxu0 %v2718
    %3599 = vmatprep.subr.bf16.mxu0 %v2711
    %3600 = vmatpush1.bf16.msra.mxu0 %v2710
    %3601 = vmatprep.subr.bf16.mxu0 %v2703
    %3602 = vmatpush1.bf16.msra.mxu0 %v2702
    %3603 = vmatprep.subr.bf16.mxu0 %v2695
    %3604 = vmatpush1.bf16.msra.mxu0 %v2694
    %3605 = vmatprep.subr.bf16.mxu0 %v2687
    %3606 = vmatpush1.bf16.msra.mxu0 %v2686
    %3607 = vmatprep.subr.bf16.mxu0 %v2679
    %3608 = vmatpush1.bf16.msra.mxu0 %v2678
    %3609 = vmatprep.subr.bf16.mxu0 %v2671
    %3610 = vmatpush1.bf16.msra.mxu0 %v2670
    %3611 = vmatprep.subr.bf16.mxu0 %v2791
    %3612 = vmatpush2.bf16.msra.mxu0 %v2790
    %3613 = vmatprep.subr.bf16.mxu0 %v2783
    %3614 = vmatpush2.bf16.msra.mxu0 %v2782
    %3615 = vmatprep.subr.bf16.mxu0 %v2775
    %3616 = vmatpush2.bf16.msra.mxu0 %v2774
    %3617 = vmatprep.subr.bf16.mxu0 %v2767
    %3618 = vmatpush2.bf16.msra.mxu0 %v2766
    %3619 = vmatprep.subr.bf16.mxu0 %v2759
    %3620 = vmatpush2.bf16.msra.mxu0 %v2758
    %3621 = vmatprep.subr.bf16.mxu0 %v2751
    %3622 = vmatpush2.bf16.msra.mxu0 %v2750
    %3623 = vmatprep.subr.bf16.mxu0 %v2743
    %3624 = vmatpush2.bf16.msra.mxu0 %v2742
    %3625 = vmatprep.subr.bf16.mxu0 %v2735
    %3626 = vmatpush2.bf16.msra.mxu0 %v2734
    %3627 = vmatprep.mubr.bf16.mxu0 %v235
    %3628 = vmatmul.mubr.bf16.gmra.mxu0 %v234
    %v3629 = vpop.f32.mrf.mxu0
    %v3630 = vadd.f32 %v3589, %v3629
    %v3631 = vpop.f32.mrf.mxu0
    %v3632 = vadd.f32 %v3591, %v3631
    %v3633 = vpop.f32.mrf.mxu0
    %v3634 = vpop.f32.mrf.mxu0
    %3635 = vdwg.mxu0
    %3636 = vmatprep.subr.bf16.mxu0 %v2345
    %3637 = vmatpush1.bf16.msra.mxu0 %v2344
    %3638 = vmatprep.subr.bf16.mxu0 %v2337
    %3639 = vmatpush1.bf16.msra.mxu0 %v2336
    %3640 = vmatprep.subr.bf16.mxu0 %v2329
    %3641 = vmatpush1.bf16.msra.mxu0 %v2328
    %3642 = vmatprep.subr.bf16.mxu0 %v2321
    %3643 = vmatpush1.bf16.msra.mxu0 %v2320
    %3644 = vmatprep.subr.bf16.mxu0 %v2313
    %3645 = vmatpush1.bf16.msra.mxu0 %v2312
    %3646 = vmatprep.subr.bf16.mxu0 %v2305
    %3647 = vmatpush1.bf16.msra.mxu0 %v2304
    %3648 = vmatprep.subr.bf16.mxu0 %v2297
    %3649 = vmatpush1.bf16.msra.mxu0 %v2296
    %3650 = vmatprep.subr.bf16.mxu0 %v2289
    %3651 = vmatpush1.bf16.msra.mxu0 %v2288
    %3652 = vmatprep.subr.bf16.mxu0 %v2409
    %3653 = vmatpush2.bf16.msra.mxu0 %v2408
    %3654 = vmatprep.subr.bf16.mxu0 %v2401
    %3655 = vmatpush2.bf16.msra.mxu0 %v2400
    %3656 = vmatprep.subr.bf16.mxu0 %v2393
    %3657 = vmatpush2.bf16.msra.mxu0 %v2392
    %3658 = vmatprep.subr.bf16.mxu0 %v2385
    %3659 = vmatpush2.bf16.msra.mxu0 %v2384
    %3660 = vmatprep.subr.bf16.mxu0 %v2377
    %3661 = vmatpush2.bf16.msra.mxu0 %v2376
    %3662 = vmatprep.subr.bf16.mxu0 %v2369
    %3663 = vmatpush2.bf16.msra.mxu0 %v2368
    %3664 = vmatprep.subr.bf16.mxu0 %v2361
    %3665 = vmatpush2.bf16.msra.mxu0 %v2360
    %3666 = vmatprep.subr.bf16.mxu0 %v2353
    %3667 = vmatpush2.bf16.msra.mxu0 %v2352
    %3668 = vmatprep.mubr.bf16.mxu0 %v229
    %3669 = vmatmul.mubr.bf16.gmra.mxu0 %v228
    %v3670 = vpop.f32.mrf.mxu0
    %v3671 = vadd.f32 0.0, %v3670
    %v3672 = vpop.f32.mrf.mxu0
    %v3673 = vadd.f32 0.0, %v3672
    %v3674 = vpop.f32.mrf.mxu0
    %v3675 = vpop.f32.mrf.mxu0
    %3676 = vdwg.mxu0
    %3677 = vmatprep.subr.bf16.mxu0 %v2473
    %3678 = vmatpush1.bf16.msra.mxu0 %v2472
    %3679 = vmatprep.subr.bf16.mxu0 %v2465
    %3680 = vmatpush1.bf16.msra.mxu0 %v2464
    %3681 = vmatprep.subr.bf16.mxu0 %v2457
    %3682 = vmatpush1.bf16.msra.mxu0 %v2456
    %3683 = vmatprep.subr.bf16.mxu0 %v2449
    %3684 = vmatpush1.bf16.msra.mxu0 %v2448
    %3685 = vmatprep.subr.bf16.mxu0 %v2441
    %3686 = vmatpush1.bf16.msra.mxu0 %v2440
    %3687 = vmatprep.subr.bf16.mxu0 %v2433
    %3688 = vmatpush1.bf16.msra.mxu0 %v2432
    %3689 = vmatprep.subr.bf16.mxu0 %v2425
    %3690 = vmatpush1.bf16.msra.mxu0 %v2424
    %3691 = vmatprep.subr.bf16.mxu0 %v2417
    %3692 = vmatpush1.bf16.msra.mxu0 %v2416
    %3693 = vmatprep.subr.bf16.mxu0 %v2537
    %3694 = vmatpush2.bf16.msra.mxu0 %v2536
    %3695 = vmatprep.subr.bf16.mxu0 %v2529
    %3696 = vmatpush2.bf16.msra.mxu0 %v2528
    %3697 = vmatprep.subr.bf16.mxu0 %v2521
    %3698 = vmatpush2.bf16.msra.mxu0 %v2520
    %3699 = vmatprep.subr.bf16.mxu0 %v2513
    %3700 = vmatpush2.bf16.msra.mxu0 %v2512
    %3701 = vmatprep.subr.bf16.mxu0 %v2505
    %3702 = vmatpush2.bf16.msra.mxu0 %v2504
    %3703 = vmatprep.subr.bf16.mxu0 %v2497
    %3704 = vmatpush2.bf16.msra.mxu0 %v2496
    %3705 = vmatprep.subr.bf16.mxu0 %v2489
    %3706 = vmatpush2.bf16.msra.mxu0 %v2488
    %3707 = vmatprep.subr.bf16.mxu0 %v2481
    %3708 = vmatpush2.bf16.msra.mxu0 %v2480
    %3709 = vmatprep.mubr.bf16.mxu0 %v231
    %3710 = vmatmul.mubr.bf16.gmra.mxu0 %v230
    %v3711 = vpop.f32.mrf.mxu0
    %v3712 = vadd.f32 %v3671, %v3711
    %v3713 = vpop.f32.mrf.mxu0
    %v3714 = vadd.f32 %v3673, %v3713
    %v3715 = vpop.f32.mrf.mxu0
    %v3716 = vpop.f32.mrf.mxu0
    %3717 = vdwg.mxu0
    %3718 = vmatprep.subr.bf16.mxu0 %v2601
    %3719 = vmatpush1.bf16.msra.mxu0 %v2600
    %3720 = vmatprep.subr.bf16.mxu0 %v2593
    %3721 = vmatpush1.bf16.msra.mxu0 %v2592
    %3722 = vmatprep.subr.bf16.mxu0 %v2585
    %3723 = vmatpush1.bf16.msra.mxu0 %v2584
    %3724 = vmatprep.subr.bf16.mxu0 %v2577
    %3725 = vmatpush1.bf16.msra.mxu0 %v2576
    %3726 = vmatprep.subr.bf16.mxu0 %v2569
    %3727 = vmatpush1.bf16.msra.mxu0 %v2568
    %3728 = vmatprep.subr.bf16.mxu0 %v2561
    %3729 = vmatpush1.bf16.msra.mxu0 %v2560
    %3730 = vmatprep.subr.bf16.mxu0 %v2553
    %3731 = vmatpush1.bf16.msra.mxu0 %v2552
    %3732 = vmatprep.subr.bf16.mxu0 %v2545
    %3733 = vmatpush1.bf16.msra.mxu0 %v2544
    %3734 = vmatprep.subr.bf16.mxu0 %v2665
    %3735 = vmatpush2.bf16.msra.mxu0 %v2664
    %3736 = vmatprep.subr.bf16.mxu0 %v2657
    %3737 = vmatpush2.bf16.msra.mxu0 %v2656
    %3738 = vmatprep.subr.bf16.mxu0 %v2649
    %3739 = vmatpush2.bf16.msra.mxu0 %v2648
    %3740 = vmatprep.subr.bf16.mxu0 %v2641
    %3741 = vmatpush2.bf16.msra.mxu0 %v2640
    %3742 = vmatprep.subr.bf16.mxu0 %v2633
    %3743 = vmatpush2.bf16.msra.mxu0 %v2632
    %3744 = vmatprep.subr.bf16.mxu0 %v2625
    %3745 = vmatpush2.bf16.msra.mxu0 %v2624
    %3746 = vmatprep.subr.bf16.mxu0 %v2617
    %3747 = vmatpush2.bf16.msra.mxu0 %v2616
    %3748 = vmatprep.subr.bf16.mxu0 %v2609
    %3749 = vmatpush2.bf16.msra.mxu0 %v2608
    %3750 = vmatprep.mubr.bf16.mxu0 %v233
    %3751 = vmatmul.mubr.bf16.gmra.mxu0 %v232
    %v3752 = vpop.f32.mrf.mxu0
    %v3753 = vadd.f32 %v3712, %v3752
    %v3754 = vpop.f32.mrf.mxu0
    %v3755 = vadd.f32 %v3714, %v3754
    %v3756 = vpop.f32.mrf.mxu0
    %v3757 = vpop.f32.mrf.mxu0
    %3758 = vdwg.mxu0
    %3759 = vmatprep.subr.bf16.mxu0 %v2729
    %3760 = vmatpush1.bf16.msra.mxu0 %v2728
    %3761 = vmatprep.subr.bf16.mxu0 %v2721
    %3762 = vmatpush1.bf16.msra.mxu0 %v2720
    %3763 = vmatprep.subr.bf16.mxu0 %v2713
    %3764 = vmatpush1.bf16.msra.mxu0 %v2712
    %3765 = vmatprep.subr.bf16.mxu0 %v2705
    %3766 = vmatpush1.bf16.msra.mxu0 %v2704
    %3767 = vmatprep.subr.bf16.mxu0 %v2697
    %3768 = vmatpush1.bf16.msra.mxu0 %v2696
    %3769 = vmatprep.subr.bf16.mxu0 %v2689
    %3770 = vmatpush1.bf16.msra.mxu0 %v2688
    %3771 = vmatprep.subr.bf16.mxu0 %v2681
    %3772 = vmatpush1.bf16.msra.mxu0 %v2680
    %3773 = vmatprep.subr.bf16.mxu0 %v2673
    %3774 = vmatpush1.bf16.msra.mxu0 %v2672
    %3775 = vmatprep.subr.bf16.mxu0 %v2793
    %3776 = vmatpush2.bf16.msra.mxu0 %v2792
    %3777 = vmatprep.subr.bf16.mxu0 %v2785
    %3778 = vmatpush2.bf16.msra.mxu0 %v2784
    %3779 = vmatprep.subr.bf16.mxu0 %v2777
    %3780 = vmatpush2.bf16.msra.mxu0 %v2776
    %3781 = vmatprep.subr.bf16.mxu0 %v2769
    %3782 = vmatpush2.bf16.msra.mxu0 %v2768
    %3783 = vmatprep.subr.bf16.mxu0 %v2761
    %3784 = vmatpush2.bf16.msra.mxu0 %v2760
    %3785 = vmatprep.subr.bf16.mxu0 %v2753
    %3786 = vmatpush2.bf16.msra.mxu0 %v2752
    %3787 = vmatprep.subr.bf16.mxu0 %v2745
    %3788 = vmatpush2.bf16.msra.mxu0 %v2744
    %3789 = vmatprep.subr.bf16.mxu0 %v2737
    %3790 = vmatpush2.bf16.msra.mxu0 %v2736
    %3791 = vmatprep.mubr.bf16.mxu0 %v235
    %3792 = vmatmul.mubr.bf16.gmra.mxu0 %v234
    %v3793 = vpop.f32.mrf.mxu0
    %v3794 = vadd.f32 %v3753, %v3793
    %v3795 = vpop.f32.mrf.mxu0
    %v3796 = vadd.f32 %v3755, %v3795
    %v3797 = vpop.f32.mrf.mxu0
    %v3798 = vpop.f32.mrf.mxu0
    %3799 = vdwg.mxu0
    %3800 = vmatprep.subr.bf16.mxu0 %v2347
    %3801 = vmatpush1.bf16.msra.mxu0 %v2346
    %3802 = vmatprep.subr.bf16.mxu0 %v2339
    %3803 = vmatpush1.bf16.msra.mxu0 %v2338
    %3804 = vmatprep.subr.bf16.mxu0 %v2331
    %3805 = vmatpush1.bf16.msra.mxu0 %v2330
    %3806 = vmatprep.subr.bf16.mxu0 %v2323
    %3807 = vmatpush1.bf16.msra.mxu0 %v2322
    %3808 = vmatprep.subr.bf16.mxu0 %v2315
    %3809 = vmatpush1.bf16.msra.mxu0 %v2314
    %3810 = vmatprep.subr.bf16.mxu0 %v2307
    %3811 = vmatpush1.bf16.msra.mxu0 %v2306
    %3812 = vmatprep.subr.bf16.mxu0 %v2299
    %3813 = vmatpush1.bf16.msra.mxu0 %v2298
    %3814 = vmatprep.subr.bf16.mxu0 %v2291
    %3815 = vmatpush1.bf16.msra.mxu0 %v2290
    %3816 = vmatprep.subr.bf16.mxu0 %v2411
    %3817 = vmatpush2.bf16.msra.mxu0 %v2410
    %3818 = vmatprep.subr.bf16.mxu0 %v2403
    %3819 = vmatpush2.bf16.msra.mxu0 %v2402
    %3820 = vmatprep.subr.bf16.mxu0 %v2395
    %3821 = vmatpush2.bf16.msra.mxu0 %v2394
    %3822 = vmatprep.subr.bf16.mxu0 %v2387
    %3823 = vmatpush2.bf16.msra.mxu0 %v2386
    %3824 = vmatprep.subr.bf16.mxu0 %v2379
    %3825 = vmatpush2.bf16.msra.mxu0 %v2378
    %3826 = vmatprep.subr.bf16.mxu0 %v2371
    %3827 = vmatpush2.bf16.msra.mxu0 %v2370
    %3828 = vmatprep.subr.bf16.mxu0 %v2363
    %3829 = vmatpush2.bf16.msra.mxu0 %v2362
    %3830 = vmatprep.subr.bf16.mxu0 %v2355
    %3831 = vmatpush2.bf16.msra.mxu0 %v2354
    %3832 = vmatprep.mubr.bf16.mxu0 %v229
    %3833 = vmatmul.mubr.bf16.gmra.mxu0 %v228
    %v3834 = vpop.f32.mrf.mxu0
    %v3835 = vadd.f32 0.0, %v3834
    %v3836 = vpop.f32.mrf.mxu0
    %v3837 = vadd.f32 0.0, %v3836
    %v3838 = vpop.f32.mrf.mxu0
    %v3839 = vpop.f32.mrf.mxu0
    %3840 = vdwg.mxu0
    %3841 = vmatprep.subr.bf16.mxu0 %v2475
    %3842 = vmatpush1.bf16.msra.mxu0 %v2474
    %3843 = vmatprep.subr.bf16.mxu0 %v2467
    %3844 = vmatpush1.bf16.msra.mxu0 %v2466
    %3845 = vmatprep.subr.bf16.mxu0 %v2459
    %3846 = vmatpush1.bf16.msra.mxu0 %v2458
    %3847 = vmatprep.subr.bf16.mxu0 %v2451
    %3848 = vmatpush1.bf16.msra.mxu0 %v2450
    %3849 = vmatprep.subr.bf16.mxu0 %v2443
    %3850 = vmatpush1.bf16.msra.mxu0 %v2442
    %3851 = vmatprep.subr.bf16.mxu0 %v2435
    %3852 = vmatpush1.bf16.msra.mxu0 %v2434
    %3853 = vmatprep.subr.bf16.mxu0 %v2427
    %3854 = vmatpush1.bf16.msra.mxu0 %v2426
    %3855 = vmatprep.subr.bf16.mxu0 %v2419
    %3856 = vmatpush1.bf16.msra.mxu0 %v2418
    %3857 = vmatprep.subr.bf16.mxu0 %v2539
    %3858 = vmatpush2.bf16.msra.mxu0 %v2538
    %3859 = vmatprep.subr.bf16.mxu0 %v2531
    %3860 = vmatpush2.bf16.msra.mxu0 %v2530
    %3861 = vmatprep.subr.bf16.mxu0 %v2523
    %3862 = vmatpush2.bf16.msra.mxu0 %v2522
    %3863 = vmatprep.subr.bf16.mxu0 %v2515
    %3864 = vmatpush2.bf16.msra.mxu0 %v2514
    %3865 = vmatprep.subr.bf16.mxu0 %v2507
    %3866 = vmatpush2.bf16.msra.mxu0 %v2506
    %3867 = vmatprep.subr.bf16.mxu0 %v2499
    %3868 = vmatpush2.bf16.msra.mxu0 %v2498
    %3869 = vmatprep.subr.bf16.mxu0 %v2491
    %3870 = vmatpush2.bf16.msra.mxu0 %v2490
    %3871 = vmatprep.subr.bf16.mxu0 %v2483
    %3872 = vmatpush2.bf16.msra.mxu0 %v2482
    %3873 = vmatprep.mubr.bf16.mxu0 %v231
    %3874 = vmatmul.mubr.bf16.gmra.mxu0 %v230
    %v3875 = vpop.f32.mrf.mxu0
    %v3876 = vadd.f32 %v3835, %v3875
    %v3877 = vpop.f32.mrf.mxu0
    %v3878 = vadd.f32 %v3837, %v3877
    %v3879 = vpop.f32.mrf.mxu0
    %v3880 = vpop.f32.mrf.mxu0
    %3881 = vdwg.mxu0
    %3882 = vmatprep.subr.bf16.mxu0 %v2603
    %3883 = vmatpush1.bf16.msra.mxu0 %v2602
    %3884 = vmatprep.subr.bf16.mxu0 %v2595
    %3885 = vmatpush1.bf16.msra.mxu0 %v2594
    %3886 = vmatprep.subr.bf16.mxu0 %v2587
    %3887 = vmatpush1.bf16.msra.mxu0 %v2586
    %3888 = vmatprep.subr.bf16.mxu0 %v2579
    %3889 = vmatpush1.bf16.msra.mxu0 %v2578
    %3890 = vmatprep.subr.bf16.mxu0 %v2571
    %3891 = vmatpush1.bf16.msra.mxu0 %v2570
    %3892 = vmatprep.subr.bf16.mxu0 %v2563
    %3893 = vmatpush1.bf16.msra.mxu0 %v2562
    %3894 = vmatprep.subr.bf16.mxu0 %v2555
    %3895 = vmatpush1.bf16.msra.mxu0 %v2554
    %3896 = vmatprep.subr.bf16.mxu0 %v2547
    %3897 = vmatpush1.bf16.msra.mxu0 %v2546
    %3898 = vmatprep.subr.bf16.mxu0 %v2667
    %3899 = vmatpush2.bf16.msra.mxu0 %v2666
    %3900 = vmatprep.subr.bf16.mxu0 %v2659
    %3901 = vmatpush2.bf16.msra.mxu0 %v2658
    %3902 = vmatprep.subr.bf16.mxu0 %v2651
    %3903 = vmatpush2.bf16.msra.mxu0 %v2650
    %3904 = vmatprep.subr.bf16.mxu0 %v2643
    %3905 = vmatpush2.bf16.msra.mxu0 %v2642
    %3906 = vmatprep.subr.bf16.mxu0 %v2635
    %3907 = vmatpush2.bf16.msra.mxu0 %v2634
    %3908 = vmatprep.subr.bf16.mxu0 %v2627
    %3909 = vmatpush2.bf16.msra.mxu0 %v2626
    %3910 = vmatprep.subr.bf16.mxu0 %v2619
    %3911 = vmatpush2.bf16.msra.mxu0 %v2618
    %3912 = vmatprep.subr.bf16.mxu0 %v2611
    %3913 = vmatpush2.bf16.msra.mxu0 %v2610
    %3914 = vmatprep.mubr.bf16.mxu0 %v233
    %3915 = vmatmul.mubr.bf16.gmra.mxu0 %v232
    %v3916 = vpop.f32.mrf.mxu0
    %v3917 = vadd.f32 %v3876, %v3916
    %v3918 = vpop.f32.mrf.mxu0
    %v3919 = vadd.f32 %v3878, %v3918
    %v3920 = vpop.f32.mrf.mxu0
    %v3921 = vpop.f32.mrf.mxu0
    %3922 = vdwg.mxu0
    %3923 = vmatprep.subr.bf16.mxu0 %v2731
    %3924 = vmatpush1.bf16.msra.mxu0 %v2730
    %3925 = vmatprep.subr.bf16.mxu0 %v2723
    %3926 = vmatpush1.bf16.msra.mxu0 %v2722
    %3927 = vmatprep.subr.bf16.mxu0 %v2715
    %3928 = vmatpush1.bf16.msra.mxu0 %v2714
    %3929 = vmatprep.subr.bf16.mxu0 %v2707
    %3930 = vmatpush1.bf16.msra.mxu0 %v2706
    %3931 = vmatprep.subr.bf16.mxu0 %v2699
    %3932 = vmatpush1.bf16.msra.mxu0 %v2698
    %3933 = vmatprep.subr.bf16.mxu0 %v2691
    %3934 = vmatpush1.bf16.msra.mxu0 %v2690
    %3935 = vmatprep.subr.bf16.mxu0 %v2683
    %3936 = vmatpush1.bf16.msra.mxu0 %v2682
    %3937 = vmatprep.subr.bf16.mxu0 %v2675
    %3938 = vmatpush1.bf16.msra.mxu0 %v2674
    %3939 = vmatprep.subr.bf16.mxu0 %v2795
    %3940 = vmatpush2.bf16.msra.mxu0 %v2794
    %3941 = vmatprep.subr.bf16.mxu0 %v2787
    %3942 = vmatpush2.bf16.msra.mxu0 %v2786
    %3943 = vmatprep.subr.bf16.mxu0 %v2779
    %3944 = vmatpush2.bf16.msra.mxu0 %v2778
    %3945 = vmatprep.subr.bf16.mxu0 %v2771
    %3946 = vmatpush2.bf16.msra.mxu0 %v2770
    %3947 = vmatprep.subr.bf16.mxu0 %v2763
    %3948 = vmatpush2.bf16.msra.mxu0 %v2762
    %3949 = vmatprep.subr.bf16.mxu0 %v2755
    %3950 = vmatpush2.bf16.msra.mxu0 %v2754
    %3951 = vmatprep.subr.bf16.mxu0 %v2747
    %3952 = vmatpush2.bf16.msra.mxu0 %v2746
    %3953 = vmatprep.subr.bf16.mxu0 %v2739
    %3954 = vmatpush2.bf16.msra.mxu0 %v2738
    %3955 = vmatprep.mubr.bf16.mxu0 %v235
    %3956 = vmatmul.mubr.bf16.gmra.mxu0 %v234
    %v3957 = vpop.f32.mrf.mxu0
    %v3958 = vadd.f32 %v3917, %v3957
    %v3959 = vpop.f32.mrf.mxu0
    %v3960 = vadd.f32 %v3919, %v3959
    %v3961 = vpop.f32.mrf.mxu0
    %v3962 = vpop.f32.mrf.mxu0
    %3963 = vdwg.mxu0
    %v3972 = vcombine.low %v3466, %v3468
    %v3973 = vcombine.low %v3630, %v3632
    %v3975 = vunpack.c.l.s4 1983009808
    %v3976 = vunpack.c.0.s8 %v3975
    %v3977 = vlaneseq
    %v3978 = vshrl.u32 %v3977, 7
    %v3979 = vsub.s32 %v3976, %v3978
    %v3980 = vrot.slane %v3972, %v3979
    %v3982 = vunpack.c.l.s4 1983009808
    %v3983 = vunpack.c.0.s8 %v3982
    %v3984 = vlaneseq
    %v3985 = vshrl.u32 %v3984, 7
    %v3986 = vsub.s32 %v3983, %v3985
    %v3987 = vrot.slane %v3973, %v3986
    %v3988 = vcombine.low %v3980, %v3987
    %v3989 = vcombine.low %v3794, %v3796
    %v3990 = vcombine.low %v3958, %v3960
    %v3992 = vunpack.c.l.s4 1983009808
    %v3993 = vunpack.c.0.s8 %v3992
    %v3994 = vlaneseq
    %v3995 = vshrl.u32 %v3994, 7
    %v3996 = vsub.s32 %v3993, %v3995
    %v3997 = vrot.slane %v3989, %v3996
    %v3999 = vunpack.c.l.s4 1983009808
    %v4000 = vunpack.c.0.s8 %v3999
    %v4001 = vlaneseq
    %v4002 = vshrl.u32 %v4001, 7
    %v4003 = vsub.s32 %v4000, %v4002
    %v4004 = vrot.slane %v3990, %v4003
    %v4005 = vcombine.low %v3997, %v4004
    %v4008 = vadd.f32 %v180, %v3988
    %v4009 = vadd.f32 %v181, %v4005
    %4010 = vst [vmem:[#allocation2] sm:$0xff] %v4008
    %4011 = vst [vmem:[#allocation2 + $0x8] sm:$0xff] %v4009
    // Predicated region
    $region58: #{_reid_forward.1} parent=1 // pred_check
      %p4012 = pneg %p104
    $region59: #{_reid_forward.1} parent=1 // pred_check_branch
      %4014 = sbr.rel (%p4012) target = $region61
    $region60: #{_reid_forward.1} parent=1 // pred_region
      %v4015 = vld [vmem:[#allocation2] sm:$0xff]
      %v4016 = vld [vmem:[#allocation2 + $0x8] sm:$0xff]
      %v4017 = vmax.f32 %v4015, 0.0
      %v4018 = vmax.f32 %v4016, 0.0
      %v4021 = vcombine.high %v4017, %v4017
      %v4023 = vunpack.c.l.s4 1983009808
      %v4024 = vunpack.c.0.s8 %v4023
      %v4025 = vlaneseq
      %v4026 = vshrl.u32 %v4025, 7
      %v4027 = vsub.s32 %v4024, %v4026
      %v4028 = vrot.slane %v4017, %v4027
      %v4030 = vunpack.c.l.s4 1983009808
      %v4031 = vunpack.c.0.s8 %v4030
      %v4032 = vlaneseq
      %v4033 = vshrl.u32 %v4032, 7
      %v4034 = vsub.s32 %v4031, %v4033
      %v4035 = vrot.slane %v4021, %v4034
      %v4036 = vcombine.high %v4028, %v4028
      %v4037 = vcombine.high %v4035, %v4035
      %v4038 = vcombine.high %v4018, %v4018
      %v4040 = vunpack.c.l.s4 1983009808
      %v4041 = vunpack.c.0.s8 %v4040
      %v4042 = vlaneseq
      %v4043 = vshrl.u32 %v4042, 7
      %v4044 = vsub.s32 %v4041, %v4043
      %v4045 = vrot.slane %v4018, %v4044
      %v4047 = vunpack.c.l.s4 1983009808
      %v4048 = vunpack.c.0.s8 %v4047
      %v4049 = vlaneseq
      %v4050 = vshrl.u32 %v4049, 7
      %v4051 = vsub.s32 %v4048, %v4050
      %v4052 = vrot.slane %v4038, %v4051
      %v4053 = vcombine.high %v4045, %v4045
      %v4054 = vcombine.high %v4052, %v4052
      %v4063 = vpack.c.bf16 %v4028, %v4028
      %v4064 = vpack.c.bf16 %v4036, %v4036
      %v4065 = vpack.c.bf16 %v4035, %v4035
      %v4066 = vpack.c.bf16 %v4037, %v4037
      %v4067 = vpack.c.bf16 %v4045, %v4045
      %v4068 = vpack.c.bf16 %v4053, %v4053
      %v4069 = vpack.c.bf16 %v4052, %v4052
      %v4070 = vpack.c.bf16 %v4054, %v4054
      %v4071 = vld [vmem:[#allocation8] sm:$0xff]
      %v4072 = vld [vmem:[#allocation8 + $0x8] sm:$0xff]
      %v4073 = vld [vmem:[#allocation8 + $0x10] sm:$0xff]
      %v4074 = vld [vmem:[#allocation8 + $0x18] sm:$0xff]
      %v4075 = vld [vmem:[#allocation8 + $0x20] sm:$0xff]
      %v4076 = vld [vmem:[#allocation8 + $0x28] sm:$0xff]
      %v4077 = vld [vmem:[#allocation8 + $0x30] sm:$0xff]
      %v4078 = vld [vmem:[#allocation8 + $0x38] sm:$0xff]
      %v4079 = vld [vmem:[#allocation8 + $0x40] sm:$0xff]
      %v4080 = vld [vmem:[#allocation8 + $0x48] sm:$0xff]
      %v4081 = vld [vmem:[#allocation8 + $0x50] sm:$0xff]
      %v4082 = vld [vmem:[#allocation8 + $0x58] sm:$0xff]
      %v4083 = vld [vmem:[#allocation8 + $0x60] sm:$0xff]
      %v4084 = vld [vmem:[#allocation8 + $0x68] sm:$0xff]
      %v4085 = vld [vmem:[#allocation8 + $0x70] sm:$0xff]
      %v4086 = vld [vmem:[#allocation8 + $0x78] sm:$0xff]
      %v4087 = vld [vmem:[#allocation8 + $0x80] sm:$0xff]
      %v4088 = vld [vmem:[#allocation8 + $0x88] sm:$0xff]
      %v4089 = vld [vmem:[#allocation8 + $0x90] sm:$0xff]
      %v4090 = vld [vmem:[#allocation8 + $0x98] sm:$0xff]
      %v4091 = vld [vmem:[#allocation8 + $0xa0] sm:$0xff]
      %v4092 = vld [vmem:[#allocation8 + $0xa8] sm:$0xff]
      %v4093 = vld [vmem:[#allocation8 + $0xb0] sm:$0xff]
      %v4094 = vld [vmem:[#allocation8 + $0xb8] sm:$0xff]
      %v4095 = vld [vmem:[#allocation8 + $0xc0] sm:$0xff]
      %v4096 = vld [vmem:[#allocation8 + $0xc8] sm:$0xff]
      %v4097 = vld [vmem:[#allocation8 + $0xd0] sm:$0xff]
      %v4098 = vld [vmem:[#allocation8 + $0xd8] sm:$0xff]
      %v4099 = vld [vmem:[#allocation8 + $0xe0] sm:$0xff]
      %v4100 = vld [vmem:[#allocation8 + $0xe8] sm:$0xff]
      %v4101 = vld [vmem:[#allocation8 + $0xf0] sm:$0xff]
      %v4102 = vld [vmem:[#allocation8 + $0xf8] sm:$0xff]
      %v4103 = vld [vmem:[#allocation8 + $0x100] sm:$0xff]
      %v4104 = vld [vmem:[#allocation8 + $0x108] sm:$0xff]
      %v4105 = vld [vmem:[#allocation8 + $0x110] sm:$0xff]
      %v4106 = vld [vmem:[#allocation8 + $0x118] sm:$0xff]
      %v4107 = vld [vmem:[#allocation8 + $0x120] sm:$0xff]
      %v4108 = vld [vmem:[#allocation8 + $0x128] sm:$0xff]
      %v4109 = vld [vmem:[#allocation8 + $0x130] sm:$0xff]
      %v4110 = vld [vmem:[#allocation8 + $0x138] sm:$0xff]
      %v4111 = vld [vmem:[#allocation8 + $0x140] sm:$0xff]
      %v4112 = vld [vmem:[#allocation8 + $0x148] sm:$0xff]
      %v4113 = vld [vmem:[#allocation8 + $0x150] sm:$0xff]
      %v4114 = vld [vmem:[#allocation8 + $0x158] sm:$0xff]
      %v4115 = vld [vmem:[#allocation8 + $0x160] sm:$0xff]
      %v4116 = vld [vmem:[#allocation8 + $0x168] sm:$0xff]
      %v4117 = vld [vmem:[#allocation8 + $0x170] sm:$0xff]
      %v4118 = vld [vmem:[#allocation8 + $0x178] sm:$0xff]
      %v4119 = vld [vmem:[#allocation8 + $0x180] sm:$0xff]
      %v4120 = vld [vmem:[#allocation8 + $0x188] sm:$0xff]
      %v4121 = vld [vmem:[#allocation8 + $0x190] sm:$0xff]
      %v4122 = vld [vmem:[#allocation8 + $0x198] sm:$0xff]
      %v4123 = vld [vmem:[#allocation8 + $0x1a0] sm:$0xff]
      %v4124 = vld [vmem:[#allocation8 + $0x1a8] sm:$0xff]
      %v4125 = vld [vmem:[#allocation8 + $0x1b0] sm:$0xff]
      %v4126 = vld [vmem:[#allocation8 + $0x1b8] sm:$0xff]
      %v4127 = vld [vmem:[#allocation8 + $0x1c0] sm:$0xff]
      %v4128 = vld [vmem:[#allocation8 + $0x1c8] sm:$0xff]
      %v4129 = vld [vmem:[#allocation8 + $0x1d0] sm:$0xff]
      %v4130 = vld [vmem:[#allocation8 + $0x1d8] sm:$0xff]
      %v4131 = vld [vmem:[#allocation8 + $0x1e0] sm:$0xff]
      %v4132 = vld [vmem:[#allocation8 + $0x1e8] sm:$0xff]
      %v4133 = vld [vmem:[#allocation8 + $0x1f0] sm:$0xff]
      %v4134 = vld [vmem:[#allocation8 + $0x1f8] sm:$0xff]
      %v4135 = vld [vmem:[#allocation8 + $0x200] sm:$0xff]
      %v4136 = vld [vmem:[#allocation8 + $0x208] sm:$0xff]
      %v4137 = vld [vmem:[#allocation8 + $0x210] sm:$0xff]
      %v4138 = vld [vmem:[#allocation8 + $0x218] sm:$0xff]
      %v4139 = vld [vmem:[#allocation8 + $0x220] sm:$0xff]
      %v4140 = vld [vmem:[#allocation8 + $0x228] sm:$0xff]
      %v4141 = vld [vmem:[#allocation8 + $0x230] sm:$0xff]
      %v4142 = vld [vmem:[#allocation8 + $0x238] sm:$0xff]
      %v4143 = vld [vmem:[#allocation8 + $0x240] sm:$0xff]
      %v4144 = vld [vmem:[#allocation8 + $0x248] sm:$0xff]
      %v4145 = vld [vmem:[#allocation8 + $0x250] sm:$0xff]
      %v4146 = vld [vmem:[#allocation8 + $0x258] sm:$0xff]
      %v4147 = vld [vmem:[#allocation8 + $0x260] sm:$0xff]
      %v4148 = vld [vmem:[#allocation8 + $0x268] sm:$0xff]
      %v4149 = vld [vmem:[#allocation8 + $0x270] sm:$0xff]
      %v4150 = vld [vmem:[#allocation8 + $0x278] sm:$0xff]
      %v4151 = vld [vmem:[#allocation8 + $0x280] sm:$0xff]
      %v4152 = vld [vmem:[#allocation8 + $0x288] sm:$0xff]
      %v4153 = vld [vmem:[#allocation8 + $0x290] sm:$0xff]
      %v4154 = vld [vmem:[#allocation8 + $0x298] sm:$0xff]
      %v4155 = vld [vmem:[#allocation8 + $0x2a0] sm:$0xff]
      %v4156 = vld [vmem:[#allocation8 + $0x2a8] sm:$0xff]
      %v4157 = vld [vmem:[#allocation8 + $0x2b0] sm:$0xff]
      %v4158 = vld [vmem:[#allocation8 + $0x2b8] sm:$0xff]
      %v4159 = vld [vmem:[#allocation8 + $0x2c0] sm:$0xff]
      %v4160 = vld [vmem:[#allocation8 + $0x2c8] sm:$0xff]
      %v4161 = vld [vmem:[#allocation8 + $0x2d0] sm:$0xff]
      %v4162 = vld [vmem:[#allocation8 + $0x2d8] sm:$0xff]
      %v4163 = vld [vmem:[#allocation8 + $0x2e0] sm:$0xff]
      %v4164 = vld [vmem:[#allocation8 + $0x2e8] sm:$0xff]
      %v4165 = vld [vmem:[#allocation8 + $0x2f0] sm:$0xff]
      %v4166 = vld [vmem:[#allocation8 + $0x2f8] sm:$0xff]
      %v4167 = vld [vmem:[#allocation8 + $0x300] sm:$0xff]
      %v4168 = vld [vmem:[#allocation8 + $0x308] sm:$0xff]
      %v4169 = vld [vmem:[#allocation8 + $0x310] sm:$0xff]
      %v4170 = vld [vmem:[#allocation8 + $0x318] sm:$0xff]
      %v4171 = vld [vmem:[#allocation8 + $0x320] sm:$0xff]
      %v4172 = vld [vmem:[#allocation8 + $0x328] sm:$0xff]
      %v4173 = vld [vmem:[#allocation8 + $0x330] sm:$0xff]
      %v4174 = vld [vmem:[#allocation8 + $0x338] sm:$0xff]
      %v4175 = vld [vmem:[#allocation8 + $0x340] sm:$0xff]
      %v4176 = vld [vmem:[#allocation8 + $0x348] sm:$0xff]
      %v4177 = vld [vmem:[#allocation8 + $0x350] sm:$0xff]
      %v4178 = vld [vmem:[#allocation8 + $0x358] sm:$0xff]
      %v4179 = vld [vmem:[#allocation8 + $0x360] sm:$0xff]
      %v4180 = vld [vmem:[#allocation8 + $0x368] sm:$0xff]
      %v4181 = vld [vmem:[#allocation8 + $0x370] sm:$0xff]
      %v4182 = vld [vmem:[#allocation8 + $0x378] sm:$0xff]
      %v4183 = vld [vmem:[#allocation8 + $0x380] sm:$0xff]
      %v4184 = vld [vmem:[#allocation8 + $0x388] sm:$0xff]
      %v4185 = vld [vmem:[#allocation8 + $0x390] sm:$0xff]
      %v4186 = vld [vmem:[#allocation8 + $0x398] sm:$0xff]
      %v4187 = vld [vmem:[#allocation8 + $0x3a0] sm:$0xff]
      %v4188 = vld [vmem:[#allocation8 + $0x3a8] sm:$0xff]
      %v4189 = vld [vmem:[#allocation8 + $0x3b0] sm:$0xff]
      %v4190 = vld [vmem:[#allocation8 + $0x3b8] sm:$0xff]
      %v4191 = vld [vmem:[#allocation8 + $0x3c0] sm:$0xff]
      %v4192 = vld [vmem:[#allocation8 + $0x3c8] sm:$0xff]
      %v4193 = vld [vmem:[#allocation8 + $0x3d0] sm:$0xff]
      %v4194 = vld [vmem:[#allocation8 + $0x3d8] sm:$0xff]
      %v4195 = vld [vmem:[#allocation8 + $0x3e0] sm:$0xff]
      %v4196 = vld [vmem:[#allocation8 + $0x3e8] sm:$0xff]
      %v4197 = vld [vmem:[#allocation8 + $0x3f0] sm:$0xff]
      %v4198 = vld [vmem:[#allocation8 + $0x3f8] sm:$0xff]
      %v4199 = vld [vmem:[#allocation8 + $0x400] sm:$0xff]
      %v4200 = vld [vmem:[#allocation8 + $0x408] sm:$0xff]
      %v4201 = vld [vmem:[#allocation8 + $0x410] sm:$0xff]
      %v4202 = vld [vmem:[#allocation8 + $0x418] sm:$0xff]
      %v4203 = vld [vmem:[#allocation8 + $0x420] sm:$0xff]
      %v4204 = vld [vmem:[#allocation8 + $0x428] sm:$0xff]
      %v4205 = vld [vmem:[#allocation8 + $0x430] sm:$0xff]
      %v4206 = vld [vmem:[#allocation8 + $0x438] sm:$0xff]
      %v4207 = vld [vmem:[#allocation8 + $0x440] sm:$0xff]
      %v4208 = vld [vmem:[#allocation8 + $0x448] sm:$0xff]
      %v4209 = vld [vmem:[#allocation8 + $0x450] sm:$0xff]
      %v4210 = vld [vmem:[#allocation8 + $0x458] sm:$0xff]
      %v4211 = vld [vmem:[#allocation8 + $0x460] sm:$0xff]
      %v4212 = vld [vmem:[#allocation8 + $0x468] sm:$0xff]
      %v4213 = vld [vmem:[#allocation8 + $0x470] sm:$0xff]
      %v4214 = vld [vmem:[#allocation8 + $0x478] sm:$0xff]
      %v4215 = vld [vmem:[#allocation8 + $0x480] sm:$0xff]
      %v4216 = vld [vmem:[#allocation8 + $0x488] sm:$0xff]
      %v4217 = vld [vmem:[#allocation8 + $0x490] sm:$0xff]
      %v4218 = vld [vmem:[#allocation8 + $0x498] sm:$0xff]
      %v4219 = vld [vmem:[#allocation8 + $0x4a0] sm:$0xff]
      %v4220 = vld [vmem:[#allocation8 + $0x4a8] sm:$0xff]
      %v4221 = vld [vmem:[#allocation8 + $0x4b0] sm:$0xff]
      %v4222 = vld [vmem:[#allocation8 + $0x4b8] sm:$0xff]
      %v4223 = vld [vmem:[#allocation8 + $0x4c0] sm:$0xff]
      %v4224 = vld [vmem:[#allocation8 + $0x4c8] sm:$0xff]
      %v4225 = vld [vmem:[#allocation8 + $0x4d0] sm:$0xff]
      %v4226 = vld [vmem:[#allocation8 + $0x4d8] sm:$0xff]
      %v4227 = vld [vmem:[#allocation8 + $0x4e0] sm:$0xff]
      %v4228 = vld [vmem:[#allocation8 + $0x4e8] sm:$0xff]
      %v4229 = vld [vmem:[#allocation8 + $0x4f0] sm:$0xff]
      %v4230 = vld [vmem:[#allocation8 + $0x4f8] sm:$0xff]
      %v4231 = vld [vmem:[#allocation8 + $0x500] sm:$0xff]
      %v4232 = vld [vmem:[#allocation8 + $0x508] sm:$0xff]
      %v4233 = vld [vmem:[#allocation8 + $0x510] sm:$0xff]
      %v4234 = vld [vmem:[#allocation8 + $0x518] sm:$0xff]
      %v4235 = vld [vmem:[#allocation8 + $0x520] sm:$0xff]
      %v4236 = vld [vmem:[#allocation8 + $0x528] sm:$0xff]
      %v4237 = vld [vmem:[#allocation8 + $0x530] sm:$0xff]
      %v4238 = vld [vmem:[#allocation8 + $0x538] sm:$0xff]
      %v4239 = vld [vmem:[#allocation8 + $0x540] sm:$0xff]
      %v4240 = vld [vmem:[#allocation8 + $0x548] sm:$0xff]
      %v4241 = vld [vmem:[#allocation8 + $0x550] sm:$0xff]
      %v4242 = vld [vmem:[#allocation8 + $0x558] sm:$0xff]
      %v4243 = vld [vmem:[#allocation8 + $0x560] sm:$0xff]
      %v4244 = vld [vmem:[#allocation8 + $0x568] sm:$0xff]
      %v4245 = vld [vmem:[#allocation8 + $0x570] sm:$0xff]
      %v4246 = vld [vmem:[#allocation8 + $0x578] sm:$0xff]
      %v4247 = vld [vmem:[#allocation8 + $0x580] sm:$0xff]
      %v4248 = vld [vmem:[#allocation8 + $0x588] sm:$0xff]
      %v4249 = vld [vmem:[#allocation8 + $0x590] sm:$0xff]
      %v4250 = vld [vmem:[#allocation8 + $0x598] sm:$0xff]
      %v4251 = vld [vmem:[#allocation8 + $0x5a0] sm:$0xff]
      %v4252 = vld [vmem:[#allocation8 + $0x5a8] sm:$0xff]
      %v4253 = vld [vmem:[#allocation8 + $0x5b0] sm:$0xff]
      %v4254 = vld [vmem:[#allocation8 + $0x5b8] sm:$0xff]
      %v4255 = vld [vmem:[#allocation8 + $0x5c0] sm:$0xff]
      %v4256 = vld [vmem:[#allocation8 + $0x5c8] sm:$0xff]
      %v4257 = vld [vmem:[#allocation8 + $0x5d0] sm:$0xff]
      %v4258 = vld [vmem:[#allocation8 + $0x5d8] sm:$0xff]
      %v4259 = vld [vmem:[#allocation8 + $0x5e0] sm:$0xff]
      %v4260 = vld [vmem:[#allocation8 + $0x5e8] sm:$0xff]
      %v4261 = vld [vmem:[#allocation8 + $0x5f0] sm:$0xff]
      %v4262 = vld [vmem:[#allocation8 + $0x5f8] sm:$0xff]
      %v4263 = vld [vmem:[#allocation8 + $0x600] sm:$0xff]
      %v4264 = vld [vmem:[#allocation8 + $0x608] sm:$0xff]
      %v4265 = vld [vmem:[#allocation8 + $0x610] sm:$0xff]
      %v4266 = vld [vmem:[#allocation8 + $0x618] sm:$0xff]
      %v4267 = vld [vmem:[#allocation8 + $0x620] sm:$0xff]
      %v4268 = vld [vmem:[#allocation8 + $0x628] sm:$0xff]
      %v4269 = vld [vmem:[#allocation8 + $0x630] sm:$0xff]
      %v4270 = vld [vmem:[#allocation8 + $0x638] sm:$0xff]
      %v4271 = vld [vmem:[#allocation8 + $0x640] sm:$0xff]
      %v4272 = vld [vmem:[#allocation8 + $0x648] sm:$0xff]
      %v4273 = vld [vmem:[#allocation8 + $0x650] sm:$0xff]
      %v4274 = vld [vmem:[#allocation8 + $0x658] sm:$0xff]
      %v4275 = vld [vmem:[#allocation8 + $0x660] sm:$0xff]
      %v4276 = vld [vmem:[#allocation8 + $0x668] sm:$0xff]
      %v4277 = vld [vmem:[#allocation8 + $0x670] sm:$0xff]
      %v4278 = vld [vmem:[#allocation8 + $0x678] sm:$0xff]
      %v4279 = vld [vmem:[#allocation8 + $0x680] sm:$0xff]
      %v4280 = vld [vmem:[#allocation8 + $0x688] sm:$0xff]
      %v4281 = vld [vmem:[#allocation8 + $0x690] sm:$0xff]
      %v4282 = vld [vmem:[#allocation8 + $0x698] sm:$0xff]
      %v4283 = vld [vmem:[#allocation8 + $0x6a0] sm:$0xff]
      %v4284 = vld [vmem:[#allocation8 + $0x6a8] sm:$0xff]
      %v4285 = vld [vmem:[#allocation8 + $0x6b0] sm:$0xff]
      %v4286 = vld [vmem:[#allocation8 + $0x6b8] sm:$0xff]
      %v4287 = vld [vmem:[#allocation8 + $0x6c0] sm:$0xff]
      %v4288 = vld [vmem:[#allocation8 + $0x6c8] sm:$0xff]
      %v4289 = vld [vmem:[#allocation8 + $0x6d0] sm:$0xff]
      %v4290 = vld [vmem:[#allocation8 + $0x6d8] sm:$0xff]
      %v4291 = vld [vmem:[#allocation8 + $0x6e0] sm:$0xff]
      %v4292 = vld [vmem:[#allocation8 + $0x6e8] sm:$0xff]
      %v4293 = vld [vmem:[#allocation8 + $0x6f0] sm:$0xff]
      %v4294 = vld [vmem:[#allocation8 + $0x6f8] sm:$0xff]
      %v4295 = vld [vmem:[#allocation8 + $0x700] sm:$0xff]
      %v4296 = vld [vmem:[#allocation8 + $0x708] sm:$0xff]
      %v4297 = vld [vmem:[#allocation8 + $0x710] sm:$0xff]
      %v4298 = vld [vmem:[#allocation8 + $0x718] sm:$0xff]
      %v4299 = vld [vmem:[#allocation8 + $0x720] sm:$0xff]
      %v4300 = vld [vmem:[#allocation8 + $0x728] sm:$0xff]
      %v4301 = vld [vmem:[#allocation8 + $0x730] sm:$0xff]
      %v4302 = vld [vmem:[#allocation8 + $0x738] sm:$0xff]
      %v4303 = vld [vmem:[#allocation8 + $0x740] sm:$0xff]
      %v4304 = vld [vmem:[#allocation8 + $0x748] sm:$0xff]
      %v4305 = vld [vmem:[#allocation8 + $0x750] sm:$0xff]
      %v4306 = vld [vmem:[#allocation8 + $0x758] sm:$0xff]
      %v4307 = vld [vmem:[#allocation8 + $0x760] sm:$0xff]
      %v4308 = vld [vmem:[#allocation8 + $0x768] sm:$0xff]
      %v4309 = vld [vmem:[#allocation8 + $0x770] sm:$0xff]
      %v4310 = vld [vmem:[#allocation8 + $0x778] sm:$0xff]
      %v4311 = vld [vmem:[#allocation8 + $0x780] sm:$0xff]
      %v4312 = vld [vmem:[#allocation8 + $0x788] sm:$0xff]
      %v4313 = vld [vmem:[#allocation8 + $0x790] sm:$0xff]
      %v4314 = vld [vmem:[#allocation8 + $0x798] sm:$0xff]
      %v4315 = vld [vmem:[#allocation8 + $0x7a0] sm:$0xff]
      %v4316 = vld [vmem:[#allocation8 + $0x7a8] sm:$0xff]
      %v4317 = vld [vmem:[#allocation8 + $0x7b0] sm:$0xff]
      %v4318 = vld [vmem:[#allocation8 + $0x7b8] sm:$0xff]
      %v4319 = vld [vmem:[#allocation8 + $0x7c0] sm:$0xff]
      %v4320 = vld [vmem:[#allocation8 + $0x7c8] sm:$0xff]
      %v4321 = vld [vmem:[#allocation8 + $0x7d0] sm:$0xff]
      %v4322 = vld [vmem:[#allocation8 + $0x7d8] sm:$0xff]
      %v4323 = vld [vmem:[#allocation8 + $0x7e0] sm:$0xff]
      %v4324 = vld [vmem:[#allocation8 + $0x7e8] sm:$0xff]
      %v4325 = vld [vmem:[#allocation8 + $0x7f0] sm:$0xff]
      %v4326 = vld [vmem:[#allocation8 + $0x7f8] sm:$0xff]
      %v4327 = vld [vmem:[#allocation8 + $0x800] sm:$0xff]
      %v4328 = vld [vmem:[#allocation8 + $0x808] sm:$0xff]
      %v4329 = vld [vmem:[#allocation8 + $0x810] sm:$0xff]
      %v4330 = vld [vmem:[#allocation8 + $0x818] sm:$0xff]
      %v4331 = vld [vmem:[#allocation8 + $0x820] sm:$0xff]
      %v4332 = vld [vmem:[#allocation8 + $0x828] sm:$0xff]
      %v4333 = vld [vmem:[#allocation8 + $0x830] sm:$0xff]
      %v4334 = vld [vmem:[#allocation8 + $0x838] sm:$0xff]
      %v4335 = vld [vmem:[#allocation8 + $0x840] sm:$0xff]
      %v4336 = vld [vmem:[#allocation8 + $0x848] sm:$0xff]
      %v4337 = vld [vmem:[#allocation8 + $0x850] sm:$0xff]
      %v4338 = vld [vmem:[#allocation8 + $0x858] sm:$0xff]
      %v4339 = vld [vmem:[#allocation8 + $0x860] sm:$0xff]
      %v4340 = vld [vmem:[#allocation8 + $0x868] sm:$0xff]
      %v4341 = vld [vmem:[#allocation8 + $0x870] sm:$0xff]
      %v4342 = vld [vmem:[#allocation8 + $0x878] sm:$0xff]
      %v4343 = vld [vmem:[#allocation8 + $0x880] sm:$0xff]
      %v4344 = vld [vmem:[#allocation8 + $0x888] sm:$0xff]
      %v4345 = vld [vmem:[#allocation8 + $0x890] sm:$0xff]
      %v4346 = vld [vmem:[#allocation8 + $0x898] sm:$0xff]
      %v4347 = vld [vmem:[#allocation8 + $0x8a0] sm:$0xff]
      %v4348 = vld [vmem:[#allocation8 + $0x8a8] sm:$0xff]
      %v4349 = vld [vmem:[#allocation8 + $0x8b0] sm:$0xff]
      %v4350 = vld [vmem:[#allocation8 + $0x8b8] sm:$0xff]
      %v4351 = vld [vmem:[#allocation8 + $0x8c0] sm:$0xff]
      %v4352 = vld [vmem:[#allocation8 + $0x8c8] sm:$0xff]
      %v4353 = vld [vmem:[#allocation8 + $0x8d0] sm:$0xff]
      %v4354 = vld [vmem:[#allocation8 + $0x8d8] sm:$0xff]
      %v4355 = vld [vmem:[#allocation8 + $0x8e0] sm:$0xff]
      %v4356 = vld [vmem:[#allocation8 + $0x8e8] sm:$0xff]
      %v4357 = vld [vmem:[#allocation8 + $0x8f0] sm:$0xff]
      %v4358 = vld [vmem:[#allocation8 + $0x8f8] sm:$0xff]
      %v4359 = vld [vmem:[#allocation8 + $0x900] sm:$0xff]
      %v4360 = vld [vmem:[#allocation8 + $0x908] sm:$0xff]
      %v4361 = vld [vmem:[#allocation8 + $0x910] sm:$0xff]
      %v4362 = vld [vmem:[#allocation8 + $0x918] sm:$0xff]
      %v4363 = vld [vmem:[#allocation8 + $0x920] sm:$0xff]
      %v4364 = vld [vmem:[#allocation8 + $0x928] sm:$0xff]
      %v4365 = vld [vmem:[#allocation8 + $0x930] sm:$0xff]
      %v4366 = vld [vmem:[#allocation8 + $0x938] sm:$0xff]
      %v4367 = vld [vmem:[#allocation8 + $0x940] sm:$0xff]
      %v4368 = vld [vmem:[#allocation8 + $0x948] sm:$0xff]
      %v4369 = vld [vmem:[#allocation8 + $0x950] sm:$0xff]
      %v4370 = vld [vmem:[#allocation8 + $0x958] sm:$0xff]
      %v4371 = vld [vmem:[#allocation8 + $0x960] sm:$0xff]
      %v4372 = vld [vmem:[#allocation8 + $0x968] sm:$0xff]
      %v4373 = vld [vmem:[#allocation8 + $0x970] sm:$0xff]
      %v4374 = vld [vmem:[#allocation8 + $0x978] sm:$0xff]
      %v4375 = vld [vmem:[#allocation8 + $0x980] sm:$0xff]
      %v4376 = vld [vmem:[#allocation8 + $0x988] sm:$0xff]
      %v4377 = vld [vmem:[#allocation8 + $0x990] sm:$0xff]
      %v4378 = vld [vmem:[#allocation8 + $0x998] sm:$0xff]
      %v4379 = vld [vmem:[#allocation8 + $0x9a0] sm:$0xff]
      %v4380 = vld [vmem:[#allocation8 + $0x9a8] sm:$0xff]
      %v4381 = vld [vmem:[#allocation8 + $0x9b0] sm:$0xff]
      %v4382 = vld [vmem:[#allocation8 + $0x9b8] sm:$0xff]
      %v4383 = vld [vmem:[#allocation8 + $0x9c0] sm:$0xff]
      %v4384 = vld [vmem:[#allocation8 + $0x9c8] sm:$0xff]
      %v4385 = vld [vmem:[#allocation8 + $0x9d0] sm:$0xff]
      %v4386 = vld [vmem:[#allocation8 + $0x9d8] sm:$0xff]
      %v4387 = vld [vmem:[#allocation8 + $0x9e0] sm:$0xff]
      %v4388 = vld [vmem:[#allocation8 + $0x9e8] sm:$0xff]
      %v4389 = vld [vmem:[#allocation8 + $0x9f0] sm:$0xff]
      %v4390 = vld [vmem:[#allocation8 + $0x9f8] sm:$0xff]
      %v4391 = vld [vmem:[#allocation8 + $0xa00] sm:$0xff]
      %v4392 = vld [vmem:[#allocation8 + $0xa08] sm:$0xff]
      %v4393 = vld [vmem:[#allocation8 + $0xa10] sm:$0xff]
      %v4394 = vld [vmem:[#allocation8 + $0xa18] sm:$0xff]
      %v4395 = vld [vmem:[#allocation8 + $0xa20] sm:$0xff]
      %v4396 = vld [vmem:[#allocation8 + $0xa28] sm:$0xff]
      %v4397 = vld [vmem:[#allocation8 + $0xa30] sm:$0xff]
      %v4398 = vld [vmem:[#allocation8 + $0xa38] sm:$0xff]
      %v4399 = vld [vmem:[#allocation8 + $0xa40] sm:$0xff]
      %v4400 = vld [vmem:[#allocation8 + $0xa48] sm:$0xff]
      %v4401 = vld [vmem:[#allocation8 + $0xa50] sm:$0xff]
      %v4402 = vld [vmem:[#allocation8 + $0xa58] sm:$0xff]
      %v4403 = vld [vmem:[#allocation8 + $0xa60] sm:$0xff]
      %v4404 = vld [vmem:[#allocation8 + $0xa68] sm:$0xff]
      %v4405 = vld [vmem:[#allocation8 + $0xa70] sm:$0xff]
      %v4406 = vld [vmem:[#allocation8 + $0xa78] sm:$0xff]
      %v4407 = vld [vmem:[#allocation8 + $0xa80] sm:$0xff]
      %v4408 = vld [vmem:[#allocation8 + $0xa88] sm:$0xff]
      %v4409 = vld [vmem:[#allocation8 + $0xa90] sm:$0xff]
      %v4410 = vld [vmem:[#allocation8 + $0xa98] sm:$0xff]
      %v4411 = vld [vmem:[#allocation8 + $0xaa0] sm:$0xff]
      %v4412 = vld [vmem:[#allocation8 + $0xaa8] sm:$0xff]
      %v4413 = vld [vmem:[#allocation8 + $0xab0] sm:$0xff]
      %v4414 = vld [vmem:[#allocation8 + $0xab8] sm:$0xff]
      %v4415 = vld [vmem:[#allocation8 + $0xac0] sm:$0xff]
      %v4416 = vld [vmem:[#allocation8 + $0xac8] sm:$0xff]
      %v4417 = vld [vmem:[#allocation8 + $0xad0] sm:$0xff]
      %v4418 = vld [vmem:[#allocation8 + $0xad8] sm:$0xff]
      %v4419 = vld [vmem:[#allocation8 + $0xae0] sm:$0xff]
      %v4420 = vld [vmem:[#allocation8 + $0xae8] sm:$0xff]
      %v4421 = vld [vmem:[#allocation8 + $0xaf0] sm:$0xff]
      %v4422 = vld [vmem:[#allocation8 + $0xaf8] sm:$0xff]
      %v4423 = vld [vmem:[#allocation8 + $0xb00] sm:$0xff]
      %v4424 = vld [vmem:[#allocation8 + $0xb08] sm:$0xff]
      %v4425 = vld [vmem:[#allocation8 + $0xb10] sm:$0xff]
      %v4426 = vld [vmem:[#allocation8 + $0xb18] sm:$0xff]
      %v4427 = vld [vmem:[#allocation8 + $0xb20] sm:$0xff]
      %v4428 = vld [vmem:[#allocation8 + $0xb28] sm:$0xff]
      %v4429 = vld [vmem:[#allocation8 + $0xb30] sm:$0xff]
      %v4430 = vld [vmem:[#allocation8 + $0xb38] sm:$0xff]
      %v4431 = vld [vmem:[#allocation8 + $0xb40] sm:$0xff]
      %v4432 = vld [vmem:[#allocation8 + $0xb48] sm:$0xff]
      %v4433 = vld [vmem:[#allocation8 + $0xb50] sm:$0xff]
      %v4434 = vld [vmem:[#allocation8 + $0xb58] sm:$0xff]
      %v4435 = vld [vmem:[#allocation8 + $0xb60] sm:$0xff]
      %v4436 = vld [vmem:[#allocation8 + $0xb68] sm:$0xff]
      %v4437 = vld [vmem:[#allocation8 + $0xb70] sm:$0xff]
      %v4438 = vld [vmem:[#allocation8 + $0xb78] sm:$0xff]
      %v4439 = vld [vmem:[#allocation8 + $0xb80] sm:$0xff]
      %v4440 = vld [vmem:[#allocation8 + $0xb88] sm:$0xff]
      %v4441 = vld [vmem:[#allocation8 + $0xb90] sm:$0xff]
      %v4442 = vld [vmem:[#allocation8 + $0xb98] sm:$0xff]
      %v4443 = vld [vmem:[#allocation8 + $0xba0] sm:$0xff]
      %v4444 = vld [vmem:[#allocation8 + $0xba8] sm:$0xff]
      %v4445 = vld [vmem:[#allocation8 + $0xbb0] sm:$0xff]
      %v4446 = vld [vmem:[#allocation8 + $0xbb8] sm:$0xff]
      %v4447 = vld [vmem:[#allocation8 + $0xbc0] sm:$0xff]
      %v4448 = vld [vmem:[#allocation8 + $0xbc8] sm:$0xff]
      %v4449 = vld [vmem:[#allocation8 + $0xbd0] sm:$0xff]
      %v4450 = vld [vmem:[#allocation8 + $0xbd8] sm:$0xff]
      %v4451 = vld [vmem:[#allocation8 + $0xbe0] sm:$0xff]
      %v4452 = vld [vmem:[#allocation8 + $0xbe8] sm:$0xff]
      %v4453 = vld [vmem:[#allocation8 + $0xbf0] sm:$0xff]
      %v4454 = vld [vmem:[#allocation8 + $0xbf8] sm:$0xff]
      %v4455 = vld [vmem:[#allocation8 + $0xc00] sm:$0xff]
      %v4456 = vld [vmem:[#allocation8 + $0xc08] sm:$0xff]
      %v4457 = vld [vmem:[#allocation8 + $0xc10] sm:$0xff]
      %v4458 = vld [vmem:[#allocation8 + $0xc18] sm:$0xff]
      %v4459 = vld [vmem:[#allocation8 + $0xc20] sm:$0xff]
      %v4460 = vld [vmem:[#allocation8 + $0xc28] sm:$0xff]
      %v4461 = vld [vmem:[#allocation8 + $0xc30] sm:$0xff]
      %v4462 = vld [vmem:[#allocation8 + $0xc38] sm:$0xff]
      %v4463 = vld [vmem:[#allocation8 + $0xc40] sm:$0xff]
      %v4464 = vld [vmem:[#allocation8 + $0xc48] sm:$0xff]
      %v4465 = vld [vmem:[#allocation8 + $0xc50] sm:$0xff]
      %v4466 = vld [vmem:[#allocation8 + $0xc58] sm:$0xff]
      %v4467 = vld [vmem:[#allocation8 + $0xc60] sm:$0xff]
      %v4468 = vld [vmem:[#allocation8 + $0xc68] sm:$0xff]
      %v4469 = vld [vmem:[#allocation8 + $0xc70] sm:$0xff]
      %v4470 = vld [vmem:[#allocation8 + $0xc78] sm:$0xff]
      %v4471 = vld [vmem:[#allocation8 + $0xc80] sm:$0xff]
      %v4472 = vld [vmem:[#allocation8 + $0xc88] sm:$0xff]
      %v4473 = vld [vmem:[#allocation8 + $0xc90] sm:$0xff]
      %v4474 = vld [vmem:[#allocation8 + $0xc98] sm:$0xff]
      %v4475 = vld [vmem:[#allocation8 + $0xca0] sm:$0xff]
      %v4476 = vld [vmem:[#allocation8 + $0xca8] sm:$0xff]
      %v4477 = vld [vmem:[#allocation8 + $0xcb0] sm:$0xff]
      %v4478 = vld [vmem:[#allocation8 + $0xcb8] sm:$0xff]
      %v4479 = vld [vmem:[#allocation8 + $0xcc0] sm:$0xff]
      %v4480 = vld [vmem:[#allocation8 + $0xcc8] sm:$0xff]
      %v4481 = vld [vmem:[#allocation8 + $0xcd0] sm:$0xff]
      %v4482 = vld [vmem:[#allocation8 + $0xcd8] sm:$0xff]
      %v4483 = vld [vmem:[#allocation8 + $0xce0] sm:$0xff]
      %v4484 = vld [vmem:[#allocation8 + $0xce8] sm:$0xff]
      %v4485 = vld [vmem:[#allocation8 + $0xcf0] sm:$0xff]
      %v4486 = vld [vmem:[#allocation8 + $0xcf8] sm:$0xff]
      %v4487 = vld [vmem:[#allocation8 + $0xd00] sm:$0xff]
      %v4488 = vld [vmem:[#allocation8 + $0xd08] sm:$0xff]
      %v4489 = vld [vmem:[#allocation8 + $0xd10] sm:$0xff]
      %v4490 = vld [vmem:[#allocation8 + $0xd18] sm:$0xff]
      %v4491 = vld [vmem:[#allocation8 + $0xd20] sm:$0xff]
      %v4492 = vld [vmem:[#allocation8 + $0xd28] sm:$0xff]
      %v4493 = vld [vmem:[#allocation8 + $0xd30] sm:$0xff]
      %v4494 = vld [vmem:[#allocation8 + $0xd38] sm:$0xff]
      %v4495 = vld [vmem:[#allocation8 + $0xd40] sm:$0xff]
      %v4496 = vld [vmem:[#allocation8 + $0xd48] sm:$0xff]
      %v4497 = vld [vmem:[#allocation8 + $0xd50] sm:$0xff]
      %v4498 = vld [vmem:[#allocation8 + $0xd58] sm:$0xff]
      %v4499 = vld [vmem:[#allocation8 + $0xd60] sm:$0xff]
      %v4500 = vld [vmem:[#allocation8 + $0xd68] sm:$0xff]
      %v4501 = vld [vmem:[#allocation8 + $0xd70] sm:$0xff]
      %v4502 = vld [vmem:[#allocation8 + $0xd78] sm:$0xff]
      %v4503 = vld [vmem:[#allocation8 + $0xd80] sm:$0xff]
      %v4504 = vld [vmem:[#allocation8 + $0xd88] sm:$0xff]
      %v4505 = vld [vmem:[#allocation8 + $0xd90] sm:$0xff]
      %v4506 = vld [vmem:[#allocation8 + $0xd98] sm:$0xff]
      %v4507 = vld [vmem:[#allocation8 + $0xda0] sm:$0xff]
      %v4508 = vld [vmem:[#allocation8 + $0xda8] sm:$0xff]
      %v4509 = vld [vmem:[#allocation8 + $0xdb0] sm:$0xff]
      %v4510 = vld [vmem:[#allocation8 + $0xdb8] sm:$0xff]
      %v4511 = vld [vmem:[#allocation8 + $0xdc0] sm:$0xff]
      %v4512 = vld [vmem:[#allocation8 + $0xdc8] sm:$0xff]
      %v4513 = vld [vmem:[#allocation8 + $0xdd0] sm:$0xff]
      %v4514 = vld [vmem:[#allocation8 + $0xdd8] sm:$0xff]
      %v4515 = vld [vmem:[#allocation8 + $0xde0] sm:$0xff]
      %v4516 = vld [vmem:[#allocation8 + $0xde8] sm:$0xff]
      %v4517 = vld [vmem:[#allocation8 + $0xdf0] sm:$0xff]
      %v4518 = vld [vmem:[#allocation8 + $0xdf8] sm:$0xff]
      %v4519 = vld [vmem:[#allocation8 + $0xe00] sm:$0xff]
      %v4520 = vld [vmem:[#allocation8 + $0xe08] sm:$0xff]
      %v4521 = vld [vmem:[#allocation8 + $0xe10] sm:$0xff]
      %v4522 = vld [vmem:[#allocation8 + $0xe18] sm:$0xff]
      %v4523 = vld [vmem:[#allocation8 + $0xe20] sm:$0xff]
      %v4524 = vld [vmem:[#allocation8 + $0xe28] sm:$0xff]
      %v4525 = vld [vmem:[#allocation8 + $0xe30] sm:$0xff]
      %v4526 = vld [vmem:[#allocation8 + $0xe38] sm:$0xff]
      %v4527 = vld [vmem:[#allocation8 + $0xe40] sm:$0xff]
      %v4528 = vld [vmem:[#allocation8 + $0xe48] sm:$0xff]
      %v4529 = vld [vmem:[#allocation8 + $0xe50] sm:$0xff]
      %v4530 = vld [vmem:[#allocation8 + $0xe58] sm:$0xff]
      %v4531 = vld [vmem:[#allocation8 + $0xe60] sm:$0xff]
      %v4532 = vld [vmem:[#allocation8 + $0xe68] sm:$0xff]
      %v4533 = vld [vmem:[#allocation8 + $0xe70] sm:$0xff]
      %v4534 = vld [vmem:[#allocation8 + $0xe78] sm:$0xff]
      %v4535 = vld [vmem:[#allocation8 + $0xe80] sm:$0xff]
      %v4536 = vld [vmem:[#allocation8 + $0xe88] sm:$0xff]
      %v4537 = vld [vmem:[#allocation8 + $0xe90] sm:$0xff]
      %v4538 = vld [vmem:[#allocation8 + $0xe98] sm:$0xff]
      %v4539 = vld [vmem:[#allocation8 + $0xea0] sm:$0xff]
      %v4540 = vld [vmem:[#allocation8 + $0xea8] sm:$0xff]
      %v4541 = vld [vmem:[#allocation8 + $0xeb0] sm:$0xff]
      %v4542 = vld [vmem:[#allocation8 + $0xeb8] sm:$0xff]
      %v4543 = vld [vmem:[#allocation8 + $0xec0] sm:$0xff]
      %v4544 = vld [vmem:[#allocation8 + $0xec8] sm:$0xff]
      %v4545 = vld [vmem:[#allocation8 + $0xed0] sm:$0xff]
      %v4546 = vld [vmem:[#allocation8 + $0xed8] sm:$0xff]
      %v4547 = vld [vmem:[#allocation8 + $0xee0] sm:$0xff]
      %v4548 = vld [vmem:[#allocation8 + $0xee8] sm:$0xff]
      %v4549 = vld [vmem:[#allocation8 + $0xef0] sm:$0xff]
      %v4550 = vld [vmem:[#allocation8 + $0xef8] sm:$0xff]
      %v4551 = vld [vmem:[#allocation8 + $0xf00] sm:$0xff]
      %v4552 = vld [vmem:[#allocation8 + $0xf08] sm:$0xff]
      %v4553 = vld [vmem:[#allocation8 + $0xf10] sm:$0xff]
      %v4554 = vld [vmem:[#allocation8 + $0xf18] sm:$0xff]
      %v4555 = vld [vmem:[#allocation8 + $0xf20] sm:$0xff]
      %v4556 = vld [vmem:[#allocation8 + $0xf28] sm:$0xff]
      %v4557 = vld [vmem:[#allocation8 + $0xf30] sm:$0xff]
      %v4558 = vld [vmem:[#allocation8 + $0xf38] sm:$0xff]
      %v4559 = vld [vmem:[#allocation8 + $0xf40] sm:$0xff]
      %v4560 = vld [vmem:[#allocation8 + $0xf48] sm:$0xff]
      %v4561 = vld [vmem:[#allocation8 + $0xf50] sm:$0xff]
      %v4562 = vld [vmem:[#allocation8 + $0xf58] sm:$0xff]
      %v4563 = vld [vmem:[#allocation8 + $0xf60] sm:$0xff]
      %v4564 = vld [vmem:[#allocation8 + $0xf68] sm:$0xff]
      %v4565 = vld [vmem:[#allocation8 + $0xf70] sm:$0xff]
      %v4566 = vld [vmem:[#allocation8 + $0xf78] sm:$0xff]
      %v4567 = vld [vmem:[#allocation8 + $0xf80] sm:$0xff]
      %v4568 = vld [vmem:[#allocation8 + $0xf88] sm:$0xff]
      %v4569 = vld [vmem:[#allocation8 + $0xf90] sm:$0xff]
      %v4570 = vld [vmem:[#allocation8 + $0xf98] sm:$0xff]
      %v4571 = vld [vmem:[#allocation8 + $0xfa0] sm:$0xff]
      %v4572 = vld [vmem:[#allocation8 + $0xfa8] sm:$0xff]
      %v4573 = vld [vmem:[#allocation8 + $0xfb0] sm:$0xff]
      %v4574 = vld [vmem:[#allocation8 + $0xfb8] sm:$0xff]
      %v4575 = vld [vmem:[#allocation8 + $0xfc0] sm:$0xff]
      %v4576 = vld [vmem:[#allocation8 + $0xfc8] sm:$0xff]
      %v4577 = vld [vmem:[#allocation8 + $0xfd0] sm:$0xff]
      %v4578 = vld [vmem:[#allocation8 + $0xfd8] sm:$0xff]
      %v4579 = vld [vmem:[#allocation8 + $0xfe0] sm:$0xff]
      %v4580 = vld [vmem:[#allocation8 + $0xfe8] sm:$0xff]
      %v4581 = vld [vmem:[#allocation8 + $0xff0] sm:$0xff]
      %v4582 = vld [vmem:[#allocation8 + $0xff8] sm:$0xff]
      %v4583 = vld [vmem:[#allocation9] sm:$0xff]
      %v4585 = vlaneseq
      %v4586 = vshrl.u32 %v4585, 7
      %v4587 = vsub.s32 0, %v4586
      %v4588 = vrot.slane %v4583, %v4587
      %v4589 = vlaneseq
      %v4590 = vshrl.u32 %v4589, 7
      %v4591 = vsub.s32 1, %v4590
      %v4592 = vrot.slane %v4583, %v4591
      %v4593 = vlaneseq
      %v4594 = vshrl.u32 %v4593, 7
      %v4595 = vsub.s32 2, %v4594
      %v4596 = vrot.slane %v4583, %v4595
      %v4597 = vlaneseq
      %v4598 = vshrl.u32 %v4597, 7
      %v4599 = vsub.s32 3, %v4598
      %v4600 = vrot.slane %v4583, %v4599
      %v4601 = vlaneseq
      %v4602 = vshrl.u32 %v4601, 7
      %v4603 = vsub.s32 4, %v4602
      %v4604 = vrot.slane %v4583, %v4603
      %v4605 = vlaneseq
      %v4606 = vshrl.u32 %v4605, 7
      %v4607 = vsub.s32 5, %v4606
      %v4608 = vrot.slane %v4583, %v4607
      %v4609 = vlaneseq
      %v4610 = vshrl.u32 %v4609, 7
      %v4611 = vsub.s32 6, %v4610
      %v4612 = vrot.slane %v4583, %v4611
      %v4613 = vlaneseq
      %v4614 = vshrl.u32 %v4613, 7
      %v4615 = vsub.s32 7, %v4614
      %v4616 = vrot.slane %v4583, %v4615
      %v5137 = vunpack.c.l.b16 %v4071
      %v5138 = vunpack.c.h.b16 %v4071
      %v5139 = vunpack.c.l.b16 %v4072
      %v5140 = vunpack.c.h.b16 %v4072
      %v5141 = vunpack.c.l.b16 %v4073
      %v5142 = vunpack.c.h.b16 %v4073
      %v5143 = vunpack.c.l.b16 %v4074
      %v5144 = vunpack.c.h.b16 %v4074
      %v5145 = vunpack.c.l.b16 %v4075
      %v5146 = vunpack.c.h.b16 %v4075
      %v5147 = vunpack.c.l.b16 %v4076
      %v5148 = vunpack.c.h.b16 %v4076
      %v5149 = vunpack.c.l.b16 %v4077
      %v5150 = vunpack.c.h.b16 %v4077
      %v5151 = vunpack.c.l.b16 %v4078
      %v5152 = vunpack.c.h.b16 %v4078
      %v5153 = vunpack.c.l.b16 %v4079
      %v5154 = vunpack.c.h.b16 %v4079
      %v5155 = vunpack.c.l.b16 %v4080
      %v5156 = vunpack.c.h.b16 %v4080
      %v5157 = vunpack.c.l.b16 %v4081
      %v5158 = vunpack.c.h.b16 %v4081
      %v5159 = vunpack.c.l.b16 %v4082
      %v5160 = vunpack.c.h.b16 %v4082
      %v5161 = vunpack.c.l.b16 %v4083
      %v5162 = vunpack.c.h.b16 %v4083
      %v5163 = vunpack.c.l.b16 %v4084
      %v5164 = vunpack.c.h.b16 %v4084
      %v5165 = vunpack.c.l.b16 %v4085
      %v5166 = vunpack.c.h.b16 %v4085
      %v5167 = vunpack.c.l.b16 %v4086
      %v5168 = vunpack.c.h.b16 %v4086
      %v5169 = vunpack.c.l.b16 %v4087
      %v5170 = vunpack.c.h.b16 %v4087
      %v5171 = vunpack.c.l.b16 %v4088
      %v5172 = vunpack.c.h.b16 %v4088
      %v5173 = vunpack.c.l.b16 %v4089
      %v5174 = vunpack.c.h.b16 %v4089
      %v5175 = vunpack.c.l.b16 %v4090
      %v5176 = vunpack.c.h.b16 %v4090
      %v5177 = vunpack.c.l.b16 %v4091
      %v5178 = vunpack.c.h.b16 %v4091
      %v5179 = vunpack.c.l.b16 %v4092
      %v5180 = vunpack.c.h.b16 %v4092
      %v5181 = vunpack.c.l.b16 %v4093
      %v5182 = vunpack.c.h.b16 %v4093
      %v5183 = vunpack.c.l.b16 %v4094
      %v5184 = vunpack.c.h.b16 %v4094
      %v5185 = vunpack.c.l.b16 %v4095
      %v5186 = vunpack.c.h.b16 %v4095
      %v5187 = vunpack.c.l.b16 %v4096
      %v5188 = vunpack.c.h.b16 %v4096
      %v5189 = vunpack.c.l.b16 %v4097
      %v5190 = vunpack.c.h.b16 %v4097
      %v5191 = vunpack.c.l.b16 %v4098
      %v5192 = vunpack.c.h.b16 %v4098
      %v5193 = vunpack.c.l.b16 %v4099
      %v5194 = vunpack.c.h.b16 %v4099
      %v5195 = vunpack.c.l.b16 %v4100
      %v5196 = vunpack.c.h.b16 %v4100
      %v5197 = vunpack.c.l.b16 %v4101
      %v5198 = vunpack.c.h.b16 %v4101
      %v5199 = vunpack.c.l.b16 %v4102
      %v5200 = vunpack.c.h.b16 %v4102
      %v5201 = vunpack.c.l.b16 %v4103
      %v5202 = vunpack.c.h.b16 %v4103
      %v5203 = vunpack.c.l.b16 %v4104
      %v5204 = vunpack.c.h.b16 %v4104
      %v5205 = vunpack.c.l.b16 %v4105
      %v5206 = vunpack.c.h.b16 %v4105
      %v5207 = vunpack.c.l.b16 %v4106
      %v5208 = vunpack.c.h.b16 %v4106
      %v5209 = vunpack.c.l.b16 %v4107
      %v5210 = vunpack.c.h.b16 %v4107
      %v5211 = vunpack.c.l.b16 %v4108
      %v5212 = vunpack.c.h.b16 %v4108
      %v5213 = vunpack.c.l.b16 %v4109
      %v5214 = vunpack.c.h.b16 %v4109
      %v5215 = vunpack.c.l.b16 %v4110
      %v5216 = vunpack.c.h.b16 %v4110
      %v5217 = vunpack.c.l.b16 %v4111
      %v5218 = vunpack.c.h.b16 %v4111
      %v5219 = vunpack.c.l.b16 %v4112
      %v5220 = vunpack.c.h.b16 %v4112
      %v5221 = vunpack.c.l.b16 %v4113
      %v5222 = vunpack.c.h.b16 %v4113
      %v5223 = vunpack.c.l.b16 %v4114
      %v5224 = vunpack.c.h.b16 %v4114
      %v5225 = vunpack.c.l.b16 %v4115
      %v5226 = vunpack.c.h.b16 %v4115
      %v5227 = vunpack.c.l.b16 %v4116
      %v5228 = vunpack.c.h.b16 %v4116
      %v5229 = vunpack.c.l.b16 %v4117
      %v5230 = vunpack.c.h.b16 %v4117
      %v5231 = vunpack.c.l.b16 %v4118
      %v5232 = vunpack.c.h.b16 %v4118
      %v5233 = vunpack.c.l.b16 %v4119
      %v5234 = vunpack.c.h.b16 %v4119
      %v5235 = vunpack.c.l.b16 %v4120
      %v5236 = vunpack.c.h.b16 %v4120
      %v5237 = vunpack.c.l.b16 %v4121
      %v5238 = vunpack.c.h.b16 %v4121
      %v5239 = vunpack.c.l.b16 %v4122
      %v5240 = vunpack.c.h.b16 %v4122
      %v5241 = vunpack.c.l.b16 %v4123
      %v5242 = vunpack.c.h.b16 %v4123
      %v5243 = vunpack.c.l.b16 %v4124
      %v5244 = vunpack.c.h.b16 %v4124
      %v5245 = vunpack.c.l.b16 %v4125
      %v5246 = vunpack.c.h.b16 %v4125
      %v5247 = vunpack.c.l.b16 %v4126
      %v5248 = vunpack.c.h.b16 %v4126
      %v5249 = vunpack.c.l.b16 %v4127
      %v5250 = vunpack.c.h.b16 %v4127
      %v5251 = vunpack.c.l.b16 %v4128
      %v5252 = vunpack.c.h.b16 %v4128
      %v5253 = vunpack.c.l.b16 %v4129
      %v5254 = vunpack.c.h.b16 %v4129
      %v5255 = vunpack.c.l.b16 %v4130
      %v5256 = vunpack.c.h.b16 %v4130
      %v5257 = vunpack.c.l.b16 %v4131
      %v5258 = vunpack.c.h.b16 %v4131
      %v5259 = vunpack.c.l.b16 %v4132
      %v5260 = vunpack.c.h.b16 %v4132
      %v5261 = vunpack.c.l.b16 %v4133
      %v5262 = vunpack.c.h.b16 %v4133
      %v5263 = vunpack.c.l.b16 %v4134
      %v5264 = vunpack.c.h.b16 %v4134
      %v5265 = vunpack.c.l.b16 %v4135
      %v5266 = vunpack.c.h.b16 %v4135
      %v5267 = vunpack.c.l.b16 %v4136
      %v5268 = vunpack.c.h.b16 %v4136
      %v5269 = vunpack.c.l.b16 %v4137
      %v5270 = vunpack.c.h.b16 %v4137
      %v5271 = vunpack.c.l.b16 %v4138
      %v5272 = vunpack.c.h.b16 %v4138
      %v5273 = vunpack.c.l.b16 %v4139
      %v5274 = vunpack.c.h.b16 %v4139
      %v5275 = vunpack.c.l.b16 %v4140
      %v5276 = vunpack.c.h.b16 %v4140
      %v5277 = vunpack.c.l.b16 %v4141
      %v5278 = vunpack.c.h.b16 %v4141
      %v5279 = vunpack.c.l.b16 %v4142
      %v5280 = vunpack.c.h.b16 %v4142
      %v5281 = vunpack.c.l.b16 %v4143
      %v5282 = vunpack.c.h.b16 %v4143
      %v5283 = vunpack.c.l.b16 %v4144
      %v5284 = vunpack.c.h.b16 %v4144
      %v5285 = vunpack.c.l.b16 %v4145
      %v5286 = vunpack.c.h.b16 %v4145
      %v5287 = vunpack.c.l.b16 %v4146
      %v5288 = vunpack.c.h.b16 %v4146
      %v5289 = vunpack.c.l.b16 %v4147
      %v5290 = vunpack.c.h.b16 %v4147
      %v5291 = vunpack.c.l.b16 %v4148
      %v5292 = vunpack.c.h.b16 %v4148
      %v5293 = vunpack.c.l.b16 %v4149
      %v5294 = vunpack.c.h.b16 %v4149
      %v5295 = vunpack.c.l.b16 %v4150
      %v5296 = vunpack.c.h.b16 %v4150
      %v5297 = vunpack.c.l.b16 %v4151
      %v5298 = vunpack.c.h.b16 %v4151
      %v5299 = vunpack.c.l.b16 %v4152
      %v5300 = vunpack.c.h.b16 %v4152
      %v5301 = vunpack.c.l.b16 %v4153
      %v5302 = vunpack.c.h.b16 %v4153
      %v5303 = vunpack.c.l.b16 %v4154
      %v5304 = vunpack.c.h.b16 %v4154
      %v5305 = vunpack.c.l.b16 %v4155
      %v5306 = vunpack.c.h.b16 %v4155
      %v5307 = vunpack.c.l.b16 %v4156
      %v5308 = vunpack.c.h.b16 %v4156
      %v5309 = vunpack.c.l.b16 %v4157
      %v5310 = vunpack.c.h.b16 %v4157
      %v5311 = vunpack.c.l.b16 %v4158
      %v5312 = vunpack.c.h.b16 %v4158
      %v5313 = vunpack.c.l.b16 %v4159
      %v5314 = vunpack.c.h.b16 %v4159
      %v5315 = vunpack.c.l.b16 %v4160
      %v5316 = vunpack.c.h.b16 %v4160
      %v5317 = vunpack.c.l.b16 %v4161
      %v5318 = vunpack.c.h.b16 %v4161
      %v5319 = vunpack.c.l.b16 %v4162
      %v5320 = vunpack.c.h.b16 %v4162
      %v5321 = vunpack.c.l.b16 %v4163
      %v5322 = vunpack.c.h.b16 %v4163
      %v5323 = vunpack.c.l.b16 %v4164
      %v5324 = vunpack.c.h.b16 %v4164
      %v5325 = vunpack.c.l.b16 %v4165
      %v5326 = vunpack.c.h.b16 %v4165
      %v5327 = vunpack.c.l.b16 %v4166
      %v5328 = vunpack.c.h.b16 %v4166
      %v5329 = vunpack.c.l.b16 %v4167
      %v5330 = vunpack.c.h.b16 %v4167
      %v5331 = vunpack.c.l.b16 %v4168
      %v5332 = vunpack.c.h.b16 %v4168
      %v5333 = vunpack.c.l.b16 %v4169
      %v5334 = vunpack.c.h.b16 %v4169
      %v5335 = vunpack.c.l.b16 %v4170
      %v5336 = vunpack.c.h.b16 %v4170
      %v5337 = vunpack.c.l.b16 %v4171
      %v5338 = vunpack.c.h.b16 %v4171
      %v5339 = vunpack.c.l.b16 %v4172
      %v5340 = vunpack.c.h.b16 %v4172
      %v5341 = vunpack.c.l.b16 %v4173
      %v5342 = vunpack.c.h.b16 %v4173
      %v5343 = vunpack.c.l.b16 %v4174
      %v5344 = vunpack.c.h.b16 %v4174
      %v5345 = vunpack.c.l.b16 %v4175
      %v5346 = vunpack.c.h.b16 %v4175
      %v5347 = vunpack.c.l.b16 %v4176
      %v5348 = vunpack.c.h.b16 %v4176
      %v5349 = vunpack.c.l.b16 %v4177
      %v5350 = vunpack.c.h.b16 %v4177
      %v5351 = vunpack.c.l.b16 %v4178
      %v5352 = vunpack.c.h.b16 %v4178
      %v5353 = vunpack.c.l.b16 %v4179
      %v5354 = vunpack.c.h.b16 %v4179
      %v5355 = vunpack.c.l.b16 %v4180
      %v5356 = vunpack.c.h.b16 %v4180
      %v5357 = vunpack.c.l.b16 %v4181
      %v5358 = vunpack.c.h.b16 %v4181
      %v5359 = vunpack.c.l.b16 %v4182
      %v5360 = vunpack.c.h.b16 %v4182
      %v5361 = vunpack.c.l.b16 %v4183
      %v5362 = vunpack.c.h.b16 %v4183
      %v5363 = vunpack.c.l.b16 %v4184
      %v5364 = vunpack.c.h.b16 %v4184
      %v5365 = vunpack.c.l.b16 %v4185
      %v5366 = vunpack.c.h.b16 %v4185
      %v5367 = vunpack.c.l.b16 %v4186
      %v5368 = vunpack.c.h.b16 %v4186
      %v5369 = vunpack.c.l.b16 %v4187
      %v5370 = vunpack.c.h.b16 %v4187
      %v5371 = vunpack.c.l.b16 %v4188
      %v5372 = vunpack.c.h.b16 %v4188
      %v5373 = vunpack.c.l.b16 %v4189
      %v5374 = vunpack.c.h.b16 %v4189
      %v5375 = vunpack.c.l.b16 %v4190
      %v5376 = vunpack.c.h.b16 %v4190
      %v5377 = vunpack.c.l.b16 %v4191
      %v5378 = vunpack.c.h.b16 %v4191
      %v5379 = vunpack.c.l.b16 %v4192
      %v5380 = vunpack.c.h.b16 %v4192
      %v5381 = vunpack.c.l.b16 %v4193
      %v5382 = vunpack.c.h.b16 %v4193
      %v5383 = vunpack.c.l.b16 %v4194
      %v5384 = vunpack.c.h.b16 %v4194
      %v5385 = vunpack.c.l.b16 %v4195
      %v5386 = vunpack.c.h.b16 %v4195
      %v5387 = vunpack.c.l.b16 %v4196
      %v5388 = vunpack.c.h.b16 %v4196
      %v5389 = vunpack.c.l.b16 %v4197
      %v5390 = vunpack.c.h.b16 %v4197
      %v5391 = vunpack.c.l.b16 %v4198
      %v5392 = vunpack.c.h.b16 %v4198
      %v5393 = vunpack.c.l.b16 %v4199
      %v5394 = vunpack.c.h.b16 %v4199
      %v5395 = vunpack.c.l.b16 %v4200
      %v5396 = vunpack.c.h.b16 %v4200
      %v5397 = vunpack.c.l.b16 %v4201
      %v5398 = vunpack.c.h.b16 %v4201
      %v5399 = vunpack.c.l.b16 %v4202
      %v5400 = vunpack.c.h.b16 %v4202
      %v5401 = vunpack.c.l.b16 %v4203
      %v5402 = vunpack.c.h.b16 %v4203
      %v5403 = vunpack.c.l.b16 %v4204
      %v5404 = vunpack.c.h.b16 %v4204
      %v5405 = vunpack.c.l.b16 %v4205
      %v5406 = vunpack.c.h.b16 %v4205
      %v5407 = vunpack.c.l.b16 %v4206
      %v5408 = vunpack.c.h.b16 %v4206
      %v5409 = vunpack.c.l.b16 %v4207
      %v5410 = vunpack.c.h.b16 %v4207
      %v5411 = vunpack.c.l.b16 %v4208
      %v5412 = vunpack.c.h.b16 %v4208
      %v5413 = vunpack.c.l.b16 %v4209
      %v5414 = vunpack.c.h.b16 %v4209
      %v5415 = vunpack.c.l.b16 %v4210
      %v5416 = vunpack.c.h.b16 %v4210
      %v5417 = vunpack.c.l.b16 %v4211
      %v5418 = vunpack.c.h.b16 %v4211
      %v5419 = vunpack.c.l.b16 %v4212
      %v5420 = vunpack.c.h.b16 %v4212
      %v5421 = vunpack.c.l.b16 %v4213
      %v5422 = vunpack.c.h.b16 %v4213
      %v5423 = vunpack.c.l.b16 %v4214
      %v5424 = vunpack.c.h.b16 %v4214
      %v5425 = vunpack.c.l.b16 %v4215
      %v5426 = vunpack.c.h.b16 %v4215
      %v5427 = vunpack.c.l.b16 %v4216
      %v5428 = vunpack.c.h.b16 %v4216
      %v5429 = vunpack.c.l.b16 %v4217
      %v5430 = vunpack.c.h.b16 %v4217
      %v5431 = vunpack.c.l.b16 %v4218
      %v5432 = vunpack.c.h.b16 %v4218
      %v5433 = vunpack.c.l.b16 %v4219
      %v5434 = vunpack.c.h.b16 %v4219
      %v5435 = vunpack.c.l.b16 %v4220
      %v5436 = vunpack.c.h.b16 %v4220
      %v5437 = vunpack.c.l.b16 %v4221
      %v5438 = vunpack.c.h.b16 %v4221
      %v5439 = vunpack.c.l.b16 %v4222
      %v5440 = vunpack.c.h.b16 %v4222
      %v5441 = vunpack.c.l.b16 %v4223
      %v5442 = vunpack.c.h.b16 %v4223
      %v5443 = vunpack.c.l.b16 %v4224
      %v5444 = vunpack.c.h.b16 %v4224
      %v5445 = vunpack.c.l.b16 %v4225
      %v5446 = vunpack.c.h.b16 %v4225
      %v5447 = vunpack.c.l.b16 %v4226
      %v5448 = vunpack.c.h.b16 %v4226
      %v5449 = vunpack.c.l.b16 %v4227
      %v5450 = vunpack.c.h.b16 %v4227
      %v5451 = vunpack.c.l.b16 %v4228
      %v5452 = vunpack.c.h.b16 %v4228
      %v5453 = vunpack.c.l.b16 %v4229
      %v5454 = vunpack.c.h.b16 %v4229
      %v5455 = vunpack.c.l.b16 %v4230
      %v5456 = vunpack.c.h.b16 %v4230
      %v5457 = vunpack.c.l.b16 %v4231
      %v5458 = vunpack.c.h.b16 %v4231
      %v5459 = vunpack.c.l.b16 %v4232
      %v5460 = vunpack.c.h.b16 %v4232
      %v5461 = vunpack.c.l.b16 %v4233
      %v5462 = vunpack.c.h.b16 %v4233
      %v5463 = vunpack.c.l.b16 %v4234
      %v5464 = vunpack.c.h.b16 %v4234
      %v5465 = vunpack.c.l.b16 %v4235
      %v5466 = vunpack.c.h.b16 %v4235
      %v5467 = vunpack.c.l.b16 %v4236
      %v5468 = vunpack.c.h.b16 %v4236
      %v5469 = vunpack.c.l.b16 %v4237
      %v5470 = vunpack.c.h.b16 %v4237
      %v5471 = vunpack.c.l.b16 %v4238
      %v5472 = vunpack.c.h.b16 %v4238
      %v5473 = vunpack.c.l.b16 %v4239
      %v5474 = vunpack.c.h.b16 %v4239
      %v5475 = vunpack.c.l.b16 %v4240
      %v5476 = vunpack.c.h.b16 %v4240
      %v5477 = vunpack.c.l.b16 %v4241
      %v5478 = vunpack.c.h.b16 %v4241
      %v5479 = vunpack.c.l.b16 %v4242
      %v5480 = vunpack.c.h.b16 %v4242
      %v5481 = vunpack.c.l.b16 %v4243
      %v5482 = vunpack.c.h.b16 %v4243
      %v5483 = vunpack.c.l.b16 %v4244
      %v5484 = vunpack.c.h.b16 %v4244
      %v5485 = vunpack.c.l.b16 %v4245
      %v5486 = vunpack.c.h.b16 %v4245
      %v5487 = vunpack.c.l.b16 %v4246
      %v5488 = vunpack.c.h.b16 %v4246
      %v5489 = vunpack.c.l.b16 %v4247
      %v5490 = vunpack.c.h.b16 %v4247
      %v5491 = vunpack.c.l.b16 %v4248
      %v5492 = vunpack.c.h.b16 %v4248
      %v5493 = vunpack.c.l.b16 %v4249
      %v5494 = vunpack.c.h.b16 %v4249
      %v5495 = vunpack.c.l.b16 %v4250
      %v5496 = vunpack.c.h.b16 %v4250
      %v5497 = vunpack.c.l.b16 %v4251
      %v5498 = vunpack.c.h.b16 %v4251
      %v5499 = vunpack.c.l.b16 %v4252
      %v5500 = vunpack.c.h.b16 %v4252
      %v5501 = vunpack.c.l.b16 %v4253
      %v5502 = vunpack.c.h.b16 %v4253
      %v5503 = vunpack.c.l.b16 %v4254
      %v5504 = vunpack.c.h.b16 %v4254
      %v5505 = vunpack.c.l.b16 %v4255
      %v5506 = vunpack.c.h.b16 %v4255
      %v5507 = vunpack.c.l.b16 %v4256
      %v5508 = vunpack.c.h.b16 %v4256
      %v5509 = vunpack.c.l.b16 %v4257
      %v5510 = vunpack.c.h.b16 %v4257
      %v5511 = vunpack.c.l.b16 %v4258
      %v5512 = vunpack.c.h.b16 %v4258
      %v5513 = vunpack.c.l.b16 %v4259
      %v5514 = vunpack.c.h.b16 %v4259
      %v5515 = vunpack.c.l.b16 %v4260
      %v5516 = vunpack.c.h.b16 %v4260
      %v5517 = vunpack.c.l.b16 %v4261
      %v5518 = vunpack.c.h.b16 %v4261
      %v5519 = vunpack.c.l.b16 %v4262
      %v5520 = vunpack.c.h.b16 %v4262
      %v5521 = vunpack.c.l.b16 %v4263
      %v5522 = vunpack.c.h.b16 %v4263
      %v5523 = vunpack.c.l.b16 %v4264
      %v5524 = vunpack.c.h.b16 %v4264
      %v5525 = vunpack.c.l.b16 %v4265
      %v5526 = vunpack.c.h.b16 %v4265
      %v5527 = vunpack.c.l.b16 %v4266
      %v5528 = vunpack.c.h.b16 %v4266
      %v5529 = vunpack.c.l.b16 %v4267
      %v5530 = vunpack.c.h.b16 %v4267
      %v5531 = vunpack.c.l.b16 %v4268
      %v5532 = vunpack.c.h.b16 %v4268
      %v5533 = vunpack.c.l.b16 %v4269
      %v5534 = vunpack.c.h.b16 %v4269
      %v5535 = vunpack.c.l.b16 %v4270
      %v5536 = vunpack.c.h.b16 %v4270
      %v5537 = vunpack.c.l.b16 %v4271
      %v5538 = vunpack.c.h.b16 %v4271
      %v5539 = vunpack.c.l.b16 %v4272
      %v5540 = vunpack.c.h.b16 %v4272
      %v5541 = vunpack.c.l.b16 %v4273
      %v5542 = vunpack.c.h.b16 %v4273
      %v5543 = vunpack.c.l.b16 %v4274
      %v5544 = vunpack.c.h.b16 %v4274
      %v5545 = vunpack.c.l.b16 %v4275
      %v5546 = vunpack.c.h.b16 %v4275
      %v5547 = vunpack.c.l.b16 %v4276
      %v5548 = vunpack.c.h.b16 %v4276
      %v5549 = vunpack.c.l.b16 %v4277
      %v5550 = vunpack.c.h.b16 %v4277
      %v5551 = vunpack.c.l.b16 %v4278
      %v5552 = vunpack.c.h.b16 %v4278
      %v5553 = vunpack.c.l.b16 %v4279
      %v5554 = vunpack.c.h.b16 %v4279
      %v5555 = vunpack.c.l.b16 %v4280
      %v5556 = vunpack.c.h.b16 %v4280
      %v5557 = vunpack.c.l.b16 %v4281
      %v5558 = vunpack.c.h.b16 %v4281
      %v5559 = vunpack.c.l.b16 %v4282
      %v5560 = vunpack.c.h.b16 %v4282
      %v5561 = vunpack.c.l.b16 %v4283
      %v5562 = vunpack.c.h.b16 %v4283
      %v5563 = vunpack.c.l.b16 %v4284
      %v5564 = vunpack.c.h.b16 %v4284
      %v5565 = vunpack.c.l.b16 %v4285
      %v5566 = vunpack.c.h.b16 %v4285
      %v5567 = vunpack.c.l.b16 %v4286
      %v5568 = vunpack.c.h.b16 %v4286
      %v5569 = vunpack.c.l.b16 %v4287
      %v5570 = vunpack.c.h.b16 %v4287
      %v5571 = vunpack.c.l.b16 %v4288
      %v5572 = vunpack.c.h.b16 %v4288
      %v5573 = vunpack.c.l.b16 %v4289
      %v5574 = vunpack.c.h.b16 %v4289
      %v5575 = vunpack.c.l.b16 %v4290
      %v5576 = vunpack.c.h.b16 %v4290
      %v5577 = vunpack.c.l.b16 %v4291
      %v5578 = vunpack.c.h.b16 %v4291
      %v5579 = vunpack.c.l.b16 %v4292
      %v5580 = vunpack.c.h.b16 %v4292
      %v5581 = vunpack.c.l.b16 %v4293
      %v5582 = vunpack.c.h.b16 %v4293
      %v5583 = vunpack.c.l.b16 %v4294
      %v5584 = vunpack.c.h.b16 %v4294
      %v5585 = vunpack.c.l.b16 %v4295
      %v5586 = vunpack.c.h.b16 %v4295
      %v5587 = vunpack.c.l.b16 %v4296
      %v5588 = vunpack.c.h.b16 %v4296
      %v5589 = vunpack.c.l.b16 %v4297
      %v5590 = vunpack.c.h.b16 %v4297
      %v5591 = vunpack.c.l.b16 %v4298
      %v5592 = vunpack.c.h.b16 %v4298
      %v5593 = vunpack.c.l.b16 %v4299
      %v5594 = vunpack.c.h.b16 %v4299
      %v5595 = vunpack.c.l.b16 %v4300
      %v5596 = vunpack.c.h.b16 %v4300
      %v5597 = vunpack.c.l.b16 %v4301
      %v5598 = vunpack.c.h.b16 %v4301
      %v5599 = vunpack.c.l.b16 %v4302
      %v5600 = vunpack.c.h.b16 %v4302
      %v5601 = vunpack.c.l.b16 %v4303
      %v5602 = vunpack.c.h.b16 %v4303
      %v5603 = vunpack.c.l.b16 %v4304
      %v5604 = vunpack.c.h.b16 %v4304
      %v5605 = vunpack.c.l.b16 %v4305
      %v5606 = vunpack.c.h.b16 %v4305
      %v5607 = vunpack.c.l.b16 %v4306
      %v5608 = vunpack.c.h.b16 %v4306
      %v5609 = vunpack.c.l.b16 %v4307
      %v5610 = vunpack.c.h.b16 %v4307
      %v5611 = vunpack.c.l.b16 %v4308
      %v5612 = vunpack.c.h.b16 %v4308
      %v5613 = vunpack.c.l.b16 %v4309
      %v5614 = vunpack.c.h.b16 %v4309
      %v5615 = vunpack.c.l.b16 %v4310
      %v5616 = vunpack.c.h.b16 %v4310
      %v5617 = vunpack.c.l.b16 %v4311
      %v5618 = vunpack.c.h.b16 %v4311
      %v5619 = vunpack.c.l.b16 %v4312
      %v5620 = vunpack.c.h.b16 %v4312
      %v5621 = vunpack.c.l.b16 %v4313
      %v5622 = vunpack.c.h.b16 %v4313
      %v5623 = vunpack.c.l.b16 %v4314
      %v5624 = vunpack.c.h.b16 %v4314
      %v5625 = vunpack.c.l.b16 %v4315
      %v5626 = vunpack.c.h.b16 %v4315
      %v5627 = vunpack.c.l.b16 %v4316
      %v5628 = vunpack.c.h.b16 %v4316
      %v5629 = vunpack.c.l.b16 %v4317
      %v5630 = vunpack.c.h.b16 %v4317
      %v5631 = vunpack.c.l.b16 %v4318
      %v5632 = vunpack.c.h.b16 %v4318
      %v5633 = vunpack.c.l.b16 %v4319
      %v5634 = vunpack.c.h.b16 %v4319
      %v5635 = vunpack.c.l.b16 %v4320
      %v5636 = vunpack.c.h.b16 %v4320
      %v5637 = vunpack.c.l.b16 %v4321
      %v5638 = vunpack.c.h.b16 %v4321
      %v5639 = vunpack.c.l.b16 %v4322
      %v5640 = vunpack.c.h.b16 %v4322
      %v5641 = vunpack.c.l.b16 %v4323
      %v5642 = vunpack.c.h.b16 %v4323
      %v5643 = vunpack.c.l.b16 %v4324
      %v5644 = vunpack.c.h.b16 %v4324
      %v5645 = vunpack.c.l.b16 %v4325
      %v5646 = vunpack.c.h.b16 %v4325
      %v5647 = vunpack.c.l.b16 %v4326
      %v5648 = vunpack.c.h.b16 %v4326
      %v5649 = vunpack.c.l.b16 %v4327
      %v5650 = vunpack.c.h.b16 %v4327
      %v5651 = vunpack.c.l.b16 %v4328
      %v5652 = vunpack.c.h.b16 %v4328
      %v5653 = vunpack.c.l.b16 %v4329
      %v5654 = vunpack.c.h.b16 %v4329
      %v5655 = vunpack.c.l.b16 %v4330
      %v5656 = vunpack.c.h.b16 %v4330
      %v5657 = vunpack.c.l.b16 %v4331
      %v5658 = vunpack.c.h.b16 %v4331
      %v5659 = vunpack.c.l.b16 %v4332
      %v5660 = vunpack.c.h.b16 %v4332
      %v5661 = vunpack.c.l.b16 %v4333
      %v5662 = vunpack.c.h.b16 %v4333
      %v5663 = vunpack.c.l.b16 %v4334
      %v5664 = vunpack.c.h.b16 %v4334
      %v5665 = vunpack.c.l.b16 %v4335
      %v5666 = vunpack.c.h.b16 %v4335
      %v5667 = vunpack.c.l.b16 %v4336
      %v5668 = vunpack.c.h.b16 %v4336
      %v5669 = vunpack.c.l.b16 %v4337
      %v5670 = vunpack.c.h.b16 %v4337
      %v5671 = vunpack.c.l.b16 %v4338
      %v5672 = vunpack.c.h.b16 %v4338
      %v5673 = vunpack.c.l.b16 %v4339
      %v5674 = vunpack.c.h.b16 %v4339
      %v5675 = vunpack.c.l.b16 %v4340
      %v5676 = vunpack.c.h.b16 %v4340
      %v5677 = vunpack.c.l.b16 %v4341
      %v5678 = vunpack.c.h.b16 %v4341
      %v5679 = vunpack.c.l.b16 %v4342
      %v5680 = vunpack.c.h.b16 %v4342
      %v5681 = vunpack.c.l.b16 %v4343
      %v5682 = vunpack.c.h.b16 %v4343
      %v5683 = vunpack.c.l.b16 %v4344
      %v5684 = vunpack.c.h.b16 %v4344
      %v5685 = vunpack.c.l.b16 %v4345
      %v5686 = vunpack.c.h.b16 %v4345
      %v5687 = vunpack.c.l.b16 %v4346
      %v5688 = vunpack.c.h.b16 %v4346
      %v5689 = vunpack.c.l.b16 %v4347
      %v5690 = vunpack.c.h.b16 %v4347
      %v5691 = vunpack.c.l.b16 %v4348
      %v5692 = vunpack.c.h.b16 %v4348
      %v5693 = vunpack.c.l.b16 %v4349
      %v5694 = vunpack.c.h.b16 %v4349
      %v5695 = vunpack.c.l.b16 %v4350
      %v5696 = vunpack.c.h.b16 %v4350
      %v5697 = vunpack.c.l.b16 %v4351
      %v5698 = vunpack.c.h.b16 %v4351
      %v5699 = vunpack.c.l.b16 %v4352
      %v5700 = vunpack.c.h.b16 %v4352
      %v5701 = vunpack.c.l.b16 %v4353
      %v5702 = vunpack.c.h.b16 %v4353
      %v5703 = vunpack.c.l.b16 %v4354
      %v5704 = vunpack.c.h.b16 %v4354
      %v5705 = vunpack.c.l.b16 %v4355
      %v5706 = vunpack.c.h.b16 %v4355
      %v5707 = vunpack.c.l.b16 %v4356
      %v5708 = vunpack.c.h.b16 %v4356
      %v5709 = vunpack.c.l.b16 %v4357
      %v5710 = vunpack.c.h.b16 %v4357
      %v5711 = vunpack.c.l.b16 %v4358
      %v5712 = vunpack.c.h.b16 %v4358
      %v5713 = vunpack.c.l.b16 %v4359
      %v5714 = vunpack.c.h.b16 %v4359
      %v5715 = vunpack.c.l.b16 %v4360
      %v5716 = vunpack.c.h.b16 %v4360
      %v5717 = vunpack.c.l.b16 %v4361
      %v5718 = vunpack.c.h.b16 %v4361
      %v5719 = vunpack.c.l.b16 %v4362
      %v5720 = vunpack.c.h.b16 %v4362
      %v5721 = vunpack.c.l.b16 %v4363
      %v5722 = vunpack.c.h.b16 %v4363
      %v5723 = vunpack.c.l.b16 %v4364
      %v5724 = vunpack.c.h.b16 %v4364
      %v5725 = vunpack.c.l.b16 %v4365
      %v5726 = vunpack.c.h.b16 %v4365
      %v5727 = vunpack.c.l.b16 %v4366
      %v5728 = vunpack.c.h.b16 %v4366
      %v5729 = vunpack.c.l.b16 %v4367
      %v5730 = vunpack.c.h.b16 %v4367
      %v5731 = vunpack.c.l.b16 %v4368
      %v5732 = vunpack.c.h.b16 %v4368
      %v5733 = vunpack.c.l.b16 %v4369
      %v5734 = vunpack.c.h.b16 %v4369
      %v5735 = vunpack.c.l.b16 %v4370
      %v5736 = vunpack.c.h.b16 %v4370
      %v5737 = vunpack.c.l.b16 %v4371
      %v5738 = vunpack.c.h.b16 %v4371
      %v5739 = vunpack.c.l.b16 %v4372
      %v5740 = vunpack.c.h.b16 %v4372
      %v5741 = vunpack.c.l.b16 %v4373
      %v5742 = vunpack.c.h.b16 %v4373
      %v5743 = vunpack.c.l.b16 %v4374
      %v5744 = vunpack.c.h.b16 %v4374
      %v5745 = vunpack.c.l.b16 %v4375
      %v5746 = vunpack.c.h.b16 %v4375
      %v5747 = vunpack.c.l.b16 %v4376
      %v5748 = vunpack.c.h.b16 %v4376
      %v5749 = vunpack.c.l.b16 %v4377
      %v5750 = vunpack.c.h.b16 %v4377
      %v5751 = vunpack.c.l.b16 %v4378
      %v5752 = vunpack.c.h.b16 %v4378
      %v5753 = vunpack.c.l.b16 %v4379
      %v5754 = vunpack.c.h.b16 %v4379
      %v5755 = vunpack.c.l.b16 %v4380
      %v5756 = vunpack.c.h.b16 %v4380
      %v5757 = vunpack.c.l.b16 %v4381
      %v5758 = vunpack.c.h.b16 %v4381
      %v5759 = vunpack.c.l.b16 %v4382
      %v5760 = vunpack.c.h.b16 %v4382
      %v5761 = vunpack.c.l.b16 %v4383
      %v5762 = vunpack.c.h.b16 %v4383
      %v5763 = vunpack.c.l.b16 %v4384
      %v5764 = vunpack.c.h.b16 %v4384
      %v5765 = vunpack.c.l.b16 %v4385
      %v5766 = vunpack.c.h.b16 %v4385
      %v5767 = vunpack.c.l.b16 %v4386
      %v5768 = vunpack.c.h.b16 %v4386
      %v5769 = vunpack.c.l.b16 %v4387
      %v5770 = vunpack.c.h.b16 %v4387
      %v5771 = vunpack.c.l.b16 %v4388
      %v5772 = vunpack.c.h.b16 %v4388
      %v5773 = vunpack.c.l.b16 %v4389
      %v5774 = vunpack.c.h.b16 %v4389
      %v5775 = vunpack.c.l.b16 %v4390
      %v5776 = vunpack.c.h.b16 %v4390
      %v5777 = vunpack.c.l.b16 %v4391
      %v5778 = vunpack.c.h.b16 %v4391
      %v5779 = vunpack.c.l.b16 %v4392
      %v5780 = vunpack.c.h.b16 %v4392
      %v5781 = vunpack.c.l.b16 %v4393
      %v5782 = vunpack.c.h.b16 %v4393
      %v5783 = vunpack.c.l.b16 %v4394
      %v5784 = vunpack.c.h.b16 %v4394
      %v5785 = vunpack.c.l.b16 %v4395
      %v5786 = vunpack.c.h.b16 %v4395
      %v5787 = vunpack.c.l.b16 %v4396
      %v5788 = vunpack.c.h.b16 %v4396
      %v5789 = vunpack.c.l.b16 %v4397
      %v5790 = vunpack.c.h.b16 %v4397
      %v5791 = vunpack.c.l.b16 %v4398
      %v5792 = vunpack.c.h.b16 %v4398
      %v5793 = vunpack.c.l.b16 %v4399
      %v5794 = vunpack.c.h.b16 %v4399
      %v5795 = vunpack.c.l.b16 %v4400
      %v5796 = vunpack.c.h.b16 %v4400
      %v5797 = vunpack.c.l.b16 %v4401
      %v5798 = vunpack.c.h.b16 %v4401
      %v5799 = vunpack.c.l.b16 %v4402
      %v5800 = vunpack.c.h.b16 %v4402
      %v5801 = vunpack.c.l.b16 %v4403
      %v5802 = vunpack.c.h.b16 %v4403
      %v5803 = vunpack.c.l.b16 %v4404
      %v5804 = vunpack.c.h.b16 %v4404
      %v5805 = vunpack.c.l.b16 %v4405
      %v5806 = vunpack.c.h.b16 %v4405
      %v5807 = vunpack.c.l.b16 %v4406
      %v5808 = vunpack.c.h.b16 %v4406
      %v5809 = vunpack.c.l.b16 %v4407
      %v5810 = vunpack.c.h.b16 %v4407
      %v5811 = vunpack.c.l.b16 %v4408
      %v5812 = vunpack.c.h.b16 %v4408
      %v5813 = vunpack.c.l.b16 %v4409
      %v5814 = vunpack.c.h.b16 %v4409
      %v5815 = vunpack.c.l.b16 %v4410
      %v5816 = vunpack.c.h.b16 %v4410
      %v5817 = vunpack.c.l.b16 %v4411
      %v5818 = vunpack.c.h.b16 %v4411
      %v5819 = vunpack.c.l.b16 %v4412
      %v5820 = vunpack.c.h.b16 %v4412
      %v5821 = vunpack.c.l.b16 %v4413
      %v5822 = vunpack.c.h.b16 %v4413
      %v5823 = vunpack.c.l.b16 %v4414
      %v5824 = vunpack.c.h.b16 %v4414
      %v5825 = vunpack.c.l.b16 %v4415
      %v5826 = vunpack.c.h.b16 %v4415
      %v5827 = vunpack.c.l.b16 %v4416
      %v5828 = vunpack.c.h.b16 %v4416
      %v5829 = vunpack.c.l.b16 %v4417
      %v5830 = vunpack.c.h.b16 %v4417
      %v5831 = vunpack.c.l.b16 %v4418
      %v5832 = vunpack.c.h.b16 %v4418
      %v5833 = vunpack.c.l.b16 %v4419
      %v5834 = vunpack.c.h.b16 %v4419
      %v5835 = vunpack.c.l.b16 %v4420
      %v5836 = vunpack.c.h.b16 %v4420
      %v5837 = vunpack.c.l.b16 %v4421
      %v5838 = vunpack.c.h.b16 %v4421
      %v5839 = vunpack.c.l.b16 %v4422
      %v5840 = vunpack.c.h.b16 %v4422
      %v5841 = vunpack.c.l.b16 %v4423
      %v5842 = vunpack.c.h.b16 %v4423
      %v5843 = vunpack.c.l.b16 %v4424
      %v5844 = vunpack.c.h.b16 %v4424
      %v5845 = vunpack.c.l.b16 %v4425
      %v5846 = vunpack.c.h.b16 %v4425
      %v5847 = vunpack.c.l.b16 %v4426
      %v5848 = vunpack.c.h.b16 %v4426
      %v5849 = vunpack.c.l.b16 %v4427
      %v5850 = vunpack.c.h.b16 %v4427
      %v5851 = vunpack.c.l.b16 %v4428
      %v5852 = vunpack.c.h.b16 %v4428
      %v5853 = vunpack.c.l.b16 %v4429
      %v5854 = vunpack.c.h.b16 %v4429
      %v5855 = vunpack.c.l.b16 %v4430
      %v5856 = vunpack.c.h.b16 %v4430
      %v5857 = vunpack.c.l.b16 %v4431
      %v5858 = vunpack.c.h.b16 %v4431
      %v5859 = vunpack.c.l.b16 %v4432
      %v5860 = vunpack.c.h.b16 %v4432
      %v5861 = vunpack.c.l.b16 %v4433
      %v5862 = vunpack.c.h.b16 %v4433
      %v5863 = vunpack.c.l.b16 %v4434
      %v5864 = vunpack.c.h.b16 %v4434
      %v5865 = vunpack.c.l.b16 %v4435
      %v5866 = vunpack.c.h.b16 %v4435
      %v5867 = vunpack.c.l.b16 %v4436
      %v5868 = vunpack.c.h.b16 %v4436
      %v5869 = vunpack.c.l.b16 %v4437
      %v5870 = vunpack.c.h.b16 %v4437
      %v5871 = vunpack.c.l.b16 %v4438
      %v5872 = vunpack.c.h.b16 %v4438
      %v5873 = vunpack.c.l.b16 %v4439
      %v5874 = vunpack.c.h.b16 %v4439
      %v5875 = vunpack.c.l.b16 %v4440
      %v5876 = vunpack.c.h.b16 %v4440
      %v5877 = vunpack.c.l.b16 %v4441
      %v5878 = vunpack.c.h.b16 %v4441
      %v5879 = vunpack.c.l.b16 %v4442
      %v5880 = vunpack.c.h.b16 %v4442
      %v5881 = vunpack.c.l.b16 %v4443
      %v5882 = vunpack.c.h.b16 %v4443
      %v5883 = vunpack.c.l.b16 %v4444
      %v5884 = vunpack.c.h.b16 %v4444
      %v5885 = vunpack.c.l.b16 %v4445
      %v5886 = vunpack.c.h.b16 %v4445
      %v5887 = vunpack.c.l.b16 %v4446
      %v5888 = vunpack.c.h.b16 %v4446
      %v5889 = vunpack.c.l.b16 %v4447
      %v5890 = vunpack.c.h.b16 %v4447
      %v5891 = vunpack.c.l.b16 %v4448
      %v5892 = vunpack.c.h.b16 %v4448
      %v5893 = vunpack.c.l.b16 %v4449
      %v5894 = vunpack.c.h.b16 %v4449
      %v5895 = vunpack.c.l.b16 %v4450
      %v5896 = vunpack.c.h.b16 %v4450
      %v5897 = vunpack.c.l.b16 %v4451
      %v5898 = vunpack.c.h.b16 %v4451
      %v5899 = vunpack.c.l.b16 %v4452
      %v5900 = vunpack.c.h.b16 %v4452
      %v5901 = vunpack.c.l.b16 %v4453
      %v5902 = vunpack.c.h.b16 %v4453
      %v5903 = vunpack.c.l.b16 %v4454
      %v5904 = vunpack.c.h.b16 %v4454
      %v5905 = vunpack.c.l.b16 %v4455
      %v5906 = vunpack.c.h.b16 %v4455
      %v5907 = vunpack.c.l.b16 %v4456
      %v5908 = vunpack.c.h.b16 %v4456
      %v5909 = vunpack.c.l.b16 %v4457
      %v5910 = vunpack.c.h.b16 %v4457
      %v5911 = vunpack.c.l.b16 %v4458
      %v5912 = vunpack.c.h.b16 %v4458
      %v5913 = vunpack.c.l.b16 %v4459
      %v5914 = vunpack.c.h.b16 %v4459
      %v5915 = vunpack.c.l.b16 %v4460
      %v5916 = vunpack.c.h.b16 %v4460
      %v5917 = vunpack.c.l.b16 %v4461
      %v5918 = vunpack.c.h.b16 %v4461
      %v5919 = vunpack.c.l.b16 %v4462
      %v5920 = vunpack.c.h.b16 %v4462
      %v5921 = vunpack.c.l.b16 %v4463
      %v5922 = vunpack.c.h.b16 %v4463
      %v5923 = vunpack.c.l.b16 %v4464
      %v5924 = vunpack.c.h.b16 %v4464
      %v5925 = vunpack.c.l.b16 %v4465
      %v5926 = vunpack.c.h.b16 %v4465
      %v5927 = vunpack.c.l.b16 %v4466
      %v5928 = vunpack.c.h.b16 %v4466
      %v5929 = vunpack.c.l.b16 %v4467
      %v5930 = vunpack.c.h.b16 %v4467
      %v5931 = vunpack.c.l.b16 %v4468
      %v5932 = vunpack.c.h.b16 %v4468
      %v5933 = vunpack.c.l.b16 %v4469
      %v5934 = vunpack.c.h.b16 %v4469
      %v5935 = vunpack.c.l.b16 %v4470
      %v5936 = vunpack.c.h.b16 %v4470
      %v5937 = vunpack.c.l.b16 %v4471
      %v5938 = vunpack.c.h.b16 %v4471
      %v5939 = vunpack.c.l.b16 %v4472
      %v5940 = vunpack.c.h.b16 %v4472
      %v5941 = vunpack.c.l.b16 %v4473
      %v5942 = vunpack.c.h.b16 %v4473
      %v5943 = vunpack.c.l.b16 %v4474
      %v5944 = vunpack.c.h.b16 %v4474
      %v5945 = vunpack.c.l.b16 %v4475
      %v5946 = vunpack.c.h.b16 %v4475
      %v5947 = vunpack.c.l.b16 %v4476
      %v5948 = vunpack.c.h.b16 %v4476
      %v5949 = vunpack.c.l.b16 %v4477
      %v5950 = vunpack.c.h.b16 %v4477
      %v5951 = vunpack.c.l.b16 %v4478
      %v5952 = vunpack.c.h.b16 %v4478
      %v5953 = vunpack.c.l.b16 %v4479
      %v5954 = vunpack.c.h.b16 %v4479
      %v5955 = vunpack.c.l.b16 %v4480
      %v5956 = vunpack.c.h.b16 %v4480
      %v5957 = vunpack.c.l.b16 %v4481
      %v5958 = vunpack.c.h.b16 %v4481
      %v5959 = vunpack.c.l.b16 %v4482
      %v5960 = vunpack.c.h.b16 %v4482
      %v5961 = vunpack.c.l.b16 %v4483
      %v5962 = vunpack.c.h.b16 %v4483
      %v5963 = vunpack.c.l.b16 %v4484
      %v5964 = vunpack.c.h.b16 %v4484
      %v5965 = vunpack.c.l.b16 %v4485
      %v5966 = vunpack.c.h.b16 %v4485
      %v5967 = vunpack.c.l.b16 %v4486
      %v5968 = vunpack.c.h.b16 %v4486
      %v5969 = vunpack.c.l.b16 %v4487
      %v5970 = vunpack.c.h.b16 %v4487
      %v5971 = vunpack.c.l.b16 %v4488
      %v5972 = vunpack.c.h.b16 %v4488
      %v5973 = vunpack.c.l.b16 %v4489
      %v5974 = vunpack.c.h.b16 %v4489
      %v5975 = vunpack.c.l.b16 %v4490
      %v5976 = vunpack.c.h.b16 %v4490
      %v5977 = vunpack.c.l.b16 %v4491
      %v5978 = vunpack.c.h.b16 %v4491
      %v5979 = vunpack.c.l.b16 %v4492
      %v5980 = vunpack.c.h.b16 %v4492
      %v5981 = vunpack.c.l.b16 %v4493
      %v5982 = vunpack.c.h.b16 %v4493
      %v5983 = vunpack.c.l.b16 %v4494
      %v5984 = vunpack.c.h.b16 %v4494
      %v5985 = vunpack.c.l.b16 %v4495
      %v5986 = vunpack.c.h.b16 %v4495
      %v5987 = vunpack.c.l.b16 %v4496
      %v5988 = vunpack.c.h.b16 %v4496
      %v5989 = vunpack.c.l.b16 %v4497
      %v5990 = vunpack.c.h.b16 %v4497
      %v5991 = vunpack.c.l.b16 %v4498
      %v5992 = vunpack.c.h.b16 %v4498
      %v5993 = vunpack.c.l.b16 %v4499
      %v5994 = vunpack.c.h.b16 %v4499
      %v5995 = vunpack.c.l.b16 %v4500
      %v5996 = vunpack.c.h.b16 %v4500
      %v5997 = vunpack.c.l.b16 %v4501
      %v5998 = vunpack.c.h.b16 %v4501
      %v5999 = vunpack.c.l.b16 %v4502
      %v6000 = vunpack.c.h.b16 %v4502
      %v6001 = vunpack.c.l.b16 %v4503
      %v6002 = vunpack.c.h.b16 %v4503
      %v6003 = vunpack.c.l.b16 %v4504
      %v6004 = vunpack.c.h.b16 %v4504
      %v6005 = vunpack.c.l.b16 %v4505
      %v6006 = vunpack.c.h.b16 %v4505
      %v6007 = vunpack.c.l.b16 %v4506
      %v6008 = vunpack.c.h.b16 %v4506
      %v6009 = vunpack.c.l.b16 %v4507
      %v6010 = vunpack.c.h.b16 %v4507
      %v6011 = vunpack.c.l.b16 %v4508
      %v6012 = vunpack.c.h.b16 %v4508
      %v6013 = vunpack.c.l.b16 %v4509
      %v6014 = vunpack.c.h.b16 %v4509
      %v6015 = vunpack.c.l.b16 %v4510
      %v6016 = vunpack.c.h.b16 %v4510
      %v6017 = vunpack.c.l.b16 %v4511
      %v6018 = vunpack.c.h.b16 %v4511
      %v6019 = vunpack.c.l.b16 %v4512
      %v6020 = vunpack.c.h.b16 %v4512
      %v6021 = vunpack.c.l.b16 %v4513
      %v6022 = vunpack.c.h.b16 %v4513
      %v6023 = vunpack.c.l.b16 %v4514
      %v6024 = vunpack.c.h.b16 %v4514
      %v6025 = vunpack.c.l.b16 %v4515
      %v6026 = vunpack.c.h.b16 %v4515
      %v6027 = vunpack.c.l.b16 %v4516
      %v6028 = vunpack.c.h.b16 %v4516
      %v6029 = vunpack.c.l.b16 %v4517
      %v6030 = vunpack.c.h.b16 %v4517
      %v6031 = vunpack.c.l.b16 %v4518
      %v6032 = vunpack.c.h.b16 %v4518
      %v6033 = vunpack.c.l.b16 %v4519
      %v6034 = vunpack.c.h.b16 %v4519
      %v6035 = vunpack.c.l.b16 %v4520
      %v6036 = vunpack.c.h.b16 %v4520
      %v6037 = vunpack.c.l.b16 %v4521
      %v6038 = vunpack.c.h.b16 %v4521
      %v6039 = vunpack.c.l.b16 %v4522
      %v6040 = vunpack.c.h.b16 %v4522
      %v6041 = vunpack.c.l.b16 %v4523
      %v6042 = vunpack.c.h.b16 %v4523
      %v6043 = vunpack.c.l.b16 %v4524
      %v6044 = vunpack.c.h.b16 %v4524
      %v6045 = vunpack.c.l.b16 %v4525
      %v6046 = vunpack.c.h.b16 %v4525
      %v6047 = vunpack.c.l.b16 %v4526
      %v6048 = vunpack.c.h.b16 %v4526
      %v6049 = vunpack.c.l.b16 %v4527
      %v6050 = vunpack.c.h.b16 %v4527
      %v6051 = vunpack.c.l.b16 %v4528
      %v6052 = vunpack.c.h.b16 %v4528
      %v6053 = vunpack.c.l.b16 %v4529
      %v6054 = vunpack.c.h.b16 %v4529
      %v6055 = vunpack.c.l.b16 %v4530
      %v6056 = vunpack.c.h.b16 %v4530
      %v6057 = vunpack.c.l.b16 %v4531
      %v6058 = vunpack.c.h.b16 %v4531
      %v6059 = vunpack.c.l.b16 %v4532
      %v6060 = vunpack.c.h.b16 %v4532
      %v6061 = vunpack.c.l.b16 %v4533
      %v6062 = vunpack.c.h.b16 %v4533
      %v6063 = vunpack.c.l.b16 %v4534
      %v6064 = vunpack.c.h.b16 %v4534
      %v6065 = vunpack.c.l.b16 %v4535
      %v6066 = vunpack.c.h.b16 %v4535
      %v6067 = vunpack.c.l.b16 %v4536
      %v6068 = vunpack.c.h.b16 %v4536
      %v6069 = vunpack.c.l.b16 %v4537
      %v6070 = vunpack.c.h.b16 %v4537
      %v6071 = vunpack.c.l.b16 %v4538
      %v6072 = vunpack.c.h.b16 %v4538
      %v6073 = vunpack.c.l.b16 %v4539
      %v6074 = vunpack.c.h.b16 %v4539
      %v6075 = vunpack.c.l.b16 %v4540
      %v6076 = vunpack.c.h.b16 %v4540
      %v6077 = vunpack.c.l.b16 %v4541
      %v6078 = vunpack.c.h.b16 %v4541
      %v6079 = vunpack.c.l.b16 %v4542
      %v6080 = vunpack.c.h.b16 %v4542
      %v6081 = vunpack.c.l.b16 %v4543
      %v6082 = vunpack.c.h.b16 %v4543
      %v6083 = vunpack.c.l.b16 %v4544
      %v6084 = vunpack.c.h.b16 %v4544
      %v6085 = vunpack.c.l.b16 %v4545
      %v6086 = vunpack.c.h.b16 %v4545
      %v6087 = vunpack.c.l.b16 %v4546
      %v6088 = vunpack.c.h.b16 %v4546
      %v6089 = vunpack.c.l.b16 %v4547
      %v6090 = vunpack.c.h.b16 %v4547
      %v6091 = vunpack.c.l.b16 %v4548
      %v6092 = vunpack.c.h.b16 %v4548
      %v6093 = vunpack.c.l.b16 %v4549
      %v6094 = vunpack.c.h.b16 %v4549
      %v6095 = vunpack.c.l.b16 %v4550
      %v6096 = vunpack.c.h.b16 %v4550
      %v6097 = vunpack.c.l.b16 %v4551
      %v6098 = vunpack.c.h.b16 %v4551
      %v6099 = vunpack.c.l.b16 %v4552
      %v6100 = vunpack.c.h.b16 %v4552
      %v6101 = vunpack.c.l.b16 %v4553
      %v6102 = vunpack.c.h.b16 %v4553
      %v6103 = vunpack.c.l.b16 %v4554
      %v6104 = vunpack.c.h.b16 %v4554
      %v6105 = vunpack.c.l.b16 %v4555
      %v6106 = vunpack.c.h.b16 %v4555
      %v6107 = vunpack.c.l.b16 %v4556
      %v6108 = vunpack.c.h.b16 %v4556
      %v6109 = vunpack.c.l.b16 %v4557
      %v6110 = vunpack.c.h.b16 %v4557
      %v6111 = vunpack.c.l.b16 %v4558
      %v6112 = vunpack.c.h.b16 %v4558
      %v6113 = vunpack.c.l.b16 %v4559
      %v6114 = vunpack.c.h.b16 %v4559
      %v6115 = vunpack.c.l.b16 %v4560
      %v6116 = vunpack.c.h.b16 %v4560
      %v6117 = vunpack.c.l.b16 %v4561
      %v6118 = vunpack.c.h.b16 %v4561
      %v6119 = vunpack.c.l.b16 %v4562
      %v6120 = vunpack.c.h.b16 %v4562
      %v6121 = vunpack.c.l.b16 %v4563
      %v6122 = vunpack.c.h.b16 %v4563
      %v6123 = vunpack.c.l.b16 %v4564
      %v6124 = vunpack.c.h.b16 %v4564
      %v6125 = vunpack.c.l.b16 %v4565
      %v6126 = vunpack.c.h.b16 %v4565
      %v6127 = vunpack.c.l.b16 %v4566
      %v6128 = vunpack.c.h.b16 %v4566
      %v6129 = vunpack.c.l.b16 %v4567
      %v6130 = vunpack.c.h.b16 %v4567
      %v6131 = vunpack.c.l.b16 %v4568
      %v6132 = vunpack.c.h.b16 %v4568
      %v6133 = vunpack.c.l.b16 %v4569
      %v6134 = vunpack.c.h.b16 %v4569
      %v6135 = vunpack.c.l.b16 %v4570
      %v6136 = vunpack.c.h.b16 %v4570
      %v6137 = vunpack.c.l.b16 %v4571
      %v6138 = vunpack.c.h.b16 %v4571
      %v6139 = vunpack.c.l.b16 %v4572
      %v6140 = vunpack.c.h.b16 %v4572
      %v6141 = vunpack.c.l.b16 %v4573
      %v6142 = vunpack.c.h.b16 %v4573
      %v6143 = vunpack.c.l.b16 %v4574
      %v6144 = vunpack.c.h.b16 %v4574
      %v6145 = vunpack.c.l.b16 %v4575
      %v6146 = vunpack.c.h.b16 %v4575
      %v6147 = vunpack.c.l.b16 %v4576
      %v6148 = vunpack.c.h.b16 %v4576
      %v6149 = vunpack.c.l.b16 %v4577
      %v6150 = vunpack.c.h.b16 %v4577
      %v6151 = vunpack.c.l.b16 %v4578
      %v6152 = vunpack.c.h.b16 %v4578
      %v6153 = vunpack.c.l.b16 %v4579
      %v6154 = vunpack.c.h.b16 %v4579
      %v6155 = vunpack.c.l.b16 %v4580
      %v6156 = vunpack.c.h.b16 %v4580
      %v6157 = vunpack.c.l.b16 %v4581
      %v6158 = vunpack.c.h.b16 %v4581
      %v6159 = vunpack.c.l.b16 %v4582
      %v6160 = vunpack.c.h.b16 %v4582
      %v6161 = vpack.c.b16 %v5145, %v5137
      %v6162 = vpack.c.b16 %v5146, %v5138
      %v6163 = vpack.c.b16 %v5147, %v5139
      %v6164 = vpack.c.b16 %v5148, %v5140
      %v6165 = vpack.c.b16 %v5149, %v5141
      %v6166 = vpack.c.b16 %v5150, %v5142
      %v6167 = vpack.c.b16 %v5151, %v5143
      %v6168 = vpack.c.b16 %v5152, %v5144
      %v6169 = vpack.c.b16 %v5161, %v5153
      %v6170 = vpack.c.b16 %v5162, %v5154
      %v6171 = vpack.c.b16 %v5163, %v5155
      %v6172 = vpack.c.b16 %v5164, %v5156
      %v6173 = vpack.c.b16 %v5165, %v5157
      %v6174 = vpack.c.b16 %v5166, %v5158
      %v6175 = vpack.c.b16 %v5167, %v5159
      %v6176 = vpack.c.b16 %v5168, %v5160
      %v6177 = vpack.c.b16 %v5177, %v5169
      %v6178 = vpack.c.b16 %v5178, %v5170
      %v6179 = vpack.c.b16 %v5179, %v5171
      %v6180 = vpack.c.b16 %v5180, %v5172
      %v6181 = vpack.c.b16 %v5181, %v5173
      %v6182 = vpack.c.b16 %v5182, %v5174
      %v6183 = vpack.c.b16 %v5183, %v5175
      %v6184 = vpack.c.b16 %v5184, %v5176
      %v6185 = vpack.c.b16 %v5193, %v5185
      %v6186 = vpack.c.b16 %v5194, %v5186
      %v6187 = vpack.c.b16 %v5195, %v5187
      %v6188 = vpack.c.b16 %v5196, %v5188
      %v6189 = vpack.c.b16 %v5197, %v5189
      %v6190 = vpack.c.b16 %v5198, %v5190
      %v6191 = vpack.c.b16 %v5199, %v5191
      %v6192 = vpack.c.b16 %v5200, %v5192
      %v6193 = vpack.c.b16 %v5209, %v5201
      %v6194 = vpack.c.b16 %v5210, %v5202
      %v6195 = vpack.c.b16 %v5211, %v5203
      %v6196 = vpack.c.b16 %v5212, %v5204
      %v6197 = vpack.c.b16 %v5213, %v5205
      %v6198 = vpack.c.b16 %v5214, %v5206
      %v6199 = vpack.c.b16 %v5215, %v5207
      %v6200 = vpack.c.b16 %v5216, %v5208
      %v6201 = vpack.c.b16 %v5225, %v5217
      %v6202 = vpack.c.b16 %v5226, %v5218
      %v6203 = vpack.c.b16 %v5227, %v5219
      %v6204 = vpack.c.b16 %v5228, %v5220
      %v6205 = vpack.c.b16 %v5229, %v5221
      %v6206 = vpack.c.b16 %v5230, %v5222
      %v6207 = vpack.c.b16 %v5231, %v5223
      %v6208 = vpack.c.b16 %v5232, %v5224
      %v6209 = vpack.c.b16 %v5241, %v5233
      %v6210 = vpack.c.b16 %v5242, %v5234
      %v6211 = vpack.c.b16 %v5243, %v5235
      %v6212 = vpack.c.b16 %v5244, %v5236
      %v6213 = vpack.c.b16 %v5245, %v5237
      %v6214 = vpack.c.b16 %v5246, %v5238
      %v6215 = vpack.c.b16 %v5247, %v5239
      %v6216 = vpack.c.b16 %v5248, %v5240
      %v6217 = vpack.c.b16 %v5257, %v5249
      %v6218 = vpack.c.b16 %v5258, %v5250
      %v6219 = vpack.c.b16 %v5259, %v5251
      %v6220 = vpack.c.b16 %v5260, %v5252
      %v6221 = vpack.c.b16 %v5261, %v5253
      %v6222 = vpack.c.b16 %v5262, %v5254
      %v6223 = vpack.c.b16 %v5263, %v5255
      %v6224 = vpack.c.b16 %v5264, %v5256
      %v6225 = vpack.c.b16 %v5273, %v5265
      %v6226 = vpack.c.b16 %v5274, %v5266
      %v6227 = vpack.c.b16 %v5275, %v5267
      %v6228 = vpack.c.b16 %v5276, %v5268
      %v6229 = vpack.c.b16 %v5277, %v5269
      %v6230 = vpack.c.b16 %v5278, %v5270
      %v6231 = vpack.c.b16 %v5279, %v5271
      %v6232 = vpack.c.b16 %v5280, %v5272
      %v6233 = vpack.c.b16 %v5289, %v5281
      %v6234 = vpack.c.b16 %v5290, %v5282
      %v6235 = vpack.c.b16 %v5291, %v5283
      %v6236 = vpack.c.b16 %v5292, %v5284
      %v6237 = vpack.c.b16 %v5293, %v5285
      %v6238 = vpack.c.b16 %v5294, %v5286
      %v6239 = vpack.c.b16 %v5295, %v5287
      %v6240 = vpack.c.b16 %v5296, %v5288
      %v6241 = vpack.c.b16 %v5305, %v5297
      %v6242 = vpack.c.b16 %v5306, %v5298
      %v6243 = vpack.c.b16 %v5307, %v5299
      %v6244 = vpack.c.b16 %v5308, %v5300
      %v6245 = vpack.c.b16 %v5309, %v5301
      %v6246 = vpack.c.b16 %v5310, %v5302
      %v6247 = vpack.c.b16 %v5311, %v5303
      %v6248 = vpack.c.b16 %v5312, %v5304
      %v6249 = vpack.c.b16 %v5321, %v5313
      %v6250 = vpack.c.b16 %v5322, %v5314
      %v6251 = vpack.c.b16 %v5323, %v5315
      %v6252 = vpack.c.b16 %v5324, %v5316
      %v6253 = vpack.c.b16 %v5325, %v5317
      %v6254 = vpack.c.b16 %v5326, %v5318
      %v6255 = vpack.c.b16 %v5327, %v5319
      %v6256 = vpack.c.b16 %v5328, %v5320
      %v6257 = vpack.c.b16 %v5337, %v5329
      %v6258 = vpack.c.b16 %v5338, %v5330
      %v6259 = vpack.c.b16 %v5339, %v5331
      %v6260 = vpack.c.b16 %v5340, %v5332
      %v6261 = vpack.c.b16 %v5341, %v5333
      %v6262 = vpack.c.b16 %v5342, %v5334
      %v6263 = vpack.c.b16 %v5343, %v5335
      %v6264 = vpack.c.b16 %v5344, %v5336
      %v6265 = vpack.c.b16 %v5353, %v5345
      %v6266 = vpack.c.b16 %v5354, %v5346
      %v6267 = vpack.c.b16 %v5355, %v5347
      %v6268 = vpack.c.b16 %v5356, %v5348
      %v6269 = vpack.c.b16 %v5357, %v5349
      %v6270 = vpack.c.b16 %v5358, %v5350
      %v6271 = vpack.c.b16 %v5359, %v5351
      %v6272 = vpack.c.b16 %v5360, %v5352
      %v6273 = vpack.c.b16 %v5369, %v5361
      %v6274 = vpack.c.b16 %v5370, %v5362
      %v6275 = vpack.c.b16 %v5371, %v5363
      %v6276 = vpack.c.b16 %v5372, %v5364
      %v6277 = vpack.c.b16 %v5373, %v5365
      %v6278 = vpack.c.b16 %v5374, %v5366
      %v6279 = vpack.c.b16 %v5375, %v5367
      %v6280 = vpack.c.b16 %v5376, %v5368
      %v6281 = vpack.c.b16 %v5385, %v5377
      %v6282 = vpack.c.b16 %v5386, %v5378
      %v6283 = vpack.c.b16 %v5387, %v5379
      %v6284 = vpack.c.b16 %v5388, %v5380
      %v6285 = vpack.c.b16 %v5389, %v5381
      %v6286 = vpack.c.b16 %v5390, %v5382
      %v6287 = vpack.c.b16 %v5391, %v5383
      %v6288 = vpack.c.b16 %v5392, %v5384
      %v6289 = vpack.c.b16 %v5401, %v5393
      %v6290 = vpack.c.b16 %v5402, %v5394
      %v6291 = vpack.c.b16 %v5403, %v5395
      %v6292 = vpack.c.b16 %v5404, %v5396
      %v6293 = vpack.c.b16 %v5405, %v5397
      %v6294 = vpack.c.b16 %v5406, %v5398
      %v6295 = vpack.c.b16 %v5407, %v5399
      %v6296 = vpack.c.b16 %v5408, %v5400
      %v6297 = vpack.c.b16 %v5417, %v5409
      %v6298 = vpack.c.b16 %v5418, %v5410
      %v6299 = vpack.c.b16 %v5419, %v5411
      %v6300 = vpack.c.b16 %v5420, %v5412
      %v6301 = vpack.c.b16 %v5421, %v5413
      %v6302 = vpack.c.b16 %v5422, %v5414
      %v6303 = vpack.c.b16 %v5423, %v5415
      %v6304 = vpack.c.b16 %v5424, %v5416
      %v6305 = vpack.c.b16 %v5433, %v5425
      %v6306 = vpack.c.b16 %v5434, %v5426
      %v6307 = vpack.c.b16 %v5435, %v5427
      %v6308 = vpack.c.b16 %v5436, %v5428
      %v6309 = vpack.c.b16 %v5437, %v5429
      %v6310 = vpack.c.b16 %v5438, %v5430
      %v6311 = vpack.c.b16 %v5439, %v5431
      %v6312 = vpack.c.b16 %v5440, %v5432
      %v6313 = vpack.c.b16 %v5449, %v5441
      %v6314 = vpack.c.b16 %v5450, %v5442
      %v6315 = vpack.c.b16 %v5451, %v5443
      %v6316 = vpack.c.b16 %v5452, %v5444
      %v6317 = vpack.c.b16 %v5453, %v5445
      %v6318 = vpack.c.b16 %v5454, %v5446
      %v6319 = vpack.c.b16 %v5455, %v5447
      %v6320 = vpack.c.b16 %v5456, %v5448
      %v6321 = vpack.c.b16 %v5465, %v5457
      %v6322 = vpack.c.b16 %v5466, %v5458
      %v6323 = vpack.c.b16 %v5467, %v5459
      %v6324 = vpack.c.b16 %v5468, %v5460
      %v6325 = vpack.c.b16 %v5469, %v5461
      %v6326 = vpack.c.b16 %v5470, %v5462
      %v6327 = vpack.c.b16 %v5471, %v5463
      %v6328 = vpack.c.b16 %v5472, %v5464
      %v6329 = vpack.c.b16 %v5481, %v5473
      %v6330 = vpack.c.b16 %v5482, %v5474
      %v6331 = vpack.c.b16 %v5483, %v5475
      %v6332 = vpack.c.b16 %v5484, %v5476
      %v6333 = vpack.c.b16 %v5485, %v5477
      %v6334 = vpack.c.b16 %v5486, %v5478
      %v6335 = vpack.c.b16 %v5487, %v5479
      %v6336 = vpack.c.b16 %v5488, %v5480
      %v6337 = vpack.c.b16 %v5497, %v5489
      %v6338 = vpack.c.b16 %v5498, %v5490
      %v6339 = vpack.c.b16 %v5499, %v5491
      %v6340 = vpack.c.b16 %v5500, %v5492
      %v6341 = vpack.c.b16 %v5501, %v5493
      %v6342 = vpack.c.b16 %v5502, %v5494
      %v6343 = vpack.c.b16 %v5503, %v5495
      %v6344 = vpack.c.b16 %v5504, %v5496
      %v6345 = vpack.c.b16 %v5513, %v5505
      %v6346 = vpack.c.b16 %v5514, %v5506
      %v6347 = vpack.c.b16 %v5515, %v5507
      %v6348 = vpack.c.b16 %v5516, %v5508
      %v6349 = vpack.c.b16 %v5517, %v5509
      %v6350 = vpack.c.b16 %v5518, %v5510
      %v6351 = vpack.c.b16 %v5519, %v5511
      %v6352 = vpack.c.b16 %v5520, %v5512
      %v6353 = vpack.c.b16 %v5529, %v5521
      %v6354 = vpack.c.b16 %v5530, %v5522
      %v6355 = vpack.c.b16 %v5531, %v5523
      %v6356 = vpack.c.b16 %v5532, %v5524
      %v6357 = vpack.c.b16 %v5533, %v5525
      %v6358 = vpack.c.b16 %v5534, %v5526
      %v6359 = vpack.c.b16 %v5535, %v5527
      %v6360 = vpack.c.b16 %v5536, %v5528
      %v6361 = vpack.c.b16 %v5545, %v5537
      %v6362 = vpack.c.b16 %v5546, %v5538
      %v6363 = vpack.c.b16 %v5547, %v5539
      %v6364 = vpack.c.b16 %v5548, %v5540
      %v6365 = vpack.c.b16 %v5549, %v5541
      %v6366 = vpack.c.b16 %v5550, %v5542
      %v6367 = vpack.c.b16 %v5551, %v5543
      %v6368 = vpack.c.b16 %v5552, %v5544
      %v6369 = vpack.c.b16 %v5561, %v5553
      %v6370 = vpack.c.b16 %v5562, %v5554
      %v6371 = vpack.c.b16 %v5563, %v5555
      %v6372 = vpack.c.b16 %v5564, %v5556
      %v6373 = vpack.c.b16 %v5565, %v5557
      %v6374 = vpack.c.b16 %v5566, %v5558
      %v6375 = vpack.c.b16 %v5567, %v5559
      %v6376 = vpack.c.b16 %v5568, %v5560
      %v6377 = vpack.c.b16 %v5577, %v5569
      %v6378 = vpack.c.b16 %v5578, %v5570
      %v6379 = vpack.c.b16 %v5579, %v5571
      %v6380 = vpack.c.b16 %v5580, %v5572
      %v6381 = vpack.c.b16 %v5581, %v5573
      %v6382 = vpack.c.b16 %v5582, %v5574
      %v6383 = vpack.c.b16 %v5583, %v5575
      %v6384 = vpack.c.b16 %v5584, %v5576
      %v6385 = vpack.c.b16 %v5593, %v5585
      %v6386 = vpack.c.b16 %v5594, %v5586
      %v6387 = vpack.c.b16 %v5595, %v5587
      %v6388 = vpack.c.b16 %v5596, %v5588
      %v6389 = vpack.c.b16 %v5597, %v5589
      %v6390 = vpack.c.b16 %v5598, %v5590
      %v6391 = vpack.c.b16 %v5599, %v5591
      %v6392 = vpack.c.b16 %v5600, %v5592
      %v6393 = vpack.c.b16 %v5609, %v5601
      %v6394 = vpack.c.b16 %v5610, %v5602
      %v6395 = vpack.c.b16 %v5611, %v5603
      %v6396 = vpack.c.b16 %v5612, %v5604
      %v6397 = vpack.c.b16 %v5613, %v5605
      %v6398 = vpack.c.b16 %v5614, %v5606
      %v6399 = vpack.c.b16 %v5615, %v5607
      %v6400 = vpack.c.b16 %v5616, %v5608
      %v6401 = vpack.c.b16 %v5625, %v5617
      %v6402 = vpack.c.b16 %v5626, %v5618
      %v6403 = vpack.c.b16 %v5627, %v5619
      %v6404 = vpack.c.b16 %v5628, %v5620
      %v6405 = vpack.c.b16 %v5629, %v5621
      %v6406 = vpack.c.b16 %v5630, %v5622
      %v6407 = vpack.c.b16 %v5631, %v5623
      %v6408 = vpack.c.b16 %v5632, %v5624
      %v6409 = vpack.c.b16 %v5641, %v5633
      %v6410 = vpack.c.b16 %v5642, %v5634
      %v6411 = vpack.c.b16 %v5643, %v5635
      %v6412 = vpack.c.b16 %v5644, %v5636
      %v6413 = vpack.c.b16 %v5645, %v5637
      %v6414 = vpack.c.b16 %v5646, %v5638
      %v6415 = vpack.c.b16 %v5647, %v5639
      %v6416 = vpack.c.b16 %v5648, %v5640
      %v6417 = vpack.c.b16 %v5657, %v5649
      %v6418 = vpack.c.b16 %v5658, %v5650
      %v6419 = vpack.c.b16 %v5659, %v5651
      %v6420 = vpack.c.b16 %v5660, %v5652
      %v6421 = vpack.c.b16 %v5661, %v5653
      %v6422 = vpack.c.b16 %v5662, %v5654
      %v6423 = vpack.c.b16 %v5663, %v5655
      %v6424 = vpack.c.b16 %v5664, %v5656
      %v6425 = vpack.c.b16 %v5673, %v5665
      %v6426 = vpack.c.b16 %v5674, %v5666
      %v6427 = vpack.c.b16 %v5675, %v5667
      %v6428 = vpack.c.b16 %v5676, %v5668
      %v6429 = vpack.c.b16 %v5677, %v5669
      %v6430 = vpack.c.b16 %v5678, %v5670
      %v6431 = vpack.c.b16 %v5679, %v5671
      %v6432 = vpack.c.b16 %v5680, %v5672
      %v6433 = vpack.c.b16 %v5689, %v5681
      %v6434 = vpack.c.b16 %v5690, %v5682
      %v6435 = vpack.c.b16 %v5691, %v5683
      %v6436 = vpack.c.b16 %v5692, %v5684
      %v6437 = vpack.c.b16 %v5693, %v5685
      %v6438 = vpack.c.b16 %v5694, %v5686
      %v6439 = vpack.c.b16 %v5695, %v5687
      %v6440 = vpack.c.b16 %v5696, %v5688
      %v6441 = vpack.c.b16 %v5705, %v5697
      %v6442 = vpack.c.b16 %v5706, %v5698
      %v6443 = vpack.c.b16 %v5707, %v5699
      %v6444 = vpack.c.b16 %v5708, %v5700
      %v6445 = vpack.c.b16 %v5709, %v5701
      %v6446 = vpack.c.b16 %v5710, %v5702
      %v6447 = vpack.c.b16 %v5711, %v5703
      %v6448 = vpack.c.b16 %v5712, %v5704
      %v6449 = vpack.c.b16 %v5721, %v5713
      %v6450 = vpack.c.b16 %v5722, %v5714
      %v6451 = vpack.c.b16 %v5723, %v5715
      %v6452 = vpack.c.b16 %v5724, %v5716
      %v6453 = vpack.c.b16 %v5725, %v5717
      %v6454 = vpack.c.b16 %v5726, %v5718
      %v6455 = vpack.c.b16 %v5727, %v5719
      %v6456 = vpack.c.b16 %v5728, %v5720
      %v6457 = vpack.c.b16 %v5737, %v5729
      %v6458 = vpack.c.b16 %v5738, %v5730
      %v6459 = vpack.c.b16 %v5739, %v5731
      %v6460 = vpack.c.b16 %v5740, %v5732
      %v6461 = vpack.c.b16 %v5741, %v5733
      %v6462 = vpack.c.b16 %v5742, %v5734
      %v6463 = vpack.c.b16 %v5743, %v5735
      %v6464 = vpack.c.b16 %v5744, %v5736
      %v6465 = vpack.c.b16 %v5753, %v5745
      %v6466 = vpack.c.b16 %v5754, %v5746
      %v6467 = vpack.c.b16 %v5755, %v5747
      %v6468 = vpack.c.b16 %v5756, %v5748
      %v6469 = vpack.c.b16 %v5757, %v5749
      %v6470 = vpack.c.b16 %v5758, %v5750
      %v6471 = vpack.c.b16 %v5759, %v5751
      %v6472 = vpack.c.b16 %v5760, %v5752
      %v6473 = vpack.c.b16 %v5769, %v5761
      %v6474 = vpack.c.b16 %v5770, %v5762
      %v6475 = vpack.c.b16 %v5771, %v5763
      %v6476 = vpack.c.b16 %v5772, %v5764
      %v6477 = vpack.c.b16 %v5773, %v5765
      %v6478 = vpack.c.b16 %v5774, %v5766
      %v6479 = vpack.c.b16 %v5775, %v5767
      %v6480 = vpack.c.b16 %v5776, %v5768
      %v6481 = vpack.c.b16 %v5785, %v5777
      %v6482 = vpack.c.b16 %v5786, %v5778
      %v6483 = vpack.c.b16 %v5787, %v5779
      %v6484 = vpack.c.b16 %v5788, %v5780
      %v6485 = vpack.c.b16 %v5789, %v5781
      %v6486 = vpack.c.b16 %v5790, %v5782
      %v6487 = vpack.c.b16 %v5791, %v5783
      %v6488 = vpack.c.b16 %v5792, %v5784
      %v6489 = vpack.c.b16 %v5801, %v5793
      %v6490 = vpack.c.b16 %v5802, %v5794
      %v6491 = vpack.c.b16 %v5803, %v5795
      %v6492 = vpack.c.b16 %v5804, %v5796
      %v6493 = vpack.c.b16 %v5805, %v5797
      %v6494 = vpack.c.b16 %v5806, %v5798
      %v6495 = vpack.c.b16 %v5807, %v5799
      %v6496 = vpack.c.b16 %v5808, %v5800
      %v6497 = vpack.c.b16 %v5817, %v5809
      %v6498 = vpack.c.b16 %v5818, %v5810
      %v6499 = vpack.c.b16 %v5819, %v5811
      %v6500 = vpack.c.b16 %v5820, %v5812
      %v6501 = vpack.c.b16 %v5821, %v5813
      %v6502 = vpack.c.b16 %v5822, %v5814
      %v6503 = vpack.c.b16 %v5823, %v5815
      %v6504 = vpack.c.b16 %v5824, %v5816
      %v6505 = vpack.c.b16 %v5833, %v5825
      %v6506 = vpack.c.b16 %v5834, %v5826
      %v6507 = vpack.c.b16 %v5835, %v5827
      %v6508 = vpack.c.b16 %v5836, %v5828
      %v6509 = vpack.c.b16 %v5837, %v5829
      %v6510 = vpack.c.b16 %v5838, %v5830
      %v6511 = vpack.c.b16 %v5839, %v5831
      %v6512 = vpack.c.b16 %v5840, %v5832
      %v6513 = vpack.c.b16 %v5849, %v5841
      %v6514 = vpack.c.b16 %v5850, %v5842
      %v6515 = vpack.c.b16 %v5851, %v5843
      %v6516 = vpack.c.b16 %v5852, %v5844
      %v6517 = vpack.c.b16 %v5853, %v5845
      %v6518 = vpack.c.b16 %v5854, %v5846
      %v6519 = vpack.c.b16 %v5855, %v5847
      %v6520 = vpack.c.b16 %v5856, %v5848
      %v6521 = vpack.c.b16 %v5865, %v5857
      %v6522 = vpack.c.b16 %v5866, %v5858
      %v6523 = vpack.c.b16 %v5867, %v5859
      %v6524 = vpack.c.b16 %v5868, %v5860
      %v6525 = vpack.c.b16 %v5869, %v5861
      %v6526 = vpack.c.b16 %v5870, %v5862
      %v6527 = vpack.c.b16 %v5871, %v5863
      %v6528 = vpack.c.b16 %v5872, %v5864
      %v6529 = vpack.c.b16 %v5881, %v5873
      %v6530 = vpack.c.b16 %v5882, %v5874
      %v6531 = vpack.c.b16 %v5883, %v5875
      %v6532 = vpack.c.b16 %v5884, %v5876
      %v6533 = vpack.c.b16 %v5885, %v5877
      %v6534 = vpack.c.b16 %v5886, %v5878
      %v6535 = vpack.c.b16 %v5887, %v5879
      %v6536 = vpack.c.b16 %v5888, %v5880
      %v6537 = vpack.c.b16 %v5897, %v5889
      %v6538 = vpack.c.b16 %v5898, %v5890
      %v6539 = vpack.c.b16 %v5899, %v5891
      %v6540 = vpack.c.b16 %v5900, %v5892
      %v6541 = vpack.c.b16 %v5901, %v5893
      %v6542 = vpack.c.b16 %v5902, %v5894
      %v6543 = vpack.c.b16 %v5903, %v5895
      %v6544 = vpack.c.b16 %v5904, %v5896
      %v6545 = vpack.c.b16 %v5913, %v5905
      %v6546 = vpack.c.b16 %v5914, %v5906
      %v6547 = vpack.c.b16 %v5915, %v5907
      %v6548 = vpack.c.b16 %v5916, %v5908
      %v6549 = vpack.c.b16 %v5917, %v5909
      %v6550 = vpack.c.b16 %v5918, %v5910
      %v6551 = vpack.c.b16 %v5919, %v5911
      %v6552 = vpack.c.b16 %v5920, %v5912
      %v6553 = vpack.c.b16 %v5929, %v5921
      %v6554 = vpack.c.b16 %v5930, %v5922
      %v6555 = vpack.c.b16 %v5931, %v5923
      %v6556 = vpack.c.b16 %v5932, %v5924
      %v6557 = vpack.c.b16 %v5933, %v5925
      %v6558 = vpack.c.b16 %v5934, %v5926
      %v6559 = vpack.c.b16 %v5935, %v5927
      %v6560 = vpack.c.b16 %v5936, %v5928
      %v6561 = vpack.c.b16 %v5945, %v5937
      %v6562 = vpack.c.b16 %v5946, %v5938
      %v6563 = vpack.c.b16 %v5947, %v5939
      %v6564 = vpack.c.b16 %v5948, %v5940
      %v6565 = vpack.c.b16 %v5949, %v5941
      %v6566 = vpack.c.b16 %v5950, %v5942
      %v6567 = vpack.c.b16 %v5951, %v5943
      %v6568 = vpack.c.b16 %v5952, %v5944
      %v6569 = vpack.c.b16 %v5961, %v5953
      %v6570 = vpack.c.b16 %v5962, %v5954
      %v6571 = vpack.c.b16 %v5963, %v5955
      %v6572 = vpack.c.b16 %v5964, %v5956
      %v6573 = vpack.c.b16 %v5965, %v5957
      %v6574 = vpack.c.b16 %v5966, %v5958
      %v6575 = vpack.c.b16 %v5967, %v5959
      %v6576 = vpack.c.b16 %v5968, %v5960
      %v6577 = vpack.c.b16 %v5977, %v5969
      %v6578 = vpack.c.b16 %v5978, %v5970
      %v6579 = vpack.c.b16 %v5979, %v5971
      %v6580 = vpack.c.b16 %v5980, %v5972
      %v6581 = vpack.c.b16 %v5981, %v5973
      %v6582 = vpack.c.b16 %v5982, %v5974
      %v6583 = vpack.c.b16 %v5983, %v5975
      %v6584 = vpack.c.b16 %v5984, %v5976
      %v6585 = vpack.c.b16 %v5993, %v5985
      %v6586 = vpack.c.b16 %v5994, %v5986
      %v6587 = vpack.c.b16 %v5995, %v5987
      %v6588 = vpack.c.b16 %v5996, %v5988
      %v6589 = vpack.c.b16 %v5997, %v5989
      %v6590 = vpack.c.b16 %v5998, %v5990
      %v6591 = vpack.c.b16 %v5999, %v5991
      %v6592 = vpack.c.b16 %v6000, %v5992
      %v6593 = vpack.c.b16 %v6009, %v6001
      %v6594 = vpack.c.b16 %v6010, %v6002
      %v6595 = vpack.c.b16 %v6011, %v6003
      %v6596 = vpack.c.b16 %v6012, %v6004
      %v6597 = vpack.c.b16 %v6013, %v6005
      %v6598 = vpack.c.b16 %v6014, %v6006
      %v6599 = vpack.c.b16 %v6015, %v6007
      %v6600 = vpack.c.b16 %v6016, %v6008
      %v6601 = vpack.c.b16 %v6025, %v6017
      %v6602 = vpack.c.b16 %v6026, %v6018
      %v6603 = vpack.c.b16 %v6027, %v6019
      %v6604 = vpack.c.b16 %v6028, %v6020
      %v6605 = vpack.c.b16 %v6029, %v6021
      %v6606 = vpack.c.b16 %v6030, %v6022
      %v6607 = vpack.c.b16 %v6031, %v6023
      %v6608 = vpack.c.b16 %v6032, %v6024
      %v6609 = vpack.c.b16 %v6041, %v6033
      %v6610 = vpack.c.b16 %v6042, %v6034
      %v6611 = vpack.c.b16 %v6043, %v6035
      %v6612 = vpack.c.b16 %v6044, %v6036
      %v6613 = vpack.c.b16 %v6045, %v6037
      %v6614 = vpack.c.b16 %v6046, %v6038
      %v6615 = vpack.c.b16 %v6047, %v6039
      %v6616 = vpack.c.b16 %v6048, %v6040
      %v6617 = vpack.c.b16 %v6057, %v6049
      %v6618 = vpack.c.b16 %v6058, %v6050
      %v6619 = vpack.c.b16 %v6059, %v6051
      %v6620 = vpack.c.b16 %v6060, %v6052
      %v6621 = vpack.c.b16 %v6061, %v6053
      %v6622 = vpack.c.b16 %v6062, %v6054
      %v6623 = vpack.c.b16 %v6063, %v6055
      %v6624 = vpack.c.b16 %v6064, %v6056
      %v6625 = vpack.c.b16 %v6073, %v6065
      %v6626 = vpack.c.b16 %v6074, %v6066
      %v6627 = vpack.c.b16 %v6075, %v6067
      %v6628 = vpack.c.b16 %v6076, %v6068
      %v6629 = vpack.c.b16 %v6077, %v6069
      %v6630 = vpack.c.b16 %v6078, %v6070
      %v6631 = vpack.c.b16 %v6079, %v6071
      %v6632 = vpack.c.b16 %v6080, %v6072
      %v6633 = vpack.c.b16 %v6089, %v6081
      %v6634 = vpack.c.b16 %v6090, %v6082
      %v6635 = vpack.c.b16 %v6091, %v6083
      %v6636 = vpack.c.b16 %v6092, %v6084
      %v6637 = vpack.c.b16 %v6093, %v6085
      %v6638 = vpack.c.b16 %v6094, %v6086
      %v6639 = vpack.c.b16 %v6095, %v6087
      %v6640 = vpack.c.b16 %v6096, %v6088
      %v6641 = vpack.c.b16 %v6105, %v6097
      %v6642 = vpack.c.b16 %v6106, %v6098
      %v6643 = vpack.c.b16 %v6107, %v6099
      %v6644 = vpack.c.b16 %v6108, %v6100
      %v6645 = vpack.c.b16 %v6109, %v6101
      %v6646 = vpack.c.b16 %v6110, %v6102
      %v6647 = vpack.c.b16 %v6111, %v6103
      %v6648 = vpack.c.b16 %v6112, %v6104
      %v6649 = vpack.c.b16 %v6121, %v6113
      %v6650 = vpack.c.b16 %v6122, %v6114
      %v6651 = vpack.c.b16 %v6123, %v6115
      %v6652 = vpack.c.b16 %v6124, %v6116
      %v6653 = vpack.c.b16 %v6125, %v6117
      %v6654 = vpack.c.b16 %v6126, %v6118
      %v6655 = vpack.c.b16 %v6127, %v6119
      %v6656 = vpack.c.b16 %v6128, %v6120
      %v6657 = vpack.c.b16 %v6137, %v6129
      %v6658 = vpack.c.b16 %v6138, %v6130
      %v6659 = vpack.c.b16 %v6139, %v6131
      %v6660 = vpack.c.b16 %v6140, %v6132
      %v6661 = vpack.c.b16 %v6141, %v6133
      %v6662 = vpack.c.b16 %v6142, %v6134
      %v6663 = vpack.c.b16 %v6143, %v6135
      %v6664 = vpack.c.b16 %v6144, %v6136
      %v6665 = vpack.c.b16 %v6153, %v6145
      %v6666 = vpack.c.b16 %v6154, %v6146
      %v6667 = vpack.c.b16 %v6155, %v6147
      %v6668 = vpack.c.b16 %v6156, %v6148
      %v6669 = vpack.c.b16 %v6157, %v6149
      %v6670 = vpack.c.b16 %v6158, %v6150
      %v6671 = vpack.c.b16 %v6159, %v6151
      %v6672 = vpack.c.b16 %v6160, %v6152
      %7185 = vmatprep.subr.bf16.mxu0 %v6218
      %7186 = vmatpush1.bf16.msra.mxu0 %v6217
      %7187 = vmatprep.subr.bf16.mxu0 %v6210
      %7188 = vmatpush1.bf16.msra.mxu0 %v6209
      %7189 = vmatprep.subr.bf16.mxu0 %v6202
      %7190 = vmatpush1.bf16.msra.mxu0 %v6201
      %7191 = vmatprep.subr.bf16.mxu0 %v6194
      %7192 = vmatpush1.bf16.msra.mxu0 %v6193
      %7193 = vmatprep.subr.bf16.mxu0 %v6186
      %7194 = vmatpush1.bf16.msra.mxu0 %v6185
      %7195 = vmatprep.subr.bf16.mxu0 %v6178
      %7196 = vmatpush1.bf16.msra.mxu0 %v6177
      %7197 = vmatprep.subr.bf16.mxu0 %v6170
      %7198 = vmatpush1.bf16.msra.mxu0 %v6169
      %7199 = vmatprep.subr.bf16.mxu0 %v6162
      %7200 = vmatpush1.bf16.msra.mxu0 %v6161
      %7201 = vmatprep.subr.bf16.mxu0 %v6282
      %7202 = vmatpush2.bf16.msra.mxu0 %v6281
      %7203 = vmatprep.subr.bf16.mxu0 %v6274
      %7204 = vmatpush2.bf16.msra.mxu0 %v6273
      %7205 = vmatprep.subr.bf16.mxu0 %v6266
      %7206 = vmatpush2.bf16.msra.mxu0 %v6265
      %7207 = vmatprep.subr.bf16.mxu0 %v6258
      %7208 = vmatpush2.bf16.msra.mxu0 %v6257
      %7209 = vmatprep.subr.bf16.mxu0 %v6250
      %7210 = vmatpush2.bf16.msra.mxu0 %v6249
      %7211 = vmatprep.subr.bf16.mxu0 %v6242
      %7212 = vmatpush2.bf16.msra.mxu0 %v6241
      %7213 = vmatprep.subr.bf16.mxu0 %v6234
      %7214 = vmatpush2.bf16.msra.mxu0 %v6233
      %7215 = vmatprep.subr.bf16.mxu0 %v6226
      %7216 = vmatpush2.bf16.msra.mxu0 %v6225
      %7217 = vmatprep.mubr.bf16.mxu0 %v4064
      %7218 = vmatmul.mubr.bf16.gmra.mxu0 %v4063
      %v7219 = vpop.f32.mrf.mxu0
      %v7220 = vadd.f32 %v4588, %v7219
      %v7221 = vpop.f32.mrf.mxu0
      %v7222 = vadd.f32 %v4592, %v7221
      %v7223 = vpop.f32.mrf.mxu0
      %v7224 = vpop.f32.mrf.mxu0
      %7225 = vdwg.mxu0
      %7226 = vmatprep.subr.bf16.mxu0 %v6346
      %7227 = vmatpush1.bf16.msra.mxu0 %v6345
      %7228 = vmatprep.subr.bf16.mxu0 %v6338
      %7229 = vmatpush1.bf16.msra.mxu0 %v6337
      %7230 = vmatprep.subr.bf16.mxu0 %v6330
      %7231 = vmatpush1.bf16.msra.mxu0 %v6329
      %7232 = vmatprep.subr.bf16.mxu0 %v6322
      %7233 = vmatpush1.bf16.msra.mxu0 %v6321
      %7234 = vmatprep.subr.bf16.mxu0 %v6314
      %7235 = vmatpush1.bf16.msra.mxu0 %v6313
      %7236 = vmatprep.subr.bf16.mxu0 %v6306
      %7237 = vmatpush1.bf16.msra.mxu0 %v6305
      %7238 = vmatprep.subr.bf16.mxu0 %v6298
      %7239 = vmatpush1.bf16.msra.mxu0 %v6297
      %7240 = vmatprep.subr.bf16.mxu0 %v6290
      %7241 = vmatpush1.bf16.msra.mxu0 %v6289
      %7242 = vmatprep.subr.bf16.mxu0 %v6410
      %7243 = vmatpush2.bf16.msra.mxu0 %v6409
      %7244 = vmatprep.subr.bf16.mxu0 %v6402
      %7245 = vmatpush2.bf16.msra.mxu0 %v6401
      %7246 = vmatprep.subr.bf16.mxu0 %v6394
      %7247 = vmatpush2.bf16.msra.mxu0 %v6393
      %7248 = vmatprep.subr.bf16.mxu0 %v6386
      %7249 = vmatpush2.bf16.msra.mxu0 %v6385
      %7250 = vmatprep.subr.bf16.mxu0 %v6378
      %7251 = vmatpush2.bf16.msra.mxu0 %v6377
      %7252 = vmatprep.subr.bf16.mxu0 %v6370
      %7253 = vmatpush2.bf16.msra.mxu0 %v6369
      %7254 = vmatprep.subr.bf16.mxu0 %v6362
      %7255 = vmatpush2.bf16.msra.mxu0 %v6361
      %7256 = vmatprep.subr.bf16.mxu0 %v6354
      %7257 = vmatpush2.bf16.msra.mxu0 %v6353
      %7258 = vmatprep.mubr.bf16.mxu0 %v4066
      %7259 = vmatmul.mubr.bf16.gmra.mxu0 %v4065
      %v7260 = vpop.f32.mrf.mxu0
      %v7261 = vadd.f32 %v7220, %v7260
      %v7262 = vpop.f32.mrf.mxu0
      %v7263 = vadd.f32 %v7222, %v7262
      %v7264 = vpop.f32.mrf.mxu0
      %v7265 = vpop.f32.mrf.mxu0
      %7266 = vdwg.mxu0
      %7267 = vmatprep.subr.bf16.mxu0 %v6474
      %7268 = vmatpush1.bf16.msra.mxu0 %v6473
      %7269 = vmatprep.subr.bf16.mxu0 %v6466
      %7270 = vmatpush1.bf16.msra.mxu0 %v6465
      %7271 = vmatprep.subr.bf16.mxu0 %v6458
      %7272 = vmatpush1.bf16.msra.mxu0 %v6457
      %7273 = vmatprep.subr.bf16.mxu0 %v6450
      %7274 = vmatpush1.bf16.msra.mxu0 %v6449
      %7275 = vmatprep.subr.bf16.mxu0 %v6442
      %7276 = vmatpush1.bf16.msra.mxu0 %v6441
      %7277 = vmatprep.subr.bf16.mxu0 %v6434
      %7278 = vmatpush1.bf16.msra.mxu0 %v6433
      %7279 = vmatprep.subr.bf16.mxu0 %v6426
      %7280 = vmatpush1.bf16.msra.mxu0 %v6425
      %7281 = vmatprep.subr.bf16.mxu0 %v6418
      %7282 = vmatpush1.bf16.msra.mxu0 %v6417
      %7283 = vmatprep.subr.bf16.mxu0 %v6538
      %7284 = vmatpush2.bf16.msra.mxu0 %v6537
      %7285 = vmatprep.subr.bf16.mxu0 %v6530
      %7286 = vmatpush2.bf16.msra.mxu0 %v6529
      %7287 = vmatprep.subr.bf16.mxu0 %v6522
      %7288 = vmatpush2.bf16.msra.mxu0 %v6521
      %7289 = vmatprep.subr.bf16.mxu0 %v6514
      %7290 = vmatpush2.bf16.msra.mxu0 %v6513
      %7291 = vmatprep.subr.bf16.mxu0 %v6506
      %7292 = vmatpush2.bf16.msra.mxu0 %v6505
      %7293 = vmatprep.subr.bf16.mxu0 %v6498
      %7294 = vmatpush2.bf16.msra.mxu0 %v6497
      %7295 = vmatprep.subr.bf16.mxu0 %v6490
      %7296 = vmatpush2.bf16.msra.mxu0 %v6489
      %7297 = vmatprep.subr.bf16.mxu0 %v6482
      %7298 = vmatpush2.bf16.msra.mxu0 %v6481
      %7299 = vmatprep.mubr.bf16.mxu0 %v4068
      %7300 = vmatmul.mubr.bf16.gmra.mxu0 %v4067
      %v7301 = vpop.f32.mrf.mxu0
      %v7302 = vadd.f32 %v7261, %v7301
      %v7303 = vpop.f32.mrf.mxu0
      %v7304 = vadd.f32 %v7263, %v7303
      %v7305 = vpop.f32.mrf.mxu0
      %v7306 = vpop.f32.mrf.mxu0
      %7307 = vdwg.mxu0
      %7308 = vmatprep.subr.bf16.mxu0 %v6602
      %7309 = vmatpush1.bf16.msra.mxu0 %v6601
      %7310 = vmatprep.subr.bf16.mxu0 %v6594
      %7311 = vmatpush1.bf16.msra.mxu0 %v6593
      %7312 = vmatprep.subr.bf16.mxu0 %v6586
      %7313 = vmatpush1.bf16.msra.mxu0 %v6585
      %7314 = vmatprep.subr.bf16.mxu0 %v6578
      %7315 = vmatpush1.bf16.msra.mxu0 %v6577
      %7316 = vmatprep.subr.bf16.mxu0 %v6570
      %7317 = vmatpush1.bf16.msra.mxu0 %v6569
      %7318 = vmatprep.subr.bf16.mxu0 %v6562
      %7319 = vmatpush1.bf16.msra.mxu0 %v6561
      %7320 = vmatprep.subr.bf16.mxu0 %v6554
      %7321 = vmatpush1.bf16.msra.mxu0 %v6553
      %7322 = vmatprep.subr.bf16.mxu0 %v6546
      %7323 = vmatpush1.bf16.msra.mxu0 %v6545
      %7324 = vmatprep.subr.bf16.mxu0 %v6666
      %7325 = vmatpush2.bf16.msra.mxu0 %v6665
      %7326 = vmatprep.subr.bf16.mxu0 %v6658
      %7327 = vmatpush2.bf16.msra.mxu0 %v6657
      %7328 = vmatprep.subr.bf16.mxu0 %v6650
      %7329 = vmatpush2.bf16.msra.mxu0 %v6649
      %7330 = vmatprep.subr.bf16.mxu0 %v6642
      %7331 = vmatpush2.bf16.msra.mxu0 %v6641
      %7332 = vmatprep.subr.bf16.mxu0 %v6634
      %7333 = vmatpush2.bf16.msra.mxu0 %v6633
      %7334 = vmatprep.subr.bf16.mxu0 %v6626
      %7335 = vmatpush2.bf16.msra.mxu0 %v6625
      %7336 = vmatprep.subr.bf16.mxu0 %v6618
      %7337 = vmatpush2.bf16.msra.mxu0 %v6617
      %7338 = vmatprep.subr.bf16.mxu0 %v6610
      %7339 = vmatpush2.bf16.msra.mxu0 %v6609
      %7340 = vmatprep.mubr.bf16.mxu0 %v4070
      %7341 = vmatmul.mubr.bf16.gmra.mxu0 %v4069
      %v7342 = vpop.f32.mrf.mxu0
      %v7343 = vadd.f32 %v7302, %v7342
      %v7344 = vpop.f32.mrf.mxu0
      %v7345 = vadd.f32 %v7304, %v7344
      %v7346 = vpop.f32.mrf.mxu0
      %v7347 = vpop.f32.mrf.mxu0
      %7348 = vdwg.mxu0
      %7349 = vmatprep.subr.bf16.mxu0 %v6220
      %7350 = vmatpush1.bf16.msra.mxu0 %v6219
      %7351 = vmatprep.subr.bf16.mxu0 %v6212
      %7352 = vmatpush1.bf16.msra.mxu0 %v6211
      %7353 = vmatprep.subr.bf16.mxu0 %v6204
      %7354 = vmatpush1.bf16.msra.mxu0 %v6203
      %7355 = vmatprep.subr.bf16.mxu0 %v6196
      %7356 = vmatpush1.bf16.msra.mxu0 %v6195
      %7357 = vmatprep.subr.bf16.mxu0 %v6188
      %7358 = vmatpush1.bf16.msra.mxu0 %v6187
      %7359 = vmatprep.subr.bf16.mxu0 %v6180
      %7360 = vmatpush1.bf16.msra.mxu0 %v6179
      %7361 = vmatprep.subr.bf16.mxu0 %v6172
      %7362 = vmatpush1.bf16.msra.mxu0 %v6171
      %7363 = vmatprep.subr.bf16.mxu0 %v6164
      %7364 = vmatpush1.bf16.msra.mxu0 %v6163
      %7365 = vmatprep.subr.bf16.mxu0 %v6284
      %7366 = vmatpush2.bf16.msra.mxu0 %v6283
      %7367 = vmatprep.subr.bf16.mxu0 %v6276
      %7368 = vmatpush2.bf16.msra.mxu0 %v6275
      %7369 = vmatprep.subr.bf16.mxu0 %v6268
      %7370 = vmatpush2.bf16.msra.mxu0 %v6267
      %7371 = vmatprep.subr.bf16.mxu0 %v6260
      %7372 = vmatpush2.bf16.msra.mxu0 %v6259
      %7373 = vmatprep.subr.bf16.mxu0 %v6252
      %7374 = vmatpush2.bf16.msra.mxu0 %v6251
      %7375 = vmatprep.subr.bf16.mxu0 %v6244
      %7376 = vmatpush2.bf16.msra.mxu0 %v6243
      %7377 = vmatprep.subr.bf16.mxu0 %v6236
      %7378 = vmatpush2.bf16.msra.mxu0 %v6235
      %7379 = vmatprep.subr.bf16.mxu0 %v6228
      %7380 = vmatpush2.bf16.msra.mxu0 %v6227
      %7381 = vmatprep.mubr.bf16.mxu0 %v4064
      %7382 = vmatmul.mubr.bf16.gmra.mxu0 %v4063
      %v7383 = vpop.f32.mrf.mxu0
      %v7384 = vadd.f32 %v4596, %v7383
      %v7385 = vpop.f32.mrf.mxu0
      %v7386 = vadd.f32 %v4600, %v7385
      %v7387 = vpop.f32.mrf.mxu0
      %v7388 = vpop.f32.mrf.mxu0
      %7389 = vdwg.mxu0
      %7390 = vmatprep.subr.bf16.mxu0 %v6348
      %7391 = vmatpush1.bf16.msra.mxu0 %v6347
      %7392 = vmatprep.subr.bf16.mxu0 %v6340
      %7393 = vmatpush1.bf16.msra.mxu0 %v6339
      %7394 = vmatprep.subr.bf16.mxu0 %v6332
      %7395 = vmatpush1.bf16.msra.mxu0 %v6331
      %7396 = vmatprep.subr.bf16.mxu0 %v6324
      %7397 = vmatpush1.bf16.msra.mxu0 %v6323
      %7398 = vmatprep.subr.bf16.mxu0 %v6316
      %7399 = vmatpush1.bf16.msra.mxu0 %v6315
      %7400 = vmatprep.subr.bf16.mxu0 %v6308
      %7401 = vmatpush1.bf16.msra.mxu0 %v6307
      %7402 = vmatprep.subr.bf16.mxu0 %v6300
      %7403 = vmatpush1.bf16.msra.mxu0 %v6299
      %7404 = vmatprep.subr.bf16.mxu0 %v6292
      %7405 = vmatpush1.bf16.msra.mxu0 %v6291
      %7406 = vmatprep.subr.bf16.mxu0 %v6412
      %7407 = vmatpush2.bf16.msra.mxu0 %v6411
      %7408 = vmatprep.subr.bf16.mxu0 %v6404
      %7409 = vmatpush2.bf16.msra.mxu0 %v6403
      %7410 = vmatprep.subr.bf16.mxu0 %v6396
      %7411 = vmatpush2.bf16.msra.mxu0 %v6395
      %7412 = vmatprep.subr.bf16.mxu0 %v6388
      %7413 = vmatpush2.bf16.msra.mxu0 %v6387
      %7414 = vmatprep.subr.bf16.mxu0 %v6380
      %7415 = vmatpush2.bf16.msra.mxu0 %v6379
      %7416 = vmatprep.subr.bf16.mxu0 %v6372
      %7417 = vmatpush2.bf16.msra.mxu0 %v6371
      %7418 = vmatprep.subr.bf16.mxu0 %v6364
      %7419 = vmatpush2.bf16.msra.mxu0 %v6363
      %7420 = vmatprep.subr.bf16.mxu0 %v6356
      %7421 = vmatpush2.bf16.msra.mxu0 %v6355
      %7422 = vmatprep.mubr.bf16.mxu0 %v4066
      %7423 = vmatmul.mubr.bf16.gmra.mxu0 %v4065
      %v7424 = vpop.f32.mrf.mxu0
      %v7425 = vadd.f32 %v7384, %v7424
      %v7426 = vpop.f32.mrf.mxu0
      %v7427 = vadd.f32 %v7386, %v7426
      %v7428 = vpop.f32.mrf.mxu0
      %v7429 = vpop.f32.mrf.mxu0
      %7430 = vdwg.mxu0
      %7431 = vmatprep.subr.bf16.mxu0 %v6476
      %7432 = vmatpush1.bf16.msra.mxu0 %v6475
      %7433 = vmatprep.subr.bf16.mxu0 %v6468
      %7434 = vmatpush1.bf16.msra.mxu0 %v6467
      %7435 = vmatprep.subr.bf16.mxu0 %v6460
      %7436 = vmatpush1.bf16.msra.mxu0 %v6459
      %7437 = vmatprep.subr.bf16.mxu0 %v6452
      %7438 = vmatpush1.bf16.msra.mxu0 %v6451
      %7439 = vmatprep.subr.bf16.mxu0 %v6444
      %7440 = vmatpush1.bf16.msra.mxu0 %v6443
      %7441 = vmatprep.subr.bf16.mxu0 %v6436
      %7442 = vmatpush1.bf16.msra.mxu0 %v6435
      %7443 = vmatprep.subr.bf16.mxu0 %v6428
      %7444 = vmatpush1.bf16.msra.mxu0 %v6427
      %7445 = vmatprep.subr.bf16.mxu0 %v6420
      %7446 = vmatpush1.bf16.msra.mxu0 %v6419
      %7447 = vmatprep.subr.bf16.mxu0 %v6540
      %7448 = vmatpush2.bf16.msra.mxu0 %v6539
      %7449 = vmatprep.subr.bf16.mxu0 %v6532
      %7450 = vmatpush2.bf16.msra.mxu0 %v6531
      %7451 = vmatprep.subr.bf16.mxu0 %v6524
      %7452 = vmatpush2.bf16.msra.mxu0 %v6523
      %7453 = vmatprep.subr.bf16.mxu0 %v6516
      %7454 = vmatpush2.bf16.msra.mxu0 %v6515
      %7455 = vmatprep.subr.bf16.mxu0 %v6508
      %7456 = vmatpush2.bf16.msra.mxu0 %v6507
      %7457 = vmatprep.subr.bf16.mxu0 %v6500
      %7458 = vmatpush2.bf16.msra.mxu0 %v6499
      %7459 = vmatprep.subr.bf16.mxu0 %v6492
      %7460 = vmatpush2.bf16.msra.mxu0 %v6491
      %7461 = vmatprep.subr.bf16.mxu0 %v6484
      %7462 = vmatpush2.bf16.msra.mxu0 %v6483
      %7463 = vmatprep.mubr.bf16.mxu0 %v4068
      %7464 = vmatmul.mubr.bf16.gmra.mxu0 %v4067
      %v7465 = vpop.f32.mrf.mxu0
      %v7466 = vadd.f32 %v7425, %v7465
      %v7467 = vpop.f32.mrf.mxu0
      %v7468 = vadd.f32 %v7427, %v7467
      %v7469 = vpop.f32.mrf.mxu0
      %v7470 = vpop.f32.mrf.mxu0
      %7471 = vdwg.mxu0
      %7472 = vmatprep.subr.bf16.mxu0 %v6604
      %7473 = vmatpush1.bf16.msra.mxu0 %v6603
      %7474 = vmatprep.subr.bf16.mxu0 %v6596
      %7475 = vmatpush1.bf16.msra.mxu0 %v6595
      %7476 = vmatprep.subr.bf16.mxu0 %v6588
      %7477 = vmatpush1.bf16.msra.mxu0 %v6587
      %7478 = vmatprep.subr.bf16.mxu0 %v6580
      %7479 = vmatpush1.bf16.msra.mxu0 %v6579
      %7480 = vmatprep.subr.bf16.mxu0 %v6572
      %7481 = vmatpush1.bf16.msra.mxu0 %v6571
      %7482 = vmatprep.subr.bf16.mxu0 %v6564
      %7483 = vmatpush1.bf16.msra.mxu0 %v6563
      %7484 = vmatprep.subr.bf16.mxu0 %v6556
      %7485 = vmatpush1.bf16.msra.mxu0 %v6555
      %7486 = vmatprep.subr.bf16.mxu0 %v6548
      %7487 = vmatpush1.bf16.msra.mxu0 %v6547
      %7488 = vmatprep.subr.bf16.mxu0 %v6668
      %7489 = vmatpush2.bf16.msra.mxu0 %v6667
      %7490 = vmatprep.subr.bf16.mxu0 %v6660
      %7491 = vmatpush2.bf16.msra.mxu0 %v6659
      %7492 = vmatprep.subr.bf16.mxu0 %v6652
      %7493 = vmatpush2.bf16.msra.mxu0 %v6651
      %7494 = vmatprep.subr.bf16.mxu0 %v6644
      %7495 = vmatpush2.bf16.msra.mxu0 %v6643
      %7496 = vmatprep.subr.bf16.mxu0 %v6636
      %7497 = vmatpush2.bf16.msra.mxu0 %v6635
      %7498 = vmatprep.subr.bf16.mxu0 %v6628
      %7499 = vmatpush2.bf16.msra.mxu0 %v6627
      %7500 = vmatprep.subr.bf16.mxu0 %v6620
      %7501 = vmatpush2.bf16.msra.mxu0 %v6619
      %7502 = vmatprep.subr.bf16.mxu0 %v6612
      %7503 = vmatpush2.bf16.msra.mxu0 %v6611
      %7504 = vmatprep.mubr.bf16.mxu0 %v4070
      %7505 = vmatmul.mubr.bf16.gmra.mxu0 %v4069
      %v7506 = vpop.f32.mrf.mxu0
      %v7507 = vadd.f32 %v7466, %v7506
      %v7508 = vpop.f32.mrf.mxu0
      %v7509 = vadd.f32 %v7468, %v7508
      %v7510 = vpop.f32.mrf.mxu0
      %v7511 = vpop.f32.mrf.mxu0
      %7512 = vdwg.mxu0
      %7513 = vmatprep.subr.bf16.mxu0 %v6222
      %7514 = vmatpush1.bf16.msra.mxu0 %v6221
      %7515 = vmatprep.subr.bf16.mxu0 %v6214
      %7516 = vmatpush1.bf16.msra.mxu0 %v6213
      %7517 = vmatprep.subr.bf16.mxu0 %v6206
      %7518 = vmatpush1.bf16.msra.mxu0 %v6205
      %7519 = vmatprep.subr.bf16.mxu0 %v6198
      %7520 = vmatpush1.bf16.msra.mxu0 %v6197
      %7521 = vmatprep.subr.bf16.mxu0 %v6190
      %7522 = vmatpush1.bf16.msra.mxu0 %v6189
      %7523 = vmatprep.subr.bf16.mxu0 %v6182
      %7524 = vmatpush1.bf16.msra.mxu0 %v6181
      %7525 = vmatprep.subr.bf16.mxu0 %v6174
      %7526 = vmatpush1.bf16.msra.mxu0 %v6173
      %7527 = vmatprep.subr.bf16.mxu0 %v6166
      %7528 = vmatpush1.bf16.msra.mxu0 %v6165
      %7529 = vmatprep.subr.bf16.mxu0 %v6286
      %7530 = vmatpush2.bf16.msra.mxu0 %v6285
      %7531 = vmatprep.subr.bf16.mxu0 %v6278
      %7532 = vmatpush2.bf16.msra.mxu0 %v6277
      %7533 = vmatprep.subr.bf16.mxu0 %v6270
      %7534 = vmatpush2.bf16.msra.mxu0 %v6269
      %7535 = vmatprep.subr.bf16.mxu0 %v6262
      %7536 = vmatpush2.bf16.msra.mxu0 %v6261
      %7537 = vmatprep.subr.bf16.mxu0 %v6254
      %7538 = vmatpush2.bf16.msra.mxu0 %v6253
      %7539 = vmatprep.subr.bf16.mxu0 %v6246
      %7540 = vmatpush2.bf16.msra.mxu0 %v6245
      %7541 = vmatprep.subr.bf16.mxu0 %v6238
      %7542 = vmatpush2.bf16.msra.mxu0 %v6237
      %7543 = vmatprep.subr.bf16.mxu0 %v6230
      %7544 = vmatpush2.bf16.msra.mxu0 %v6229
      %7545 = vmatprep.mubr.bf16.mxu0 %v4064
      %7546 = vmatmul.mubr.bf16.gmra.mxu0 %v4063
      %v7547 = vpop.f32.mrf.mxu0
      %v7548 = vadd.f32 %v4604, %v7547
      %v7549 = vpop.f32.mrf.mxu0
      %v7550 = vadd.f32 %v4608, %v7549
      %v7551 = vpop.f32.mrf.mxu0
      %v7552 = vpop.f32.mrf.mxu0
      %7553 = vdwg.mxu0
      %7554 = vmatprep.subr.bf16.mxu0 %v6350
      %7555 = vmatpush1.bf16.msra.mxu0 %v6349
      %7556 = vmatprep.subr.bf16.mxu0 %v6342
      %7557 = vmatpush1.bf16.msra.mxu0 %v6341
      %7558 = vmatprep.subr.bf16.mxu0 %v6334
      %7559 = vmatpush1.bf16.msra.mxu0 %v6333
      %7560 = vmatprep.subr.bf16.mxu0 %v6326
      %7561 = vmatpush1.bf16.msra.mxu0 %v6325
      %7562 = vmatprep.subr.bf16.mxu0 %v6318
      %7563 = vmatpush1.bf16.msra.mxu0 %v6317
      %7564 = vmatprep.subr.bf16.mxu0 %v6310
      %7565 = vmatpush1.bf16.msra.mxu0 %v6309
      %7566 = vmatprep.subr.bf16.mxu0 %v6302
      %7567 = vmatpush1.bf16.msra.mxu0 %v6301
      %7568 = vmatprep.subr.bf16.mxu0 %v6294
      %7569 = vmatpush1.bf16.msra.mxu0 %v6293
      %7570 = vmatprep.subr.bf16.mxu0 %v6414
      %7571 = vmatpush2.bf16.msra.mxu0 %v6413
      %7572 = vmatprep.subr.bf16.mxu0 %v6406
      %7573 = vmatpush2.bf16.msra.mxu0 %v6405
      %7574 = vmatprep.subr.bf16.mxu0 %v6398
      %7575 = vmatpush2.bf16.msra.mxu0 %v6397
      %7576 = vmatprep.subr.bf16.mxu0 %v6390
      %7577 = vmatpush2.bf16.msra.mxu0 %v6389
      %7578 = vmatprep.subr.bf16.mxu0 %v6382
      %7579 = vmatpush2.bf16.msra.mxu0 %v6381
      %7580 = vmatprep.subr.bf16.mxu0 %v6374
      %7581 = vmatpush2.bf16.msra.mxu0 %v6373
      %7582 = vmatprep.subr.bf16.mxu0 %v6366
      %7583 = vmatpush2.bf16.msra.mxu0 %v6365
      %7584 = vmatprep.subr.bf16.mxu0 %v6358
      %7585 = vmatpush2.bf16.msra.mxu0 %v6357
      %7586 = vmatprep.mubr.bf16.mxu0 %v4066
      %7587 = vmatmul.mubr.bf16.gmra.mxu0 %v4065
      %v7588 = vpop.f32.mrf.mxu0
      %v7589 = vadd.f32 %v7548, %v7588
      %v7590 = vpop.f32.mrf.mxu0
      %v7591 = vadd.f32 %v7550, %v7590
      %v7592 = vpop.f32.mrf.mxu0
      %v7593 = vpop.f32.mrf.mxu0
      %7594 = vdwg.mxu0
      %7595 = vmatprep.subr.bf16.mxu0 %v6478
      %7596 = vmatpush1.bf16.msra.mxu0 %v6477
      %7597 = vmatprep.subr.bf16.mxu0 %v6470
      %7598 = vmatpush1.bf16.msra.mxu0 %v6469
      %7599 = vmatprep.subr.bf16.mxu0 %v6462
      %7600 = vmatpush1.bf16.msra.mxu0 %v6461
      %7601 = vmatprep.subr.bf16.mxu0 %v6454
      %7602 = vmatpush1.bf16.msra.mxu0 %v6453
      %7603 = vmatprep.subr.bf16.mxu0 %v6446
      %7604 = vmatpush1.bf16.msra.mxu0 %v6445
      %7605 = vmatprep.subr.bf16.mxu0 %v6438
      %7606 = vmatpush1.bf16.msra.mxu0 %v6437
      %7607 = vmatprep.subr.bf16.mxu0 %v6430
      %7608 = vmatpush1.bf16.msra.mxu0 %v6429
      %7609 = vmatprep.subr.bf16.mxu0 %v6422
      %7610 = vmatpush1.bf16.msra.mxu0 %v6421
      %7611 = vmatprep.subr.bf16.mxu0 %v6542
      %7612 = vmatpush2.bf16.msra.mxu0 %v6541
      %7613 = vmatprep.subr.bf16.mxu0 %v6534
      %7614 = vmatpush2.bf16.msra.mxu0 %v6533
      %7615 = vmatprep.subr.bf16.mxu0 %v6526
      %7616 = vmatpush2.bf16.msra.mxu0 %v6525
      %7617 = vmatprep.subr.bf16.mxu0 %v6518
      %7618 = vmatpush2.bf16.msra.mxu0 %v6517
      %7619 = vmatprep.subr.bf16.mxu0 %v6510
      %7620 = vmatpush2.bf16.msra.mxu0 %v6509
      %7621 = vmatprep.subr.bf16.mxu0 %v6502
      %7622 = vmatpush2.bf16.msra.mxu0 %v6501
      %7623 = vmatprep.subr.bf16.mxu0 %v6494
      %7624 = vmatpush2.bf16.msra.mxu0 %v6493
      %7625 = vmatprep.subr.bf16.mxu0 %v6486
      %7626 = vmatpush2.bf16.msra.mxu0 %v6485
      %7627 = vmatprep.mubr.bf16.mxu0 %v4068
      %7628 = vmatmul.mubr.bf16.gmra.mxu0 %v4067
      %v7629 = vpop.f32.mrf.mxu0
      %v7630 = vadd.f32 %v7589, %v7629
      %v7631 = vpop.f32.mrf.mxu0
      %v7632 = vadd.f32 %v7591, %v7631
      %v7633 = vpop.f32.mrf.mxu0
      %v7634 = vpop.f32.mrf.mxu0
      %7635 = vdwg.mxu0
      %7636 = vmatprep.subr.bf16.mxu0 %v6606
      %7637 = vmatpush1.bf16.msra.mxu0 %v6605
      %7638 = vmatprep.subr.bf16.mxu0 %v6598
      %7639 = vmatpush1.bf16.msra.mxu0 %v6597
      %7640 = vmatprep.subr.bf16.mxu0 %v6590
      %7641 = vmatpush1.bf16.msra.mxu0 %v6589
      %7642 = vmatprep.subr.bf16.mxu0 %v6582
      %7643 = vmatpush1.bf16.msra.mxu0 %v6581
      %7644 = vmatprep.subr.bf16.mxu0 %v6574
      %7645 = vmatpush1.bf16.msra.mxu0 %v6573
      %7646 = vmatprep.subr.bf16.mxu0 %v6566
      %7647 = vmatpush1.bf16.msra.mxu0 %v6565
      %7648 = vmatprep.subr.bf16.mxu0 %v6558
      %7649 = vmatpush1.bf16.msra.mxu0 %v6557
      %7650 = vmatprep.subr.bf16.mxu0 %v6550
      %7651 = vmatpush1.bf16.msra.mxu0 %v6549
      %7652 = vmatprep.subr.bf16.mxu0 %v6670
      %7653 = vmatpush2.bf16.msra.mxu0 %v6669
      %7654 = vmatprep.subr.bf16.mxu0 %v6662
      %7655 = vmatpush2.bf16.msra.mxu0 %v6661
      %7656 = vmatprep.subr.bf16.mxu0 %v6654
      %7657 = vmatpush2.bf16.msra.mxu0 %v6653
      %7658 = vmatprep.subr.bf16.mxu0 %v6646
      %7659 = vmatpush2.bf16.msra.mxu0 %v6645
      %7660 = vmatprep.subr.bf16.mxu0 %v6638
      %7661 = vmatpush2.bf16.msra.mxu0 %v6637
      %7662 = vmatprep.subr.bf16.mxu0 %v6630
      %7663 = vmatpush2.bf16.msra.mxu0 %v6629
      %7664 = vmatprep.subr.bf16.mxu0 %v6622
      %7665 = vmatpush2.bf16.msra.mxu0 %v6621
      %7666 = vmatprep.subr.bf16.mxu0 %v6614
      %7667 = vmatpush2.bf16.msra.mxu0 %v6613
      %7668 = vmatprep.mubr.bf16.mxu0 %v4070
      %7669 = vmatmul.mubr.bf16.gmra.mxu0 %v4069
      %v7670 = vpop.f32.mrf.mxu0
      %v7671 = vadd.f32 %v7630, %v7670
      %v7672 = vpop.f32.mrf.mxu0
      %v7673 = vadd.f32 %v7632, %v7672
      %v7674 = vpop.f32.mrf.mxu0
      %v7675 = vpop.f32.mrf.mxu0
      %7676 = vdwg.mxu0
      %7677 = vmatprep.subr.bf16.mxu0 %v6224
      %7678 = vmatpush1.bf16.msra.mxu0 %v6223
      %7679 = vmatprep.subr.bf16.mxu0 %v6216
      %7680 = vmatpush1.bf16.msra.mxu0 %v6215
      %7681 = vmatprep.subr.bf16.mxu0 %v6208
      %7682 = vmatpush1.bf16.msra.mxu0 %v6207
      %7683 = vmatprep.subr.bf16.mxu0 %v6200
      %7684 = vmatpush1.bf16.msra.mxu0 %v6199
      %7685 = vmatprep.subr.bf16.mxu0 %v6192
      %7686 = vmatpush1.bf16.msra.mxu0 %v6191
      %7687 = vmatprep.subr.bf16.mxu0 %v6184
      %7688 = vmatpush1.bf16.msra.mxu0 %v6183
      %7689 = vmatprep.subr.bf16.mxu0 %v6176
      %7690 = vmatpush1.bf16.msra.mxu0 %v6175
      %7691 = vmatprep.subr.bf16.mxu0 %v6168
      %7692 = vmatpush1.bf16.msra.mxu0 %v6167
      %7693 = vmatprep.subr.bf16.mxu0 %v6288
      %7694 = vmatpush2.bf16.msra.mxu0 %v6287
      %7695 = vmatprep.subr.bf16.mxu0 %v6280
      %7696 = vmatpush2.bf16.msra.mxu0 %v6279
      %7697 = vmatprep.subr.bf16.mxu0 %v6272
      %7698 = vmatpush2.bf16.msra.mxu0 %v6271
      %7699 = vmatprep.subr.bf16.mxu0 %v6264
      %7700 = vmatpush2.bf16.msra.mxu0 %v6263
      %7701 = vmatprep.subr.bf16.mxu0 %v6256
      %7702 = vmatpush2.bf16.msra.mxu0 %v6255
      %7703 = vmatprep.subr.bf16.mxu0 %v6248
      %7704 = vmatpush2.bf16.msra.mxu0 %v6247
      %7705 = vmatprep.subr.bf16.mxu0 %v6240
      %7706 = vmatpush2.bf16.msra.mxu0 %v6239
      %7707 = vmatprep.subr.bf16.mxu0 %v6232
      %7708 = vmatpush2.bf16.msra.mxu0 %v6231
      %7709 = vmatprep.mubr.bf16.mxu0 %v4064
      %7710 = vmatmul.mubr.bf16.gmra.mxu0 %v4063
      %v7711 = vpop.f32.mrf.mxu0
      %v7712 = vadd.f32 %v4612, %v7711
      %v7713 = vpop.f32.mrf.mxu0
      %v7714 = vadd.f32 %v4616, %v7713
      %v7715 = vpop.f32.mrf.mxu0
      %v7716 = vpop.f32.mrf.mxu0
      %7717 = vdwg.mxu0
      %7718 = vmatprep.subr.bf16.mxu0 %v6352
      %7719 = vmatpush1.bf16.msra.mxu0 %v6351
      %7720 = vmatprep.subr.bf16.mxu0 %v6344
      %7721 = vmatpush1.bf16.msra.mxu0 %v6343
      %7722 = vmatprep.subr.bf16.mxu0 %v6336
      %7723 = vmatpush1.bf16.msra.mxu0 %v6335
      %7724 = vmatprep.subr.bf16.mxu0 %v6328
      %7725 = vmatpush1.bf16.msra.mxu0 %v6327
      %7726 = vmatprep.subr.bf16.mxu0 %v6320
      %7727 = vmatpush1.bf16.msra.mxu0 %v6319
      %7728 = vmatprep.subr.bf16.mxu0 %v6312
      %7729 = vmatpush1.bf16.msra.mxu0 %v6311
      %7730 = vmatprep.subr.bf16.mxu0 %v6304
      %7731 = vmatpush1.bf16.msra.mxu0 %v6303
      %7732 = vmatprep.subr.bf16.mxu0 %v6296
      %7733 = vmatpush1.bf16.msra.mxu0 %v6295
      %7734 = vmatprep.subr.bf16.mxu0 %v6416
      %7735 = vmatpush2.bf16.msra.mxu0 %v6415
      %7736 = vmatprep.subr.bf16.mxu0 %v6408
      %7737 = vmatpush2.bf16.msra.mxu0 %v6407
      %7738 = vmatprep.subr.bf16.mxu0 %v6400
      %7739 = vmatpush2.bf16.msra.mxu0 %v6399
      %7740 = vmatprep.subr.bf16.mxu0 %v6392
      %7741 = vmatpush2.bf16.msra.mxu0 %v6391
      %7742 = vmatprep.subr.bf16.mxu0 %v6384
      %7743 = vmatpush2.bf16.msra.mxu0 %v6383
      %7744 = vmatprep.subr.bf16.mxu0 %v6376
      %7745 = vmatpush2.bf16.msra.mxu0 %v6375
      %7746 = vmatprep.subr.bf16.mxu0 %v6368
      %7747 = vmatpush2.bf16.msra.mxu0 %v6367
      %7748 = vmatprep.subr.bf16.mxu0 %v6360
      %7749 = vmatpush2.bf16.msra.mxu0 %v6359
      %7750 = vmatprep.mubr.bf16.mxu0 %v4066
      %7751 = vmatmul.mubr.bf16.gmra.mxu0 %v4065
      %v7752 = vpop.f32.mrf.mxu0
      %v7753 = vadd.f32 %v7712, %v7752
      %v7754 = vpop.f32.mrf.mxu0
      %v7755 = vadd.f32 %v7714, %v7754
      %v7756 = vpop.f32.mrf.mxu0
      %v7757 = vpop.f32.mrf.mxu0
      %7758 = vdwg.mxu0
      %7759 = vmatprep.subr.bf16.mxu0 %v6480
      %7760 = vmatpush1.bf16.msra.mxu0 %v6479
      %7761 = vmatprep.subr.bf16.mxu0 %v6472
      %7762 = vmatpush1.bf16.msra.mxu0 %v6471
      %7763 = vmatprep.subr.bf16.mxu0 %v6464
      %7764 = vmatpush1.bf16.msra.mxu0 %v6463
      %7765 = vmatprep.subr.bf16.mxu0 %v6456
      %7766 = vmatpush1.bf16.msra.mxu0 %v6455
      %7767 = vmatprep.subr.bf16.mxu0 %v6448
      %7768 = vmatpush1.bf16.msra.mxu0 %v6447
      %7769 = vmatprep.subr.bf16.mxu0 %v6440
      %7770 = vmatpush1.bf16.msra.mxu0 %v6439
      %7771 = vmatprep.subr.bf16.mxu0 %v6432
      %7772 = vmatpush1.bf16.msra.mxu0 %v6431
      %7773 = vmatprep.subr.bf16.mxu0 %v6424
      %7774 = vmatpush1.bf16.msra.mxu0 %v6423
      %7775 = vmatprep.subr.bf16.mxu0 %v6544
      %7776 = vmatpush2.bf16.msra.mxu0 %v6543
      %7777 = vmatprep.subr.bf16.mxu0 %v6536
      %7778 = vmatpush2.bf16.msra.mxu0 %v6535
      %7779 = vmatprep.subr.bf16.mxu0 %v6528
      %7780 = vmatpush2.bf16.msra.mxu0 %v6527
      %7781 = vmatprep.subr.bf16.mxu0 %v6520
      %7782 = vmatpush2.bf16.msra.mxu0 %v6519
      %7783 = vmatprep.subr.bf16.mxu0 %v6512
      %7784 = vmatpush2.bf16.msra.mxu0 %v6511
      %7785 = vmatprep.subr.bf16.mxu0 %v6504
      %7786 = vmatpush2.bf16.msra.mxu0 %v6503
      %7787 = vmatprep.subr.bf16.mxu0 %v6496
      %7788 = vmatpush2.bf16.msra.mxu0 %v6495
      %7789 = vmatprep.subr.bf16.mxu0 %v6488
      %7790 = vmatpush2.bf16.msra.mxu0 %v6487
      %7791 = vmatprep.mubr.bf16.mxu0 %v4068
      %7792 = vmatmul.mubr.bf16.gmra.mxu0 %v4067
      %v7793 = vpop.f32.mrf.mxu0
      %v7794 = vadd.f32 %v7753, %v7793
      %v7795 = vpop.f32.mrf.mxu0
      %v7796 = vadd.f32 %v7755, %v7795
      %v7797 = vpop.f32.mrf.mxu0
      %v7798 = vpop.f32.mrf.mxu0
      %7799 = vdwg.mxu0
      %7800 = vmatprep.subr.bf16.mxu0 %v6608
      %7801 = vmatpush1.bf16.msra.mxu0 %v6607
      %7802 = vmatprep.subr.bf16.mxu0 %v6600
      %7803 = vmatpush1.bf16.msra.mxu0 %v6599
      %7804 = vmatprep.subr.bf16.mxu0 %v6592
      %7805 = vmatpush1.bf16.msra.mxu0 %v6591
      %7806 = vmatprep.subr.bf16.mxu0 %v6584
      %7807 = vmatpush1.bf16.msra.mxu0 %v6583
      %7808 = vmatprep.subr.bf16.mxu0 %v6576
      %7809 = vmatpush1.bf16.msra.mxu0 %v6575
      %7810 = vmatprep.subr.bf16.mxu0 %v6568
      %7811 = vmatpush1.bf16.msra.mxu0 %v6567
      %7812 = vmatprep.subr.bf16.mxu0 %v6560
      %7813 = vmatpush1.bf16.msra.mxu0 %v6559
      %7814 = vmatprep.subr.bf16.mxu0 %v6552
      %7815 = vmatpush1.bf16.msra.mxu0 %v6551
      %7816 = vmatprep.subr.bf16.mxu0 %v6672
      %7817 = vmatpush2.bf16.msra.mxu0 %v6671
      %7818 = vmatprep.subr.bf16.mxu0 %v6664
      %7819 = vmatpush2.bf16.msra.mxu0 %v6663
      %7820 = vmatprep.subr.bf16.mxu0 %v6656
      %7821 = vmatpush2.bf16.msra.mxu0 %v6655
      %7822 = vmatprep.subr.bf16.mxu0 %v6648
      %7823 = vmatpush2.bf16.msra.mxu0 %v6647
      %7824 = vmatprep.subr.bf16.mxu0 %v6640
      %7825 = vmatpush2.bf16.msra.mxu0 %v6639
      %7826 = vmatprep.subr.bf16.mxu0 %v6632
      %7827 = vmatpush2.bf16.msra.mxu0 %v6631
      %7828 = vmatprep.subr.bf16.mxu0 %v6624
      %7829 = vmatpush2.bf16.msra.mxu0 %v6623
      %7830 = vmatprep.subr.bf16.mxu0 %v6616
      %7831 = vmatpush2.bf16.msra.mxu0 %v6615
      %7832 = vmatprep.mubr.bf16.mxu0 %v4070
      %7833 = vmatmul.mubr.bf16.gmra.mxu0 %v4069
      %v7834 = vpop.f32.mrf.mxu0
      %v7835 = vadd.f32 %v7794, %v7834
      %v7836 = vpop.f32.mrf.mxu0
      %v7837 = vadd.f32 %v7796, %v7836
      %v7838 = vpop.f32.mrf.mxu0
      %v7839 = vpop.f32.mrf.mxu0
      %7840 = vdwg.mxu0
      %v7841 = vmax.f32 %v7343, 0.0
      %v7842 = vmax.f32 %v7345, 0.0
      %v7843 = vmax.f32 %v7507, 0.0
      %v7844 = vmax.f32 %v7509, 0.0
      %v7845 = vmax.f32 %v7671, 0.0
      %v7846 = vmax.f32 %v7673, 0.0
      %v7847 = vmax.f32 %v7835, 0.0
      %v7848 = vmax.f32 %v7837, 0.0
      %v7849 = vpack.c.bf16 %v7841, %v7841
      %v7850 = vpack.c.bf16 %v7842, %v7842
      %v7851 = vpack.c.bf16 %v7843, %v7843
      %v7852 = vpack.c.bf16 %v7844, %v7844
      %v7853 = vpack.c.bf16 %v7845, %v7845
      %v7854 = vpack.c.bf16 %v7846, %v7846
      %v7855 = vpack.c.bf16 %v7847, %v7847
      %v7856 = vpack.c.bf16 %v7848, %v7848
      %v7857 = vld [vmem:[#allocation11] sm:$0xf]
      %v7858 = vld [vmem:[#allocation11 + $0x4] sm:$0xf]
      %v7859 = vld [vmem:[#allocation11 + $0x8] sm:$0xf]
      %v7860 = vld [vmem:[#allocation11 + $0xc] sm:$0xf]
      %v7861 = vld [vmem:[#allocation11 + $0x10] sm:$0xf]
      %v7862 = vld [vmem:[#allocation11 + $0x14] sm:$0xf]
      %v7863 = vld [vmem:[#allocation11 + $0x18] sm:$0xf]
      %v7864 = vld [vmem:[#allocation11 + $0x1c] sm:$0xf]
      %v7865 = vld [vmem:[#allocation11 + $0x20] sm:$0xf]
      %v7866 = vld [vmem:[#allocation11 + $0x24] sm:$0xf]
      %v7867 = vld [vmem:[#allocation11 + $0x28] sm:$0xf]
      %v7868 = vld [vmem:[#allocation11 + $0x2c] sm:$0xf]
      %v7869 = vld [vmem:[#allocation11 + $0x30] sm:$0xf]
      %v7870 = vld [vmem:[#allocation11 + $0x34] sm:$0xf]
      %v7871 = vld [vmem:[#allocation11 + $0x38] sm:$0xf]
      %v7872 = vld [vmem:[#allocation11 + $0x3c] sm:$0xf]
      %v7873 = vld [vmem:[#allocation11 + $0x40] sm:$0xf]
      %v7874 = vld [vmem:[#allocation11 + $0x44] sm:$0xf]
      %v7875 = vld [vmem:[#allocation11 + $0x48] sm:$0xf]
      %v7876 = vld [vmem:[#allocation11 + $0x4c] sm:$0xf]
      %v7877 = vld [vmem:[#allocation11 + $0x50] sm:$0xf]
      %v7878 = vld [vmem:[#allocation11 + $0x54] sm:$0xf]
      %v7879 = vld [vmem:[#allocation11 + $0x58] sm:$0xf]
      %v7880 = vld [vmem:[#allocation11 + $0x5c] sm:$0xf]
      %v7881 = vld [vmem:[#allocation11 + $0x60] sm:$0xf]
      %v7882 = vld [vmem:[#allocation11 + $0x64] sm:$0xf]
      %v7883 = vld [vmem:[#allocation11 + $0x68] sm:$0xf]
      %v7884 = vld [vmem:[#allocation11 + $0x6c] sm:$0xf]
      %v7885 = vld [vmem:[#allocation11 + $0x70] sm:$0xf]
      %v7886 = vld [vmem:[#allocation11 + $0x74] sm:$0xf]
      %v7887 = vld [vmem:[#allocation11 + $0x78] sm:$0xf]
      %v7888 = vld [vmem:[#allocation11 + $0x7c] sm:$0xf]
      %v7889 = vld [vmem:[#allocation11 + $0x80] sm:$0xf]
      %v7890 = vld [vmem:[#allocation11 + $0x84] sm:$0xf]
      %v7891 = vld [vmem:[#allocation11 + $0x88] sm:$0xf]
      %v7892 = vld [vmem:[#allocation11 + $0x8c] sm:$0xf]
      %v7893 = vld [vmem:[#allocation11 + $0x90] sm:$0xf]
      %v7894 = vld [vmem:[#allocation11 + $0x94] sm:$0xf]
      %v7895 = vld [vmem:[#allocation11 + $0x98] sm:$0xf]
      %v7896 = vld [vmem:[#allocation11 + $0x9c] sm:$0xf]
      %v7897 = vld [vmem:[#allocation11 + $0xa0] sm:$0xf]
      %v7898 = vld [vmem:[#allocation11 + $0xa4] sm:$0xf]
      %v7899 = vld [vmem:[#allocation11 + $0xa8] sm:$0xf]
      %v7900 = vld [vmem:[#allocation11 + $0xac] sm:$0xf]
      %v7901 = vld [vmem:[#allocation11 + $0xb0] sm:$0xf]
      %v7902 = vld [vmem:[#allocation11 + $0xb4] sm:$0xf]
      %v7903 = vld [vmem:[#allocation11 + $0xb8] sm:$0xf]
      %v7904 = vld [vmem:[#allocation11 + $0xbc] sm:$0xf]
      %v7905 = vld [vmem:[#allocation11 + $0xc0] sm:$0xf]
      %v7906 = vld [vmem:[#allocation11 + $0xc4] sm:$0xf]
      %v7907 = vld [vmem:[#allocation11 + $0xc8] sm:$0xf]
      %v7908 = vld [vmem:[#allocation11 + $0xcc] sm:$0xf]
      %v7909 = vld [vmem:[#allocation11 + $0xd0] sm:$0xf]
      %v7910 = vld [vmem:[#allocation11 + $0xd4] sm:$0xf]
      %v7911 = vld [vmem:[#allocation11 + $0xd8] sm:$0xf]
      %v7912 = vld [vmem:[#allocation11 + $0xdc] sm:$0xf]
      %v7913 = vld [vmem:[#allocation11 + $0xe0] sm:$0xf]
      %v7914 = vld [vmem:[#allocation11 + $0xe4] sm:$0xf]
      %v7915 = vld [vmem:[#allocation11 + $0xe8] sm:$0xf]
      %v7916 = vld [vmem:[#allocation11 + $0xec] sm:$0xf]
      %v7917 = vld [vmem:[#allocation11 + $0xf0] sm:$0xf]
      %v7918 = vld [vmem:[#allocation11 + $0xf4] sm:$0xf]
      %v7919 = vld [vmem:[#allocation11 + $0xf8] sm:$0xf]
      %v7920 = vld [vmem:[#allocation11 + $0xfc] sm:$0xf]
      %v7921 = vld [vmem:[#allocation11 + $0x100] sm:$0xf]
      %v7922 = vld [vmem:[#allocation11 + $0x104] sm:$0xf]
      %v7923 = vld [vmem:[#allocation11 + $0x108] sm:$0xf]
      %v7924 = vld [vmem:[#allocation11 + $0x10c] sm:$0xf]
      %v7925 = vld [vmem:[#allocation11 + $0x110] sm:$0xf]
      %v7926 = vld [vmem:[#allocation11 + $0x114] sm:$0xf]
      %v7927 = vld [vmem:[#allocation11 + $0x118] sm:$0xf]
      %v7928 = vld [vmem:[#allocation11 + $0x11c] sm:$0xf]
      %v7929 = vld [vmem:[#allocation11 + $0x120] sm:$0xf]
      %v7930 = vld [vmem:[#allocation11 + $0x124] sm:$0xf]
      %v7931 = vld [vmem:[#allocation11 + $0x128] sm:$0xf]
      %v7932 = vld [vmem:[#allocation11 + $0x12c] sm:$0xf]
      %v7933 = vld [vmem:[#allocation11 + $0x130] sm:$0xf]
      %v7934 = vld [vmem:[#allocation11 + $0x134] sm:$0xf]
      %v7935 = vld [vmem:[#allocation11 + $0x138] sm:$0xf]
      %v7936 = vld [vmem:[#allocation11 + $0x13c] sm:$0xf]
      %v7937 = vld [vmem:[#allocation11 + $0x140] sm:$0xf]
      %v7938 = vld [vmem:[#allocation11 + $0x144] sm:$0xf]
      %v7939 = vld [vmem:[#allocation11 + $0x148] sm:$0xf]
      %v7940 = vld [vmem:[#allocation11 + $0x14c] sm:$0xf]
      %v7941 = vld [vmem:[#allocation11 + $0x150] sm:$0xf]
      %v7942 = vld [vmem:[#allocation11 + $0x154] sm:$0xf]
      %v7943 = vld [vmem:[#allocation11 + $0x158] sm:$0xf]
      %v7944 = vld [vmem:[#allocation11 + $0x15c] sm:$0xf]
      %v7945 = vld [vmem:[#allocation11 + $0x160] sm:$0xf]
      %v7946 = vld [vmem:[#allocation11 + $0x164] sm:$0xf]
      %v7947 = vld [vmem:[#allocation11 + $0x168] sm:$0xf]
      %v7948 = vld [vmem:[#allocation11 + $0x16c] sm:$0xf]
      %v7949 = vld [vmem:[#allocation11 + $0x170] sm:$0xf]
      %v7950 = vld [vmem:[#allocation11 + $0x174] sm:$0xf]
      %v7951 = vld [vmem:[#allocation11 + $0x178] sm:$0xf]
      %v7952 = vld [vmem:[#allocation11 + $0x17c] sm:$0xf]
      %v7953 = vld [vmem:[#allocation11 + $0x180] sm:$0xf]
      %v7954 = vld [vmem:[#allocation11 + $0x184] sm:$0xf]
      %v7955 = vld [vmem:[#allocation11 + $0x188] sm:$0xf]
      %v7956 = vld [vmem:[#allocation11 + $0x18c] sm:$0xf]
      %v7957 = vld [vmem:[#allocation11 + $0x190] sm:$0xf]
      %v7958 = vld [vmem:[#allocation11 + $0x194] sm:$0xf]
      %v7959 = vld [vmem:[#allocation11 + $0x198] sm:$0xf]
      %v7960 = vld [vmem:[#allocation11 + $0x19c] sm:$0xf]
      %v7961 = vld [vmem:[#allocation11 + $0x1a0] sm:$0xf]
      %v7962 = vld [vmem:[#allocation11 + $0x1a4] sm:$0xf]
      %v7963 = vld [vmem:[#allocation11 + $0x1a8] sm:$0xf]
      %v7964 = vld [vmem:[#allocation11 + $0x1ac] sm:$0xf]
      %v7965 = vld [vmem:[#allocation11 + $0x1b0] sm:$0xf]
      %v7966 = vld [vmem:[#allocation11 + $0x1b4] sm:$0xf]
      %v7967 = vld [vmem:[#allocation11 + $0x1b8] sm:$0xf]
      %v7968 = vld [vmem:[#allocation11 + $0x1bc] sm:$0xf]
      %v7969 = vld [vmem:[#allocation11 + $0x1c0] sm:$0xf]
      %v7970 = vld [vmem:[#allocation11 + $0x1c4] sm:$0xf]
      %v7971 = vld [vmem:[#allocation11 + $0x1c8] sm:$0xf]
      %v7972 = vld [vmem:[#allocation11 + $0x1cc] sm:$0xf]
      %v7973 = vld [vmem:[#allocation11 + $0x1d0] sm:$0xf]
      %v7974 = vld [vmem:[#allocation11 + $0x1d4] sm:$0xf]
      %v7975 = vld [vmem:[#allocation11 + $0x1d8] sm:$0xf]
      %v7976 = vld [vmem:[#allocation11 + $0x1dc] sm:$0xf]
      %v7977 = vld [vmem:[#allocation11 + $0x1e0] sm:$0xf]
      %v7978 = vld [vmem:[#allocation11 + $0x1e4] sm:$0xf]
      %v7979 = vld [vmem:[#allocation11 + $0x1e8] sm:$0xf]
      %v7980 = vld [vmem:[#allocation11 + $0x1ec] sm:$0xf]
      %v7981 = vld [vmem:[#allocation11 + $0x1f0] sm:$0xf]
      %v7982 = vld [vmem:[#allocation11 + $0x1f4] sm:$0xf]
      %v7983 = vld [vmem:[#allocation11 + $0x1f8] sm:$0xf]
      %v7984 = vld [vmem:[#allocation11 + $0x1fc] sm:$0xf]
      %v7985 = vld [vmem:[#allocation12] sm:$0x1]
      %v7987 = vlaneseq
      %v7988 = vshrl.u32 %v7987, 7
      %v7989 = vsub.s32 0, %v7988
      %v7990 = vrot.slane %v7985, %v7989
      %v8120 = vunpack.c.l.b16 %v7857
      %v8121 = vunpack.c.l.b16 %v7858
      %v8122 = vunpack.c.l.b16 %v7859
      %v8123 = vunpack.c.l.b16 %v7860
      %v8124 = vunpack.c.l.b16 %v7861
      %v8125 = vunpack.c.l.b16 %v7862
      %v8126 = vunpack.c.l.b16 %v7863
      %v8127 = vunpack.c.l.b16 %v7864
      %v8128 = vunpack.c.l.b16 %v7865
      %v8129 = vunpack.c.l.b16 %v7866
      %v8130 = vunpack.c.l.b16 %v7867
      %v8131 = vunpack.c.l.b16 %v7868
      %v8132 = vunpack.c.l.b16 %v7869
      %v8133 = vunpack.c.l.b16 %v7870
      %v8134 = vunpack.c.l.b16 %v7871
      %v8135 = vunpack.c.l.b16 %v7872
      %v8136 = vunpack.c.l.b16 %v7873
      %v8137 = vunpack.c.l.b16 %v7874
      %v8138 = vunpack.c.l.b16 %v7875
      %v8139 = vunpack.c.l.b16 %v7876
      %v8140 = vunpack.c.l.b16 %v7877
      %v8141 = vunpack.c.l.b16 %v7878
      %v8142 = vunpack.c.l.b16 %v7879
      %v8143 = vunpack.c.l.b16 %v7880
      %v8144 = vunpack.c.l.b16 %v7881
      %v8145 = vunpack.c.l.b16 %v7882
      %v8146 = vunpack.c.l.b16 %v7883
      %v8147 = vunpack.c.l.b16 %v7884
      %v8148 = vunpack.c.l.b16 %v7885
      %v8149 = vunpack.c.l.b16 %v7886
      %v8150 = vunpack.c.l.b16 %v7887
      %v8151 = vunpack.c.l.b16 %v7888
      %v8152 = vunpack.c.l.b16 %v7889
      %v8153 = vunpack.c.l.b16 %v7890
      %v8154 = vunpack.c.l.b16 %v7891
      %v8155 = vunpack.c.l.b16 %v7892
      %v8156 = vunpack.c.l.b16 %v7893
      %v8157 = vunpack.c.l.b16 %v7894
      %v8158 = vunpack.c.l.b16 %v7895
      %v8159 = vunpack.c.l.b16 %v7896
      %v8160 = vunpack.c.l.b16 %v7897
      %v8161 = vunpack.c.l.b16 %v7898
      %v8162 = vunpack.c.l.b16 %v7899
      %v8163 = vunpack.c.l.b16 %v7900
      %v8164 = vunpack.c.l.b16 %v7901
      %v8165 = vunpack.c.l.b16 %v7902
      %v8166 = vunpack.c.l.b16 %v7903
      %v8167 = vunpack.c.l.b16 %v7904
      %v8168 = vunpack.c.l.b16 %v7905
      %v8169 = vunpack.c.l.b16 %v7906
      %v8170 = vunpack.c.l.b16 %v7907
      %v8171 = vunpack.c.l.b16 %v7908
      %v8172 = vunpack.c.l.b16 %v7909
      %v8173 = vunpack.c.l.b16 %v7910
      %v8174 = vunpack.c.l.b16 %v7911
      %v8175 = vunpack.c.l.b16 %v7912
      %v8176 = vunpack.c.l.b16 %v7913
      %v8177 = vunpack.c.l.b16 %v7914
      %v8178 = vunpack.c.l.b16 %v7915
      %v8179 = vunpack.c.l.b16 %v7916
      %v8180 = vunpack.c.l.b16 %v7917
      %v8181 = vunpack.c.l.b16 %v7918
      %v8182 = vunpack.c.l.b16 %v7919
      %v8183 = vunpack.c.l.b16 %v7920
      %v8184 = vunpack.c.l.b16 %v7921
      %v8185 = vunpack.c.l.b16 %v7922
      %v8186 = vunpack.c.l.b16 %v7923
      %v8187 = vunpack.c.l.b16 %v7924
      %v8188 = vunpack.c.l.b16 %v7925
      %v8189 = vunpack.c.l.b16 %v7926
      %v8190 = vunpack.c.l.b16 %v7927
      %v8191 = vunpack.c.l.b16 %v7928
      %v8192 = vunpack.c.l.b16 %v7929
      %v8193 = vunpack.c.l.b16 %v7930
      %v8194 = vunpack.c.l.b16 %v7931
      %v8195 = vunpack.c.l.b16 %v7932
      %v8196 = vunpack.c.l.b16 %v7933
      %v8197 = vunpack.c.l.b16 %v7934
      %v8198 = vunpack.c.l.b16 %v7935
      %v8199 = vunpack.c.l.b16 %v7936
      %v8200 = vunpack.c.l.b16 %v7937
      %v8201 = vunpack.c.l.b16 %v7938
      %v8202 = vunpack.c.l.b16 %v7939
      %v8203 = vunpack.c.l.b16 %v7940
      %v8204 = vunpack.c.l.b16 %v7941
      %v8205 = vunpack.c.l.b16 %v7942
      %v8206 = vunpack.c.l.b16 %v7943
      %v8207 = vunpack.c.l.b16 %v7944
      %v8208 = vunpack.c.l.b16 %v7945
      %v8209 = vunpack.c.l.b16 %v7946
      %v8210 = vunpack.c.l.b16 %v7947
      %v8211 = vunpack.c.l.b16 %v7948
      %v8212 = vunpack.c.l.b16 %v7949
      %v8213 = vunpack.c.l.b16 %v7950
      %v8214 = vunpack.c.l.b16 %v7951
      %v8215 = vunpack.c.l.b16 %v7952
      %v8216 = vunpack.c.l.b16 %v7953
      %v8217 = vunpack.c.l.b16 %v7954
      %v8218 = vunpack.c.l.b16 %v7955
      %v8219 = vunpack.c.l.b16 %v7956
      %v8220 = vunpack.c.l.b16 %v7957
      %v8221 = vunpack.c.l.b16 %v7958
      %v8222 = vunpack.c.l.b16 %v7959
      %v8223 = vunpack.c.l.b16 %v7960
      %v8224 = vunpack.c.l.b16 %v7961
      %v8225 = vunpack.c.l.b16 %v7962
      %v8226 = vunpack.c.l.b16 %v7963
      %v8227 = vunpack.c.l.b16 %v7964
      %v8228 = vunpack.c.l.b16 %v7965
      %v8229 = vunpack.c.l.b16 %v7966
      %v8230 = vunpack.c.l.b16 %v7967
      %v8231 = vunpack.c.l.b16 %v7968
      %v8232 = vunpack.c.l.b16 %v7969
      %v8233 = vunpack.c.l.b16 %v7970
      %v8234 = vunpack.c.l.b16 %v7971
      %v8235 = vunpack.c.l.b16 %v7972
      %v8236 = vunpack.c.l.b16 %v7973
      %v8237 = vunpack.c.l.b16 %v7974
      %v8238 = vunpack.c.l.b16 %v7975
      %v8239 = vunpack.c.l.b16 %v7976
      %v8240 = vunpack.c.l.b16 %v7977
      %v8241 = vunpack.c.l.b16 %v7978
      %v8242 = vunpack.c.l.b16 %v7979
      %v8243 = vunpack.c.l.b16 %v7980
      %v8244 = vunpack.c.l.b16 %v7981
      %v8245 = vunpack.c.l.b16 %v7982
      %v8246 = vunpack.c.l.b16 %v7983
      %v8247 = vunpack.c.l.b16 %v7984
      %v8248 = vpack.c.b16 %v8121, %v8120
      %v8249 = vpack.c.b16 %v8123, %v8122
      %v8250 = vpack.c.b16 %v8125, %v8124
      %v8251 = vpack.c.b16 %v8127, %v8126
      %v8252 = vpack.c.b16 %v8129, %v8128
      %v8253 = vpack.c.b16 %v8131, %v8130
      %v8254 = vpack.c.b16 %v8133, %v8132
      %v8255 = vpack.c.b16 %v8135, %v8134
      %v8256 = vpack.c.b16 %v8137, %v8136
      %v8257 = vpack.c.b16 %v8139, %v8138
      %v8258 = vpack.c.b16 %v8141, %v8140
      %v8259 = vpack.c.b16 %v8143, %v8142
      %v8260 = vpack.c.b16 %v8145, %v8144
      %v8261 = vpack.c.b16 %v8147, %v8146
      %v8262 = vpack.c.b16 %v8149, %v8148
      %v8263 = vpack.c.b16 %v8151, %v8150
      %v8264 = vpack.c.b16 %v8153, %v8152
      %v8265 = vpack.c.b16 %v8155, %v8154
      %v8266 = vpack.c.b16 %v8157, %v8156
      %v8267 = vpack.c.b16 %v8159, %v8158
      %v8268 = vpack.c.b16 %v8161, %v8160
      %v8269 = vpack.c.b16 %v8163, %v8162
      %v8270 = vpack.c.b16 %v8165, %v8164
      %v8271 = vpack.c.b16 %v8167, %v8166
      %v8272 = vpack.c.b16 %v8169, %v8168
      %v8273 = vpack.c.b16 %v8171, %v8170
      %v8274 = vpack.c.b16 %v8173, %v8172
      %v8275 = vpack.c.b16 %v8175, %v8174
      %v8276 = vpack.c.b16 %v8177, %v8176
      %v8277 = vpack.c.b16 %v8179, %v8178
      %v8278 = vpack.c.b16 %v8181, %v8180
      %v8279 = vpack.c.b16 %v8183, %v8182
      %v8280 = vpack.c.b16 %v8185, %v8184
      %v8281 = vpack.c.b16 %v8187, %v8186
      %v8282 = vpack.c.b16 %v8189, %v8188
      %v8283 = vpack.c.b16 %v8191, %v8190
      %v8284 = vpack.c.b16 %v8193, %v8192
      %v8285 = vpack.c.b16 %v8195, %v8194
      %v8286 = vpack.c.b16 %v8197, %v8196
      %v8287 = vpack.c.b16 %v8199, %v8198
      %v8288 = vpack.c.b16 %v8201, %v8200
      %v8289 = vpack.c.b16 %v8203, %v8202
      %v8290 = vpack.c.b16 %v8205, %v8204
      %v8291 = vpack.c.b16 %v8207, %v8206
      %v8292 = vpack.c.b16 %v8209, %v8208
      %v8293 = vpack.c.b16 %v8211, %v8210
      %v8294 = vpack.c.b16 %v8213, %v8212
      %v8295 = vpack.c.b16 %v8215, %v8214
      %v8296 = vpack.c.b16 %v8217, %v8216
      %v8297 = vpack.c.b16 %v8219, %v8218
      %v8298 = vpack.c.b16 %v8221, %v8220
      %v8299 = vpack.c.b16 %v8223, %v8222
      %v8300 = vpack.c.b16 %v8225, %v8224
      %v8301 = vpack.c.b16 %v8227, %v8226
      %v8302 = vpack.c.b16 %v8229, %v8228
      %v8303 = vpack.c.b16 %v8231, %v8230
      %v8304 = vpack.c.b16 %v8233, %v8232
      %v8305 = vpack.c.b16 %v8235, %v8234
      %v8306 = vpack.c.b16 %v8237, %v8236
      %v8307 = vpack.c.b16 %v8239, %v8238
      %v8308 = vpack.c.b16 %v8241, %v8240
      %v8309 = vpack.c.b16 %v8243, %v8242
      %v8310 = vpack.c.b16 %v8245, %v8244
      %v8311 = vpack.c.b16 %v8247, %v8246
      %8376 = vmatprep.subr.bf16.mxu0 0
      %8377 = vmatpush1.bf16.msra.mxu0 %v8255
      %8378 = vmatprep.subr.bf16.mxu0 0
      %8379 = vmatpush1.bf16.msra.mxu0 %v8254
      %8380 = vmatprep.subr.bf16.mxu0 0
      %8381 = vmatpush1.bf16.msra.mxu0 %v8253
      %8382 = vmatprep.subr.bf16.mxu0 0
      %8383 = vmatpush1.bf16.msra.mxu0 %v8252
      %8384 = vmatprep.subr.bf16.mxu0 0
      %8385 = vmatpush1.bf16.msra.mxu0 %v8251
      %8386 = vmatprep.subr.bf16.mxu0 0
      %8387 = vmatpush1.bf16.msra.mxu0 %v8250
      %8388 = vmatprep.subr.bf16.mxu0 0
      %8389 = vmatpush1.bf16.msra.mxu0 %v8249
      %8390 = vmatprep.subr.bf16.mxu0 0
      %8391 = vmatpush1.bf16.msra.mxu0 %v8248
      %8392 = vmatprep.subr.bf16.mxu0 0
      %8393 = vmatpush2.bf16.msra.mxu0 %v8263
      %8394 = vmatprep.subr.bf16.mxu0 0
      %8395 = vmatpush2.bf16.msra.mxu0 %v8262
      %8396 = vmatprep.subr.bf16.mxu0 0
      %8397 = vmatpush2.bf16.msra.mxu0 %v8261
      %8398 = vmatprep.subr.bf16.mxu0 0
      %8399 = vmatpush2.bf16.msra.mxu0 %v8260
      %8400 = vmatprep.subr.bf16.mxu0 0
      %8401 = vmatpush2.bf16.msra.mxu0 %v8259
      %8402 = vmatprep.subr.bf16.mxu0 0
      %8403 = vmatpush2.bf16.msra.mxu0 %v8258
      %8404 = vmatprep.subr.bf16.mxu0 0
      %8405 = vmatpush2.bf16.msra.mxu0 %v8257
      %8406 = vmatprep.subr.bf16.mxu0 0
      %8407 = vmatpush2.bf16.msra.mxu0 %v8256
      %8408 = vmatprep.mubr.bf16.mxu0 %v7850
      %8409 = vmatmul.mubr.bf16.gmra.mxu0 %v7849
      %v8410 = vpop.f32.mrf.mxu0
      %v8411 = vadd.f32 %v7990, %v8410
      %v8412 = vpop.f32.mrf.mxu0
      %v8413 = vpop.f32.mrf.mxu0
      %v8414 = vpop.f32.mrf.mxu0
      %8415 = vdwg.mxu0
      %8416 = vmatprep.subr.bf16.mxu0 0
      %8417 = vmatpush1.bf16.msra.mxu0 %v8271
      %8418 = vmatprep.subr.bf16.mxu0 0
      %8419 = vmatpush1.bf16.msra.mxu0 %v8270
      %8420 = vmatprep.subr.bf16.mxu0 0
      %8421 = vmatpush1.bf16.msra.mxu0 %v8269
      %8422 = vmatprep.subr.bf16.mxu0 0
      %8423 = vmatpush1.bf16.msra.mxu0 %v8268
      %8424 = vmatprep.subr.bf16.mxu0 0
      %8425 = vmatpush1.bf16.msra.mxu0 %v8267
      %8426 = vmatprep.subr.bf16.mxu0 0
      %8427 = vmatpush1.bf16.msra.mxu0 %v8266
      %8428 = vmatprep.subr.bf16.mxu0 0
      %8429 = vmatpush1.bf16.msra.mxu0 %v8265
      %8430 = vmatprep.subr.bf16.mxu0 0
      %8431 = vmatpush1.bf16.msra.mxu0 %v8264
      %8432 = vmatprep.subr.bf16.mxu0 0
      %8433 = vmatpush2.bf16.msra.mxu0 %v8279
      %8434 = vmatprep.subr.bf16.mxu0 0
      %8435 = vmatpush2.bf16.msra.mxu0 %v8278
      %8436 = vmatprep.subr.bf16.mxu0 0
      %8437 = vmatpush2.bf16.msra.mxu0 %v8277
      %8438 = vmatprep.subr.bf16.mxu0 0
      %8439 = vmatpush2.bf16.msra.mxu0 %v8276
      %8440 = vmatprep.subr.bf16.mxu0 0
      %8441 = vmatpush2.bf16.msra.mxu0 %v8275
      %8442 = vmatprep.subr.bf16.mxu0 0
      %8443 = vmatpush2.bf16.msra.mxu0 %v8274
      %8444 = vmatprep.subr.bf16.mxu0 0
      %8445 = vmatpush2.bf16.msra.mxu0 %v8273
      %8446 = vmatprep.subr.bf16.mxu0 0
      %8447 = vmatpush2.bf16.msra.mxu0 %v8272
      %8448 = vmatprep.mubr.bf16.mxu0 %v7852
      %8449 = vmatmul.mubr.bf16.gmra.mxu0 %v7851
      %v8450 = vpop.f32.mrf.mxu0
      %v8451 = vadd.f32 %v8411, %v8450
      %v8452 = vpop.f32.mrf.mxu0
      %v8453 = vpop.f32.mrf.mxu0
      %v8454 = vpop.f32.mrf.mxu0
      %8455 = vdwg.mxu0
      %8456 = vmatprep.subr.bf16.mxu0 0
      %8457 = vmatpush1.bf16.msra.mxu0 %v8287
      %8458 = vmatprep.subr.bf16.mxu0 0
      %8459 = vmatpush1.bf16.msra.mxu0 %v8286
      %8460 = vmatprep.subr.bf16.mxu0 0
      %8461 = vmatpush1.bf16.msra.mxu0 %v8285
      %8462 = vmatprep.subr.bf16.mxu0 0
      %8463 = vmatpush1.bf16.msra.mxu0 %v8284
      %8464 = vmatprep.subr.bf16.mxu0 0
      %8465 = vmatpush1.bf16.msra.mxu0 %v8283
      %8466 = vmatprep.subr.bf16.mxu0 0
      %8467 = vmatpush1.bf16.msra.mxu0 %v8282
      %8468 = vmatprep.subr.bf16.mxu0 0
      %8469 = vmatpush1.bf16.msra.mxu0 %v8281
      %8470 = vmatprep.subr.bf16.mxu0 0
      %8471 = vmatpush1.bf16.msra.mxu0 %v8280
      %8472 = vmatprep.subr.bf16.mxu0 0
      %8473 = vmatpush2.bf16.msra.mxu0 %v8295
      %8474 = vmatprep.subr.bf16.mxu0 0
      %8475 = vmatpush2.bf16.msra.mxu0 %v8294
      %8476 = vmatprep.subr.bf16.mxu0 0
      %8477 = vmatpush2.bf16.msra.mxu0 %v8293
      %8478 = vmatprep.subr.bf16.mxu0 0
      %8479 = vmatpush2.bf16.msra.mxu0 %v8292
      %8480 = vmatprep.subr.bf16.mxu0 0
      %8481 = vmatpush2.bf16.msra.mxu0 %v8291
      %8482 = vmatprep.subr.bf16.mxu0 0
      %8483 = vmatpush2.bf16.msra.mxu0 %v8290
      %8484 = vmatprep.subr.bf16.mxu0 0
      %8485 = vmatpush2.bf16.msra.mxu0 %v8289
      %8486 = vmatprep.subr.bf16.mxu0 0
      %8487 = vmatpush2.bf16.msra.mxu0 %v8288
      %8488 = vmatprep.mubr.bf16.mxu0 %v7854
      %8489 = vmatmul.mubr.bf16.gmra.mxu0 %v7853
      %v8490 = vpop.f32.mrf.mxu0
      %v8491 = vadd.f32 %v8451, %v8490
      %v8492 = vpop.f32.mrf.mxu0
      %v8493 = vpop.f32.mrf.mxu0
      %v8494 = vpop.f32.mrf.mxu0
      %8495 = vdwg.mxu0
      %8496 = vmatprep.subr.bf16.mxu0 0
      %8497 = vmatpush1.bf16.msra.mxu0 %v8303
      %8498 = vmatprep.subr.bf16.mxu0 0
      %8499 = vmatpush1.bf16.msra.mxu0 %v8302
      %8500 = vmatprep.subr.bf16.mxu0 0
      %8501 = vmatpush1.bf16.msra.mxu0 %v8301
      %8502 = vmatprep.subr.bf16.mxu0 0
      %8503 = vmatpush1.bf16.msra.mxu0 %v8300
      %8504 = vmatprep.subr.bf16.mxu0 0
      %8505 = vmatpush1.bf16.msra.mxu0 %v8299
      %8506 = vmatprep.subr.bf16.mxu0 0
      %8507 = vmatpush1.bf16.msra.mxu0 %v8298
      %8508 = vmatprep.subr.bf16.mxu0 0
      %8509 = vmatpush1.bf16.msra.mxu0 %v8297
      %8510 = vmatprep.subr.bf16.mxu0 0
      %8511 = vmatpush1.bf16.msra.mxu0 %v8296
      %8512 = vmatprep.subr.bf16.mxu0 0
      %8513 = vmatpush2.bf16.msra.mxu0 %v8311
      %8514 = vmatprep.subr.bf16.mxu0 0
      %8515 = vmatpush2.bf16.msra.mxu0 %v8310
      %8516 = vmatprep.subr.bf16.mxu0 0
      %8517 = vmatpush2.bf16.msra.mxu0 %v8309
      %8518 = vmatprep.subr.bf16.mxu0 0
      %8519 = vmatpush2.bf16.msra.mxu0 %v8308
      %8520 = vmatprep.subr.bf16.mxu0 0
      %8521 = vmatpush2.bf16.msra.mxu0 %v8307
      %8522 = vmatprep.subr.bf16.mxu0 0
      %8523 = vmatpush2.bf16.msra.mxu0 %v8306
      %8524 = vmatprep.subr.bf16.mxu0 0
      %8525 = vmatpush2.bf16.msra.mxu0 %v8305
      %8526 = vmatprep.subr.bf16.mxu0 0
      %8527 = vmatpush2.bf16.msra.mxu0 %v8304
      %8528 = vmatprep.mubr.bf16.mxu0 %v7856
      %8529 = vmatmul.mubr.bf16.gmra.mxu0 %v7855
      %v8530 = vpop.f32.mrf.mxu0
      %v8531 = vadd.f32 %v8491, %v8530
      %v8532 = vpop.f32.mrf.mxu0
      %v8533 = vpop.f32.mrf.mxu0
      %v8534 = vpop.f32.mrf.mxu0
      %8535 = vdwg.mxu0
      %8536 = vst [vmem:[#allocation14] sm:$0x3] %v8531
    $region61: #{_reid_forward.1} parent=1 // pred_fallthru
      _
    // Predicated region
    $region62: #{_reid_forward.1} parent=1 // pred_check
      _
    $region63: #{_reid_forward.1} parent=1 // pred_check_branch
      %8538 = sbr.rel (0) target = $region65
    $region64: #{_reid_forward.1} parent=1 // pred_region
      %s8540 = ssub.s32 32, 32
      %8541 = vsyncadd [#allocation5], %s8540
      %s8543 = sshll.u32 [#allocation14], 4
      %s8544 = int_to_ptr.vmem [resolvable:$true] %s8543
      %8546 = dma.vmem_to_hbm [thread:$0]  %s8544, 32, %s7, [#allocation5]
    $region65: #{_reid_forward.1} parent=1 // pred_fallthru
      _
    // Predicated region
    $region66: #{_reid_forward.1} parent=1 // pred_check
      _
    $region67: #{_reid_forward.1} parent=1 // pred_check_branch
      %8548 = sbr.rel (0) target = $region69
    $region68: #{_reid_forward.1} parent=1 // pred_region
      %8549 = dma.done [#allocation5], 32
    $region69: #{_reid_forward.1} parent=1 // pred_fallthru
      _
    %8550 = vsyncpa [#allocation4], 1
    %8551 = vsyncpa [#allocation7], 1
    %8552 = vsyncpa [#allocation10], 1
    %8553 = vsyncpa [#allocation13], 1
    %8554 = vsyncpa [#allocation5], 1

</llo_original>
